<compile_context>
chip_gen: v6e
topology: v6e:2x2x1
jax: 0.10.0
libtpu: 0.0.40
codegen_flags: <defaults>
</compile_context>

<pallas_src>
import jax
import jax.numpy as jnp
from jax import lax
from jax.experimental import pallas as pl
from jax.experimental.pallas import tpu as pltpu


# ----------------------------------------------------------------------------
# Fused Pallas kernel
# ----------------------------------------------------------------------------
def _build_kernel(N, C, S, V, L):
    """Builds the fused DQN forward kernel (all sizes static Python ints).

    N: batch, C: board_size (= conv channels), S: input spatial (= C + 1),
    V: valid conv output spatial (= C - 1), L: full-width row count.
    Activation layout: 2-D (rows, channels); row = n*S*S + y*S + x.
    """
    SS = S * S
    OFF = S + 1      # row shift that realises the (1, 1) zero padding of pad=1
    NT = V * V       # number of fc1 "taps" (flattened spatial positions)

    def kernel(x_ref, mask_ref, w1_ref, b1_ref, w2_ref, b2_ref, w3_ref, b3_ref,
               wf1_ref, bf1_ref, wf2_ref, bf2_ref, o_ref, pad_ref):
        mask = mask_ref[...]                                     # (L, 1)

        # ---- conv1 (Cin=1, pad=0): 9 taps, broadcast MAC on the VPU --------
        acc = jnp.zeros((L, C), jnp.float32)
        for ky in range(3):
            for kx in range(3):
                off = ky * S + kx
                acc = acc + x_ref[off:off + L, :] * w1_ref[ky * 3 + kx]
        a1 = jnp.maximum(acc + b1_ref[...], 0.0) * mask

        # In-kernel pad=1: pre-zero the padded grid once; store valid rows
        # shifted by (+1, +1) == +OFF rows.  Untouched head/tail rows stay 0
        # and act as the zero padding for every later read.
        pad_ref[...] = jnp.zeros(pad_ref.shape, jnp.float32)
        pad_ref[OFF:OFF + L, :] = a1

        # ---- conv2 / conv3 (Cin=C, pad=1): 9 taps of (L,C)@(C,C) MXU dots --
        def conv_cc(w_ref, b_ref):
            acc = jnp.zeros((L, C), jnp.float32)
            for ky in range(3):
                for kx in range(3):
                    off = ky * S + kx
                    acc = acc + jnp.dot(pad_ref[off:off + L, :],
                                        w_ref[ky * 3 + kx],
                                        preferred_element_type=jnp.float32)
            return jnp.maximum(acc + b_ref[...], 0.0)

        a2 = conv_cc(w2_ref, b2_ref) * mask
        pad_ref[OFF:OFF + L, :] = a2
        a3 = conv_cc(w3_ref, b3_ref)      # no mask: only valid rows read below
        pad_ref[OFF:OFF + L, :] = a3

        # ---- fc1 (flatten folded into weight taps), batched over samples ---
        # fc1 == a VxV "valid conv" with 128 outputs evaluated at (y, x)=(0,0);
        # the PyTorch (C,H,W) flatten order is baked into wf1 at prep time.
        # Each tap: gather the N sample rows -> one (N, C) @ (C, 128) MXU dot.
        h = jnp.broadcast_to(bf1_ref[...], (N, bf1_ref.shape[1]))   # bias init
        for q in range(NT):
            tap = (q // V) * S + (q % V)
            rows = jnp.concatenate(
                [pad_ref[OFF + n * SS + tap:OFF + n * SS + tap + 1, :]
                 for n in range(N)], axis=0)                     # (N, C)
            h = h + jnp.dot(rows, wf1_ref[q],
                            preferred_element_type=jnp.float32)
        h = jnp.maximum(h, 0.0)                                  # (N, 128)

        # ---- fc2: single batched dot, single output store ------------------
        y = jnp.dot(h, wf2_ref[...], preferred_element_type=jnp.float32)
        o_ref[...] = jnp.maximum(y + bf2_ref[...], 0.0)

    return kernel


# ----------------------------------------------------------------------------
# One-time parameter preparation (hoisted out of the per-call path)
# ----------------------------------------------------------------------------
def prepare_params(params):
    """Relayout PyTorch-layout (OIHW / [out, in]) params into tap-major form."""
    f32 = jnp.float32
    B = params["conv1_b"].shape[0]
    V = B - 1
    H = params["fc1_b"].shape[0]          # 128

    def conv_taps(w):                     # (Cout, Cin, 3, 3) -> (9, Cin, Cout)
        cout, cin = w.shape[0], w.shape[1]
        return jnp.transpose(w, (2, 3, 1, 0)).reshape(9, cin, cout).astype(f32)

    # fc1: (H, B*V*V) with PyTorch flatten index j = c*V*V + y*V + x
    #   -> taps (V*V, B, H): wf1[y*V + x, c, k] = fc1_w[k, j]
    wf1 = params["fc1_w"].reshape(H, B, V, V)
    wf1 = jnp.transpose(wf1, (2, 3, 1, 0)).reshape(V * V, B, H).astype(f32)

    return {
        "w1": conv_taps(params["conv1_w"]),
        "b1": params["conv1_b"].reshape(1, B).astype(f32),
        "w2": conv_taps(params["conv2_w"]),
        "b2": params["conv2_b"].reshape(1, B).astype(f32),
        "w3": conv_taps(params["conv3_w"]),
        "b3": params["conv3_b"].reshape(1, B).astype(f32),
        "wf1": wf1,
        "bf1": params["fc1_b"].reshape(1, H).astype(f32),
        "wf2": params["fc2_w"].T.astype(f32),
        "bf2": params["fc2_b"].reshape(1, B * B).astype(f32),
    }


# ----------------------------------------------------------------------------
# Fused DQN forward (single pallas_call)
# ----------------------------------------------------------------------------
def dqn_forward(prepped, x_nchw):
    N = x_nchw.shape[0]
    S = x_nchw.shape[2]                   # board_size + 1
    C = prepped["b1"].shape[1]            # board_size (= conv channels)
    V = S - 2                             # valid conv output spatial
    SS = S * S
    L = (N - 1) * SS + (V - 1) * S + V    # rows of each full-width conv result

    # Row-major (n, y, x) grid-rows x channels layout of the 1-channel input.
    x2d = x_nchw.astype(jnp.float32).reshape(N * SS, 1)

    # {0,1} mask of rows whose (y, x) is a valid conv output (trace-time const).
    rows = jnp.arange(L)
    local = rows % SS
    mask = (((local // S) < V) & ((local % S) < V)).astype(jnp.float32)[:, None]

    # TODO(synk): for large serving batches, add a batch grid axis with
    # dimension_semantics=("parallel",) instead of the static in-kernel batch
    # handling used here for tiny N.
    kernel = _build_kernel(N, C, S, V, L)
    vmem = pl.BlockSpec(memory_space=pltpu.MemorySpace.VMEM)
    return pl.pallas_call(
        kernel,
        out_shape=jax.ShapeDtypeStruct((N, C * C), jnp.float32),
        in_specs=[vmem] * 12,
        out_specs=vmem,
        scratch_shapes=[pltpu.VMEM((N * SS, C), jnp.float32)],
    )(x2d, mask,
      prepped["w1"], prepped["b1"], prepped["w2"], prepped["b2"],
      prepped["w3"], prepped["b3"], prepped["wf1"], prepped["bf1"],
      prepped["wf2"], prepped["bf2"])


# ----------------------------------------------------------------------------
# Pure-JAX reference (for correctness check)
# ----------------------------------------------------------------------------
def dqn_reference(params, x_nchw):
    def conv(x, w, b, pad):
        y = lax.conv_general_dilated(
            x, w, (1, 1), [(pad, pad), (pad, pad)],
            dimension_numbers=("NCHW", "OIHW", "NCHW"))
        return jax.nn.relu(y + b[None, :, None, None])

    x = x_nchw.astype(jnp.float32)
    x = conv(x, params["conv1_w"], params["conv1_b"], 0)
    x = conv(x, params["conv2_w"], params["conv2_b"], 1)
    x = conv(x, params["conv3_w"], params["conv3_b"], 1)
    x = x.reshape(x.shape[0], -1)
    x = jax.nn.relu(x @ params["fc1_w"].T + params["fc1_b"])
    x = jax.nn.relu(x @ params["fc2_w"].T + params["fc2_b"])
    return x


# ----------------------------------------------------------------------------
# Deterministic parameter init (PyTorch default-ish uniform(-1/sqrt(fan_in), .))
# ----------------------------------------------------------------------------
def init_params(key, board_size):
    B = board_size

    def u(key, shape, fan_in):
        bound = 1.0 / jnp.sqrt(jnp.float32(fan_in))
        return jax.random.uniform(key, shape, jnp.float32, -bound, bound)

    ks = jax.random.split(key, 10)
    feat = (B - 1) * (B - 1) * B
    return {
        "conv1_w": u(ks[0], (B, 1, 3, 3), 1 * 9),
        "conv1_b": u(ks[1], (B,), 1 * 9),
        "conv2_w": u(ks[2], (B, B, 3, 3), B * 9),
        "conv2_b": u(ks[3], (B,), B * 9),
        "conv3_w": u(ks[4], (B, B, 3, 3), B * 9),
        "conv3_b": u(ks[5], (B,), B * 9),
        "fc1_w": u(ks[6], (128, feat), feat),
        "fc1_b": u(ks[7], (128,), feat),
        "fc2_w": u(ks[8], (B * B, 128), 128),
        "fc2_b": u(ks[9], (B * B,), 128),
    }


if __name__ == "__main__":
    board_size = 6
    batch = 2
    spatial = board_size + 1  # conv1(pad=0) output = board_size-1, matches fc1

    key = jax.random.PRNGKey(0)
    k_param, k_x = jax.random.split(key)
    params = init_params(k_param, board_size)
    x = jax.random.normal(k_x, (batch, 1, spatial, spatial), jnp.float32)

    prepped = prepare_params(params)          # one-time weight relayout
    fwd = jax.jit(dqn_forward)
    out = jax.block_until_ready(fwd(prepped, x))

    ref = jax.block_until_ready(dqn_reference(params, x))
    assert out.shape == (batch, board_size * board_size)
    max_err = float(jnp.max(jnp.abs(out - ref)))
    assert max_err < 2e-4, f"mismatch vs reference: {max_err}"

    print("KERNEL_OK")
</pallas_src>

<mosaic_0001>
module attributes {stable_mosaic.version = 11 : i64} {
  func.func @kernel(%arg0: memref<98x1xf32, #tpu.memory_space<vmem>>, %arg1: memref<82x1xf32, #tpu.memory_space<vmem>>, %arg2: memref<9x1x6xf32, #tpu.memory_space<vmem>>, %arg3: memref<1x6xf32, #tpu.memory_space<vmem>>, %arg4: memref<9x6x6xf32, #tpu.memory_space<vmem>>, %arg5: memref<1x6xf32, #tpu.memory_space<vmem>>, %arg6: memref<9x6x6xf32, #tpu.memory_space<vmem>>, %arg7: memref<1x6xf32, #tpu.memory_space<vmem>>, %arg8: memref<25x6x128xf32, #tpu.memory_space<vmem>>, %arg9: memref<1x128xf32, #tpu.memory_space<vmem>>, %arg10: memref<128x36xf32, #tpu.memory_space<vmem>>, %arg11: memref<1x36xf32, #tpu.memory_space<vmem>>, %arg12: memref<2x36xf32, #tpu.memory_space<vmem>>, %arg13: memref<98x6xf32, #tpu.memory_space<vmem>>) attributes {dimension_semantics = [], scalar_prefetch = 0 : i64, scratch_operands = 1 : i64, tpu.core_type = #tpu.core_type<tc>} {
    %c0 = arith.constant 0 : index
    %c0_0 = arith.constant 0 : index
    %0 = vector.load %arg1[%c0, %c0_0] : memref<82x1xf32, #tpu.memory_space<vmem>>, vector<82x1xf32>
    %cst = arith.constant 0.000000e+00 : f32
    %1 = vector.broadcast %cst : f32 to vector<82x6xf32>
    %c0_1 = arith.constant 0 : index
    %c0_2 = arith.constant 0 : index
    %2 = vector.load %arg0[%c0_1, %c0_2] : memref<98x1xf32, #tpu.memory_space<vmem>>, vector<82x1xf32>
    %c0_3 = arith.constant 0 : index
    %c0_4 = arith.constant 0 : index
    %c0_5 = arith.constant 0 : index
    %3 = vector.load %arg2[%c0_3, %c0_4, %c0_5] : memref<9x1x6xf32, #tpu.memory_space<vmem>>, vector<1x1x6xf32>
    %4 = vector.shape_cast %3 : vector<1x1x6xf32> to vector<1x6xf32>
    %5 = vector.broadcast %2 : vector<82x1xf32> to vector<82x6xf32>
    %6 = vector.broadcast %4 : vector<1x6xf32> to vector<82x6xf32>
    %7 = arith.mulf %5, %6 : vector<82x6xf32>
    %8 = arith.addf %1, %7 : vector<82x6xf32>
    %c1 = arith.constant 1 : index
    %c0_6 = arith.constant 0 : index
    %9 = vector.load %arg0[%c1, %c0_6] : memref<98x1xf32, #tpu.memory_space<vmem>>, vector<82x1xf32>
    %c1_7 = arith.constant 1 : index
    %c0_8 = arith.constant 0 : index
    %c0_9 = arith.constant 0 : index
    %10 = vector.load %arg2[%c1_7, %c0_8, %c0_9] : memref<9x1x6xf32, #tpu.memory_space<vmem>>, vector<1x1x6xf32>
    %11 = vector.shape_cast %10 : vector<1x1x6xf32> to vector<1x6xf32>
    %12 = vector.broadcast %9 : vector<82x1xf32> to vector<82x6xf32>
    %13 = vector.broadcast %11 : vector<1x6xf32> to vector<82x6xf32>
    %14 = arith.mulf %12, %13 : vector<82x6xf32>
    %15 = arith.addf %8, %14 : vector<82x6xf32>
    %c2 = arith.constant 2 : index
    %c0_10 = arith.constant 0 : index
    %16 = vector.load %arg0[%c2, %c0_10] : memref<98x1xf32, #tpu.memory_space<vmem>>, vector<82x1xf32>
    %c2_11 = arith.constant 2 : index
    %c0_12 = arith.constant 0 : index
    %c0_13 = arith.constant 0 : index
    %17 = vector.load %arg2[%c2_11, %c0_12, %c0_13] : memref<9x1x6xf32, #tpu.memory_space<vmem>>, vector<1x1x6xf32>
    %18 = vector.shape_cast %17 : vector<1x1x6xf32> to vector<1x6xf32>
    %19 = vector.broadcast %16 : vector<82x1xf32> to vector<82x6xf32>
    %20 = vector.broadcast %18 : vector<1x6xf32> to vector<82x6xf32>
    %21 = arith.mulf %19, %20 : vector<82x6xf32>
    %22 = arith.addf %15, %21 : vector<82x6xf32>
    %c7 = arith.constant 7 : index
    %c0_14 = arith.constant 0 : index
    %23 = vector.load %arg0[%c7, %c0_14] : memref<98x1xf32, #tpu.memory_space<vmem>>, vector<82x1xf32>
    %c3 = arith.constant 3 : index
    %c0_15 = arith.constant 0 : index
    %c0_16 = arith.constant 0 : index
    %24 = vector.load %arg2[%c3, %c0_15, %c0_16] : memref<9x1x6xf32, #tpu.memory_space<vmem>>, vector<1x1x6xf32>
    %25 = vector.shape_cast %24 : vector<1x1x6xf32> to vector<1x6xf32>
    %26 = vector.broadcast %23 : vector<82x1xf32> to vector<82x6xf32>
    %27 = vector.broadcast %25 : vector<1x6xf32> to vector<82x6xf32>
    %28 = arith.mulf %26, %27 : vector<82x6xf32>
    %29 = arith.addf %22, %28 : vector<82x6xf32>
    %c8 = arith.constant 8 : index
    %c0_17 = arith.constant 0 : index
    %30 = vector.load %arg0[%c8, %c0_17] : memref<98x1xf32, #tpu.memory_space<vmem>>, vector<82x1xf32>
    %c4 = arith.constant 4 : index
    %c0_18 = arith.constant 0 : index
    %c0_19 = arith.constant 0 : index
    %31 = vector.load %arg2[%c4, %c0_18, %c0_19] : memref<9x1x6xf32, #tpu.memory_space<vmem>>, vector<1x1x6xf32>
    %32 = vector.shape_cast %31 : vector<1x1x6xf32> to vector<1x6xf32>
    %33 = vector.broadcast %30 : vector<82x1xf32> to vector<82x6xf32>
    %34 = vector.broadcast %32 : vector<1x6xf32> to vector<82x6xf32>
    %35 = arith.mulf %33, %34 : vector<82x6xf32>
    %36 = arith.addf %29, %35 : vector<82x6xf32>
    %c9 = arith.constant 9 : index
    %c0_20 = arith.constant 0 : index
    %37 = vector.load %arg0[%c9, %c0_20] : memref<98x1xf32, #tpu.memory_space<vmem>>, vector<82x1xf32>
    %c5 = arith.constant 5 : index
    %c0_21 = arith.constant 0 : index
    %c0_22 = arith.constant 0 : index
    %38 = vector.load %arg2[%c5, %c0_21, %c0_22] : memref<9x1x6xf32, #tpu.memory_space<vmem>>, vector<1x1x6xf32>
    %39 = vector.shape_cast %38 : vector<1x1x6xf32> to vector<1x6xf32>
    %40 = vector.broadcast %37 : vector<82x1xf32> to vector<82x6xf32>
    %41 = vector.broadcast %39 : vector<1x6xf32> to vector<82x6xf32>
    %42 = arith.mulf %40, %41 : vector<82x6xf32>
    %43 = arith.addf %36, %42 : vector<82x6xf32>
    %c14 = arith.constant 14 : index
    %c0_23 = arith.constant 0 : index
    %44 = vector.load %arg0[%c14, %c0_23] : memref<98x1xf32, #tpu.memory_space<vmem>>, vector<82x1xf32>
    %c6 = arith.constant 6 : index
    %c0_24 = arith.constant 0 : index
    %c0_25 = arith.constant 0 : index
    %45 = vector.load %arg2[%c6, %c0_24, %c0_25] : memref<9x1x6xf32, #tpu.memory_space<vmem>>, vector<1x1x6xf32>
    %46 = vector.shape_cast %45 : vector<1x1x6xf32> to vector<1x6xf32>
    %47 = vector.broadcast %44 : vector<82x1xf32> to vector<82x6xf32>
    %48 = vector.broadcast %46 : vector<1x6xf32> to vector<82x6xf32>
    %49 = arith.mulf %47, %48 : vector<82x6xf32>
    %50 = arith.addf %43, %49 : vector<82x6xf32>
    %c15 = arith.constant 15 : index
    %c0_26 = arith.constant 0 : index
    %51 = vector.load %arg0[%c15, %c0_26] : memref<98x1xf32, #tpu.memory_space<vmem>>, vector<82x1xf32>
    %c7_27 = arith.constant 7 : index
    %c0_28 = arith.constant 0 : index
    %c0_29 = arith.constant 0 : index
    %52 = vector.load %arg2[%c7_27, %c0_28, %c0_29] : memref<9x1x6xf32, #tpu.memory_space<vmem>>, vector<1x1x6xf32>
    %53 = vector.shape_cast %52 : vector<1x1x6xf32> to vector<1x6xf32>
    %54 = vector.broadcast %51 : vector<82x1xf32> to vector<82x6xf32>
    %55 = vector.broadcast %53 : vector<1x6xf32> to vector<82x6xf32>
    %56 = arith.mulf %54, %55 : vector<82x6xf32>
    %57 = arith.addf %50, %56 : vector<82x6xf32>
    %c16 = arith.constant 16 : index
    %c0_30 = arith.constant 0 : index
    %58 = vector.load %arg0[%c16, %c0_30] : memref<98x1xf32, #tpu.memory_space<vmem>>, vector<82x1xf32>
    %c8_31 = arith.constant 8 : index
    %c0_32 = arith.constant 0 : index
    %c0_33 = arith.constant 0 : index
    %59 = vector.load %arg2[%c8_31, %c0_32, %c0_33] : memref<9x1x6xf32, #tpu.memory_space<vmem>>, vector<1x1x6xf32>
    %60 = vector.shape_cast %59 : vector<1x1x6xf32> to vector<1x6xf32>
    %61 = vector.broadcast %58 : vector<82x1xf32> to vector<82x6xf32>
    %62 = vector.broadcast %60 : vector<1x6xf32> to vector<82x6xf32>
    %63 = arith.mulf %61, %62 : vector<82x6xf32>
    %64 = arith.addf %57, %63 : vector<82x6xf32>
    %c0_34 = arith.constant 0 : index
    %c0_35 = arith.constant 0 : index
    %65 = vector.load %arg3[%c0_34, %c0_35] : memref<1x6xf32, #tpu.memory_space<vmem>>, vector<1x6xf32>
    %66 = vector.broadcast %65 : vector<1x6xf32> to vector<82x6xf32>
    %67 = arith.addf %64, %66 : vector<82x6xf32>
    %cst_36 = arith.constant 0.000000e+00 : f32
    %68 = vector.broadcast %cst_36 : f32 to vector<82x6xf32>
    %69 = arith.maximumf %67, %68 : vector<82x6xf32>
    %70 = vector.broadcast %0 : vector<82x1xf32> to vector<82x6xf32>
    %71 = arith.mulf %69, %70 : vector<82x6xf32>
    %cst_37 = arith.constant 0.000000e+00 : f32
    %72 = vector.broadcast %cst_37 : f32 to vector<98x6xf32>
    %c0_38 = arith.constant 0 : index
    %c0_39 = arith.constant 0 : index
    %73 = vector.load %arg13[%c0_38, %c0_39] : memref<98x6xf32, #tpu.memory_space<vmem>>, vector<98x6xf32>
    tpu.vector_store %arg13[%c0_38, %c0_39], %72 {strides = array<i32>} : memref<98x6xf32, #tpu.memory_space<vmem>>, vector<98x6xf32>,
    %c8_40 = arith.constant 8 : index
    %c0_41 = arith.constant 0 : index
    %74 = vector.load %arg13[%c8_40, %c0_41] : memref<98x6xf32, #tpu.memory_space<vmem>>, vector<82x6xf32>
    tpu.vector_store %arg13[%c8_40, %c0_41], %71 {strides = array<i32>} : memref<98x6xf32, #tpu.memory_space<vmem>>, vector<82x6xf32>,
    %cst_42 = arith.constant 0.000000e+00 : f32
    %75 = vector.broadcast %cst_42 : f32 to vector<82x6xf32>
    %c0_43 = arith.constant 0 : index
    %c0_44 = arith.constant 0 : index
    %76 = vector.load %arg13[%c0_43, %c0_44] : memref<98x6xf32, #tpu.memory_space<vmem>>, vector<82x6xf32>
    %c0_45 = arith.constant 0 : index
    %c0_46 = arith.constant 0 : index
    %c0_47 = arith.constant 0 : index
    %77 = vector.load %arg4[%c0_45, %c0_46, %c0_47] : memref<9x6x6xf32, #tpu.memory_space<vmem>>, vector<1x6x6xf32>
    %78 = vector.shape_cast %77 : vector<1x6x6xf32> to vector<6x6xf32>
    %cst_48 = arith.constant dense<0.000000e+00> : vector<82x6xf32>
    %79 = tpu.matmul %76, %78, %cst_48 {dimension_numbers = #tpu.dot_dimension_numbers<[1], [0], [0], [1], [0, 0, 1, 1], [], []>} : vector<82x6xf32>, vector<6x6xf32>, vector<82x6xf32> -> vector<82x6xf32>
    %80 = arith.addf %75, %79 : vector<82x6xf32>
    %c1_49 = arith.constant 1 : index
    %c0_50 = arith.constant 0 : index
    %81 = vector.load %arg13[%c1_49, %c0_50] : memref<98x6xf32, #tpu.memory_space<vmem>>, vector<82x6xf32>
    %c1_51 = arith.constant 1 : index
    %c0_52 = arith.constant 0 : index
    %c0_53 = arith.constant 0 : index
    %82 = vector.load %arg4[%c1_51, %c0_52, %c0_53] : memref<9x6x6xf32, #tpu.memory_space<vmem>>, vector<1x6x6xf32>
    %83 = vector.shape_cast %82 : vector<1x6x6xf32> to vector<6x6xf32>
    %cst_54 = arith.constant dense<0.000000e+00> : vector<82x6xf32>
    %84 = tpu.matmul %81, %83, %cst_54 {dimension_numbers = #tpu.dot_dimension_numbers<[1], [0], [0], [1], [0, 0, 1, 1], [], []>} : vector<82x6xf32>, vector<6x6xf32>, vector<82x6xf32> -> vector<82x6xf32>
    %85 = arith.addf %80, %84 : vector<82x6xf32>
    %c2_55 = arith.constant 2 : index
    %c0_56 = arith.constant 0 : index
    %86 = vector.load %arg13[%c2_55, %c0_56] : memref<98x6xf32, #tpu.memory_space<vmem>>, vector<82x6xf32>
    %c2_57 = arith.constant 2 : index
    %c0_58 = arith.constant 0 : index
    %c0_59 = arith.constant 0 : index
    %87 = vector.load %arg4[%c2_57, %c0_58, %c0_59] : memref<9x6x6xf32, #tpu.memory_space<vmem>>, vector<1x6x6xf32>
    %88 = vector.shape_cast %87 : vector<1x6x6xf32> to vector<6x6xf32>
    %cst_60 = arith.constant dense<0.000000e+00> : vector<82x6xf32>
    %89 = tpu.matmul %86, %88, %cst_60 {dimension_numbers = #tpu.dot_dimension_numbers<[1], [0], [0], [1], [0, 0, 1, 1], [], []>} : vector<82x6xf32>, vector<6x6xf32>, vector<82x6xf32> -> vector<82x6xf32>
    %90 = arith.addf %85, %89 : vector<82x6xf32>
    %c7_61 = arith.constant 7 : index
    %c0_62 = arith.constant 0 : index
    %91 = vector.load %arg13[%c7_61, %c0_62] : memref<98x6xf32, #tpu.memory_space<vmem>>, vector<82x6xf32>
    %c3_63 = arith.constant 3 : index
    %c0_64 = arith.constant 0 : index
    %c0_65 = arith.constant 0 : index
    %92 = vector.load %arg4[%c3_63, %c0_64, %c0_65] : memref<9x6x6xf32, #tpu.memory_space<vmem>>, vector<1x6x6xf32>
    %93 = vector.shape_cast %92 : vector<1x6x6xf32> to vector<6x6xf32>
    %cst_66 = arith.constant dense<0.000000e+00> : vector<82x6xf32>
    %94 = tpu.matmul %91, %93, %cst_66 {dimension_numbers = #tpu.dot_dimension_numbers<[1], [0], [0], [1], [0, 0, 1, 1], [], []>} : vector<82x6xf32>, vector<6x6xf32>, vector<82x6xf32> -> vector<82x6xf32>
    %95 = arith.addf %90, %94 : vector<82x6xf32>
    %c8_67 = arith.constant 8 : index
    %c0_68 = arith.constant 0 : index
    %96 = vector.load %arg13[%c8_67, %c0_68] : memref<98x6xf32, #tpu.memory_space<vmem>>, vector<82x6xf32>
    %c4_69 = arith.constant 4 : index
    %c0_70 = arith.constant 0 : index
    %c0_71 = arith.constant 0 : index
    %97 = vector.load %arg4[%c4_69, %c0_70, %c0_71] : memref<9x6x6xf32, #tpu.memory_space<vmem>>, vector<1x6x6xf32>
    %98 = vector.shape_cast %97 : vector<1x6x6xf32> to vector<6x6xf32>
    %cst_72 = arith.constant dense<0.000000e+00> : vector<82x6xf32>
    %99 = tpu.matmul %96, %98, %cst_72 {dimension_numbers = #tpu.dot_dimension_numbers<[1], [0], [0], [1], [0, 0, 1, 1], [], []>} : vector<82x6xf32>, vector<6x6xf32>, vector<82x6xf32> -> vector<82x6xf32>
    %100 = arith.addf %95, %99 : vector<82x6xf32>
    %c9_73 = arith.constant 9 : index
    %c0_74 = arith.constant 0 : index
    %101 = vector.load %arg13[%c9_73, %c0_74] : memref<98x6xf32, #tpu.memory_space<vmem>>, vector<82x6xf32>
    %c5_75 = arith.constant 5 : index
    %c0_76 = arith.constant 0 : index
    %c0_77 = arith.constant 0 : index
    %102 = vector.load %arg4[%c5_75, %c0_76, %c0_77] : memref<9x6x6xf32, #tpu.memory_space<vmem>>, vector<1x6x6xf32>
    %103 = vector.shape_cast %102 : vector<1x6x6xf32> to vector<6x6xf32>
    %cst_78 = arith.constant dense<0.000000e+00> : vector<82x6xf32>
    %104 = tpu.matmul %101, %103, %cst_78 {dimension_numbers = #tpu.dot_dimension_numbers<[1], [0], [0], [1], [0, 0, 1, 1], [], []>} : vector<82x6xf32>, vector<6x6xf32>, vector<82x6xf32> -> vector<82x6xf32>
    %105 = arith.addf %100, %104 : vector<82x6xf32>
    %c14_79 = arith.constant 14 : index
    %c0_80 = arith.constant 0 : index
    %106 = vector.load %arg13[%c14_79, %c0_80] : memref<98x6xf32, #tpu.memory_space<vmem>>, vector<82x6xf32>
    %c6_81 = arith.constant 6 : index
    %c0_82 = arith.constant 0 : index
    %c0_83 = arith.constant 0 : index
    %107 = vector.load %arg4[%c6_81, %c0_82, %c0_83] : memref<9x6x6xf32, #tpu.memory_space<vmem>>, vector<1x6x6xf32>
    %108 = vector.shape_cast %107 : vector<1x6x6xf32> to vector<6x6xf32>
    %cst_84 = arith.constant dense<0.000000e+00> : vector<82x6xf32>
    %109 = tpu.matmul %106, %108, %cst_84 {dimension_numbers = #tpu.dot_dimension_numbers<[1], [0], [0], [1], [0, 0, 1, 1], [], []>} : vector<82x6xf32>, vector<6x6xf32>, vector<82x6xf32> -> vector<82x6xf32>
    %110 = arith.addf %105, %109 : vector<82x6xf32>
    %c15_85 = arith.constant 15 : index
    %c0_86 = arith.constant 0 : index
    %111 = vector.load %arg13[%c15_85, %c0_86] : memref<98x6xf32, #tpu.memory_space<vmem>>, vector<82x6xf32>
    %c7_87 = arith.constant 7 : index
    %c0_88 = arith.constant 0 : index
    %c0_89 = arith.constant 0 : index
    %112 = vector.load %arg4[%c7_87, %c0_88, %c0_89] : memref<9x6x6xf32, #tpu.memory_space<vmem>>, vector<1x6x6xf32>
    %113 = vector.shape_cast %112 : vector<1x6x6xf32> to vector<6x6xf32>
    %cst_90 = arith.constant dense<0.000000e+00> : vector<82x6xf32>
    %114 = tpu.matmul %111, %113, %cst_90 {dimension_numbers = #tpu.dot_dimension_numbers<[1], [0], [0], [1], [0, 0, 1, 1], [], []>} : vector<82x6xf32>, vector<6x6xf32>, vector<82x6xf32> -> vector<82x6xf32>
    %115 = arith.addf %110, %114 : vector<82x6xf32>
    %c16_91 = arith.constant 16 : index
    %c0_92 = arith.constant 0 : index
    %116 = vector.load %arg13[%c16_91, %c0_92] : memref<98x6xf32, #tpu.memory_space<vmem>>, vector<82x6xf32>
    %c8_93 = arith.constant 8 : index
    %c0_94 = arith.constant 0 : index
    %c0_95 = arith.constant 0 : index
    %117 = vector.load %arg4[%c8_93, %c0_94, %c0_95] : memref<9x6x6xf32, #tpu.memory_space<vmem>>, vector<1x6x6xf32>
    %118 = vector.shape_cast %117 : vector<1x6x6xf32> to vector<6x6xf32>
    %cst_96 = arith.constant dense<0.000000e+00> : vector<82x6xf32>
    %119 = tpu.matmul %116, %118, %cst_96 {dimension_numbers = #tpu.dot_dimension_numbers<[1], [0], [0], [1], [0, 0, 1, 1], [], []>} : vector<82x6xf32>, vector<6x6xf32>, vector<82x6xf32> -> vector<82x6xf32>
    %120 = arith.addf %115, %119 : vector<82x6xf32>
    %c0_97 = arith.constant 0 : index
    %c0_98 = arith.constant 0 : index
    %121 = vector.load %arg5[%c0_97, %c0_98] : memref<1x6xf32, #tpu.memory_space<vmem>>, vector<1x6xf32>
    %122 = vector.broadcast %121 : vector<1x6xf32> to vector<82x6xf32>
    %123 = arith.addf %120, %122 : vector<82x6xf32>
    %cst_99 = arith.constant 0.000000e+00 : f32
    %124 = vector.broadcast %cst_99 : f32 to vector<82x6xf32>
    %125 = arith.maximumf %123, %124 : vector<82x6xf32>
    %126 = vector.broadcast %0 : vector<82x1xf32> to vector<82x6xf32>
    %127 = arith.mulf %125, %126 : vector<82x6xf32>
    %c8_100 = arith.constant 8 : index
    %c0_101 = arith.constant 0 : index
    %128 = vector.load %arg13[%c8_100, %c0_101] : memref<98x6xf32, #tpu.memory_space<vmem>>, vector<82x6xf32>
    tpu.vector_store %arg13[%c8_100, %c0_101], %127 {strides = array<i32>} : memref<98x6xf32, #tpu.memory_space<vmem>>, vector<82x6xf32>,
    %cst_102 = arith.constant 0.000000e+00 : f32
    %129 = vector.broadcast %cst_102 : f32 to vector<82x6xf32>
    %c0_103 = arith.constant 0 : index
    %c0_104 = arith.constant 0 : index
    %130 = vector.load %arg13[%c0_103, %c0_104] : memref<98x6xf32, #tpu.memory_space<vmem>>, vector<82x6xf32>
    %c0_105 = arith.constant 0 : index
    %c0_106 = arith.constant 0 : index
    %c0_107 = arith.constant 0 : index
    %131 = vector.load %arg6[%c0_105, %c0_106, %c0_107] : memref<9x6x6xf32, #tpu.memory_space<vmem>>, vector<1x6x6xf32>
    %132 = vector.shape_cast %131 : vector<1x6x6xf32> to vector<6x6xf32>
    %cst_108 = arith.constant dense<0.000000e+00> : vector<82x6xf32>
    %133 = tpu.matmul %130, %132, %cst_108 {dimension_numbers = #tpu.dot_dimension_numbers<[1], [0], [0], [1], [0, 0, 1, 1], [], []>} : vector<82x6xf32>, vector<6x6xf32>, vector<82x6xf32> -> vector<82x6xf32>
    %134 = arith.addf %129, %133 : vector<82x6xf32>
    %c1_109 = arith.constant 1 : index
    %c0_110 = arith.constant 0 : index
    %135 = vector.load %arg13[%c1_109, %c0_110] : memref<98x6xf32, #tpu.memory_space<vmem>>, vector<82x6xf32>
    %c1_111 = arith.constant 1 : index
    %c0_112 = arith.constant 0 : index
    %c0_113 = arith.constant 0 : index
    %136 = vector.load %arg6[%c1_111, %c0_112, %c0_113] : memref<9x6x6xf32, #tpu.memory_space<vmem>>, vector<1x6x6xf32>
    %137 = vector.shape_cast %136 : vector<1x6x6xf32> to vector<6x6xf32>
    %cst_114 = arith.constant dense<0.000000e+00> : vector<82x6xf32>
    %138 = tpu.matmul %135, %137, %cst_114 {dimension_numbers = #tpu.dot_dimension_numbers<[1], [0], [0], [1], [0, 0, 1, 1], [], []>} : vector<82x6xf32>, vector<6x6xf32>, vector<82x6xf32> -> vector<82x6xf32>
    %139 = arith.addf %134, %138 : vector<82x6xf32>
    %c2_115 = arith.constant 2 : index
    %c0_116 = arith.constant 0 : index
    %140 = vector.load %arg13[%c2_115, %c0_116] : memref<98x6xf32, #tpu.memory_space<vmem>>, vector<82x6xf32>
    %c2_117 = arith.constant 2 : index
    %c0_118 = arith.constant 0 : index
    %c0_119 = arith.constant 0 : index
    %141 = vector.load %arg6[%c2_117, %c0_118, %c0_119] : memref<9x6x6xf32, #tpu.memory_space<vmem>>, vector<1x6x6xf32>
    %142 = vector.shape_cast %141 : vector<1x6x6xf32> to vector<6x6xf32>
    %cst_120 = arith.constant dense<0.000000e+00> : vector<82x6xf32>
    %143 = tpu.matmul %140, %142, %cst_120 {dimension_numbers = #tpu.dot_dimension_numbers<[1], [0], [0], [1], [0, 0, 1, 1], [], []>} : vector<82x6xf32>, vector<6x6xf32>, vector<82x6xf32> -> vector<82x6xf32>
    %144 = arith.addf %139, %143 : vector<82x6xf32>
    %c7_121 = arith.constant 7 : index
    %c0_122 = arith.constant 0 : index
    %145 = vector.load %arg13[%c7_121, %c0_122] : memref<98x6xf32, #tpu.memory_space<vmem>>, vector<82x6xf32>
    %c3_123 = arith.constant 3 : index
    %c0_124 = arith.constant 0 : index
    %c0_125 = arith.constant 0 : index
    %146 = vector.load %arg6[%c3_123, %c0_124, %c0_125] : memref<9x6x6xf32, #tpu.memory_space<vmem>>, vector<1x6x6xf32>
    %147 = vector.shape_cast %146 : vector<1x6x6xf32> to vector<6x6xf32>
    %cst_126 = arith.constant dense<0.000000e+00> : vector<82x6xf32>
    %148 = tpu.matmul %145, %147, %cst_126 {dimension_numbers = #tpu.dot_dimension_numbers<[1], [0], [0], [1], [0, 0, 1, 1], [], []>} : vector<82x6xf32>, vector<6x6xf32>, vector<82x6xf32> -> vector<82x6xf32>
    %149 = arith.addf %144, %148 : vector<82x6xf32>
    %c8_127 = arith.constant 8 : index
    %c0_128 = arith.constant 0 : index
    %150 = vector.load %arg13[%c8_127, %c0_128] : memref<98x6xf32, #tpu.memory_space<vmem>>, vector<82x6xf32>
    %c4_129 = arith.constant 4 : index
    %c0_130 = arith.constant 0 : index
    %c0_131 = arith.constant 0 : index
    %151 = vector.load %arg6[%c4_129, %c0_130, %c0_131] : memref<9x6x6xf32, #tpu.memory_space<vmem>>, vector<1x6x6xf32>
    %152 = vector.shape_cast %151 : vector<1x6x6xf32> to vector<6x6xf32>
    %cst_132 = arith.constant dense<0.000000e+00> : vector<82x6xf32>
    %153 = tpu.matmul %150, %152, %cst_132 {dimension_numbers = #tpu.dot_dimension_numbers<[1], [0], [0], [1], [0, 0, 1, 1], [], []>} : vector<82x6xf32>, vector<6x6xf32>, vector<82x6xf32> -> vector<82x6xf32>
    %154 = arith.addf %149, %153 : vector<82x6xf32>
    %c9_133 = arith.constant 9 : index
    %c0_134 = arith.constant 0 : index
    %155 = vector.load %arg13[%c9_133, %c0_134] : memref<98x6xf32, #tpu.memory_space<vmem>>, vector<82x6xf32>
    %c5_135 = arith.constant 5 : index
    %c0_136 = arith.constant 0 : index
    %c0_137 = arith.constant 0 : index
    %156 = vector.load %arg6[%c5_135, %c0_136, %c0_137] : memref<9x6x6xf32, #tpu.memory_space<vmem>>, vector<1x6x6xf32>
    %157 = vector.shape_cast %156 : vector<1x6x6xf32> to vector<6x6xf32>
    %cst_138 = arith.constant dense<0.000000e+00> : vector<82x6xf32>
    %158 = tpu.matmul %155, %157, %cst_138 {dimension_numbers = #tpu.dot_dimension_numbers<[1], [0], [0], [1], [0, 0, 1, 1], [], []>} : vector<82x6xf32>, vector<6x6xf32>, vector<82x6xf32> -> vector<82x6xf32>
    %159 = arith.addf %154, %158 : vector<82x6xf32>
    %c14_139 = arith.constant 14 : index
    %c0_140 = arith.constant 0 : index
    %160 = vector.load %arg13[%c14_139, %c0_140] : memref<98x6xf32, #tpu.memory_space<vmem>>, vector<82x6xf32>
    %c6_141 = arith.constant 6 : index
    %c0_142 = arith.constant 0 : index
    %c0_143 = arith.constant 0 : index
    %161 = vector.load %arg6[%c6_141, %c0_142, %c0_143] : memref<9x6x6xf32, #tpu.memory_space<vmem>>, vector<1x6x6xf32>
    %162 = vector.shape_cast %161 : vector<1x6x6xf32> to vector<6x6xf32>
    %cst_144 = arith.constant dense<0.000000e+00> : vector<82x6xf32>
    %163 = tpu.matmul %160, %162, %cst_144 {dimension_numbers = #tpu.dot_dimension_numbers<[1], [0], [0], [1], [0, 0, 1, 1], [], []>} : vector<82x6xf32>, vector<6x6xf32>, vector<82x6xf32> -> vector<82x6xf32>
    %164 = arith.addf %159, %163 : vector<82x6xf32>
    %c15_145 = arith.constant 15 : index
    %c0_146 = arith.constant 0 : index
    %165 = vector.load %arg13[%c15_145, %c0_146] : memref<98x6xf32, #tpu.memory_space<vmem>>, vector<82x6xf32>
    %c7_147 = arith.constant 7 : index
    %c0_148 = arith.constant 0 : index
    %c0_149 = arith.constant 0 : index
    %166 = vector.load %arg6[%c7_147, %c0_148, %c0_149] : memref<9x6x6xf32, #tpu.memory_space<vmem>>, vector<1x6x6xf32>
    %167 = vector.shape_cast %166 : vector<1x6x6xf32> to vector<6x6xf32>
    %cst_150 = arith.constant dense<0.000000e+00> : vector<82x6xf32>
    %168 = tpu.matmul %165, %167, %cst_150 {dimension_numbers = #tpu.dot_dimension_numbers<[1], [0], [0], [1], [0, 0, 1, 1], [], []>} : vector<82x6xf32>, vector<6x6xf32>, vector<82x6xf32> -> vector<82x6xf32>
    %169 = arith.addf %164, %168 : vector<82x6xf32>
    %c16_151 = arith.constant 16 : index
    %c0_152 = arith.constant 0 : index
    %170 = vector.load %arg13[%c16_151, %c0_152] : memref<98x6xf32, #tpu.memory_space<vmem>>, vector<82x6xf32>
    %c8_153 = arith.constant 8 : index
    %c0_154 = arith.constant 0 : index
    %c0_155 = arith.constant 0 : index
    %171 = vector.load %arg6[%c8_153, %c0_154, %c0_155] : memref<9x6x6xf32, #tpu.memory_space<vmem>>, vector<1x6x6xf32>
    %172 = vector.shape_cast %171 : vector<1x6x6xf32> to vector<6x6xf32>
    %cst_156 = arith.constant dense<0.000000e+00> : vector<82x6xf32>
    %173 = tpu.matmul %170, %172, %cst_156 {dimension_numbers = #tpu.dot_dimension_numbers<[1], [0], [0], [1], [0, 0, 1, 1], [], []>} : vector<82x6xf32>, vector<6x6xf32>, vector<82x6xf32> -> vector<82x6xf32>
    %174 = arith.addf %169, %173 : vector<82x6xf32>
    %c0_157 = arith.constant 0 : index
    %c0_158 = arith.constant 0 : index
    %175 = vector.load %arg7[%c0_157, %c0_158] : memref<1x6xf32, #tpu.memory_space<vmem>>, vector<1x6xf32>
    %176 = vector.broadcast %175 : vector<1x6xf32> to vector<82x6xf32>
    %177 = arith.addf %174, %176 : vector<82x6xf32>
    %cst_159 = arith.constant 0.000000e+00 : f32
    %178 = vector.broadcast %cst_159 : f32 to vector<82x6xf32>
    %179 = arith.maximumf %177, %178 : vector<82x6xf32>
    %c8_160 = arith.constant 8 : index
    %c0_161 = arith.constant 0 : index
    %180 = vector.load %arg13[%c8_160, %c0_161] : memref<98x6xf32, #tpu.memory_space<vmem>>, vector<82x6xf32>
    tpu.vector_store %arg13[%c8_160, %c0_161], %179 {strides = array<i32>} : memref<98x6xf32, #tpu.memory_space<vmem>>, vector<82x6xf32>,
    %c0_162 = arith.constant 0 : index
    %c0_163 = arith.constant 0 : index
    %181 = vector.load %arg9[%c0_162, %c0_163] : memref<1x128xf32, #tpu.memory_space<vmem>>, vector<1x128xf32>
    %182 = vector.shape_cast %181 : vector<1x128xf32> to vector<1x128xf32>
    %183 = vector.broadcast %182 : vector<1x128xf32> to vector<2x128xf32>
    %c8_164 = arith.constant 8 : index
    %c0_165 = arith.constant 0 : index
    %184 = vector.load %arg13[%c8_164, %c0_165] : memref<98x6xf32, #tpu.memory_space<vmem>>, vector<1x6xf32>
    %c57 = arith.constant 57 : index
    %c0_166 = arith.constant 0 : index
    %185 = vector.load %arg13[%c57, %c0_166] : memref<98x6xf32, #tpu.memory_space<vmem>>, vector<1x6xf32>
    %186 = tpu.concatenate %184, %185 in 0 : vector<1x6xf32>, vector<1x6xf32> -> vector<2x6xf32>
    %c0_167 = arith.constant 0 : index
    %c0_168 = arith.constant 0 : index
    %c0_169 = arith.constant 0 : index
    %187 = vector.load %arg8[%c0_167, %c0_168, %c0_169] : memref<25x6x128xf32, #tpu.memory_space<vmem>>, vector<1x6x128xf32>
    %188 = vector.shape_cast %187 : vector<1x6x128xf32> to vector<6x128xf32>
    %cst_170 = arith.constant dense<0.000000e+00> : vector<2x128xf32>
    %189 = tpu.matmul %186, %188, %cst_170 {dimension_numbers = #tpu.dot_dimension_numbers<[1], [0], [0], [1], [0, 0, 1, 1], [], []>} : vector<2x6xf32>, vector<6x128xf32>, vector<2x128xf32> -> vector<2x128xf32>
    %190 = arith.addf %183, %189 : vector<2x128xf32>
    %c9_171 = arith.constant 9 : index
    %c0_172 = arith.constant 0 : index
    %191 = vector.load %arg13[%c9_171, %c0_172] : memref<98x6xf32, #tpu.memory_space<vmem>>, vector<1x6xf32>
    %c58 = arith.constant 58 : index
    %c0_173 = arith.constant 0 : index
    %192 = vector.load %arg13[%c58, %c0_173] : memref<98x6xf32, #tpu.memory_space<vmem>>, vector<1x6xf32>
    %193 = tpu.concatenate %191, %192 in 0 : vector<1x6xf32>, vector<1x6xf32> -> vector<2x6xf32>
    %c1_174 = arith.constant 1 : index
    %c0_175 = arith.constant 0 : index
    %c0_176 = arith.constant 0 : index
    %194 = vector.load %arg8[%c1_174, %c0_175, %c0_176] : memref<25x6x128xf32, #tpu.memory_space<vmem>>, vector<1x6x128xf32>
    %195 = vector.shape_cast %194 : vector<1x6x128xf32> to vector<6x128xf32>
    %cst_177 = arith.constant dense<0.000000e+00> : vector<2x128xf32>
    %196 = tpu.matmul %193, %195, %cst_177 {dimension_numbers = #tpu.dot_dimension_numbers<[1], [0], [0], [1], [0, 0, 1, 1], [], []>} : vector<2x6xf32>, vector<6x128xf32>, vector<2x128xf32> -> vector<2x128xf32>
    %197 = arith.addf %190, %196 : vector<2x128xf32>
    %c10 = arith.constant 10 : index
    %c0_178 = arith.constant 0 : index
    %198 = vector.load %arg13[%c10, %c0_178] : memref<98x6xf32, #tpu.memory_space<vmem>>, vector<1x6xf32>
    %c59 = arith.constant 59 : index
    %c0_179 = arith.constant 0 : index
    %199 = vector.load %arg13[%c59, %c0_179] : memref<98x6xf32, #tpu.memory_space<vmem>>, vector<1x6xf32>
    %200 = tpu.concatenate %198, %199 in 0 : vector<1x6xf32>, vector<1x6xf32> -> vector<2x6xf32>
    %c2_180 = arith.constant 2 : index
    %c0_181 = arith.constant 0 : index
    %c0_182 = arith.constant 0 : index
    %201 = vector.load %arg8[%c2_180, %c0_181, %c0_182] : memref<25x6x128xf32, #tpu.memory_space<vmem>>, vector<1x6x128xf32>
    %202 = vector.shape_cast %201 : vector<1x6x128xf32> to vector<6x128xf32>
    %cst_183 = arith.constant dense<0.000000e+00> : vector<2x128xf32>
    %203 = tpu.matmul %200, %202, %cst_183 {dimension_numbers = #tpu.dot_dimension_numbers<[1], [0], [0], [1], [0, 0, 1, 1], [], []>} : vector<2x6xf32>, vector<6x128xf32>, vector<2x128xf32> -> vector<2x128xf32>
    %204 = arith.addf %197, %203 : vector<2x128xf32>
    %c11 = arith.constant 11 : index
    %c0_184 = arith.constant 0 : index
    %205 = vector.load %arg13[%c11, %c0_184] : memref<98x6xf32, #tpu.memory_space<vmem>>, vector<1x6xf32>
    %c60 = arith.constant 60 : index
    %c0_185 = arith.constant 0 : index
    %206 = vector.load %arg13[%c60, %c0_185] : memref<98x6xf32, #tpu.memory_space<vmem>>, vector<1x6xf32>
    %207 = tpu.concatenate %205, %206 in 0 : vector<1x6xf32>, vector<1x6xf32> -> vector<2x6xf32>
    %c3_186 = arith.constant 3 : index
    %c0_187 = arith.constant 0 : index
    %c0_188 = arith.constant 0 : index
    %208 = vector.load %arg8[%c3_186, %c0_187, %c0_188] : memref<25x6x128xf32, #tpu.memory_space<vmem>>, vector<1x6x128xf32>
    %209 = vector.shape_cast %208 : vector<1x6x128xf32> to vector<6x128xf32>
    %cst_189 = arith.constant dense<0.000000e+00> : vector<2x128xf32>
    %210 = tpu.matmul %207, %209, %cst_189 {dimension_numbers = #tpu.dot_dimension_numbers<[1], [0], [0], [1], [0, 0, 1, 1], [], []>} : vector<2x6xf32>, vector<6x128xf32>, vector<2x128xf32> -> vector<2x128xf32>
    %211 = arith.addf %204, %210 : vector<2x128xf32>
    %c12 = arith.constant 12 : index
    %c0_190 = arith.constant 0 : index
    %212 = vector.load %arg13[%c12, %c0_190] : memref<98x6xf32, #tpu.memory_space<vmem>>, vector<1x6xf32>
    %c61 = arith.constant 61 : index
    %c0_191 = arith.constant 0 : index
    %213 = vector.load %arg13[%c61, %c0_191] : memref<98x6xf32, #tpu.memory_space<vmem>>, vector<1x6xf32>
    %214 = tpu.concatenate %212, %213 in 0 : vector<1x6xf32>, vector<1x6xf32> -> vector<2x6xf32>
    %c4_192 = arith.constant 4 : index
    %c0_193 = arith.constant 0 : index
    %c0_194 = arith.constant 0 : index
    %215 = vector.load %arg8[%c4_192, %c0_193, %c0_194] : memref<25x6x128xf32, #tpu.memory_space<vmem>>, vector<1x6x128xf32>
    %216 = vector.shape_cast %215 : vector<1x6x128xf32> to vector<6x128xf32>
    %cst_195 = arith.constant dense<0.000000e+00> : vector<2x128xf32>
    %217 = tpu.matmul %214, %216, %cst_195 {dimension_numbers = #tpu.dot_dimension_numbers<[1], [0], [0], [1], [0, 0, 1, 1], [], []>} : vector<2x6xf32>, vector<6x128xf32>, vector<2x128xf32> -> vector<2x128xf32>
    %218 = arith.addf %211, %217 : vector<2x128xf32>
    %c15_196 = arith.constant 15 : index
    %c0_197 = arith.constant 0 : index
    %219 = vector.load %arg13[%c15_196, %c0_197] : memref<98x6xf32, #tpu.memory_space<vmem>>, vector<1x6xf32>
    %c64 = arith.constant 64 : index
    %c0_198 = arith.constant 0 : index
    %220 = vector.load %arg13[%c64, %c0_198] : memref<98x6xf32, #tpu.memory_space<vmem>>, vector<1x6xf32>
    %221 = tpu.concatenate %219, %220 in 0 : vector<1x6xf32>, vector<1x6xf32> -> vector<2x6xf32>
    %c5_199 = arith.constant 5 : index
    %c0_200 = arith.constant 0 : index
    %c0_201 = arith.constant 0 : index
    %222 = vector.load %arg8[%c5_199, %c0_200, %c0_201] : memref<25x6x128xf32, #tpu.memory_space<vmem>>, vector<1x6x128xf32>
    %223 = vector.shape_cast %222 : vector<1x6x128xf32> to vector<6x128xf32>
    %cst_202 = arith.constant dense<0.000000e+00> : vector<2x128xf32>
    %224 = tpu.matmul %221, %223, %cst_202 {dimension_numbers = #tpu.dot_dimension_numbers<[1], [0], [0], [1], [0, 0, 1, 1], [], []>} : vector<2x6xf32>, vector<6x128xf32>, vector<2x128xf32> -> vector<2x128xf32>
    %225 = arith.addf %218, %224 : vector<2x128xf32>
    %c16_203 = arith.constant 16 : index
    %c0_204 = arith.constant 0 : index
    %226 = vector.load %arg13[%c16_203, %c0_204] : memref<98x6xf32, #tpu.memory_space<vmem>>, vector<1x6xf32>
    %c65 = arith.constant 65 : index
    %c0_205 = arith.constant 0 : index
    %227 = vector.load %arg13[%c65, %c0_205] : memref<98x6xf32, #tpu.memory_space<vmem>>, vector<1x6xf32>
    %228 = tpu.concatenate %226, %227 in 0 : vector<1x6xf32>, vector<1x6xf32> -> vector<2x6xf32>
    %c6_206 = arith.constant 6 : index
    %c0_207 = arith.constant 0 : index
    %c0_208 = arith.constant 0 : index
    %229 = vector.load %arg8[%c6_206, %c0_207, %c0_208] : memref<25x6x128xf32, #tpu.memory_space<vmem>>, vector<1x6x128xf32>
    %230 = vector.shape_cast %229 : vector<1x6x128xf32> to vector<6x128xf32>
    %cst_209 = arith.constant dense<0.000000e+00> : vector<2x128xf32>
    %231 = tpu.matmul %228, %230, %cst_209 {dimension_numbers = #tpu.dot_dimension_numbers<[1], [0], [0], [1], [0, 0, 1, 1], [], []>} : vector<2x6xf32>, vector<6x128xf32>, vector<2x128xf32> -> vector<2x128xf32>
    %232 = arith.addf %225, %231 : vector<2x128xf32>
    %c17 = arith.constant 17 : index
    %c0_210 = arith.constant 0 : index
    %233 = vector.load %arg13[%c17, %c0_210] : memref<98x6xf32, #tpu.memory_space<vmem>>, vector<1x6xf32>
    %c66 = arith.constant 66 : index
    %c0_211 = arith.constant 0 : index
    %234 = vector.load %arg13[%c66, %c0_211] : memref<98x6xf32, #tpu.memory_space<vmem>>, vector<1x6xf32>
    %235 = tpu.concatenate %233, %234 in 0 : vector<1x6xf32>, vector<1x6xf32> -> vector<2x6xf32>
    %c7_212 = arith.constant 7 : index
    %c0_213 = arith.constant 0 : index
    %c0_214 = arith.constant 0 : index
    %236 = vector.load %arg8[%c7_212, %c0_213, %c0_214] : memref<25x6x128xf32, #tpu.memory_space<vmem>>, vector<1x6x128xf32>
    %237 = vector.shape_cast %236 : vector<1x6x128xf32> to vector<6x128xf32>
    %cst_215 = arith.constant dense<0.000000e+00> : vector<2x128xf32>
    %238 = tpu.matmul %235, %237, %cst_215 {dimension_numbers = #tpu.dot_dimension_numbers<[1], [0], [0], [1], [0, 0, 1, 1], [], []>} : vector<2x6xf32>, vector<6x128xf32>, vector<2x128xf32> -> vector<2x128xf32>
    %239 = arith.addf %232, %238 : vector<2x128xf32>
    %c18 = arith.constant 18 : index
    %c0_216 = arith.constant 0 : index
    %240 = vector.load %arg13[%c18, %c0_216] : memref<98x6xf32, #tpu.memory_space<vmem>>, vector<1x6xf32>
    %c67 = arith.constant 67 : index
    %c0_217 = arith.constant 0 : index
    %241 = vector.load %arg13[%c67, %c0_217] : memref<98x6xf32, #tpu.memory_space<vmem>>, vector<1x6xf32>
    %242 = tpu.concatenate %240, %241 in 0 : vector<1x6xf32>, vector<1x6xf32> -> vector<2x6xf32>
    %c8_218 = arith.constant 8 : index
    %c0_219 = arith.constant 0 : index
    %c0_220 = arith.constant 0 : index
    %243 = vector.load %arg8[%c8_218, %c0_219, %c0_220] : memref<25x6x128xf32, #tpu.memory_space<vmem>>, vector<1x6x128xf32>
    %244 = vector.shape_cast %243 : vector<1x6x128xf32> to vector<6x128xf32>
    %cst_221 = arith.constant dense<0.000000e+00> : vector<2x128xf32>
    %245 = tpu.matmul %242, %244, %cst_221 {dimension_numbers = #tpu.dot_dimension_numbers<[1], [0], [0], [1], [0, 0, 1, 1], [], []>} : vector<2x6xf32>, vector<6x128xf32>, vector<2x128xf32> -> vector<2x128xf32>
    %246 = arith.addf %239, %245 : vector<2x128xf32>
    %c19 = arith.constant 19 : index
    %c0_222 = arith.constant 0 : index
    %247 = vector.load %arg13[%c19, %c0_222] : memref<98x6xf32, #tpu.memory_space<vmem>>, vector<1x6xf32>
    %c68 = arith.constant 68 : index
    %c0_223 = arith.constant 0 : index
    %248 = vector.load %arg13[%c68, %c0_223] : memref<98x6xf32, #tpu.memory_space<vmem>>, vector<1x6xf32>
    %249 = tpu.concatenate %247, %248 in 0 : vector<1x6xf32>, vector<1x6xf32> -> vector<2x6xf32>
    %c9_224 = arith.constant 9 : index
    %c0_225 = arith.constant 0 : index
    %c0_226 = arith.constant 0 : index
    %250 = vector.load %arg8[%c9_224, %c0_225, %c0_226] : memref<25x6x128xf32, #tpu.memory_space<vmem>>, vector<1x6x128xf32>
    %251 = vector.shape_cast %250 : vector<1x6x128xf32> to vector<6x128xf32>
    %cst_227 = arith.constant dense<0.000000e+00> : vector<2x128xf32>
    %252 = tpu.matmul %249, %251, %cst_227 {dimension_numbers = #tpu.dot_dimension_numbers<[1], [0], [0], [1], [0, 0, 1, 1], [], []>} : vector<2x6xf32>, vector<6x128xf32>, vector<2x128xf32> -> vector<2x128xf32>
    %253 = arith.addf %246, %252 : vector<2x128xf32>
    %c22 = arith.constant 22 : index
    %c0_228 = arith.constant 0 : index
    %254 = vector.load %arg13[%c22, %c0_228] : memref<98x6xf32, #tpu.memory_space<vmem>>, vector<1x6xf32>
    %c71 = arith.constant 71 : index
    %c0_229 = arith.constant 0 : index
    %255 = vector.load %arg13[%c71, %c0_229] : memref<98x6xf32, #tpu.memory_space<vmem>>, vector<1x6xf32>
    %256 = tpu.concatenate %254, %255 in 0 : vector<1x6xf32>, vector<1x6xf32> -> vector<2x6xf32>
    %c10_230 = arith.constant 10 : index
    %c0_231 = arith.constant 0 : index
    %c0_232 = arith.constant 0 : index
    %257 = vector.load %arg8[%c10_230, %c0_231, %c0_232] : memref<25x6x128xf32, #tpu.memory_space<vmem>>, vector<1x6x128xf32>
    %258 = vector.shape_cast %257 : vector<1x6x128xf32> to vector<6x128xf32>
    %cst_233 = arith.constant dense<0.000000e+00> : vector<2x128xf32>
    %259 = tpu.matmul %256, %258, %cst_233 {dimension_numbers = #tpu.dot_dimension_numbers<[1], [0], [0], [1], [0, 0, 1, 1], [], []>} : vector<2x6xf32>, vector<6x128xf32>, vector<2x128xf32> -> vector<2x128xf32>
    %260 = arith.addf %253, %259 : vector<2x128xf32>
    %c23 = arith.constant 23 : index
    %c0_234 = arith.constant 0 : index
    %261 = vector.load %arg13[%c23, %c0_234] : memref<98x6xf32, #tpu.memory_space<vmem>>, vector<1x6xf32>
    %c72 = arith.constant 72 : index
    %c0_235 = arith.constant 0 : index
    %262 = vector.load %arg13[%c72, %c0_235] : memref<98x6xf32, #tpu.memory_space<vmem>>, vector<1x6xf32>
    %263 = tpu.concatenate %261, %262 in 0 : vector<1x6xf32>, vector<1x6xf32> -> vector<2x6xf32>
    %c11_236 = arith.constant 11 : index
    %c0_237 = arith.constant 0 : index
    %c0_238 = arith.constant 0 : index
    %264 = vector.load %arg8[%c11_236, %c0_237, %c0_238] : memref<25x6x128xf32, #tpu.memory_space<vmem>>, vector<1x6x128xf32>
    %265 = vector.shape_cast %264 : vector<1x6x128xf32> to vector<6x128xf32>
    %cst_239 = arith.constant dense<0.000000e+00> : vector<2x128xf32>
    %266 = tpu.matmul %263, %265, %cst_239 {dimension_numbers = #tpu.dot_dimension_numbers<[1], [0], [0], [1], [0, 0, 1, 1], [], []>} : vector<2x6xf32>, vector<6x128xf32>, vector<2x128xf32> -> vector<2x128xf32>
    %267 = arith.addf %260, %266 : vector<2x128xf32>
    %c24 = arith.constant 24 : index
    %c0_240 = arith.constant 0 : index
    %268 = vector.load %arg13[%c24, %c0_240] : memref<98x6xf32, #tpu.memory_space<vmem>>, vector<1x6xf32>
    %c73 = arith.constant 73 : index
    %c0_241 = arith.constant 0 : index
    %269 = vector.load %arg13[%c73, %c0_241] : memref<98x6xf32, #tpu.memory_space<vmem>>, vector<1x6xf32>
    %270 = tpu.concatenate %268, %269 in 0 : vector<1x6xf32>, vector<1x6xf32> -> vector<2x6xf32>
    %c12_242 = arith.constant 12 : index
    %c0_243 = arith.constant 0 : index
    %c0_244 = arith.constant 0 : index
    %271 = vector.load %arg8[%c12_242, %c0_243, %c0_244] : memref<25x6x128xf32, #tpu.memory_space<vmem>>, vector<1x6x128xf32>
    %272 = vector.shape_cast %271 : vector<1x6x128xf32> to vector<6x128xf32>
    %cst_245 = arith.constant dense<0.000000e+00> : vector<2x128xf32>
    %273 = tpu.matmul %270, %272, %cst_245 {dimension_numbers = #tpu.dot_dimension_numbers<[1], [0], [0], [1], [0, 0, 1, 1], [], []>} : vector<2x6xf32>, vector<6x128xf32>, vector<2x128xf32> -> vector<2x128xf32>
    %274 = arith.addf %267, %273 : vector<2x128xf32>
    %c25 = arith.constant 25 : index
    %c0_246 = arith.constant 0 : index
    %275 = vector.load %arg13[%c25, %c0_246] : memref<98x6xf32, #tpu.memory_space<vmem>>, vector<1x6xf32>
    %c74 = arith.constant 74 : index
    %c0_247 = arith.constant 0 : index
    %276 = vector.load %arg13[%c74, %c0_247] : memref<98x6xf32, #tpu.memory_space<vmem>>, vector<1x6xf32>
    %277 = tpu.concatenate %275, %276 in 0 : vector<1x6xf32>, vector<1x6xf32> -> vector<2x6xf32>
    %c13 = arith.constant 13 : index
    %c0_248 = arith.constant 0 : index
    %c0_249 = arith.constant 0 : index
    %278 = vector.load %arg8[%c13, %c0_248, %c0_249] : memref<25x6x128xf32, #tpu.memory_space<vmem>>, vector<1x6x128xf32>
    %279 = vector.shape_cast %278 : vector<1x6x128xf32> to vector<6x128xf32>
    %cst_250 = arith.constant dense<0.000000e+00> : vector<2x128xf32>
    %280 = tpu.matmul %277, %279, %cst_250 {dimension_numbers = #tpu.dot_dimension_numbers<[1], [0], [0], [1], [0, 0, 1, 1], [], []>} : vector<2x6xf32>, vector<6x128xf32>, vector<2x128xf32> -> vector<2x128xf32>
    %281 = arith.addf %274, %280 : vector<2x128xf32>
    %c26 = arith.constant 26 : index
    %c0_251 = arith.constant 0 : index
    %282 = vector.load %arg13[%c26, %c0_251] : memref<98x6xf32, #tpu.memory_space<vmem>>, vector<1x6xf32>
    %c75 = arith.constant 75 : index
    %c0_252 = arith.constant 0 : index
    %283 = vector.load %arg13[%c75, %c0_252] : memref<98x6xf32, #tpu.memory_space<vmem>>, vector<1x6xf32>
    %284 = tpu.concatenate %282, %283 in 0 : vector<1x6xf32>, vector<1x6xf32> -> vector<2x6xf32>
    %c14_253 = arith.constant 14 : index
    %c0_254 = arith.constant 0 : index
    %c0_255 = arith.constant 0 : index
    %285 = vector.load %arg8[%c14_253, %c0_254, %c0_255] : memref<25x6x128xf32, #tpu.memory_space<vmem>>, vector<1x6x128xf32>
    %286 = vector.shape_cast %285 : vector<1x6x128xf32> to vector<6x128xf32>
    %cst_256 = arith.constant dense<0.000000e+00> : vector<2x128xf32>
    %287 = tpu.matmul %284, %286, %cst_256 {dimension_numbers = #tpu.dot_dimension_numbers<[1], [0], [0], [1], [0, 0, 1, 1], [], []>} : vector<2x6xf32>, vector<6x128xf32>, vector<2x128xf32> -> vector<2x128xf32>
    %288 = arith.addf %281, %287 : vector<2x128xf32>
    %c29 = arith.constant 29 : index
    %c0_257 = arith.constant 0 : index
    %289 = vector.load %arg13[%c29, %c0_257] : memref<98x6xf32, #tpu.memory_space<vmem>>, vector<1x6xf32>
    %c78 = arith.constant 78 : index
    %c0_258 = arith.constant 0 : index
    %290 = vector.load %arg13[%c78, %c0_258] : memref<98x6xf32, #tpu.memory_space<vmem>>, vector<1x6xf32>
    %291 = tpu.concatenate %289, %290 in 0 : vector<1x6xf32>, vector<1x6xf32> -> vector<2x6xf32>
    %c15_259 = arith.constant 15 : index
    %c0_260 = arith.constant 0 : index
    %c0_261 = arith.constant 0 : index
    %292 = vector.load %arg8[%c15_259, %c0_260, %c0_261] : memref<25x6x128xf32, #tpu.memory_space<vmem>>, vector<1x6x128xf32>
    %293 = vector.shape_cast %292 : vector<1x6x128xf32> to vector<6x128xf32>
    %cst_262 = arith.constant dense<0.000000e+00> : vector<2x128xf32>
    %294 = tpu.matmul %291, %293, %cst_262 {dimension_numbers = #tpu.dot_dimension_numbers<[1], [0], [0], [1], [0, 0, 1, 1], [], []>} : vector<2x6xf32>, vector<6x128xf32>, vector<2x128xf32> -> vector<2x128xf32>
    %295 = arith.addf %288, %294 : vector<2x128xf32>
    %c30 = arith.constant 30 : index
    %c0_263 = arith.constant 0 : index
    %296 = vector.load %arg13[%c30, %c0_263] : memref<98x6xf32, #tpu.memory_space<vmem>>, vector<1x6xf32>
    %c79 = arith.constant 79 : index
    %c0_264 = arith.constant 0 : index
    %297 = vector.load %arg13[%c79, %c0_264] : memref<98x6xf32, #tpu.memory_space<vmem>>, vector<1x6xf32>
    %298 = tpu.concatenate %296, %297 in 0 : vector<1x6xf32>, vector<1x6xf32> -> vector<2x6xf32>
    %c16_265 = arith.constant 16 : index
    %c0_266 = arith.constant 0 : index
    %c0_267 = arith.constant 0 : index
    %299 = vector.load %arg8[%c16_265, %c0_266, %c0_267] : memref<25x6x128xf32, #tpu.memory_space<vmem>>, vector<1x6x128xf32>
    %300 = vector.shape_cast %299 : vector<1x6x128xf32> to vector<6x128xf32>
    %cst_268 = arith.constant dense<0.000000e+00> : vector<2x128xf32>
    %301 = tpu.matmul %298, %300, %cst_268 {dimension_numbers = #tpu.dot_dimension_numbers<[1], [0], [0], [1], [0, 0, 1, 1], [], []>} : vector<2x6xf32>, vector<6x128xf32>, vector<2x128xf32> -> vector<2x128xf32>
    %302 = arith.addf %295, %301 : vector<2x128xf32>
    %c31 = arith.constant 31 : index
    %c0_269 = arith.constant 0 : index
    %303 = vector.load %arg13[%c31, %c0_269] : memref<98x6xf32, #tpu.memory_space<vmem>>, vector<1x6xf32>
    %c80 = arith.constant 80 : index
    %c0_270 = arith.constant 0 : index
    %304 = vector.load %arg13[%c80, %c0_270] : memref<98x6xf32, #tpu.memory_space<vmem>>, vector<1x6xf32>
    %305 = tpu.concatenate %303, %304 in 0 : vector<1x6xf32>, vector<1x6xf32> -> vector<2x6xf32>
    %c17_271 = arith.constant 17 : index
    %c0_272 = arith.constant 0 : index
    %c0_273 = arith.constant 0 : index
    %306 = vector.load %arg8[%c17_271, %c0_272, %c0_273] : memref<25x6x128xf32, #tpu.memory_space<vmem>>, vector<1x6x128xf32>
    %307 = vector.shape_cast %306 : vector<1x6x128xf32> to vector<6x128xf32>
    %cst_274 = arith.constant dense<0.000000e+00> : vector<2x128xf32>
    %308 = tpu.matmul %305, %307, %cst_274 {dimension_numbers = #tpu.dot_dimension_numbers<[1], [0], [0], [1], [0, 0, 1, 1], [], []>} : vector<2x6xf32>, vector<6x128xf32>, vector<2x128xf32> -> vector<2x128xf32>
    %309 = arith.addf %302, %308 : vector<2x128xf32>
    %c32 = arith.constant 32 : index
    %c0_275 = arith.constant 0 : index
    %310 = vector.load %arg13[%c32, %c0_275] : memref<98x6xf32, #tpu.memory_space<vmem>>, vector<1x6xf32>
    %c81 = arith.constant 81 : index
    %c0_276 = arith.constant 0 : index
    %311 = vector.load %arg13[%c81, %c0_276] : memref<98x6xf32, #tpu.memory_space<vmem>>, vector<1x6xf32>
    %312 = tpu.concatenate %310, %311 in 0 : vector<1x6xf32>, vector<1x6xf32> -> vector<2x6xf32>
    %c18_277 = arith.constant 18 : index
    %c0_278 = arith.constant 0 : index
    %c0_279 = arith.constant 0 : index
    %313 = vector.load %arg8[%c18_277, %c0_278, %c0_279] : memref<25x6x128xf32, #tpu.memory_space<vmem>>, vector<1x6x128xf32>
    %314 = vector.shape_cast %313 : vector<1x6x128xf32> to vector<6x128xf32>
    %cst_280 = arith.constant dense<0.000000e+00> : vector<2x128xf32>
    %315 = tpu.matmul %312, %314, %cst_280 {dimension_numbers = #tpu.dot_dimension_numbers<[1], [0], [0], [1], [0, 0, 1, 1], [], []>} : vector<2x6xf32>, vector<6x128xf32>, vector<2x128xf32> -> vector<2x128xf32>
    %316 = arith.addf %309, %315 : vector<2x128xf32>
    %c33 = arith.constant 33 : index
    %c0_281 = arith.constant 0 : index
    %317 = vector.load %arg13[%c33, %c0_281] : memref<98x6xf32, #tpu.memory_space<vmem>>, vector<1x6xf32>
    %c82 = arith.constant 82 : index
    %c0_282 = arith.constant 0 : index
    %318 = vector.load %arg13[%c82, %c0_282] : memref<98x6xf32, #tpu.memory_space<vmem>>, vector<1x6xf32>
    %319 = tpu.concatenate %317, %318 in 0 : vector<1x6xf32>, vector<1x6xf32> -> vector<2x6xf32>
    %c19_283 = arith.constant 19 : index
    %c0_284 = arith.constant 0 : index
    %c0_285 = arith.constant 0 : index
    %320 = vector.load %arg8[%c19_283, %c0_284, %c0_285] : memref<25x6x128xf32, #tpu.memory_space<vmem>>, vector<1x6x128xf32>
    %321 = vector.shape_cast %320 : vector<1x6x128xf32> to vector<6x128xf32>
    %cst_286 = arith.constant dense<0.000000e+00> : vector<2x128xf32>
    %322 = tpu.matmul %319, %321, %cst_286 {dimension_numbers = #tpu.dot_dimension_numbers<[1], [0], [0], [1], [0, 0, 1, 1], [], []>} : vector<2x6xf32>, vector<6x128xf32>, vector<2x128xf32> -> vector<2x128xf32>
    %323 = arith.addf %316, %322 : vector<2x128xf32>
    %c36 = arith.constant 36 : index
    %c0_287 = arith.constant 0 : index
    %324 = vector.load %arg13[%c36, %c0_287] : memref<98x6xf32, #tpu.memory_space<vmem>>, vector<1x6xf32>
    %c85 = arith.constant 85 : index
    %c0_288 = arith.constant 0 : index
    %325 = vector.load %arg13[%c85, %c0_288] : memref<98x6xf32, #tpu.memory_space<vmem>>, vector<1x6xf32>
    %326 = tpu.concatenate %324, %325 in 0 : vector<1x6xf32>, vector<1x6xf32> -> vector<2x6xf32>
    %c20 = arith.constant 20 : index
    %c0_289 = arith.constant 0 : index
    %c0_290 = arith.constant 0 : index
    %327 = vector.load %arg8[%c20, %c0_289, %c0_290] : memref<25x6x128xf32, #tpu.memory_space<vmem>>, vector<1x6x128xf32>
    %328 = vector.shape_cast %327 : vector<1x6x128xf32> to vector<6x128xf32>
    %cst_291 = arith.constant dense<0.000000e+00> : vector<2x128xf32>
    %329 = tpu.matmul %326, %328, %cst_291 {dimension_numbers = #tpu.dot_dimension_numbers<[1], [0], [0], [1], [0, 0, 1, 1], [], []>} : vector<2x6xf32>, vector<6x128xf32>, vector<2x128xf32> -> vector<2x128xf32>
    %330 = arith.addf %323, %329 : vector<2x128xf32>
    %c37 = arith.constant 37 : index
    %c0_292 = arith.constant 0 : index
    %331 = vector.load %arg13[%c37, %c0_292] : memref<98x6xf32, #tpu.memory_space<vmem>>, vector<1x6xf32>
    %c86 = arith.constant 86 : index
    %c0_293 = arith.constant 0 : index
    %332 = vector.load %arg13[%c86, %c0_293] : memref<98x6xf32, #tpu.memory_space<vmem>>, vector<1x6xf32>
    %333 = tpu.concatenate %331, %332 in 0 : vector<1x6xf32>, vector<1x6xf32> -> vector<2x6xf32>
    %c21 = arith.constant 21 : index
    %c0_294 = arith.constant 0 : index
    %c0_295 = arith.constant 0 : index
    %334 = vector.load %arg8[%c21, %c0_294, %c0_295] : memref<25x6x128xf32, #tpu.memory_space<vmem>>, vector<1x6x128xf32>
    %335 = vector.shape_cast %334 : vector<1x6x128xf32> to vector<6x128xf32>
    %cst_296 = arith.constant dense<0.000000e+00> : vector<2x128xf32>
    %336 = tpu.matmul %333, %335, %cst_296 {dimension_numbers = #tpu.dot_dimension_numbers<[1], [0], [0], [1], [0, 0, 1, 1], [], []>} : vector<2x6xf32>, vector<6x128xf32>, vector<2x128xf32> -> vector<2x128xf32>
    %337 = arith.addf %330, %336 : vector<2x128xf32>
    %c38 = arith.constant 38 : index
    %c0_297 = arith.constant 0 : index
    %338 = vector.load %arg13[%c38, %c0_297] : memref<98x6xf32, #tpu.memory_space<vmem>>, vector<1x6xf32>
    %c87 = arith.constant 87 : index
    %c0_298 = arith.constant 0 : index
    %339 = vector.load %arg13[%c87, %c0_298] : memref<98x6xf32, #tpu.memory_space<vmem>>, vector<1x6xf32>
    %340 = tpu.concatenate %338, %339 in 0 : vector<1x6xf32>, vector<1x6xf32> -> vector<2x6xf32>
    %c22_299 = arith.constant 22 : index
    %c0_300 = arith.constant 0 : index
    %c0_301 = arith.constant 0 : index
    %341 = vector.load %arg8[%c22_299, %c0_300, %c0_301] : memref<25x6x128xf32, #tpu.memory_space<vmem>>, vector<1x6x128xf32>
    %342 = vector.shape_cast %341 : vector<1x6x128xf32> to vector<6x128xf32>
    %cst_302 = arith.constant dense<0.000000e+00> : vector<2x128xf32>
    %343 = tpu.matmul %340, %342, %cst_302 {dimension_numbers = #tpu.dot_dimension_numbers<[1], [0], [0], [1], [0, 0, 1, 1], [], []>} : vector<2x6xf32>, vector<6x128xf32>, vector<2x128xf32> -> vector<2x128xf32>
    %344 = arith.addf %337, %343 : vector<2x128xf32>
    %c39 = arith.constant 39 : index
    %c0_303 = arith.constant 0 : index
    %345 = vector.load %arg13[%c39, %c0_303] : memref<98x6xf32, #tpu.memory_space<vmem>>, vector<1x6xf32>
    %c88 = arith.constant 88 : index
    %c0_304 = arith.constant 0 : index
    %346 = vector.load %arg13[%c88, %c0_304] : memref<98x6xf32, #tpu.memory_space<vmem>>, vector<1x6xf32>
    %347 = tpu.concatenate %345, %346 in 0 : vector<1x6xf32>, vector<1x6xf32> -> vector<2x6xf32>
    %c23_305 = arith.constant 23 : index
    %c0_306 = arith.constant 0 : index
    %c0_307 = arith.constant 0 : index
    %348 = vector.load %arg8[%c23_305, %c0_306, %c0_307] : memref<25x6x128xf32, #tpu.memory_space<vmem>>, vector<1x6x128xf32>
    %349 = vector.shape_cast %348 : vector<1x6x128xf32> to vector<6x128xf32>
    %cst_308 = arith.constant dense<0.000000e+00> : vector<2x128xf32>
    %350 = tpu.matmul %347, %349, %cst_308 {dimension_numbers = #tpu.dot_dimension_numbers<[1], [0], [0], [1], [0, 0, 1, 1], [], []>} : vector<2x6xf32>, vector<6x128xf32>, vector<2x128xf32> -> vector<2x128xf32>
    %351 = arith.addf %344, %350 : vector<2x128xf32>
    %c40 = arith.constant 40 : index
    %c0_309 = arith.constant 0 : index
    %352 = vector.load %arg13[%c40, %c0_309] : memref<98x6xf32, #tpu.memory_space<vmem>>, vector<1x6xf32>
    %c89 = arith.constant 89 : index
    %c0_310 = arith.constant 0 : index
    %353 = vector.load %arg13[%c89, %c0_310] : memref<98x6xf32, #tpu.memory_space<vmem>>, vector<1x6xf32>
    %354 = tpu.concatenate %352, %353 in 0 : vector<1x6xf32>, vector<1x6xf32> -> vector<2x6xf32>
    %c24_311 = arith.constant 24 : index
    %c0_312 = arith.constant 0 : index
    %c0_313 = arith.constant 0 : index
    %355 = vector.load %arg8[%c24_311, %c0_312, %c0_313] : memref<25x6x128xf32, #tpu.memory_space<vmem>>, vector<1x6x128xf32>
    %356 = vector.shape_cast %355 : vector<1x6x128xf32> to vector<6x128xf32>
    %cst_314 = arith.constant dense<0.000000e+00> : vector<2x128xf32>
    %357 = tpu.matmul %354, %356, %cst_314 {dimension_numbers = #tpu.dot_dimension_numbers<[1], [0], [0], [1], [0, 0, 1, 1], [], []>} : vector<2x6xf32>, vector<6x128xf32>, vector<2x128xf32> -> vector<2x128xf32>
    %358 = arith.addf %351, %357 : vector<2x128xf32>
    %cst_315 = arith.constant 0.000000e+00 : f32
    %359 = vector.broadcast %cst_315 : f32 to vector<2x128xf32>
    %360 = arith.maximumf %358, %359 : vector<2x128xf32>
    %c0_316 = arith.constant 0 : index
    %c0_317 = arith.constant 0 : index
    %361 = vector.load %arg10[%c0_316, %c0_317] : memref<128x36xf32, #tpu.memory_space<vmem>>, vector<128x36xf32>
    %cst_318 = arith.constant dense<0.000000e+00> : vector<2x36xf32>
    %362 = tpu.matmul %360, %361, %cst_318 {dimension_numbers = #tpu.dot_dimension_numbers<[1], [0], [0], [1], [0, 0, 1, 1], [], []>} : vector<2x128xf32>, vector<128x36xf32>, vector<2x36xf32> -> vector<2x36xf32>
    %c0_319 = arith.constant 0 : index
    %c0_320 = arith.constant 0 : index
    %363 = vector.load %arg11[%c0_319, %c0_320] : memref<1x36xf32, #tpu.memory_space<vmem>>, vector<1x36xf32>
    %364 = vector.broadcast %363 : vector<1x36xf32> to vector<2x36xf32>
    %365 = arith.addf %362, %364 : vector<2x36xf32>
    %cst_321 = arith.constant 0.000000e+00 : f32
    %366 = vector.broadcast %cst_321 : f32 to vector<2x36xf32>
    %367 = arith.maximumf %365, %366 : vector<2x36xf32>
    %c0_322 = arith.constant 0 : index
    %c0_323 = arith.constant 0 : index
    %368 = vector.load %arg12[%c0_322, %c0_323] : memref<2x36xf32, #tpu.memory_space<vmem>>, vector<2x36xf32>
    tpu.vector_store %arg12[%c0_322, %c0_323], %367 {strides = array<i32>} : memref<2x36xf32, #tpu.memory_space<vmem>>, vector<2x36xf32>,
    return
  }
}

</mosaic_0001>

<llo_original>
// kernel: dqn_forward.1
$region0: #{dqn_forward.1}
  #allocation0 [shape = 'u32[]', space=smem, size = 0x4, offset = 0x4, fixed_abs, tag = 'smem constant byte address 0x4 - core index']
  #allocation1 [shape = 'u32[144,128]{1,0:T(1,128)}', space=vmem, size = 0x12000, scoped, tag = 'internal scratch']
  #allocation2 [shape = 'f32[98,6]{1,0:T(8,128)}', space=vmem, size = 0xd000, scoped, tag = 'scratch operand']
  %s0 = inlined_call_operand.vmem [shape: f32[98,1], index: 0, kind: input, shape index: {}]
  %s1 = inlined_call_operand.vmem [shape: f32[82,1], index: 1, kind: input, shape index: {}]
  %s2 = inlined_call_operand.vmem [shape: f32[9,1,6], index: 2, kind: input, shape index: {}]
  %s3 = inlined_call_operand.vmem [shape: f32[1,6], index: 3, kind: input, shape index: {}]
  %s4 = inlined_call_operand.vmem [shape: f32[9,6,6], index: 4, kind: input, shape index: {}]
  %s5 = inlined_call_operand.vmem [shape: f32[1,6], index: 5, kind: input, shape index: {}]
  %s6 = inlined_call_operand.vmem [shape: f32[9,6,6], index: 6, kind: input, shape index: {}]
  %s7 = inlined_call_operand.vmem [shape: f32[1,6], index: 7, kind: input, shape index: {}]
  %s8 = inlined_call_operand.vmem [shape: f32[25,6,128], index: 8, kind: input, shape index: {}]
  %s9 = inlined_call_operand.vmem [shape: f32[1,128], index: 9, kind: input, shape index: {}]
  %s10 = inlined_call_operand.vmem [shape: f32[128,36], index: 10, kind: input, shape index: {}]
  %s11 = inlined_call_operand.vmem [shape: f32[1,36], index: 11, kind: input, shape index: {}]
  %s12 = inlined_call_operand.hbm [shape: f32[2,36], index: 12, kind: output, shape index: {}]
  %s13 = sld [smem:[#allocation0]]
  $region58: #{dqn_forward.1} parent=0
    _
  %s15 = ssub.s32 1, %s13
  %s16 = scalar_select 0, %s15, %s13
  $region1: #{dqn_forward.1} parent=0
    #allocation3 [shape = 'u8[1024]{0}', space=vmem, size = 0x400, scoped, tag = 'output window, operand 0, single buffered']
    #allocation4 [shape = 's32[1]{0}', space=sflag, size = 0x4, scoped, tag = 'scoped memory for dqn_forward.1']
    %17 = vsyncpa [#allocation4], 0
    // Predicated region
    $region2: #{dqn_forward.1} parent=1 // pred_check
      _
    $region3: #{dqn_forward.1} parent=1 // pred_check_branch
      %19 = sbr.rel (0) target = $region5
    $region4: #{dqn_forward.1} parent=1 // pred_region
      _
    $region5: #{dqn_forward.1} parent=1 // pred_fallthru
      _
    // Predicated region
    $region6: #{dqn_forward.1} parent=1 // pred_check
      _
    $region7: #{dqn_forward.1} parent=1 // pred_check_branch
      %21 = sbr.rel (0) target = $region9
    $region8: #{dqn_forward.1} parent=1 // pred_region
      _
    $region9: #{dqn_forward.1} parent=1 // pred_fallthru
      _
    // Predicated region
    $region10: #{dqn_forward.1} parent=1 // pred_check
      _
    $region11: #{dqn_forward.1} parent=1 // pred_check_branch
      %23 = sbr.rel (0) target = $region13
    $region12: #{dqn_forward.1} parent=1 // pred_region
      _
    $region13: #{dqn_forward.1} parent=1 // pred_fallthru
      _
    // Predicated region
    $region14: #{dqn_forward.1} parent=1 // pred_check
      _
    $region15: #{dqn_forward.1} parent=1 // pred_check_branch
      %25 = sbr.rel (0) target = $region17
    $region16: #{dqn_forward.1} parent=1 // pred_region
      _
    $region17: #{dqn_forward.1} parent=1 // pred_fallthru
      _
    // Predicated region
    $region18: #{dqn_forward.1} parent=1 // pred_check
      _
    $region19: #{dqn_forward.1} parent=1 // pred_check_branch
      %27 = sbr.rel (0) target = $region21
    $region20: #{dqn_forward.1} parent=1 // pred_region
      _
    $region21: #{dqn_forward.1} parent=1 // pred_fallthru
      _
    // Predicated region
    $region22: #{dqn_forward.1} parent=1 // pred_check
      _
    $region23: #{dqn_forward.1} parent=1 // pred_check_branch
      %29 = sbr.rel (0) target = $region25
    $region24: #{dqn_forward.1} parent=1 // pred_region
      _
    $region25: #{dqn_forward.1} parent=1 // pred_fallthru
      _
    // Predicated region
    $region26: #{dqn_forward.1} parent=1 // pred_check
      _
    $region27: #{dqn_forward.1} parent=1 // pred_check_branch
      %31 = sbr.rel (0) target = $region29
    $region28: #{dqn_forward.1} parent=1 // pred_region
      _
    $region29: #{dqn_forward.1} parent=1 // pred_fallthru
      _
    // Predicated region
    $region30: #{dqn_forward.1} parent=1 // pred_check
      _
    $region31: #{dqn_forward.1} parent=1 // pred_check_branch
      %33 = sbr.rel (0) target = $region33
    $region32: #{dqn_forward.1} parent=1 // pred_region
      _
    $region33: #{dqn_forward.1} parent=1 // pred_fallthru
      _
    // Predicated region
    $region34: #{dqn_forward.1} parent=1 // pred_check
      _
    $region35: #{dqn_forward.1} parent=1 // pred_check_branch
      %35 = sbr.rel (0) target = $region37
    $region36: #{dqn_forward.1} parent=1 // pred_region
      _
    $region37: #{dqn_forward.1} parent=1 // pred_fallthru
      _
    // Predicated region
    $region38: #{dqn_forward.1} parent=1 // pred_check
      _
    $region39: #{dqn_forward.1} parent=1 // pred_check_branch
      %37 = sbr.rel (0) target = $region41
    $region40: #{dqn_forward.1} parent=1 // pred_region
      _
    $region41: #{dqn_forward.1} parent=1 // pred_fallthru
      _
    // Predicated region
    $region42: #{dqn_forward.1} parent=1 // pred_check
      _
    $region43: #{dqn_forward.1} parent=1 // pred_check_branch
      %39 = sbr.rel (0) target = $region45
    $region44: #{dqn_forward.1} parent=1 // pred_region
      _
    $region45: #{dqn_forward.1} parent=1 // pred_fallthru
      _
    // Predicated region
    $region46: #{dqn_forward.1} parent=1 // pred_check
      _
    $region47: #{dqn_forward.1} parent=1 // pred_check_branch
      %41 = sbr.rel (0) target = $region49
    $region48: #{dqn_forward.1} parent=1 // pred_region
      _
    $region49: #{dqn_forward.1} parent=1 // pred_fallthru
      _
    %v42 = vld [vmem:[%s1] sm:$0xff]
    %v43 = vld [vmem:[%s1 + $0x8] sm:$0xff]
    %v44 = vld [vmem:[%s1 + $0x10] sm:$0xff]
    %v45 = vld [vmem:[%s1 + $0x18] sm:$0xff]
    %v46 = vld [vmem:[%s1 + $0x20] sm:$0xff]
    %v47 = vld [vmem:[%s1 + $0x28] sm:$0xff]
    %v48 = vld [vmem:[%s1 + $0x30] sm:$0xff]
    %v49 = vld [vmem:[%s1 + $0x38] sm:$0xff]
    %v50 = vld [vmem:[%s1 + $0x40] sm:$0xff]
    %v51 = vld [vmem:[%s1 + $0x48] sm:$0xff]
    %v52 = vld [vmem:[%s1 + $0x50] sm:$0x3]
    %v53 = vld [vmem:[%s0] sm:$0xff]
    %v54 = vld [vmem:[%s0 + $0x8] sm:$0xff]
    %v55 = vld [vmem:[%s0 + $0x10] sm:$0xff]
    %v56 = vld [vmem:[%s0 + $0x18] sm:$0xff]
    %v57 = vld [vmem:[%s0 + $0x20] sm:$0xff]
    %v58 = vld [vmem:[%s0 + $0x28] sm:$0xff]
    %v59 = vld [vmem:[%s0 + $0x30] sm:$0xff]
    %v60 = vld [vmem:[%s0 + $0x38] sm:$0xff]
    %v61 = vld [vmem:[%s0 + $0x40] sm:$0xff]
    %v62 = vld [vmem:[%s0 + $0x48] sm:$0xff]
    %v63 = vld [vmem:[%s0 + $0x50] sm:$0x3]
    %v64 = vld [vmem:[%s2] sm:$0x1]
    %66 = vset.pattern.permute.xlu0 0
    %67 = vperm.xlu0 %66, %v53
    %v68 = vpop.permute.xlu0 %67
    %71 = vset.pattern.permute.xlu0 0
    %72 = vperm.xlu0 %71, %v54
    %v73 = vpop.permute.xlu0 %72
    %76 = vset.pattern.permute.xlu0 0
    %77 = vperm.xlu0 %76, %v55
    %v78 = vpop.permute.xlu0 %77
    %81 = vset.pattern.permute.xlu0 0
    %82 = vperm.xlu0 %81, %v56
    %v83 = vpop.permute.xlu0 %82
    %86 = vset.pattern.permute.xlu0 0
    %87 = vperm.xlu0 %86, %v57
    %v88 = vpop.permute.xlu0 %87
    %91 = vset.pattern.permute.xlu0 0
    %92 = vperm.xlu0 %91, %v58
    %v93 = vpop.permute.xlu0 %92
    %96 = vset.pattern.permute.xlu0 0
    %97 = vperm.xlu0 %96, %v59
    %v98 = vpop.permute.xlu0 %97
    %101 = vset.pattern.permute.xlu0 0
    %102 = vperm.xlu0 %101, %v60
    %v103 = vpop.permute.xlu0 %102
    %106 = vset.pattern.permute.xlu0 0
    %107 = vperm.xlu0 %106, %v61
    %v108 = vpop.permute.xlu0 %107
    %111 = vset.pattern.permute.xlu0 0
    %112 = vperm.xlu0 %111, %v62
    %v113 = vpop.permute.xlu0 %112
    %116 = vset.pattern.permute.xlu0 0
    %117 = vperm.xlu0 %116, %v63
    %v118 = vpop.permute.xlu0 %117
    %v121 = vlaneseq
    %v122 = vshrl.u32 %v121, 7
    %v123 = vsub.s32 0, %v122
    %v124 = vrot.slane %v64, %v123
    %v126 = vmul.f32 %v68, %v124
    %v127 = vmul.f32 %v73, %v124
    %v128 = vmul.f32 %v78, %v124
    %v129 = vmul.f32 %v83, %v124
    %v130 = vmul.f32 %v88, %v124
    %v131 = vmul.f32 %v93, %v124
    %v132 = vmul.f32 %v98, %v124
    %v133 = vmul.f32 %v103, %v124
    %v134 = vmul.f32 %v108, %v124
    %v135 = vmul.f32 %v113, %v124
    %v136 = vmul.f32 %v118, %v124
    %v137 = vadd.f32 %v126, 0.0
    %v138 = vadd.f32 %v127, 0.0
    %v139 = vadd.f32 %v128, 0.0
    %v140 = vadd.f32 %v129, 0.0
    %v141 = vadd.f32 %v130, 0.0
    %v142 = vadd.f32 %v131, 0.0
    %v143 = vadd.f32 %v132, 0.0
    %v144 = vadd.f32 %v133, 0.0
    %v145 = vadd.f32 %v134, 0.0
    %v146 = vadd.f32 %v135, 0.0
    %v147 = vadd.f32 %v136, 0.0
    %v148 = vld [vmem:[%s0 + $0x1] sm:$0xff]
    %v149 = vld [vmem:[%s0 + $0x9] sm:$0xff]
    %v150 = vld [vmem:[%s0 + $0x11] sm:$0xff]
    %v151 = vld [vmem:[%s0 + $0x19] sm:$0xff]
    %v152 = vld [vmem:[%s0 + $0x21] sm:$0xff]
    %v153 = vld [vmem:[%s0 + $0x29] sm:$0xff]
    %v154 = vld [vmem:[%s0 + $0x31] sm:$0xff]
    %v155 = vld [vmem:[%s0 + $0x39] sm:$0xff]
    %v156 = vld [vmem:[%s0 + $0x41] sm:$0xff]
    %v157 = vld [vmem:[%s0 + $0x49] sm:$0xff]
    %v158 = vld [vmem:[%s0 + $0x51] sm:$0x3]
    %s159 = scalar_lea.vmem %s2, 1
    %v160 = vld [vmem:[%s159] sm:$0x1]
    %162 = vset.pattern.permute.xlu0 0
    %163 = vperm.xlu0 %162, %v148
    %v164 = vpop.permute.xlu0 %163
    %167 = vset.pattern.permute.xlu0 0
    %168 = vperm.xlu0 %167, %v149
    %v169 = vpop.permute.xlu0 %168
    %172 = vset.pattern.permute.xlu0 0
    %173 = vperm.xlu0 %172, %v150
    %v174 = vpop.permute.xlu0 %173
    %177 = vset.pattern.permute.xlu0 0
    %178 = vperm.xlu0 %177, %v151
    %v179 = vpop.permute.xlu0 %178
    %182 = vset.pattern.permute.xlu0 0
    %183 = vperm.xlu0 %182, %v152
    %v184 = vpop.permute.xlu0 %183
    %187 = vset.pattern.permute.xlu0 0
    %188 = vperm.xlu0 %187, %v153
    %v189 = vpop.permute.xlu0 %188
    %192 = vset.pattern.permute.xlu0 0
    %193 = vperm.xlu0 %192, %v154
    %v194 = vpop.permute.xlu0 %193
    %197 = vset.pattern.permute.xlu0 0
    %198 = vperm.xlu0 %197, %v155
    %v199 = vpop.permute.xlu0 %198
    %202 = vset.pattern.permute.xlu0 0
    %203 = vperm.xlu0 %202, %v156
    %v204 = vpop.permute.xlu0 %203
    %207 = vset.pattern.permute.xlu0 0
    %208 = vperm.xlu0 %207, %v157
    %v209 = vpop.permute.xlu0 %208
    %212 = vset.pattern.permute.xlu0 0
    %213 = vperm.xlu0 %212, %v158
    %v214 = vpop.permute.xlu0 %213
    %v217 = vlaneseq
    %v218 = vshrl.u32 %v217, 7
    %v219 = vsub.s32 0, %v218
    %v220 = vrot.slane %v160, %v219
    %v222 = vmul.f32 %v164, %v220
    %v223 = vmul.f32 %v169, %v220
    %v224 = vmul.f32 %v174, %v220
    %v225 = vmul.f32 %v179, %v220
    %v226 = vmul.f32 %v184, %v220
    %v227 = vmul.f32 %v189, %v220
    %v228 = vmul.f32 %v194, %v220
    %v229 = vmul.f32 %v199, %v220
    %v230 = vmul.f32 %v204, %v220
    %v231 = vmul.f32 %v209, %v220
    %v232 = vmul.f32 %v214, %v220
    %v233 = vadd.f32 %v137, %v222
    %v234 = vadd.f32 %v138, %v223
    %v235 = vadd.f32 %v139, %v224
    %v236 = vadd.f32 %v140, %v225
    %v237 = vadd.f32 %v141, %v226
    %v238 = vadd.f32 %v142, %v227
    %v239 = vadd.f32 %v143, %v228
    %v240 = vadd.f32 %v144, %v229
    %v241 = vadd.f32 %v145, %v230
    %v242 = vadd.f32 %v146, %v231
    %v243 = vadd.f32 %v147, %v232
    %v244 = vld [vmem:[%s0 + $0x2] sm:$0xff]
    %v245 = vld [vmem:[%s0 + $0xa] sm:$0xff]
    %v246 = vld [vmem:[%s0 + $0x12] sm:$0xff]
    %v247 = vld [vmem:[%s0 + $0x1a] sm:$0xff]
    %v248 = vld [vmem:[%s0 + $0x22] sm:$0xff]
    %v249 = vld [vmem:[%s0 + $0x2a] sm:$0xff]
    %v250 = vld [vmem:[%s0 + $0x32] sm:$0xff]
    %v251 = vld [vmem:[%s0 + $0x3a] sm:$0xff]
    %v252 = vld [vmem:[%s0 + $0x42] sm:$0xff]
    %v253 = vld [vmem:[%s0 + $0x4a] sm:$0xff]
    %v254 = vld [vmem:[%s0 + $0x52] sm:$0x3]
    %s255 = scalar_lea.vmem %s2, 2
    %v256 = vld [vmem:[%s255] sm:$0x1]
    %258 = vset.pattern.permute.xlu0 0
    %259 = vperm.xlu0 %258, %v244
    %v260 = vpop.permute.xlu0 %259
    %263 = vset.pattern.permute.xlu0 0
    %264 = vperm.xlu0 %263, %v245
    %v265 = vpop.permute.xlu0 %264
    %268 = vset.pattern.permute.xlu0 0
    %269 = vperm.xlu0 %268, %v246
    %v270 = vpop.permute.xlu0 %269
    %273 = vset.pattern.permute.xlu0 0
    %274 = vperm.xlu0 %273, %v247
    %v275 = vpop.permute.xlu0 %274
    %278 = vset.pattern.permute.xlu0 0
    %279 = vperm.xlu0 %278, %v248
    %v280 = vpop.permute.xlu0 %279
    %283 = vset.pattern.permute.xlu0 0
    %284 = vperm.xlu0 %283, %v249
    %v285 = vpop.permute.xlu0 %284
    %288 = vset.pattern.permute.xlu0 0
    %289 = vperm.xlu0 %288, %v250
    %v290 = vpop.permute.xlu0 %289
    %293 = vset.pattern.permute.xlu0 0
    %294 = vperm.xlu0 %293, %v251
    %v295 = vpop.permute.xlu0 %294
    %298 = vset.pattern.permute.xlu0 0
    %299 = vperm.xlu0 %298, %v252
    %v300 = vpop.permute.xlu0 %299
    %303 = vset.pattern.permute.xlu0 0
    %304 = vperm.xlu0 %303, %v253
    %v305 = vpop.permute.xlu0 %304
    %308 = vset.pattern.permute.xlu0 0
    %309 = vperm.xlu0 %308, %v254
    %v310 = vpop.permute.xlu0 %309
    %v313 = vlaneseq
    %v314 = vshrl.u32 %v313, 7
    %v315 = vsub.s32 0, %v314
    %v316 = vrot.slane %v256, %v315
    %v318 = vmul.f32 %v260, %v316
    %v319 = vmul.f32 %v265, %v316
    %v320 = vmul.f32 %v270, %v316
    %v321 = vmul.f32 %v275, %v316
    %v322 = vmul.f32 %v280, %v316
    %v323 = vmul.f32 %v285, %v316
    %v324 = vmul.f32 %v290, %v316
    %v325 = vmul.f32 %v295, %v316
    %v326 = vmul.f32 %v300, %v316
    %v327 = vmul.f32 %v305, %v316
    %v328 = vmul.f32 %v310, %v316
    %v329 = vadd.f32 %v233, %v318
    %v330 = vadd.f32 %v234, %v319
    %v331 = vadd.f32 %v235, %v320
    %v332 = vadd.f32 %v236, %v321
    %v333 = vadd.f32 %v237, %v322
    %v334 = vadd.f32 %v238, %v323
    %v335 = vadd.f32 %v239, %v324
    %v336 = vadd.f32 %v240, %v325
    %v337 = vadd.f32 %v241, %v326
    %v338 = vadd.f32 %v242, %v327
    %v339 = vadd.f32 %v243, %v328
    %v340 = vld [vmem:[%s0 + $0x7] sm:$0xff]
    %v341 = vld [vmem:[%s0 + $0xf] sm:$0xff]
    %v342 = vld [vmem:[%s0 + $0x17] sm:$0xff]
    %v343 = vld [vmem:[%s0 + $0x1f] sm:$0xff]
    %v344 = vld [vmem:[%s0 + $0x27] sm:$0xff]
    %v345 = vld [vmem:[%s0 + $0x2f] sm:$0xff]
    %v346 = vld [vmem:[%s0 + $0x37] sm:$0xff]
    %v347 = vld [vmem:[%s0 + $0x3f] sm:$0xff]
    %v348 = vld [vmem:[%s0 + $0x47] sm:$0xff]
    %v349 = vld [vmem:[%s0 + $0x4f] sm:$0xff]
    %v350 = vld [vmem:[%s0 + $0x57] sm:$0x3]
    %s351 = scalar_lea.vmem %s2, 3
    %v352 = vld [vmem:[%s351] sm:$0x1]
    %354 = vset.pattern.permute.xlu0 0
    %355 = vperm.xlu0 %354, %v340
    %v356 = vpop.permute.xlu0 %355
    %359 = vset.pattern.permute.xlu0 0
    %360 = vperm.xlu0 %359, %v341
    %v361 = vpop.permute.xlu0 %360
    %364 = vset.pattern.permute.xlu0 0
    %365 = vperm.xlu0 %364, %v342
    %v366 = vpop.permute.xlu0 %365
    %369 = vset.pattern.permute.xlu0 0
    %370 = vperm.xlu0 %369, %v343
    %v371 = vpop.permute.xlu0 %370
    %374 = vset.pattern.permute.xlu0 0
    %375 = vperm.xlu0 %374, %v344
    %v376 = vpop.permute.xlu0 %375
    %379 = vset.pattern.permute.xlu0 0
    %380 = vperm.xlu0 %379, %v345
    %v381 = vpop.permute.xlu0 %380
    %384 = vset.pattern.permute.xlu0 0
    %385 = vperm.xlu0 %384, %v346
    %v386 = vpop.permute.xlu0 %385
    %389 = vset.pattern.permute.xlu0 0
    %390 = vperm.xlu0 %389, %v347
    %v391 = vpop.permute.xlu0 %390
    %394 = vset.pattern.permute.xlu0 0
    %395 = vperm.xlu0 %394, %v348
    %v396 = vpop.permute.xlu0 %395
    %399 = vset.pattern.permute.xlu0 0
    %400 = vperm.xlu0 %399, %v349
    %v401 = vpop.permute.xlu0 %400
    %404 = vset.pattern.permute.xlu0 0
    %405 = vperm.xlu0 %404, %v350
    %v406 = vpop.permute.xlu0 %405
    %v409 = vlaneseq
    %v410 = vshrl.u32 %v409, 7
    %v411 = vsub.s32 0, %v410
    %v412 = vrot.slane %v352, %v411
    %v414 = vmul.f32 %v356, %v412
    %v415 = vmul.f32 %v361, %v412
    %v416 = vmul.f32 %v366, %v412
    %v417 = vmul.f32 %v371, %v412
    %v418 = vmul.f32 %v376, %v412
    %v419 = vmul.f32 %v381, %v412
    %v420 = vmul.f32 %v386, %v412
    %v421 = vmul.f32 %v391, %v412
    %v422 = vmul.f32 %v396, %v412
    %v423 = vmul.f32 %v401, %v412
    %v424 = vmul.f32 %v406, %v412
    %v425 = vadd.f32 %v329, %v414
    %v426 = vadd.f32 %v330, %v415
    %v427 = vadd.f32 %v331, %v416
    %v428 = vadd.f32 %v332, %v417
    %v429 = vadd.f32 %v333, %v418
    %v430 = vadd.f32 %v334, %v419
    %v431 = vadd.f32 %v335, %v420
    %v432 = vadd.f32 %v336, %v421
    %v433 = vadd.f32 %v337, %v422
    %v434 = vadd.f32 %v338, %v423
    %v435 = vadd.f32 %v339, %v424
    %v436 = vld [vmem:[%s0 + $0x8] sm:$0xff]
    %v437 = vld [vmem:[%s0 + $0x10] sm:$0xff]
    %v438 = vld [vmem:[%s0 + $0x18] sm:$0xff]
    %v439 = vld [vmem:[%s0 + $0x20] sm:$0xff]
    %v440 = vld [vmem:[%s0 + $0x28] sm:$0xff]
    %v441 = vld [vmem:[%s0 + $0x30] sm:$0xff]
    %v442 = vld [vmem:[%s0 + $0x38] sm:$0xff]
    %v443 = vld [vmem:[%s0 + $0x40] sm:$0xff]
    %v444 = vld [vmem:[%s0 + $0x48] sm:$0xff]
    %v445 = vld [vmem:[%s0 + $0x50] sm:$0xff]
    %v446 = vld [vmem:[%s0 + $0x58] sm:$0x3]
    %s447 = scalar_lea.vmem %s2, 4
    %v448 = vld [vmem:[%s447] sm:$0x1]
    %450 = vset.pattern.permute.xlu0 0
    %451 = vperm.xlu0 %450, %v436
    %v452 = vpop.permute.xlu0 %451
    %455 = vset.pattern.permute.xlu0 0
    %456 = vperm.xlu0 %455, %v437
    %v457 = vpop.permute.xlu0 %456
    %460 = vset.pattern.permute.xlu0 0
    %461 = vperm.xlu0 %460, %v438
    %v462 = vpop.permute.xlu0 %461
    %465 = vset.pattern.permute.xlu0 0
    %466 = vperm.xlu0 %465, %v439
    %v467 = vpop.permute.xlu0 %466
    %470 = vset.pattern.permute.xlu0 0
    %471 = vperm.xlu0 %470, %v440
    %v472 = vpop.permute.xlu0 %471
    %475 = vset.pattern.permute.xlu0 0
    %476 = vperm.xlu0 %475, %v441
    %v477 = vpop.permute.xlu0 %476
    %480 = vset.pattern.permute.xlu0 0
    %481 = vperm.xlu0 %480, %v442
    %v482 = vpop.permute.xlu0 %481
    %485 = vset.pattern.permute.xlu0 0
    %486 = vperm.xlu0 %485, %v443
    %v487 = vpop.permute.xlu0 %486
    %490 = vset.pattern.permute.xlu0 0
    %491 = vperm.xlu0 %490, %v444
    %v492 = vpop.permute.xlu0 %491
    %495 = vset.pattern.permute.xlu0 0
    %496 = vperm.xlu0 %495, %v445
    %v497 = vpop.permute.xlu0 %496
    %500 = vset.pattern.permute.xlu0 0
    %501 = vperm.xlu0 %500, %v446
    %v502 = vpop.permute.xlu0 %501
    %v505 = vlaneseq
    %v506 = vshrl.u32 %v505, 7
    %v507 = vsub.s32 0, %v506
    %v508 = vrot.slane %v448, %v507
    %v510 = vmul.f32 %v452, %v508
    %v511 = vmul.f32 %v457, %v508
    %v512 = vmul.f32 %v462, %v508
    %v513 = vmul.f32 %v467, %v508
    %v514 = vmul.f32 %v472, %v508
    %v515 = vmul.f32 %v477, %v508
    %v516 = vmul.f32 %v482, %v508
    %v517 = vmul.f32 %v487, %v508
    %v518 = vmul.f32 %v492, %v508
    %v519 = vmul.f32 %v497, %v508
    %v520 = vmul.f32 %v502, %v508
    %v521 = vadd.f32 %v425, %v510
    %v522 = vadd.f32 %v426, %v511
    %v523 = vadd.f32 %v427, %v512
    %v524 = vadd.f32 %v428, %v513
    %v525 = vadd.f32 %v429, %v514
    %v526 = vadd.f32 %v430, %v515
    %v527 = vadd.f32 %v431, %v516
    %v528 = vadd.f32 %v432, %v517
    %v529 = vadd.f32 %v433, %v518
    %v530 = vadd.f32 %v434, %v519
    %v531 = vadd.f32 %v435, %v520
    %v532 = vld [vmem:[%s0 + $0x9] sm:$0xff]
    %v533 = vld [vmem:[%s0 + $0x11] sm:$0xff]
    %v534 = vld [vmem:[%s0 + $0x19] sm:$0xff]
    %v535 = vld [vmem:[%s0 + $0x21] sm:$0xff]
    %v536 = vld [vmem:[%s0 + $0x29] sm:$0xff]
    %v537 = vld [vmem:[%s0 + $0x31] sm:$0xff]
    %v538 = vld [vmem:[%s0 + $0x39] sm:$0xff]
    %v539 = vld [vmem:[%s0 + $0x41] sm:$0xff]
    %v540 = vld [vmem:[%s0 + $0x49] sm:$0xff]
    %v541 = vld [vmem:[%s0 + $0x51] sm:$0xff]
    %v542 = vld [vmem:[%s0 + $0x59] sm:$0x3]
    %s543 = scalar_lea.vmem %s2, 5
    %v544 = vld [vmem:[%s543] sm:$0x1]
    %546 = vset.pattern.permute.xlu0 0
    %547 = vperm.xlu0 %546, %v532
    %v548 = vpop.permute.xlu0 %547
    %551 = vset.pattern.permute.xlu0 0
    %552 = vperm.xlu0 %551, %v533
    %v553 = vpop.permute.xlu0 %552
    %556 = vset.pattern.permute.xlu0 0
    %557 = vperm.xlu0 %556, %v534
    %v558 = vpop.permute.xlu0 %557
    %561 = vset.pattern.permute.xlu0 0
    %562 = vperm.xlu0 %561, %v535
    %v563 = vpop.permute.xlu0 %562
    %566 = vset.pattern.permute.xlu0 0
    %567 = vperm.xlu0 %566, %v536
    %v568 = vpop.permute.xlu0 %567
    %571 = vset.pattern.permute.xlu0 0
    %572 = vperm.xlu0 %571, %v537
    %v573 = vpop.permute.xlu0 %572
    %576 = vset.pattern.permute.xlu0 0
    %577 = vperm.xlu0 %576, %v538
    %v578 = vpop.permute.xlu0 %577
    %581 = vset.pattern.permute.xlu0 0
    %582 = vperm.xlu0 %581, %v539
    %v583 = vpop.permute.xlu0 %582
    %586 = vset.pattern.permute.xlu0 0
    %587 = vperm.xlu0 %586, %v540
    %v588 = vpop.permute.xlu0 %587
    %591 = vset.pattern.permute.xlu0 0
    %592 = vperm.xlu0 %591, %v541
    %v593 = vpop.permute.xlu0 %592
    %596 = vset.pattern.permute.xlu0 0
    %597 = vperm.xlu0 %596, %v542
    %v598 = vpop.permute.xlu0 %597
    %v601 = vlaneseq
    %v602 = vshrl.u32 %v601, 7
    %v603 = vsub.s32 0, %v602
    %v604 = vrot.slane %v544, %v603
    %v606 = vmul.f32 %v548, %v604
    %v607 = vmul.f32 %v553, %v604
    %v608 = vmul.f32 %v558, %v604
    %v609 = vmul.f32 %v563, %v604
    %v610 = vmul.f32 %v568, %v604
    %v611 = vmul.f32 %v573, %v604
    %v612 = vmul.f32 %v578, %v604
    %v613 = vmul.f32 %v583, %v604
    %v614 = vmul.f32 %v588, %v604
    %v615 = vmul.f32 %v593, %v604
    %v616 = vmul.f32 %v598, %v604
    %v617 = vadd.f32 %v521, %v606
    %v618 = vadd.f32 %v522, %v607
    %v619 = vadd.f32 %v523, %v608
    %v620 = vadd.f32 %v524, %v609
    %v621 = vadd.f32 %v525, %v610
    %v622 = vadd.f32 %v526, %v611
    %v623 = vadd.f32 %v527, %v612
    %v624 = vadd.f32 %v528, %v613
    %v625 = vadd.f32 %v529, %v614
    %v626 = vadd.f32 %v530, %v615
    %v627 = vadd.f32 %v531, %v616
    %v628 = vld [vmem:[%s0 + $0xe] sm:$0xff]
    %v629 = vld [vmem:[%s0 + $0x16] sm:$0xff]
    %v630 = vld [vmem:[%s0 + $0x1e] sm:$0xff]
    %v631 = vld [vmem:[%s0 + $0x26] sm:$0xff]
    %v632 = vld [vmem:[%s0 + $0x2e] sm:$0xff]
    %v633 = vld [vmem:[%s0 + $0x36] sm:$0xff]
    %v634 = vld [vmem:[%s0 + $0x3e] sm:$0xff]
    %v635 = vld [vmem:[%s0 + $0x46] sm:$0xff]
    %v636 = vld [vmem:[%s0 + $0x4e] sm:$0xff]
    %v637 = vld [vmem:[%s0 + $0x56] sm:$0xff]
    %v638 = vld [vmem:[%s0 + $0x5e] sm:$0x3]
    %s639 = scalar_lea.vmem %s2, 6
    %v640 = vld [vmem:[%s639] sm:$0x1]
    %642 = vset.pattern.permute.xlu0 0
    %643 = vperm.xlu0 %642, %v628
    %v644 = vpop.permute.xlu0 %643
    %647 = vset.pattern.permute.xlu0 0
    %648 = vperm.xlu0 %647, %v629
    %v649 = vpop.permute.xlu0 %648
    %652 = vset.pattern.permute.xlu0 0
    %653 = vperm.xlu0 %652, %v630
    %v654 = vpop.permute.xlu0 %653
    %657 = vset.pattern.permute.xlu0 0
    %658 = vperm.xlu0 %657, %v631
    %v659 = vpop.permute.xlu0 %658
    %662 = vset.pattern.permute.xlu0 0
    %663 = vperm.xlu0 %662, %v632
    %v664 = vpop.permute.xlu0 %663
    %667 = vset.pattern.permute.xlu0 0
    %668 = vperm.xlu0 %667, %v633
    %v669 = vpop.permute.xlu0 %668
    %672 = vset.pattern.permute.xlu0 0
    %673 = vperm.xlu0 %672, %v634
    %v674 = vpop.permute.xlu0 %673
    %677 = vset.pattern.permute.xlu0 0
    %678 = vperm.xlu0 %677, %v635
    %v679 = vpop.permute.xlu0 %678
    %682 = vset.pattern.permute.xlu0 0
    %683 = vperm.xlu0 %682, %v636
    %v684 = vpop.permute.xlu0 %683
    %687 = vset.pattern.permute.xlu0 0
    %688 = vperm.xlu0 %687, %v637
    %v689 = vpop.permute.xlu0 %688
    %692 = vset.pattern.permute.xlu0 0
    %693 = vperm.xlu0 %692, %v638
    %v694 = vpop.permute.xlu0 %693
    %v697 = vlaneseq
    %v698 = vshrl.u32 %v697, 7
    %v699 = vsub.s32 0, %v698
    %v700 = vrot.slane %v640, %v699
    %v702 = vmul.f32 %v644, %v700
    %v703 = vmul.f32 %v649, %v700
    %v704 = vmul.f32 %v654, %v700
    %v705 = vmul.f32 %v659, %v700
    %v706 = vmul.f32 %v664, %v700
    %v707 = vmul.f32 %v669, %v700
    %v708 = vmul.f32 %v674, %v700
    %v709 = vmul.f32 %v679, %v700
    %v710 = vmul.f32 %v684, %v700
    %v711 = vmul.f32 %v689, %v700
    %v712 = vmul.f32 %v694, %v700
    %v713 = vadd.f32 %v617, %v702
    %v714 = vadd.f32 %v618, %v703
    %v715 = vadd.f32 %v619, %v704
    %v716 = vadd.f32 %v620, %v705
    %v717 = vadd.f32 %v621, %v706
    %v718 = vadd.f32 %v622, %v707
    %v719 = vadd.f32 %v623, %v708
    %v720 = vadd.f32 %v624, %v709
    %v721 = vadd.f32 %v625, %v710
    %v722 = vadd.f32 %v626, %v711
    %v723 = vadd.f32 %v627, %v712
    %v724 = vld [vmem:[%s0 + $0xf] sm:$0xff]
    %v725 = vld [vmem:[%s0 + $0x17] sm:$0xff]
    %v726 = vld [vmem:[%s0 + $0x1f] sm:$0xff]
    %v727 = vld [vmem:[%s0 + $0x27] sm:$0xff]
    %v728 = vld [vmem:[%s0 + $0x2f] sm:$0xff]
    %v729 = vld [vmem:[%s0 + $0x37] sm:$0xff]
    %v730 = vld [vmem:[%s0 + $0x3f] sm:$0xff]
    %v731 = vld [vmem:[%s0 + $0x47] sm:$0xff]
    %v732 = vld [vmem:[%s0 + $0x4f] sm:$0xff]
    %v733 = vld [vmem:[%s0 + $0x57] sm:$0xff]
    %v734 = vld [vmem:[%s0 + $0x5f] sm:$0x3]
    %s735 = scalar_lea.vmem %s2, 7
    %v736 = vld [vmem:[%s735] sm:$0x1]
    %738 = vset.pattern.permute.xlu0 0
    %739 = vperm.xlu0 %738, %v724
    %v740 = vpop.permute.xlu0 %739
    %743 = vset.pattern.permute.xlu0 0
    %744 = vperm.xlu0 %743, %v725
    %v745 = vpop.permute.xlu0 %744
    %748 = vset.pattern.permute.xlu0 0
    %749 = vperm.xlu0 %748, %v726
    %v750 = vpop.permute.xlu0 %749
    %753 = vset.pattern.permute.xlu0 0
    %754 = vperm.xlu0 %753, %v727
    %v755 = vpop.permute.xlu0 %754
    %758 = vset.pattern.permute.xlu0 0
    %759 = vperm.xlu0 %758, %v728
    %v760 = vpop.permute.xlu0 %759
    %763 = vset.pattern.permute.xlu0 0
    %764 = vperm.xlu0 %763, %v729
    %v765 = vpop.permute.xlu0 %764
    %768 = vset.pattern.permute.xlu0 0
    %769 = vperm.xlu0 %768, %v730
    %v770 = vpop.permute.xlu0 %769
    %773 = vset.pattern.permute.xlu0 0
    %774 = vperm.xlu0 %773, %v731
    %v775 = vpop.permute.xlu0 %774
    %778 = vset.pattern.permute.xlu0 0
    %779 = vperm.xlu0 %778, %v732
    %v780 = vpop.permute.xlu0 %779
    %783 = vset.pattern.permute.xlu0 0
    %784 = vperm.xlu0 %783, %v733
    %v785 = vpop.permute.xlu0 %784
    %788 = vset.pattern.permute.xlu0 0
    %789 = vperm.xlu0 %788, %v734
    %v790 = vpop.permute.xlu0 %789
    %v793 = vlaneseq
    %v794 = vshrl.u32 %v793, 7
    %v795 = vsub.s32 0, %v794
    %v796 = vrot.slane %v736, %v795
    %v798 = vmul.f32 %v740, %v796
    %v799 = vmul.f32 %v745, %v796
    %v800 = vmul.f32 %v750, %v796
    %v801 = vmul.f32 %v755, %v796
    %v802 = vmul.f32 %v760, %v796
    %v803 = vmul.f32 %v765, %v796
    %v804 = vmul.f32 %v770, %v796
    %v805 = vmul.f32 %v775, %v796
    %v806 = vmul.f32 %v780, %v796
    %v807 = vmul.f32 %v785, %v796
    %v808 = vmul.f32 %v790, %v796
    %v809 = vadd.f32 %v713, %v798
    %v810 = vadd.f32 %v714, %v799
    %v811 = vadd.f32 %v715, %v800
    %v812 = vadd.f32 %v716, %v801
    %v813 = vadd.f32 %v717, %v802
    %v814 = vadd.f32 %v718, %v803
    %v815 = vadd.f32 %v719, %v804
    %v816 = vadd.f32 %v720, %v805
    %v817 = vadd.f32 %v721, %v806
    %v818 = vadd.f32 %v722, %v807
    %v819 = vadd.f32 %v723, %v808
    %v820 = vld [vmem:[%s0 + $0x10] sm:$0xff]
    %v821 = vld [vmem:[%s0 + $0x18] sm:$0xff]
    %v822 = vld [vmem:[%s0 + $0x20] sm:$0xff]
    %v823 = vld [vmem:[%s0 + $0x28] sm:$0xff]
    %v824 = vld [vmem:[%s0 + $0x30] sm:$0xff]
    %v825 = vld [vmem:[%s0 + $0x38] sm:$0xff]
    %v826 = vld [vmem:[%s0 + $0x40] sm:$0xff]
    %v827 = vld [vmem:[%s0 + $0x48] sm:$0xff]
    %v828 = vld [vmem:[%s0 + $0x50] sm:$0xff]
    %v829 = vld [vmem:[%s0 + $0x58] sm:$0xff]
    %v830 = vld [vmem:[%s0 + $0x60] sm:$0x3]
    %s831 = scalar_lea.vmem %s2, 8
    %v832 = vld [vmem:[%s831] sm:$0x1]
    %834 = vset.pattern.permute.xlu0 0
    %835 = vperm.xlu0 %834, %v820
    %v836 = vpop.permute.xlu0 %835
    %839 = vset.pattern.permute.xlu0 0
    %840 = vperm.xlu0 %839, %v821
    %v841 = vpop.permute.xlu0 %840
    %844 = vset.pattern.permute.xlu0 0
    %845 = vperm.xlu0 %844, %v822
    %v846 = vpop.permute.xlu0 %845
    %849 = vset.pattern.permute.xlu0 0
    %850 = vperm.xlu0 %849, %v823
    %v851 = vpop.permute.xlu0 %850
    %854 = vset.pattern.permute.xlu0 0
    %855 = vperm.xlu0 %854, %v824
    %v856 = vpop.permute.xlu0 %855
    %859 = vset.pattern.permute.xlu0 0
    %860 = vperm.xlu0 %859, %v825
    %v861 = vpop.permute.xlu0 %860
    %864 = vset.pattern.permute.xlu0 0
    %865 = vperm.xlu0 %864, %v826
    %v866 = vpop.permute.xlu0 %865
    %869 = vset.pattern.permute.xlu0 0
    %870 = vperm.xlu0 %869, %v827
    %v871 = vpop.permute.xlu0 %870
    %874 = vset.pattern.permute.xlu0 0
    %875 = vperm.xlu0 %874, %v828
    %v876 = vpop.permute.xlu0 %875
    %879 = vset.pattern.permute.xlu0 0
    %880 = vperm.xlu0 %879, %v829
    %v881 = vpop.permute.xlu0 %880
    %884 = vset.pattern.permute.xlu0 0
    %885 = vperm.xlu0 %884, %v830
    %v886 = vpop.permute.xlu0 %885
    %v889 = vlaneseq
    %v890 = vshrl.u32 %v889, 7
    %v891 = vsub.s32 0, %v890
    %v892 = vrot.slane %v832, %v891
    %v894 = vmul.f32 %v836, %v892
    %v895 = vmul.f32 %v841, %v892
    %v896 = vmul.f32 %v846, %v892
    %v897 = vmul.f32 %v851, %v892
    %v898 = vmul.f32 %v856, %v892
    %v899 = vmul.f32 %v861, %v892
    %v900 = vmul.f32 %v866, %v892
    %v901 = vmul.f32 %v871, %v892
    %v902 = vmul.f32 %v876, %v892
    %v903 = vmul.f32 %v881, %v892
    %v904 = vmul.f32 %v886, %v892
    %v905 = vadd.f32 %v809, %v894
    %v906 = vadd.f32 %v810, %v895
    %v907 = vadd.f32 %v811, %v896
    %v908 = vadd.f32 %v812, %v897
    %v909 = vadd.f32 %v813, %v898
    %v910 = vadd.f32 %v814, %v899
    %v911 = vadd.f32 %v815, %v900
    %v912 = vadd.f32 %v816, %v901
    %v913 = vadd.f32 %v817, %v902
    %v914 = vadd.f32 %v818, %v903
    %v915 = vadd.f32 %v819, %v904
    %v916 = vld [vmem:[%s3] sm:$0x1]
    %v918 = vlaneseq
    %v919 = vshrl.u32 %v918, 7
    %v920 = vsub.s32 0, %v919
    %v921 = vrot.slane %v916, %v920
    %v923 = vadd.f32 %v905, %v921
    %v924 = vadd.f32 %v906, %v921
    %v925 = vadd.f32 %v907, %v921
    %v926 = vadd.f32 %v908, %v921
    %v927 = vadd.f32 %v909, %v921
    %v928 = vadd.f32 %v910, %v921
    %v929 = vadd.f32 %v911, %v921
    %v930 = vadd.f32 %v912, %v921
    %v931 = vadd.f32 %v913, %v921
    %v932 = vadd.f32 %v914, %v921
    %v933 = vadd.f32 %v915, %v921
    %v934 = vmax.f32 %v923, 0.0
    %v935 = vmax.f32 %v924, 0.0
    %v936 = vmax.f32 %v925, 0.0
    %v937 = vmax.f32 %v926, 0.0
    %v938 = vmax.f32 %v927, 0.0
    %v939 = vmax.f32 %v928, 0.0
    %v940 = vmax.f32 %v929, 0.0
    %v941 = vmax.f32 %v930, 0.0
    %v942 = vmax.f32 %v931, 0.0
    %v943 = vmax.f32 %v932, 0.0
    %v944 = vmax.f32 %v933, 0.0
    %946 = vset.pattern.permute.xlu0 0
    %947 = vperm.xlu0 %946, %v42
    %v948 = vpop.permute.xlu0 %947
    %951 = vset.pattern.permute.xlu0 0
    %952 = vperm.xlu0 %951, %v43
    %v953 = vpop.permute.xlu0 %952
    %956 = vset.pattern.permute.xlu0 0
    %957 = vperm.xlu0 %956, %v44
    %v958 = vpop.permute.xlu0 %957
    %961 = vset.pattern.permute.xlu0 0
    %962 = vperm.xlu0 %961, %v45
    %v963 = vpop.permute.xlu0 %962
    %966 = vset.pattern.permute.xlu0 0
    %967 = vperm.xlu0 %966, %v46
    %v968 = vpop.permute.xlu0 %967
    %971 = vset.pattern.permute.xlu0 0
    %972 = vperm.xlu0 %971, %v47
    %v973 = vpop.permute.xlu0 %972
    %976 = vset.pattern.permute.xlu0 0
    %977 = vperm.xlu0 %976, %v48
    %v978 = vpop.permute.xlu0 %977
    %981 = vset.pattern.permute.xlu0 0
    %982 = vperm.xlu0 %981, %v49
    %v983 = vpop.permute.xlu0 %982
    %986 = vset.pattern.permute.xlu0 0
    %987 = vperm.xlu0 %986, %v50
    %v988 = vpop.permute.xlu0 %987
    %991 = vset.pattern.permute.xlu0 0
    %992 = vperm.xlu0 %991, %v51
    %v993 = vpop.permute.xlu0 %992
    %996 = vset.pattern.permute.xlu0 0
    %997 = vperm.xlu0 %996, %v52
    %v998 = vpop.permute.xlu0 %997
    %v1000 = vmul.f32 %v934, %v948
    %v1001 = vmul.f32 %v935, %v953
    %v1002 = vmul.f32 %v936, %v958
    %v1003 = vmul.f32 %v937, %v963
    %v1004 = vmul.f32 %v938, %v968
    %v1005 = vmul.f32 %v939, %v973
    %v1006 = vmul.f32 %v940, %v978
    %v1007 = vmul.f32 %v941, %v983
    %v1008 = vmul.f32 %v942, %v988
    %v1009 = vmul.f32 %v943, %v993
    %v1010 = vmul.f32 %v944, %v998
    %vm1011 = vcmask 48128
    %1012 = vst.msk [vmem:[#allocation2] sm:$0xff] %vm1011, 0.0
    %1013 = vst.msk [vmem:[#allocation2 + $0x8] sm:$0xff] %vm1011, 0.0
    %1014 = vst.msk [vmem:[#allocation2 + $0x10] sm:$0xff] %vm1011, 0.0
    %1015 = vst.msk [vmem:[#allocation2 + $0x18] sm:$0xff] %vm1011, 0.0
    %1016 = vst.msk [vmem:[#allocation2 + $0x20] sm:$0xff] %vm1011, 0.0
    %1017 = vst.msk [vmem:[#allocation2 + $0x28] sm:$0xff] %vm1011, 0.0
    %1018 = vst.msk [vmem:[#allocation2 + $0x30] sm:$0xff] %vm1011, 0.0
    %1019 = vst.msk [vmem:[#allocation2 + $0x38] sm:$0xff] %vm1011, 0.0
    %1020 = vst.msk [vmem:[#allocation2 + $0x40] sm:$0xff] %vm1011, 0.0
    %1021 = vst.msk [vmem:[#allocation2 + $0x48] sm:$0xff] %vm1011, 0.0
    %1022 = vst.msk [vmem:[#allocation2 + $0x50] sm:$0xff] %vm1011, 0.0
    %1023 = vst.msk [vmem:[#allocation2 + $0x58] sm:$0xff] %vm1011, 0.0
    %vm1024 = vcmask 41984
    %1025 = vst.msk [vmem:[#allocation2 + $0x60] sm:$0x3] %vm1024, 0.0
    %1026 = vst.msk [vmem:[#allocation2 + $0x8] sm:$0xff] %vm1011, %v1000
    %1027 = vst.msk [vmem:[#allocation2 + $0x10] sm:$0xff] %vm1011, %v1001
    %1028 = vst.msk [vmem:[#allocation2 + $0x18] sm:$0xff] %vm1011, %v1002
    %1029 = vst.msk [vmem:[#allocation2 + $0x20] sm:$0xff] %vm1011, %v1003
    %1030 = vst.msk [vmem:[#allocation2 + $0x28] sm:$0xff] %vm1011, %v1004
    %1031 = vst.msk [vmem:[#allocation2 + $0x30] sm:$0xff] %vm1011, %v1005
    %1032 = vst.msk [vmem:[#allocation2 + $0x38] sm:$0xff] %vm1011, %v1006
    %1033 = vst.msk [vmem:[#allocation2 + $0x40] sm:$0xff] %vm1011, %v1007
    %1034 = vst.msk [vmem:[#allocation2 + $0x48] sm:$0xff] %vm1011, %v1008
    %1035 = vst.msk [vmem:[#allocation2 + $0x50] sm:$0xff] %vm1011, %v1009
    %1036 = vst.msk [vmem:[#allocation2 + $0x58] sm:$0x3] %vm1024, %v1010
    %v1037 = vld [vmem:[#allocation2] sm:$0xff]
    %v1038 = vld [vmem:[#allocation2 + $0x8] sm:$0xff]
    %v1039 = vld [vmem:[#allocation2 + $0x10] sm:$0xff]
    %v1040 = vld [vmem:[#allocation2 + $0x18] sm:$0xff]
    %v1041 = vld [vmem:[#allocation2 + $0x20] sm:$0xff]
    %v1042 = vld [vmem:[#allocation2 + $0x28] sm:$0xff]
    %v1043 = vld [vmem:[#allocation2 + $0x30] sm:$0xff]
    %v1044 = vld [vmem:[#allocation2 + $0x38] sm:$0xff]
    %v1045 = vld [vmem:[#allocation2 + $0x40] sm:$0xff]
    %v1046 = vld [vmem:[#allocation2 + $0x48] sm:$0xff]
    %v1047 = vld [vmem:[#allocation2 + $0x50] sm:$0x3]
    %v1048 = vld [vmem:[%s4] sm:$0x3f]
    %v1049 = vld [vmem:[#allocation2 + $0x1] sm:$0xff]
    %v1050 = vld [vmem:[#allocation2 + $0x9] sm:$0xff]
    %v1051 = vld [vmem:[#allocation2 + $0x11] sm:$0xff]
    %v1052 = vld [vmem:[#allocation2 + $0x19] sm:$0xff]
    %v1053 = vld [vmem:[#allocation2 + $0x21] sm:$0xff]
    %v1054 = vld [vmem:[#allocation2 + $0x29] sm:$0xff]
    %v1055 = vld [vmem:[#allocation2 + $0x31] sm:$0xff]
    %v1056 = vld [vmem:[#allocation2 + $0x39] sm:$0xff]
    %v1057 = vld [vmem:[#allocation2 + $0x41] sm:$0xff]
    %v1058 = vld [vmem:[#allocation2 + $0x49] sm:$0xff]
    %v1059 = vld [vmem:[#allocation2 + $0x51] sm:$0x3]
    %s1060 = scalar_lea.vmem %s4, 8
    %v1061 = vld [vmem:[%s1060] sm:$0x3f]
    %v1063 = vsel %vm1011, %v1049, 0
    %v1066 = vsel %vm1011, %v1050, 0
    %v1069 = vsel %vm1011, %v1051, 0
    %v1072 = vsel %vm1011, %v1052, 0
    %v1075 = vsel %vm1011, %v1053, 0
    %v1078 = vsel %vm1011, %v1054, 0
    %v1081 = vsel %vm1011, %v1055, 0
    %v1084 = vsel %vm1011, %v1056, 0
    %v1087 = vsel %vm1011, %v1057, 0
    %v1090 = vsel %vm1011, %v1058, 0
    %v1093 = vsel %vm1011, %v1059, 0
    %vm1095 = vcmask 1045504
    %v1097 = vsel %vm1095, %v1061, 0
    %1099 = vmatprep.subr.mxu0 0.0
    %1100 = vmatpush1.msra.mxu0 0.0
    %1101 = vmatprep.subr.mxu0 0.0
    %1102 = vmatpush1.msra.mxu0 0.0
    %1103 = vmatprep.subr.mxu0 0.0
    %1104 = vmatpush1.msra.mxu0 0.0
    %1105 = vmatprep.subr.mxu0 0.0
    %1106 = vmatpush1.msra.mxu0 0.0
    %1107 = vmatprep.subr.mxu0 0.0
    %1108 = vmatpush1.msra.mxu0 0.0
    %1109 = vmatprep.subr.mxu0 0.0
    %1110 = vmatpush1.msra.mxu0 0.0
    %1111 = vmatprep.subr.mxu0 0.0
    %1112 = vmatpush1.msra.mxu0 0.0
    %1113 = vmatprep.subr.mxu0 0.0
    %1114 = vmatpush1.msra.mxu0 0.0
    %1115 = vmatprep.subr.mxu0 0.0
    %1116 = vmatpush1.msra.mxu0 0.0
    %1117 = vmatprep.subr.mxu0 0.0
    %1118 = vmatpush1.msra.mxu0 0.0
    %1119 = vmatprep.subr.mxu0 0.0
    %1120 = vmatpush1.msra.mxu0 0.0
    %1121 = vmatprep.subr.mxu0 0.0
    %1122 = vmatpush1.msra.mxu0 0.0
    %1123 = vmatprep.subr.mxu0 0.0
    %1124 = vmatpush1.msra.mxu0 0.0
    %1125 = vmatprep.subr.mxu0 0.0
    %1126 = vmatpush1.msra.mxu0 0.0
    %1127 = vmatprep.subr.mxu0 0.0
    %1128 = vmatpush1.msra.mxu0 0.0
    %1129 = vmatprep.subr.mxu0 0.0
    %1130 = vmatpush1.msra.mxu0 %v1097
    %1131 = vmatprep.subr.mxu0 0.0
    %1132 = vmatpush2.msra.mxu0 0.0
    %1133 = vmatprep.subr.mxu0 0.0
    %1134 = vmatpush2.msra.mxu0 0.0
    %1135 = vmatprep.subr.mxu0 0.0
    %1136 = vmatpush2.msra.mxu0 0.0
    %1137 = vmatprep.subr.mxu0 0.0
    %1138 = vmatpush2.msra.mxu0 0.0
    %1139 = vmatprep.subr.mxu0 0.0
    %1140 = vmatpush2.msra.mxu0 0.0
    %1141 = vmatprep.subr.mxu0 0.0
    %1142 = vmatpush2.msra.mxu0 0.0
    %1143 = vmatprep.subr.mxu0 0.0
    %1144 = vmatpush2.msra.mxu0 0.0
    %1145 = vmatprep.subr.mxu0 0.0
    %1146 = vmatpush2.msra.mxu0 0.0
    %1147 = vmatprep.subr.mxu0 0.0
    %1148 = vmatpush2.msra.mxu0 0.0
    %1149 = vmatprep.subr.mxu0 0.0
    %1150 = vmatpush2.msra.mxu0 0.0
    %1151 = vmatprep.subr.mxu0 0.0
    %1152 = vmatpush2.msra.mxu0 0.0
    %1153 = vmatprep.subr.mxu0 0.0
    %1154 = vmatpush2.msra.mxu0 0.0
    %1155 = vmatprep.subr.mxu0 0.0
    %1156 = vmatpush2.msra.mxu0 0.0
    %1157 = vmatprep.subr.mxu0 0.0
    %1158 = vmatpush2.msra.mxu0 0.0
    %1159 = vmatprep.subr.mxu0 0.0
    %1160 = vmatpush2.msra.mxu0 0.0
    %1161 = vmatprep.subr.mxu0 0.0
    %1162 = vmatpush2.msra.mxu0 0.0
    %1163 = vmatprep.mubr.f32.mxu0 0.0
    %1164 = vmatmul.mubr.f32.gmra.mxu0 %v1063
    %v1165 = vpop.f32.mrf.mxu0
    %v1166 = vadd.f32 0.0, %v1165
    %v1167 = vpop.f32.mrf.mxu0
    %1168 = vmatprep.mubr.f32.mxu0 0.0
    %1169 = vmatmul.mubr.f32.gmra.mxu0 %v1066
    %v1170 = vpop.f32.mrf.mxu0
    %v1171 = vadd.f32 0.0, %v1170
    %v1172 = vpop.f32.mrf.mxu0
    %1173 = vmatprep.mubr.f32.mxu0 0.0
    %1174 = vmatmul.mubr.f32.gmra.mxu0 %v1069
    %v1175 = vpop.f32.mrf.mxu0
    %v1176 = vadd.f32 0.0, %v1175
    %v1177 = vpop.f32.mrf.mxu0
    %1178 = vmatprep.mubr.f32.mxu0 0.0
    %1179 = vmatmul.mubr.f32.gmra.mxu0 %v1072
    %v1180 = vpop.f32.mrf.mxu0
    %v1181 = vadd.f32 0.0, %v1180
    %v1182 = vpop.f32.mrf.mxu0
    %1183 = vmatprep.mubr.f32.mxu0 0.0
    %1184 = vmatmul.mubr.f32.gmra.mxu0 %v1075
    %v1185 = vpop.f32.mrf.mxu0
    %v1186 = vadd.f32 0.0, %v1185
    %v1187 = vpop.f32.mrf.mxu0
    %1188 = vmatprep.mubr.f32.mxu0 0.0
    %1189 = vmatmul.mubr.f32.gmra.mxu0 %v1078
    %v1190 = vpop.f32.mrf.mxu0
    %v1191 = vadd.f32 0.0, %v1190
    %v1192 = vpop.f32.mrf.mxu0
    %1193 = vmatprep.mubr.f32.mxu0 0.0
    %1194 = vmatmul.mubr.f32.gmra.mxu0 %v1081
    %v1195 = vpop.f32.mrf.mxu0
    %v1196 = vadd.f32 0.0, %v1195
    %v1197 = vpop.f32.mrf.mxu0
    %1198 = vmatprep.mubr.f32.mxu0 0.0
    %1199 = vmatmul.mubr.f32.gmra.mxu0 %v1084
    %v1200 = vpop.f32.mrf.mxu0
    %v1201 = vadd.f32 0.0, %v1200
    %v1202 = vpop.f32.mrf.mxu0
    %1203 = vmatprep.mubr.f32.mxu0 0.0
    %1204 = vmatmul.mubr.f32.gmra.mxu0 %v1087
    %v1205 = vpop.f32.mrf.mxu0
    %v1206 = vadd.f32 0.0, %v1205
    %v1207 = vpop.f32.mrf.mxu0
    %1208 = vmatprep.mubr.f32.mxu0 0.0
    %1209 = vmatmul.mubr.f32.gmra.mxu0 %v1090
    %v1210 = vpop.f32.mrf.mxu0
    %v1211 = vadd.f32 0.0, %v1210
    %v1212 = vpop.f32.mrf.mxu0
    %1213 = vmatprep.mubr.f32.mxu0 0.0
    %1214 = vmatmul.mubr.f32.gmra.mxu0 %v1093
    %v1215 = vpop.f32.mrf.mxu0
    %v1216 = vadd.f32 0.0, %v1215
    %v1217 = vpop.f32.mrf.mxu0
    %1218 = vdwg.mxu0
    %v1220 = vsel %vm1011, %v1037, 0
    %v1223 = vsel %vm1011, %v1038, 0
    %v1226 = vsel %vm1011, %v1039, 0
    %v1229 = vsel %vm1011, %v1040, 0
    %v1232 = vsel %vm1011, %v1041, 0
    %v1235 = vsel %vm1011, %v1042, 0
    %v1238 = vsel %vm1011, %v1043, 0
    %v1241 = vsel %vm1011, %v1044, 0
    %v1244 = vsel %vm1011, %v1045, 0
    %v1247 = vsel %vm1011, %v1046, 0
    %v1250 = vsel %vm1011, %v1047, 0
    %v1253 = vsel %vm1095, %v1048, 0
    %1255 = vmatprep.subr.mxu0 0.0
    %1256 = vmatpush1.msra.mxu0 0.0
    %1257 = vmatprep.subr.mxu0 0.0
    %1258 = vmatpush1.msra.mxu0 0.0
    %1259 = vmatprep.subr.mxu0 0.0
    %1260 = vmatpush1.msra.mxu0 0.0
    %1261 = vmatprep.subr.mxu0 0.0
    %1262 = vmatpush1.msra.mxu0 0.0
    %1263 = vmatprep.subr.mxu0 0.0
    %1264 = vmatpush1.msra.mxu0 0.0
    %1265 = vmatprep.subr.mxu0 0.0
    %1266 = vmatpush1.msra.mxu0 0.0
    %1267 = vmatprep.subr.mxu0 0.0
    %1268 = vmatpush1.msra.mxu0 0.0
    %1269 = vmatprep.subr.mxu0 0.0
    %1270 = vmatpush1.msra.mxu0 0.0
    %1271 = vmatprep.subr.mxu0 0.0
    %1272 = vmatpush1.msra.mxu0 0.0
    %1273 = vmatprep.subr.mxu0 0.0
    %1274 = vmatpush1.msra.mxu0 0.0
    %1275 = vmatprep.subr.mxu0 0.0
    %1276 = vmatpush1.msra.mxu0 0.0
    %1277 = vmatprep.subr.mxu0 0.0
    %1278 = vmatpush1.msra.mxu0 0.0
    %1279 = vmatprep.subr.mxu0 0.0
    %1280 = vmatpush1.msra.mxu0 0.0
    %1281 = vmatprep.subr.mxu0 0.0
    %1282 = vmatpush1.msra.mxu0 0.0
    %1283 = vmatprep.subr.mxu0 0.0
    %1284 = vmatpush1.msra.mxu0 0.0
    %1285 = vmatprep.subr.mxu0 0.0
    %1286 = vmatpush1.msra.mxu0 %v1253
    %1287 = vmatprep.subr.mxu0 0.0
    %1288 = vmatpush2.msra.mxu0 0.0
    %1289 = vmatprep.subr.mxu0 0.0
    %1290 = vmatpush2.msra.mxu0 0.0
    %1291 = vmatprep.subr.mxu0 0.0
    %1292 = vmatpush2.msra.mxu0 0.0
    %1293 = vmatprep.subr.mxu0 0.0
    %1294 = vmatpush2.msra.mxu0 0.0
    %1295 = vmatprep.subr.mxu0 0.0
    %1296 = vmatpush2.msra.mxu0 0.0
    %1297 = vmatprep.subr.mxu0 0.0
    %1298 = vmatpush2.msra.mxu0 0.0
    %1299 = vmatprep.subr.mxu0 0.0
    %1300 = vmatpush2.msra.mxu0 0.0
    %1301 = vmatprep.subr.mxu0 0.0
    %1302 = vmatpush2.msra.mxu0 0.0
    %1303 = vmatprep.subr.mxu0 0.0
    %1304 = vmatpush2.msra.mxu0 0.0
    %1305 = vmatprep.subr.mxu0 0.0
    %1306 = vmatpush2.msra.mxu0 0.0
    %1307 = vmatprep.subr.mxu0 0.0
    %1308 = vmatpush2.msra.mxu0 0.0
    %1309 = vmatprep.subr.mxu0 0.0
    %1310 = vmatpush2.msra.mxu0 0.0
    %1311 = vmatprep.subr.mxu0 0.0
    %1312 = vmatpush2.msra.mxu0 0.0
    %1313 = vmatprep.subr.mxu0 0.0
    %1314 = vmatpush2.msra.mxu0 0.0
    %1315 = vmatprep.subr.mxu0 0.0
    %1316 = vmatpush2.msra.mxu0 0.0
    %1317 = vmatprep.subr.mxu0 0.0
    %1318 = vmatpush2.msra.mxu0 0.0
    %1319 = vmatprep.mubr.f32.mxu0 0.0
    %1320 = vmatmul.mubr.f32.gmra.mxu0 %v1220
    %v1321 = vpop.f32.mrf.mxu0
    %v1322 = vadd.f32 %v1166, %v1321
    %v1323 = vpop.f32.mrf.mxu0
    %1324 = vmatprep.mubr.f32.mxu0 0.0
    %1325 = vmatmul.mubr.f32.gmra.mxu0 %v1223
    %v1326 = vpop.f32.mrf.mxu0
    %v1327 = vadd.f32 %v1171, %v1326
    %v1328 = vpop.f32.mrf.mxu0
    %1329 = vmatprep.mubr.f32.mxu0 0.0
    %1330 = vmatmul.mubr.f32.gmra.mxu0 %v1226
    %v1331 = vpop.f32.mrf.mxu0
    %v1332 = vadd.f32 %v1176, %v1331
    %v1333 = vpop.f32.mrf.mxu0
    %1334 = vmatprep.mubr.f32.mxu0 0.0
    %1335 = vmatmul.mubr.f32.gmra.mxu0 %v1229
    %v1336 = vpop.f32.mrf.mxu0
    %v1337 = vadd.f32 %v1181, %v1336
    %v1338 = vpop.f32.mrf.mxu0
    %1339 = vmatprep.mubr.f32.mxu0 0.0
    %1340 = vmatmul.mubr.f32.gmra.mxu0 %v1232
    %v1341 = vpop.f32.mrf.mxu0
    %v1342 = vadd.f32 %v1186, %v1341
    %v1343 = vpop.f32.mrf.mxu0
    %1344 = vmatprep.mubr.f32.mxu0 0.0
    %1345 = vmatmul.mubr.f32.gmra.mxu0 %v1235
    %v1346 = vpop.f32.mrf.mxu0
    %v1347 = vadd.f32 %v1191, %v1346
    %v1348 = vpop.f32.mrf.mxu0
    %1349 = vmatprep.mubr.f32.mxu0 0.0
    %1350 = vmatmul.mubr.f32.gmra.mxu0 %v1238
    %v1351 = vpop.f32.mrf.mxu0
    %v1352 = vadd.f32 %v1196, %v1351
    %v1353 = vpop.f32.mrf.mxu0
    %1354 = vmatprep.mubr.f32.mxu0 0.0
    %1355 = vmatmul.mubr.f32.gmra.mxu0 %v1241
    %v1356 = vpop.f32.mrf.mxu0
    %v1357 = vadd.f32 %v1201, %v1356
    %v1358 = vpop.f32.mrf.mxu0
    %1359 = vmatprep.mubr.f32.mxu0 0.0
    %1360 = vmatmul.mubr.f32.gmra.mxu0 %v1244
    %v1361 = vpop.f32.mrf.mxu0
    %v1362 = vadd.f32 %v1206, %v1361
    %v1363 = vpop.f32.mrf.mxu0
    %1364 = vmatprep.mubr.f32.mxu0 0.0
    %1365 = vmatmul.mubr.f32.gmra.mxu0 %v1247
    %v1366 = vpop.f32.mrf.mxu0
    %v1367 = vadd.f32 %v1211, %v1366
    %v1368 = vpop.f32.mrf.mxu0
    %1369 = vmatprep.mubr.f32.mxu0 0.0
    %1370 = vmatmul.mubr.f32.gmra.mxu0 %v1250
    %v1371 = vpop.f32.mrf.mxu0
    %v1372 = vadd.f32 %v1216, %v1371
    %v1373 = vpop.f32.mrf.mxu0
    %1374 = vdwg.mxu0
    %v1375 = vld [vmem:[#allocation2 + $0x2] sm:$0xff]
    %v1376 = vld [vmem:[#allocation2 + $0xa] sm:$0xff]
    %v1377 = vld [vmem:[#allocation2 + $0x12] sm:$0xff]
    %v1378 = vld [vmem:[#allocation2 + $0x1a] sm:$0xff]
    %v1379 = vld [vmem:[#allocation2 + $0x22] sm:$0xff]
    %v1380 = vld [vmem:[#allocation2 + $0x2a] sm:$0xff]
    %v1381 = vld [vmem:[#allocation2 + $0x32] sm:$0xff]
    %v1382 = vld [vmem:[#allocation2 + $0x3a] sm:$0xff]
    %v1383 = vld [vmem:[#allocation2 + $0x42] sm:$0xff]
    %v1384 = vld [vmem:[#allocation2 + $0x4a] sm:$0xff]
    %v1385 = vld [vmem:[#allocation2 + $0x52] sm:$0x3]
    %s1386 = scalar_lea.vmem %s4, 16
    %v1387 = vld [vmem:[%s1386] sm:$0x3f]
    %v1389 = vsel %vm1011, %v1375, 0
    %v1392 = vsel %vm1011, %v1376, 0
    %v1395 = vsel %vm1011, %v1377, 0
    %v1398 = vsel %vm1011, %v1378, 0
    %v1401 = vsel %vm1011, %v1379, 0
    %v1404 = vsel %vm1011, %v1380, 0
    %v1407 = vsel %vm1011, %v1381, 0
    %v1410 = vsel %vm1011, %v1382, 0
    %v1413 = vsel %vm1011, %v1383, 0
    %v1416 = vsel %vm1011, %v1384, 0
    %v1419 = vsel %vm1011, %v1385, 0
    %v1422 = vsel %vm1095, %v1387, 0
    %1424 = vmatprep.subr.mxu0 0.0
    %1425 = vmatpush1.msra.mxu0 0.0
    %1426 = vmatprep.subr.mxu0 0.0
    %1427 = vmatpush1.msra.mxu0 0.0
    %1428 = vmatprep.subr.mxu0 0.0
    %1429 = vmatpush1.msra.mxu0 0.0
    %1430 = vmatprep.subr.mxu0 0.0
    %1431 = vmatpush1.msra.mxu0 0.0
    %1432 = vmatprep.subr.mxu0 0.0
    %1433 = vmatpush1.msra.mxu0 0.0
    %1434 = vmatprep.subr.mxu0 0.0
    %1435 = vmatpush1.msra.mxu0 0.0
    %1436 = vmatprep.subr.mxu0 0.0
    %1437 = vmatpush1.msra.mxu0 0.0
    %1438 = vmatprep.subr.mxu0 0.0
    %1439 = vmatpush1.msra.mxu0 0.0
    %1440 = vmatprep.subr.mxu0 0.0
    %1441 = vmatpush1.msra.mxu0 0.0
    %1442 = vmatprep.subr.mxu0 0.0
    %1443 = vmatpush1.msra.mxu0 0.0
    %1444 = vmatprep.subr.mxu0 0.0
    %1445 = vmatpush1.msra.mxu0 0.0
    %1446 = vmatprep.subr.mxu0 0.0
    %1447 = vmatpush1.msra.mxu0 0.0
    %1448 = vmatprep.subr.mxu0 0.0
    %1449 = vmatpush1.msra.mxu0 0.0
    %1450 = vmatprep.subr.mxu0 0.0
    %1451 = vmatpush1.msra.mxu0 0.0
    %1452 = vmatprep.subr.mxu0 0.0
    %1453 = vmatpush1.msra.mxu0 0.0
    %1454 = vmatprep.subr.mxu0 0.0
    %1455 = vmatpush1.msra.mxu0 %v1422
    %1456 = vmatprep.subr.mxu0 0.0
    %1457 = vmatpush2.msra.mxu0 0.0
    %1458 = vmatprep.subr.mxu0 0.0
    %1459 = vmatpush2.msra.mxu0 0.0
    %1460 = vmatprep.subr.mxu0 0.0
    %1461 = vmatpush2.msra.mxu0 0.0
    %1462 = vmatprep.subr.mxu0 0.0
    %1463 = vmatpush2.msra.mxu0 0.0
    %1464 = vmatprep.subr.mxu0 0.0
    %1465 = vmatpush2.msra.mxu0 0.0
    %1466 = vmatprep.subr.mxu0 0.0
    %1467 = vmatpush2.msra.mxu0 0.0
    %1468 = vmatprep.subr.mxu0 0.0
    %1469 = vmatpush2.msra.mxu0 0.0
    %1470 = vmatprep.subr.mxu0 0.0
    %1471 = vmatpush2.msra.mxu0 0.0
    %1472 = vmatprep.subr.mxu0 0.0
    %1473 = vmatpush2.msra.mxu0 0.0
    %1474 = vmatprep.subr.mxu0 0.0
    %1475 = vmatpush2.msra.mxu0 0.0
    %1476 = vmatprep.subr.mxu0 0.0
    %1477 = vmatpush2.msra.mxu0 0.0
    %1478 = vmatprep.subr.mxu0 0.0
    %1479 = vmatpush2.msra.mxu0 0.0
    %1480 = vmatprep.subr.mxu0 0.0
    %1481 = vmatpush2.msra.mxu0 0.0
    %1482 = vmatprep.subr.mxu0 0.0
    %1483 = vmatpush2.msra.mxu0 0.0
    %1484 = vmatprep.subr.mxu0 0.0
    %1485 = vmatpush2.msra.mxu0 0.0
    %1486 = vmatprep.subr.mxu0 0.0
    %1487 = vmatpush2.msra.mxu0 0.0
    %1488 = vmatprep.mubr.f32.mxu0 0.0
    %1489 = vmatmul.mubr.f32.gmra.mxu0 %v1389
    %v1490 = vpop.f32.mrf.mxu0
    %v1491 = vadd.f32 0.0, %v1490
    %v1492 = vpop.f32.mrf.mxu0
    %1493 = vmatprep.mubr.f32.mxu0 0.0
    %1494 = vmatmul.mubr.f32.gmra.mxu0 %v1392
    %v1495 = vpop.f32.mrf.mxu0
    %v1496 = vadd.f32 0.0, %v1495
    %v1497 = vpop.f32.mrf.mxu0
    %1498 = vmatprep.mubr.f32.mxu0 0.0
    %1499 = vmatmul.mubr.f32.gmra.mxu0 %v1395
    %v1500 = vpop.f32.mrf.mxu0
    %v1501 = vadd.f32 0.0, %v1500
    %v1502 = vpop.f32.mrf.mxu0
    %1503 = vmatprep.mubr.f32.mxu0 0.0
    %1504 = vmatmul.mubr.f32.gmra.mxu0 %v1398
    %v1505 = vpop.f32.mrf.mxu0
    %v1506 = vadd.f32 0.0, %v1505
    %v1507 = vpop.f32.mrf.mxu0
    %1508 = vmatprep.mubr.f32.mxu0 0.0
    %1509 = vmatmul.mubr.f32.gmra.mxu0 %v1401
    %v1510 = vpop.f32.mrf.mxu0
    %v1511 = vadd.f32 0.0, %v1510
    %v1512 = vpop.f32.mrf.mxu0
    %1513 = vmatprep.mubr.f32.mxu0 0.0
    %1514 = vmatmul.mubr.f32.gmra.mxu0 %v1404
    %v1515 = vpop.f32.mrf.mxu0
    %v1516 = vadd.f32 0.0, %v1515
    %v1517 = vpop.f32.mrf.mxu0
    %1518 = vmatprep.mubr.f32.mxu0 0.0
    %1519 = vmatmul.mubr.f32.gmra.mxu0 %v1407
    %v1520 = vpop.f32.mrf.mxu0
    %v1521 = vadd.f32 0.0, %v1520
    %v1522 = vpop.f32.mrf.mxu0
    %1523 = vmatprep.mubr.f32.mxu0 0.0
    %1524 = vmatmul.mubr.f32.gmra.mxu0 %v1410
    %v1525 = vpop.f32.mrf.mxu0
    %v1526 = vadd.f32 0.0, %v1525
    %v1527 = vpop.f32.mrf.mxu0
    %1528 = vmatprep.mubr.f32.mxu0 0.0
    %1529 = vmatmul.mubr.f32.gmra.mxu0 %v1413
    %v1530 = vpop.f32.mrf.mxu0
    %v1531 = vadd.f32 0.0, %v1530
    %v1532 = vpop.f32.mrf.mxu0
    %1533 = vmatprep.mubr.f32.mxu0 0.0
    %1534 = vmatmul.mubr.f32.gmra.mxu0 %v1416
    %v1535 = vpop.f32.mrf.mxu0
    %v1536 = vadd.f32 0.0, %v1535
    %v1537 = vpop.f32.mrf.mxu0
    %1538 = vmatprep.mubr.f32.mxu0 0.0
    %1539 = vmatmul.mubr.f32.gmra.mxu0 %v1419
    %v1540 = vpop.f32.mrf.mxu0
    %v1541 = vadd.f32 0.0, %v1540
    %v1542 = vpop.f32.mrf.mxu0
    %1543 = vdwg.mxu0
    %v1544 = vadd.f32 %v1322, %v1491
    %v1545 = vadd.f32 %v1327, %v1496
    %v1546 = vadd.f32 %v1332, %v1501
    %v1547 = vadd.f32 %v1337, %v1506
    %v1548 = vadd.f32 %v1342, %v1511
    %v1549 = vadd.f32 %v1347, %v1516
    %v1550 = vadd.f32 %v1352, %v1521
    %v1551 = vadd.f32 %v1357, %v1526
    %v1552 = vadd.f32 %v1362, %v1531
    %v1553 = vadd.f32 %v1367, %v1536
    %v1554 = vadd.f32 %v1372, %v1541
    %v1555 = vld [vmem:[#allocation2 + $0x7] sm:$0xff]
    %v1556 = vld [vmem:[#allocation2 + $0xf] sm:$0xff]
    %v1557 = vld [vmem:[#allocation2 + $0x17] sm:$0xff]
    %v1558 = vld [vmem:[#allocation2 + $0x1f] sm:$0xff]
    %v1559 = vld [vmem:[#allocation2 + $0x27] sm:$0xff]
    %v1560 = vld [vmem:[#allocation2 + $0x2f] sm:$0xff]
    %v1561 = vld [vmem:[#allocation2 + $0x37] sm:$0xff]
    %v1562 = vld [vmem:[#allocation2 + $0x3f] sm:$0xff]
    %v1563 = vld [vmem:[#allocation2 + $0x47] sm:$0xff]
    %v1564 = vld [vmem:[#allocation2 + $0x4f] sm:$0xff]
    %v1565 = vld [vmem:[#allocation2 + $0x57] sm:$0x3]
    %s1566 = scalar_lea.vmem %s4, 24
    %v1567 = vld [vmem:[%s1566] sm:$0x3f]
    %v1569 = vsel %vm1011, %v1555, 0
    %v1572 = vsel %vm1011, %v1556, 0
    %v1575 = vsel %vm1011, %v1557, 0
    %v1578 = vsel %vm1011, %v1558, 0
    %v1581 = vsel %vm1011, %v1559, 0
    %v1584 = vsel %vm1011, %v1560, 0
    %v1587 = vsel %vm1011, %v1561, 0
    %v1590 = vsel %vm1011, %v1562, 0
    %v1593 = vsel %vm1011, %v1563, 0
    %v1596 = vsel %vm1011, %v1564, 0
    %v1599 = vsel %vm1011, %v1565, 0
    %v1602 = vsel %vm1095, %v1567, 0
    %1604 = vmatprep.subr.mxu0 0.0
    %1605 = vmatpush1.msra.mxu0 0.0
    %1606 = vmatprep.subr.mxu0 0.0
    %1607 = vmatpush1.msra.mxu0 0.0
    %1608 = vmatprep.subr.mxu0 0.0
    %1609 = vmatpush1.msra.mxu0 0.0
    %1610 = vmatprep.subr.mxu0 0.0
    %1611 = vmatpush1.msra.mxu0 0.0
    %1612 = vmatprep.subr.mxu0 0.0
    %1613 = vmatpush1.msra.mxu0 0.0
    %1614 = vmatprep.subr.mxu0 0.0
    %1615 = vmatpush1.msra.mxu0 0.0
    %1616 = vmatprep.subr.mxu0 0.0
    %1617 = vmatpush1.msra.mxu0 0.0
    %1618 = vmatprep.subr.mxu0 0.0
    %1619 = vmatpush1.msra.mxu0 0.0
    %1620 = vmatprep.subr.mxu0 0.0
    %1621 = vmatpush1.msra.mxu0 0.0
    %1622 = vmatprep.subr.mxu0 0.0
    %1623 = vmatpush1.msra.mxu0 0.0
    %1624 = vmatprep.subr.mxu0 0.0
    %1625 = vmatpush1.msra.mxu0 0.0
    %1626 = vmatprep.subr.mxu0 0.0
    %1627 = vmatpush1.msra.mxu0 0.0
    %1628 = vmatprep.subr.mxu0 0.0
    %1629 = vmatpush1.msra.mxu0 0.0
    %1630 = vmatprep.subr.mxu0 0.0
    %1631 = vmatpush1.msra.mxu0 0.0
    %1632 = vmatprep.subr.mxu0 0.0
    %1633 = vmatpush1.msra.mxu0 0.0
    %1634 = vmatprep.subr.mxu0 0.0
    %1635 = vmatpush1.msra.mxu0 %v1602
    %1636 = vmatprep.subr.mxu0 0.0
    %1637 = vmatpush2.msra.mxu0 0.0
    %1638 = vmatprep.subr.mxu0 0.0
    %1639 = vmatpush2.msra.mxu0 0.0
    %1640 = vmatprep.subr.mxu0 0.0
    %1641 = vmatpush2.msra.mxu0 0.0
    %1642 = vmatprep.subr.mxu0 0.0
    %1643 = vmatpush2.msra.mxu0 0.0
    %1644 = vmatprep.subr.mxu0 0.0
    %1645 = vmatpush2.msra.mxu0 0.0
    %1646 = vmatprep.subr.mxu0 0.0
    %1647 = vmatpush2.msra.mxu0 0.0
    %1648 = vmatprep.subr.mxu0 0.0
    %1649 = vmatpush2.msra.mxu0 0.0
    %1650 = vmatprep.subr.mxu0 0.0
    %1651 = vmatpush2.msra.mxu0 0.0
    %1652 = vmatprep.subr.mxu0 0.0
    %1653 = vmatpush2.msra.mxu0 0.0
    %1654 = vmatprep.subr.mxu0 0.0
    %1655 = vmatpush2.msra.mxu0 0.0
    %1656 = vmatprep.subr.mxu0 0.0
    %1657 = vmatpush2.msra.mxu0 0.0
    %1658 = vmatprep.subr.mxu0 0.0
    %1659 = vmatpush2.msra.mxu0 0.0
    %1660 = vmatprep.subr.mxu0 0.0
    %1661 = vmatpush2.msra.mxu0 0.0
    %1662 = vmatprep.subr.mxu0 0.0
    %1663 = vmatpush2.msra.mxu0 0.0
    %1664 = vmatprep.subr.mxu0 0.0
    %1665 = vmatpush2.msra.mxu0 0.0
    %1666 = vmatprep.subr.mxu0 0.0
    %1667 = vmatpush2.msra.mxu0 0.0
    %1668 = vmatprep.mubr.f32.mxu0 0.0
    %1669 = vmatmul.mubr.f32.gmra.mxu0 %v1569
    %v1670 = vpop.f32.mrf.mxu0
    %v1671 = vadd.f32 0.0, %v1670
    %v1672 = vpop.f32.mrf.mxu0
    %1673 = vmatprep.mubr.f32.mxu0 0.0
    %1674 = vmatmul.mubr.f32.gmra.mxu0 %v1572
    %v1675 = vpop.f32.mrf.mxu0
    %v1676 = vadd.f32 0.0, %v1675
    %v1677 = vpop.f32.mrf.mxu0
    %1678 = vmatprep.mubr.f32.mxu0 0.0
    %1679 = vmatmul.mubr.f32.gmra.mxu0 %v1575
    %v1680 = vpop.f32.mrf.mxu0
    %v1681 = vadd.f32 0.0, %v1680
    %v1682 = vpop.f32.mrf.mxu0
    %1683 = vmatprep.mubr.f32.mxu0 0.0
    %1684 = vmatmul.mubr.f32.gmra.mxu0 %v1578
    %v1685 = vpop.f32.mrf.mxu0
    %v1686 = vadd.f32 0.0, %v1685
    %v1687 = vpop.f32.mrf.mxu0
    %1688 = vmatprep.mubr.f32.mxu0 0.0
    %1689 = vmatmul.mubr.f32.gmra.mxu0 %v1581
    %v1690 = vpop.f32.mrf.mxu0
    %v1691 = vadd.f32 0.0, %v1690
    %v1692 = vpop.f32.mrf.mxu0
    %1693 = vmatprep.mubr.f32.mxu0 0.0
    %1694 = vmatmul.mubr.f32.gmra.mxu0 %v1584
    %v1695 = vpop.f32.mrf.mxu0
    %v1696 = vadd.f32 0.0, %v1695
    %v1697 = vpop.f32.mrf.mxu0
    %1698 = vmatprep.mubr.f32.mxu0 0.0
    %1699 = vmatmul.mubr.f32.gmra.mxu0 %v1587
    %v1700 = vpop.f32.mrf.mxu0
    %v1701 = vadd.f32 0.0, %v1700
    %v1702 = vpop.f32.mrf.mxu0
    %1703 = vmatprep.mubr.f32.mxu0 0.0
    %1704 = vmatmul.mubr.f32.gmra.mxu0 %v1590
    %v1705 = vpop.f32.mrf.mxu0
    %v1706 = vadd.f32 0.0, %v1705
    %v1707 = vpop.f32.mrf.mxu0
    %1708 = vmatprep.mubr.f32.mxu0 0.0
    %1709 = vmatmul.mubr.f32.gmra.mxu0 %v1593
    %v1710 = vpop.f32.mrf.mxu0
    %v1711 = vadd.f32 0.0, %v1710
    %v1712 = vpop.f32.mrf.mxu0
    %1713 = vmatprep.mubr.f32.mxu0 0.0
    %1714 = vmatmul.mubr.f32.gmra.mxu0 %v1596
    %v1715 = vpop.f32.mrf.mxu0
    %v1716 = vadd.f32 0.0, %v1715
    %v1717 = vpop.f32.mrf.mxu0
    %1718 = vmatprep.mubr.f32.mxu0 0.0
    %1719 = vmatmul.mubr.f32.gmra.mxu0 %v1599
    %v1720 = vpop.f32.mrf.mxu0
    %v1721 = vadd.f32 0.0, %v1720
    %v1722 = vpop.f32.mrf.mxu0
    %1723 = vdwg.mxu0
    %v1724 = vadd.f32 %v1544, %v1671
    %v1725 = vadd.f32 %v1545, %v1676
    %v1726 = vadd.f32 %v1546, %v1681
    %v1727 = vadd.f32 %v1547, %v1686
    %v1728 = vadd.f32 %v1548, %v1691
    %v1729 = vadd.f32 %v1549, %v1696
    %v1730 = vadd.f32 %v1550, %v1701
    %v1731 = vadd.f32 %v1551, %v1706
    %v1732 = vadd.f32 %v1552, %v1711
    %v1733 = vadd.f32 %v1553, %v1716
    %v1734 = vadd.f32 %v1554, %v1721
    %v1735 = vld [vmem:[#allocation2 + $0x8] sm:$0xff]
    %v1736 = vld [vmem:[#allocation2 + $0x10] sm:$0xff]
    %v1737 = vld [vmem:[#allocation2 + $0x18] sm:$0xff]
    %v1738 = vld [vmem:[#allocation2 + $0x20] sm:$0xff]
    %v1739 = vld [vmem:[#allocation2 + $0x28] sm:$0xff]
    %v1740 = vld [vmem:[#allocation2 + $0x30] sm:$0xff]
    %v1741 = vld [vmem:[#allocation2 + $0x38] sm:$0xff]
    %v1742 = vld [vmem:[#allocation2 + $0x40] sm:$0xff]
    %v1743 = vld [vmem:[#allocation2 + $0x48] sm:$0xff]
    %v1744 = vld [vmem:[#allocation2 + $0x50] sm:$0xff]
    %v1745 = vld [vmem:[#allocation2 + $0x58] sm:$0x3]
    %s1746 = scalar_lea.vmem %s4, 32
    %v1747 = vld [vmem:[%s1746] sm:$0x3f]
    %v1749 = vsel %vm1011, %v1735, 0
    %v1752 = vsel %vm1011, %v1736, 0
    %v1755 = vsel %vm1011, %v1737, 0
    %v1758 = vsel %vm1011, %v1738, 0
    %v1761 = vsel %vm1011, %v1739, 0
    %v1764 = vsel %vm1011, %v1740, 0
    %v1767 = vsel %vm1011, %v1741, 0
    %v1770 = vsel %vm1011, %v1742, 0
    %v1773 = vsel %vm1011, %v1743, 0
    %v1776 = vsel %vm1011, %v1744, 0
    %v1779 = vsel %vm1011, %v1745, 0
    %v1782 = vsel %vm1095, %v1747, 0
    %1784 = vmatprep.subr.mxu0 0.0
    %1785 = vmatpush1.msra.mxu0 0.0
    %1786 = vmatprep.subr.mxu0 0.0
    %1787 = vmatpush1.msra.mxu0 0.0
    %1788 = vmatprep.subr.mxu0 0.0
    %1789 = vmatpush1.msra.mxu0 0.0
    %1790 = vmatprep.subr.mxu0 0.0
    %1791 = vmatpush1.msra.mxu0 0.0
    %1792 = vmatprep.subr.mxu0 0.0
    %1793 = vmatpush1.msra.mxu0 0.0
    %1794 = vmatprep.subr.mxu0 0.0
    %1795 = vmatpush1.msra.mxu0 0.0
    %1796 = vmatprep.subr.mxu0 0.0
    %1797 = vmatpush1.msra.mxu0 0.0
    %1798 = vmatprep.subr.mxu0 0.0
    %1799 = vmatpush1.msra.mxu0 0.0
    %1800 = vmatprep.subr.mxu0 0.0
    %1801 = vmatpush1.msra.mxu0 0.0
    %1802 = vmatprep.subr.mxu0 0.0
    %1803 = vmatpush1.msra.mxu0 0.0
    %1804 = vmatprep.subr.mxu0 0.0
    %1805 = vmatpush1.msra.mxu0 0.0
    %1806 = vmatprep.subr.mxu0 0.0
    %1807 = vmatpush1.msra.mxu0 0.0
    %1808 = vmatprep.subr.mxu0 0.0
    %1809 = vmatpush1.msra.mxu0 0.0
    %1810 = vmatprep.subr.mxu0 0.0
    %1811 = vmatpush1.msra.mxu0 0.0
    %1812 = vmatprep.subr.mxu0 0.0
    %1813 = vmatpush1.msra.mxu0 0.0
    %1814 = vmatprep.subr.mxu0 0.0
    %1815 = vmatpush1.msra.mxu0 %v1782
    %1816 = vmatprep.subr.mxu0 0.0
    %1817 = vmatpush2.msra.mxu0 0.0
    %1818 = vmatprep.subr.mxu0 0.0
    %1819 = vmatpush2.msra.mxu0 0.0
    %1820 = vmatprep.subr.mxu0 0.0
    %1821 = vmatpush2.msra.mxu0 0.0
    %1822 = vmatprep.subr.mxu0 0.0
    %1823 = vmatpush2.msra.mxu0 0.0
    %1824 = vmatprep.subr.mxu0 0.0
    %1825 = vmatpush2.msra.mxu0 0.0
    %1826 = vmatprep.subr.mxu0 0.0
    %1827 = vmatpush2.msra.mxu0 0.0
    %1828 = vmatprep.subr.mxu0 0.0
    %1829 = vmatpush2.msra.mxu0 0.0
    %1830 = vmatprep.subr.mxu0 0.0
    %1831 = vmatpush2.msra.mxu0 0.0
    %1832 = vmatprep.subr.mxu0 0.0
    %1833 = vmatpush2.msra.mxu0 0.0
    %1834 = vmatprep.subr.mxu0 0.0
    %1835 = vmatpush2.msra.mxu0 0.0
    %1836 = vmatprep.subr.mxu0 0.0
    %1837 = vmatpush2.msra.mxu0 0.0
    %1838 = vmatprep.subr.mxu0 0.0
    %1839 = vmatpush2.msra.mxu0 0.0
    %1840 = vmatprep.subr.mxu0 0.0
    %1841 = vmatpush2.msra.mxu0 0.0
    %1842 = vmatprep.subr.mxu0 0.0
    %1843 = vmatpush2.msra.mxu0 0.0
    %1844 = vmatprep.subr.mxu0 0.0
    %1845 = vmatpush2.msra.mxu0 0.0
    %1846 = vmatprep.subr.mxu0 0.0
    %1847 = vmatpush2.msra.mxu0 0.0
    %1848 = vmatprep.mubr.f32.mxu0 0.0
    %1849 = vmatmul.mubr.f32.gmra.mxu0 %v1749
    %v1850 = vpop.f32.mrf.mxu0
    %v1851 = vadd.f32 0.0, %v1850
    %v1852 = vpop.f32.mrf.mxu0
    %1853 = vmatprep.mubr.f32.mxu0 0.0
    %1854 = vmatmul.mubr.f32.gmra.mxu0 %v1752
    %v1855 = vpop.f32.mrf.mxu0
    %v1856 = vadd.f32 0.0, %v1855
    %v1857 = vpop.f32.mrf.mxu0
    %1858 = vmatprep.mubr.f32.mxu0 0.0
    %1859 = vmatmul.mubr.f32.gmra.mxu0 %v1755
    %v1860 = vpop.f32.mrf.mxu0
    %v1861 = vadd.f32 0.0, %v1860
    %v1862 = vpop.f32.mrf.mxu0
    %1863 = vmatprep.mubr.f32.mxu0 0.0
    %1864 = vmatmul.mubr.f32.gmra.mxu0 %v1758
    %v1865 = vpop.f32.mrf.mxu0
    %v1866 = vadd.f32 0.0, %v1865
    %v1867 = vpop.f32.mrf.mxu0
    %1868 = vmatprep.mubr.f32.mxu0 0.0
    %1869 = vmatmul.mubr.f32.gmra.mxu0 %v1761
    %v1870 = vpop.f32.mrf.mxu0
    %v1871 = vadd.f32 0.0, %v1870
    %v1872 = vpop.f32.mrf.mxu0
    %1873 = vmatprep.mubr.f32.mxu0 0.0
    %1874 = vmatmul.mubr.f32.gmra.mxu0 %v1764
    %v1875 = vpop.f32.mrf.mxu0
    %v1876 = vadd.f32 0.0, %v1875
    %v1877 = vpop.f32.mrf.mxu0
    %1878 = vmatprep.mubr.f32.mxu0 0.0
    %1879 = vmatmul.mubr.f32.gmra.mxu0 %v1767
    %v1880 = vpop.f32.mrf.mxu0
    %v1881 = vadd.f32 0.0, %v1880
    %v1882 = vpop.f32.mrf.mxu0
    %1883 = vmatprep.mubr.f32.mxu0 0.0
    %1884 = vmatmul.mubr.f32.gmra.mxu0 %v1770
    %v1885 = vpop.f32.mrf.mxu0
    %v1886 = vadd.f32 0.0, %v1885
    %v1887 = vpop.f32.mrf.mxu0
    %1888 = vmatprep.mubr.f32.mxu0 0.0
    %1889 = vmatmul.mubr.f32.gmra.mxu0 %v1773
    %v1890 = vpop.f32.mrf.mxu0
    %v1891 = vadd.f32 0.0, %v1890
    %v1892 = vpop.f32.mrf.mxu0
    %1893 = vmatprep.mubr.f32.mxu0 0.0
    %1894 = vmatmul.mubr.f32.gmra.mxu0 %v1776
    %v1895 = vpop.f32.mrf.mxu0
    %v1896 = vadd.f32 0.0, %v1895
    %v1897 = vpop.f32.mrf.mxu0
    %1898 = vmatprep.mubr.f32.mxu0 0.0
    %1899 = vmatmul.mubr.f32.gmra.mxu0 %v1779
    %v1900 = vpop.f32.mrf.mxu0
    %v1901 = vadd.f32 0.0, %v1900
    %v1902 = vpop.f32.mrf.mxu0
    %1903 = vdwg.mxu0
    %v1904 = vadd.f32 %v1724, %v1851
    %v1905 = vadd.f32 %v1725, %v1856
    %v1906 = vadd.f32 %v1726, %v1861
    %v1907 = vadd.f32 %v1727, %v1866
    %v1908 = vadd.f32 %v1728, %v1871
    %v1909 = vadd.f32 %v1729, %v1876
    %v1910 = vadd.f32 %v1730, %v1881
    %v1911 = vadd.f32 %v1731, %v1886
    %v1912 = vadd.f32 %v1732, %v1891
    %v1913 = vadd.f32 %v1733, %v1896
    %v1914 = vadd.f32 %v1734, %v1901
    %v1915 = vld [vmem:[#allocation2 + $0x9] sm:$0xff]
    %v1916 = vld [vmem:[#allocation2 + $0x11] sm:$0xff]
    %v1917 = vld [vmem:[#allocation2 + $0x19] sm:$0xff]
    %v1918 = vld [vmem:[#allocation2 + $0x21] sm:$0xff]
    %v1919 = vld [vmem:[#allocation2 + $0x29] sm:$0xff]
    %v1920 = vld [vmem:[#allocation2 + $0x31] sm:$0xff]
    %v1921 = vld [vmem:[#allocation2 + $0x39] sm:$0xff]
    %v1922 = vld [vmem:[#allocation2 + $0x41] sm:$0xff]
    %v1923 = vld [vmem:[#allocation2 + $0x49] sm:$0xff]
    %v1924 = vld [vmem:[#allocation2 + $0x51] sm:$0xff]
    %v1925 = vld [vmem:[#allocation2 + $0x59] sm:$0x3]
    %s1926 = scalar_lea.vmem %s4, 40
    %v1927 = vld [vmem:[%s1926] sm:$0x3f]
    %v1929 = vsel %vm1011, %v1915, 0
    %v1932 = vsel %vm1011, %v1916, 0
    %v1935 = vsel %vm1011, %v1917, 0
    %v1938 = vsel %vm1011, %v1918, 0
    %v1941 = vsel %vm1011, %v1919, 0
    %v1944 = vsel %vm1011, %v1920, 0
    %v1947 = vsel %vm1011, %v1921, 0
    %v1950 = vsel %vm1011, %v1922, 0
    %v1953 = vsel %vm1011, %v1923, 0
    %v1956 = vsel %vm1011, %v1924, 0
    %v1959 = vsel %vm1011, %v1925, 0
    %v1962 = vsel %vm1095, %v1927, 0
    %1964 = vmatprep.subr.mxu0 0.0
    %1965 = vmatpush1.msra.mxu0 0.0
    %1966 = vmatprep.subr.mxu0 0.0
    %1967 = vmatpush1.msra.mxu0 0.0
    %1968 = vmatprep.subr.mxu0 0.0
    %1969 = vmatpush1.msra.mxu0 0.0
    %1970 = vmatprep.subr.mxu0 0.0
    %1971 = vmatpush1.msra.mxu0 0.0
    %1972 = vmatprep.subr.mxu0 0.0
    %1973 = vmatpush1.msra.mxu0 0.0
    %1974 = vmatprep.subr.mxu0 0.0
    %1975 = vmatpush1.msra.mxu0 0.0
    %1976 = vmatprep.subr.mxu0 0.0
    %1977 = vmatpush1.msra.mxu0 0.0
    %1978 = vmatprep.subr.mxu0 0.0
    %1979 = vmatpush1.msra.mxu0 0.0
    %1980 = vmatprep.subr.mxu0 0.0
    %1981 = vmatpush1.msra.mxu0 0.0
    %1982 = vmatprep.subr.mxu0 0.0
    %1983 = vmatpush1.msra.mxu0 0.0
    %1984 = vmatprep.subr.mxu0 0.0
    %1985 = vmatpush1.msra.mxu0 0.0
    %1986 = vmatprep.subr.mxu0 0.0
    %1987 = vmatpush1.msra.mxu0 0.0
    %1988 = vmatprep.subr.mxu0 0.0
    %1989 = vmatpush1.msra.mxu0 0.0
    %1990 = vmatprep.subr.mxu0 0.0
    %1991 = vmatpush1.msra.mxu0 0.0
    %1992 = vmatprep.subr.mxu0 0.0
    %1993 = vmatpush1.msra.mxu0 0.0
    %1994 = vmatprep.subr.mxu0 0.0
    %1995 = vmatpush1.msra.mxu0 %v1962
    %1996 = vmatprep.subr.mxu0 0.0
    %1997 = vmatpush2.msra.mxu0 0.0
    %1998 = vmatprep.subr.mxu0 0.0
    %1999 = vmatpush2.msra.mxu0 0.0
    %2000 = vmatprep.subr.mxu0 0.0
    %2001 = vmatpush2.msra.mxu0 0.0
    %2002 = vmatprep.subr.mxu0 0.0
    %2003 = vmatpush2.msra.mxu0 0.0
    %2004 = vmatprep.subr.mxu0 0.0
    %2005 = vmatpush2.msra.mxu0 0.0
    %2006 = vmatprep.subr.mxu0 0.0
    %2007 = vmatpush2.msra.mxu0 0.0
    %2008 = vmatprep.subr.mxu0 0.0
    %2009 = vmatpush2.msra.mxu0 0.0
    %2010 = vmatprep.subr.mxu0 0.0
    %2011 = vmatpush2.msra.mxu0 0.0
    %2012 = vmatprep.subr.mxu0 0.0
    %2013 = vmatpush2.msra.mxu0 0.0
    %2014 = vmatprep.subr.mxu0 0.0
    %2015 = vmatpush2.msra.mxu0 0.0
    %2016 = vmatprep.subr.mxu0 0.0
    %2017 = vmatpush2.msra.mxu0 0.0
    %2018 = vmatprep.subr.mxu0 0.0
    %2019 = vmatpush2.msra.mxu0 0.0
    %2020 = vmatprep.subr.mxu0 0.0
    %2021 = vmatpush2.msra.mxu0 0.0
    %2022 = vmatprep.subr.mxu0 0.0
    %2023 = vmatpush2.msra.mxu0 0.0
    %2024 = vmatprep.subr.mxu0 0.0
    %2025 = vmatpush2.msra.mxu0 0.0
    %2026 = vmatprep.subr.mxu0 0.0
    %2027 = vmatpush2.msra.mxu0 0.0
    %2028 = vmatprep.mubr.f32.mxu0 0.0
    %2029 = vmatmul.mubr.f32.gmra.mxu0 %v1929
    %v2030 = vpop.f32.mrf.mxu0
    %v2031 = vadd.f32 0.0, %v2030
    %v2032 = vpop.f32.mrf.mxu0
    %2033 = vmatprep.mubr.f32.mxu0 0.0
    %2034 = vmatmul.mubr.f32.gmra.mxu0 %v1932
    %v2035 = vpop.f32.mrf.mxu0
    %v2036 = vadd.f32 0.0, %v2035
    %v2037 = vpop.f32.mrf.mxu0
    %2038 = vmatprep.mubr.f32.mxu0 0.0
    %2039 = vmatmul.mubr.f32.gmra.mxu0 %v1935
    %v2040 = vpop.f32.mrf.mxu0
    %v2041 = vadd.f32 0.0, %v2040
    %v2042 = vpop.f32.mrf.mxu0
    %2043 = vmatprep.mubr.f32.mxu0 0.0
    %2044 = vmatmul.mubr.f32.gmra.mxu0 %v1938
    %v2045 = vpop.f32.mrf.mxu0
    %v2046 = vadd.f32 0.0, %v2045
    %v2047 = vpop.f32.mrf.mxu0
    %2048 = vmatprep.mubr.f32.mxu0 0.0
    %2049 = vmatmul.mubr.f32.gmra.mxu0 %v1941
    %v2050 = vpop.f32.mrf.mxu0
    %v2051 = vadd.f32 0.0, %v2050
    %v2052 = vpop.f32.mrf.mxu0
    %2053 = vmatprep.mubr.f32.mxu0 0.0
    %2054 = vmatmul.mubr.f32.gmra.mxu0 %v1944
    %v2055 = vpop.f32.mrf.mxu0
    %v2056 = vadd.f32 0.0, %v2055
    %v2057 = vpop.f32.mrf.mxu0
    %2058 = vmatprep.mubr.f32.mxu0 0.0
    %2059 = vmatmul.mubr.f32.gmra.mxu0 %v1947
    %v2060 = vpop.f32.mrf.mxu0
    %v2061 = vadd.f32 0.0, %v2060
    %v2062 = vpop.f32.mrf.mxu0
    %2063 = vmatprep.mubr.f32.mxu0 0.0
    %2064 = vmatmul.mubr.f32.gmra.mxu0 %v1950
    %v2065 = vpop.f32.mrf.mxu0
    %v2066 = vadd.f32 0.0, %v2065
    %v2067 = vpop.f32.mrf.mxu0
    %2068 = vmatprep.mubr.f32.mxu0 0.0
    %2069 = vmatmul.mubr.f32.gmra.mxu0 %v1953
    %v2070 = vpop.f32.mrf.mxu0
    %v2071 = vadd.f32 0.0, %v2070
    %v2072 = vpop.f32.mrf.mxu0
    %2073 = vmatprep.mubr.f32.mxu0 0.0
    %2074 = vmatmul.mubr.f32.gmra.mxu0 %v1956
    %v2075 = vpop.f32.mrf.mxu0
    %v2076 = vadd.f32 0.0, %v2075
    %v2077 = vpop.f32.mrf.mxu0
    %2078 = vmatprep.mubr.f32.mxu0 0.0
    %2079 = vmatmul.mubr.f32.gmra.mxu0 %v1959
    %v2080 = vpop.f32.mrf.mxu0
    %v2081 = vadd.f32 0.0, %v2080
    %v2082 = vpop.f32.mrf.mxu0
    %2083 = vdwg.mxu0
    %v2084 = vadd.f32 %v1904, %v2031
    %v2085 = vadd.f32 %v1905, %v2036
    %v2086 = vadd.f32 %v1906, %v2041
    %v2087 = vadd.f32 %v1907, %v2046
    %v2088 = vadd.f32 %v1908, %v2051
    %v2089 = vadd.f32 %v1909, %v2056
    %v2090 = vadd.f32 %v1910, %v2061
    %v2091 = vadd.f32 %v1911, %v2066
    %v2092 = vadd.f32 %v1912, %v2071
    %v2093 = vadd.f32 %v1913, %v2076
    %v2094 = vadd.f32 %v1914, %v2081
    %v2095 = vld [vmem:[#allocation2 + $0xe] sm:$0xff]
    %v2096 = vld [vmem:[#allocation2 + $0x16] sm:$0xff]
    %v2097 = vld [vmem:[#allocation2 + $0x1e] sm:$0xff]
    %v2098 = vld [vmem:[#allocation2 + $0x26] sm:$0xff]
    %v2099 = vld [vmem:[#allocation2 + $0x2e] sm:$0xff]
    %v2100 = vld [vmem:[#allocation2 + $0x36] sm:$0xff]
    %v2101 = vld [vmem:[#allocation2 + $0x3e] sm:$0xff]
    %v2102 = vld [vmem:[#allocation2 + $0x46] sm:$0xff]
    %v2103 = vld [vmem:[#allocation2 + $0x4e] sm:$0xff]
    %v2104 = vld [vmem:[#allocation2 + $0x56] sm:$0xff]
    %v2105 = vld [vmem:[#allocation2 + $0x5e] sm:$0x3]
    %s2106 = scalar_lea.vmem %s4, 48
    %v2107 = vld [vmem:[%s2106] sm:$0x3f]
    %v2109 = vsel %vm1011, %v2095, 0
    %v2112 = vsel %vm1011, %v2096, 0
    %v2115 = vsel %vm1011, %v2097, 0
    %v2118 = vsel %vm1011, %v2098, 0
    %v2121 = vsel %vm1011, %v2099, 0
    %v2124 = vsel %vm1011, %v2100, 0
    %v2127 = vsel %vm1011, %v2101, 0
    %v2130 = vsel %vm1011, %v2102, 0
    %v2133 = vsel %vm1011, %v2103, 0
    %v2136 = vsel %vm1011, %v2104, 0
    %v2139 = vsel %vm1011, %v2105, 0
    %v2142 = vsel %vm1095, %v2107, 0
    %2144 = vmatprep.subr.mxu0 0.0
    %2145 = vmatpush1.msra.mxu0 0.0
    %2146 = vmatprep.subr.mxu0 0.0
    %2147 = vmatpush1.msra.mxu0 0.0
    %2148 = vmatprep.subr.mxu0 0.0
    %2149 = vmatpush1.msra.mxu0 0.0
    %2150 = vmatprep.subr.mxu0 0.0
    %2151 = vmatpush1.msra.mxu0 0.0
    %2152 = vmatprep.subr.mxu0 0.0
    %2153 = vmatpush1.msra.mxu0 0.0
    %2154 = vmatprep.subr.mxu0 0.0
    %2155 = vmatpush1.msra.mxu0 0.0
    %2156 = vmatprep.subr.mxu0 0.0
    %2157 = vmatpush1.msra.mxu0 0.0
    %2158 = vmatprep.subr.mxu0 0.0
    %2159 = vmatpush1.msra.mxu0 0.0
    %2160 = vmatprep.subr.mxu0 0.0
    %2161 = vmatpush1.msra.mxu0 0.0
    %2162 = vmatprep.subr.mxu0 0.0
    %2163 = vmatpush1.msra.mxu0 0.0
    %2164 = vmatprep.subr.mxu0 0.0
    %2165 = vmatpush1.msra.mxu0 0.0
    %2166 = vmatprep.subr.mxu0 0.0
    %2167 = vmatpush1.msra.mxu0 0.0
    %2168 = vmatprep.subr.mxu0 0.0
    %2169 = vmatpush1.msra.mxu0 0.0
    %2170 = vmatprep.subr.mxu0 0.0
    %2171 = vmatpush1.msra.mxu0 0.0
    %2172 = vmatprep.subr.mxu0 0.0
    %2173 = vmatpush1.msra.mxu0 0.0
    %2174 = vmatprep.subr.mxu0 0.0
    %2175 = vmatpush1.msra.mxu0 %v2142
    %2176 = vmatprep.subr.mxu0 0.0
    %2177 = vmatpush2.msra.mxu0 0.0
    %2178 = vmatprep.subr.mxu0 0.0
    %2179 = vmatpush2.msra.mxu0 0.0
    %2180 = vmatprep.subr.mxu0 0.0
    %2181 = vmatpush2.msra.mxu0 0.0
    %2182 = vmatprep.subr.mxu0 0.0
    %2183 = vmatpush2.msra.mxu0 0.0
    %2184 = vmatprep.subr.mxu0 0.0
    %2185 = vmatpush2.msra.mxu0 0.0
    %2186 = vmatprep.subr.mxu0 0.0
    %2187 = vmatpush2.msra.mxu0 0.0
    %2188 = vmatprep.subr.mxu0 0.0
    %2189 = vmatpush2.msra.mxu0 0.0
    %2190 = vmatprep.subr.mxu0 0.0
    %2191 = vmatpush2.msra.mxu0 0.0
    %2192 = vmatprep.subr.mxu0 0.0
    %2193 = vmatpush2.msra.mxu0 0.0
    %2194 = vmatprep.subr.mxu0 0.0
    %2195 = vmatpush2.msra.mxu0 0.0
    %2196 = vmatprep.subr.mxu0 0.0
    %2197 = vmatpush2.msra.mxu0 0.0
    %2198 = vmatprep.subr.mxu0 0.0
    %2199 = vmatpush2.msra.mxu0 0.0
    %2200 = vmatprep.subr.mxu0 0.0
    %2201 = vmatpush2.msra.mxu0 0.0
    %2202 = vmatprep.subr.mxu0 0.0
    %2203 = vmatpush2.msra.mxu0 0.0
    %2204 = vmatprep.subr.mxu0 0.0
    %2205 = vmatpush2.msra.mxu0 0.0
    %2206 = vmatprep.subr.mxu0 0.0
    %2207 = vmatpush2.msra.mxu0 0.0
    %2208 = vmatprep.mubr.f32.mxu0 0.0
    %2209 = vmatmul.mubr.f32.gmra.mxu0 %v2109
    %v2210 = vpop.f32.mrf.mxu0
    %v2211 = vadd.f32 0.0, %v2210
    %v2212 = vpop.f32.mrf.mxu0
    %2213 = vmatprep.mubr.f32.mxu0 0.0
    %2214 = vmatmul.mubr.f32.gmra.mxu0 %v2112
    %v2215 = vpop.f32.mrf.mxu0
    %v2216 = vadd.f32 0.0, %v2215
    %v2217 = vpop.f32.mrf.mxu0
    %2218 = vmatprep.mubr.f32.mxu0 0.0
    %2219 = vmatmul.mubr.f32.gmra.mxu0 %v2115
    %v2220 = vpop.f32.mrf.mxu0
    %v2221 = vadd.f32 0.0, %v2220
    %v2222 = vpop.f32.mrf.mxu0
    %2223 = vmatprep.mubr.f32.mxu0 0.0
    %2224 = vmatmul.mubr.f32.gmra.mxu0 %v2118
    %v2225 = vpop.f32.mrf.mxu0
    %v2226 = vadd.f32 0.0, %v2225
    %v2227 = vpop.f32.mrf.mxu0
    %2228 = vmatprep.mubr.f32.mxu0 0.0
    %2229 = vmatmul.mubr.f32.gmra.mxu0 %v2121
    %v2230 = vpop.f32.mrf.mxu0
    %v2231 = vadd.f32 0.0, %v2230
    %v2232 = vpop.f32.mrf.mxu0
    %2233 = vmatprep.mubr.f32.mxu0 0.0
    %2234 = vmatmul.mubr.f32.gmra.mxu0 %v2124
    %v2235 = vpop.f32.mrf.mxu0
    %v2236 = vadd.f32 0.0, %v2235
    %v2237 = vpop.f32.mrf.mxu0
    %2238 = vmatprep.mubr.f32.mxu0 0.0
    %2239 = vmatmul.mubr.f32.gmra.mxu0 %v2127
    %v2240 = vpop.f32.mrf.mxu0
    %v2241 = vadd.f32 0.0, %v2240
    %v2242 = vpop.f32.mrf.mxu0
    %2243 = vmatprep.mubr.f32.mxu0 0.0
    %2244 = vmatmul.mubr.f32.gmra.mxu0 %v2130
    %v2245 = vpop.f32.mrf.mxu0
    %v2246 = vadd.f32 0.0, %v2245
    %v2247 = vpop.f32.mrf.mxu0
    %2248 = vmatprep.mubr.f32.mxu0 0.0
    %2249 = vmatmul.mubr.f32.gmra.mxu0 %v2133
    %v2250 = vpop.f32.mrf.mxu0
    %v2251 = vadd.f32 0.0, %v2250
    %v2252 = vpop.f32.mrf.mxu0
    %2253 = vmatprep.mubr.f32.mxu0 0.0
    %2254 = vmatmul.mubr.f32.gmra.mxu0 %v2136
    %v2255 = vpop.f32.mrf.mxu0
    %v2256 = vadd.f32 0.0, %v2255
    %v2257 = vpop.f32.mrf.mxu0
    %2258 = vmatprep.mubr.f32.mxu0 0.0
    %2259 = vmatmul.mubr.f32.gmra.mxu0 %v2139
    %v2260 = vpop.f32.mrf.mxu0
    %v2261 = vadd.f32 0.0, %v2260
    %v2262 = vpop.f32.mrf.mxu0
    %2263 = vdwg.mxu0
    %v2264 = vadd.f32 %v2084, %v2211
    %v2265 = vadd.f32 %v2085, %v2216
    %v2266 = vadd.f32 %v2086, %v2221
    %v2267 = vadd.f32 %v2087, %v2226
    %v2268 = vadd.f32 %v2088, %v2231
    %v2269 = vadd.f32 %v2089, %v2236
    %v2270 = vadd.f32 %v2090, %v2241
    %v2271 = vadd.f32 %v2091, %v2246
    %v2272 = vadd.f32 %v2092, %v2251
    %v2273 = vadd.f32 %v2093, %v2256
    %v2274 = vadd.f32 %v2094, %v2261
    %v2275 = vld [vmem:[#allocation2 + $0xf] sm:$0xff]
    %v2276 = vld [vmem:[#allocation2 + $0x17] sm:$0xff]
    %v2277 = vld [vmem:[#allocation2 + $0x1f] sm:$0xff]
    %v2278 = vld [vmem:[#allocation2 + $0x27] sm:$0xff]
    %v2279 = vld [vmem:[#allocation2 + $0x2f] sm:$0xff]
    %v2280 = vld [vmem:[#allocation2 + $0x37] sm:$0xff]
    %v2281 = vld [vmem:[#allocation2 + $0x3f] sm:$0xff]
    %v2282 = vld [vmem:[#allocation2 + $0x47] sm:$0xff]
    %v2283 = vld [vmem:[#allocation2 + $0x4f] sm:$0xff]
    %v2284 = vld [vmem:[#allocation2 + $0x57] sm:$0xff]
    %v2285 = vld [vmem:[#allocation2 + $0x5f] sm:$0x3]
    %s2286 = scalar_lea.vmem %s4, 56
    %v2287 = vld [vmem:[%s2286] sm:$0x3f]
    %v2289 = vsel %vm1011, %v2275, 0
    %v2292 = vsel %vm1011, %v2276, 0
    %v2295 = vsel %vm1011, %v2277, 0
    %v2298 = vsel %vm1011, %v2278, 0
    %v2301 = vsel %vm1011, %v2279, 0
    %v2304 = vsel %vm1011, %v2280, 0
    %v2307 = vsel %vm1011, %v2281, 0
    %v2310 = vsel %vm1011, %v2282, 0
    %v2313 = vsel %vm1011, %v2283, 0
    %v2316 = vsel %vm1011, %v2284, 0
    %v2319 = vsel %vm1011, %v2285, 0
    %v2322 = vsel %vm1095, %v2287, 0
    %2324 = vmatprep.subr.mxu0 0.0
    %2325 = vmatpush1.msra.mxu0 0.0
    %2326 = vmatprep.subr.mxu0 0.0
    %2327 = vmatpush1.msra.mxu0 0.0
    %2328 = vmatprep.subr.mxu0 0.0
    %2329 = vmatpush1.msra.mxu0 0.0
    %2330 = vmatprep.subr.mxu0 0.0
    %2331 = vmatpush1.msra.mxu0 0.0
    %2332 = vmatprep.subr.mxu0 0.0
    %2333 = vmatpush1.msra.mxu0 0.0
    %2334 = vmatprep.subr.mxu0 0.0
    %2335 = vmatpush1.msra.mxu0 0.0
    %2336 = vmatprep.subr.mxu0 0.0
    %2337 = vmatpush1.msra.mxu0 0.0
    %2338 = vmatprep.subr.mxu0 0.0
    %2339 = vmatpush1.msra.mxu0 0.0
    %2340 = vmatprep.subr.mxu0 0.0
    %2341 = vmatpush1.msra.mxu0 0.0
    %2342 = vmatprep.subr.mxu0 0.0
    %2343 = vmatpush1.msra.mxu0 0.0
    %2344 = vmatprep.subr.mxu0 0.0
    %2345 = vmatpush1.msra.mxu0 0.0
    %2346 = vmatprep.subr.mxu0 0.0
    %2347 = vmatpush1.msra.mxu0 0.0
    %2348 = vmatprep.subr.mxu0 0.0
    %2349 = vmatpush1.msra.mxu0 0.0
    %2350 = vmatprep.subr.mxu0 0.0
    %2351 = vmatpush1.msra.mxu0 0.0
    %2352 = vmatprep.subr.mxu0 0.0
    %2353 = vmatpush1.msra.mxu0 0.0
    %2354 = vmatprep.subr.mxu0 0.0
    %2355 = vmatpush1.msra.mxu0 %v2322
    %2356 = vmatprep.subr.mxu0 0.0
    %2357 = vmatpush2.msra.mxu0 0.0
    %2358 = vmatprep.subr.mxu0 0.0
    %2359 = vmatpush2.msra.mxu0 0.0
    %2360 = vmatprep.subr.mxu0 0.0
    %2361 = vmatpush2.msra.mxu0 0.0
    %2362 = vmatprep.subr.mxu0 0.0
    %2363 = vmatpush2.msra.mxu0 0.0
    %2364 = vmatprep.subr.mxu0 0.0
    %2365 = vmatpush2.msra.mxu0 0.0
    %2366 = vmatprep.subr.mxu0 0.0
    %2367 = vmatpush2.msra.mxu0 0.0
    %2368 = vmatprep.subr.mxu0 0.0
    %2369 = vmatpush2.msra.mxu0 0.0
    %2370 = vmatprep.subr.mxu0 0.0
    %2371 = vmatpush2.msra.mxu0 0.0
    %2372 = vmatprep.subr.mxu0 0.0
    %2373 = vmatpush2.msra.mxu0 0.0
    %2374 = vmatprep.subr.mxu0 0.0
    %2375 = vmatpush2.msra.mxu0 0.0
    %2376 = vmatprep.subr.mxu0 0.0
    %2377 = vmatpush2.msra.mxu0 0.0
    %2378 = vmatprep.subr.mxu0 0.0
    %2379 = vmatpush2.msra.mxu0 0.0
    %2380 = vmatprep.subr.mxu0 0.0
    %2381 = vmatpush2.msra.mxu0 0.0
    %2382 = vmatprep.subr.mxu0 0.0
    %2383 = vmatpush2.msra.mxu0 0.0
    %2384 = vmatprep.subr.mxu0 0.0
    %2385 = vmatpush2.msra.mxu0 0.0
    %2386 = vmatprep.subr.mxu0 0.0
    %2387 = vmatpush2.msra.mxu0 0.0
    %2388 = vmatprep.mubr.f32.mxu0 0.0
    %2389 = vmatmul.mubr.f32.gmra.mxu0 %v2289
    %v2390 = vpop.f32.mrf.mxu0
    %v2391 = vadd.f32 0.0, %v2390
    %v2392 = vpop.f32.mrf.mxu0
    %2393 = vmatprep.mubr.f32.mxu0 0.0
    %2394 = vmatmul.mubr.f32.gmra.mxu0 %v2292
    %v2395 = vpop.f32.mrf.mxu0
    %v2396 = vadd.f32 0.0, %v2395
    %v2397 = vpop.f32.mrf.mxu0
    %2398 = vmatprep.mubr.f32.mxu0 0.0
    %2399 = vmatmul.mubr.f32.gmra.mxu0 %v2295
    %v2400 = vpop.f32.mrf.mxu0
    %v2401 = vadd.f32 0.0, %v2400
    %v2402 = vpop.f32.mrf.mxu0
    %2403 = vmatprep.mubr.f32.mxu0 0.0
    %2404 = vmatmul.mubr.f32.gmra.mxu0 %v2298
    %v2405 = vpop.f32.mrf.mxu0
    %v2406 = vadd.f32 0.0, %v2405
    %v2407 = vpop.f32.mrf.mxu0
    %2408 = vmatprep.mubr.f32.mxu0 0.0
    %2409 = vmatmul.mubr.f32.gmra.mxu0 %v2301
    %v2410 = vpop.f32.mrf.mxu0
    %v2411 = vadd.f32 0.0, %v2410
    %v2412 = vpop.f32.mrf.mxu0
    %2413 = vmatprep.mubr.f32.mxu0 0.0
    %2414 = vmatmul.mubr.f32.gmra.mxu0 %v2304
    %v2415 = vpop.f32.mrf.mxu0
    %v2416 = vadd.f32 0.0, %v2415
    %v2417 = vpop.f32.mrf.mxu0
    %2418 = vmatprep.mubr.f32.mxu0 0.0
    %2419 = vmatmul.mubr.f32.gmra.mxu0 %v2307
    %v2420 = vpop.f32.mrf.mxu0
    %v2421 = vadd.f32 0.0, %v2420
    %v2422 = vpop.f32.mrf.mxu0
    %2423 = vmatprep.mubr.f32.mxu0 0.0
    %2424 = vmatmul.mubr.f32.gmra.mxu0 %v2310
    %v2425 = vpop.f32.mrf.mxu0
    %v2426 = vadd.f32 0.0, %v2425
    %v2427 = vpop.f32.mrf.mxu0
    %2428 = vmatprep.mubr.f32.mxu0 0.0
    %2429 = vmatmul.mubr.f32.gmra.mxu0 %v2313
    %v2430 = vpop.f32.mrf.mxu0
    %v2431 = vadd.f32 0.0, %v2430
    %v2432 = vpop.f32.mrf.mxu0
    %2433 = vmatprep.mubr.f32.mxu0 0.0
    %2434 = vmatmul.mubr.f32.gmra.mxu0 %v2316
    %v2435 = vpop.f32.mrf.mxu0
    %v2436 = vadd.f32 0.0, %v2435
    %v2437 = vpop.f32.mrf.mxu0
    %2438 = vmatprep.mubr.f32.mxu0 0.0
    %2439 = vmatmul.mubr.f32.gmra.mxu0 %v2319
    %v2440 = vpop.f32.mrf.mxu0
    %v2441 = vadd.f32 0.0, %v2440
    %v2442 = vpop.f32.mrf.mxu0
    %2443 = vdwg.mxu0
    %v2444 = vadd.f32 %v2264, %v2391
    %v2445 = vadd.f32 %v2265, %v2396
    %v2446 = vadd.f32 %v2266, %v2401
    %v2447 = vadd.f32 %v2267, %v2406
    %v2448 = vadd.f32 %v2268, %v2411
    %v2449 = vadd.f32 %v2269, %v2416
    %v2450 = vadd.f32 %v2270, %v2421
    %v2451 = vadd.f32 %v2271, %v2426
    %v2452 = vadd.f32 %v2272, %v2431
    %v2453 = vadd.f32 %v2273, %v2436
    %v2454 = vadd.f32 %v2274, %v2441
    %v2455 = vld [vmem:[#allocation2 + $0x10] sm:$0xff]
    %v2456 = vld [vmem:[#allocation2 + $0x18] sm:$0xff]
    %v2457 = vld [vmem:[#allocation2 + $0x20] sm:$0xff]
    %v2458 = vld [vmem:[#allocation2 + $0x28] sm:$0xff]
    %v2459 = vld [vmem:[#allocation2 + $0x30] sm:$0xff]
    %v2460 = vld [vmem:[#allocation2 + $0x38] sm:$0xff]
    %v2461 = vld [vmem:[#allocation2 + $0x40] sm:$0xff]
    %v2462 = vld [vmem:[#allocation2 + $0x48] sm:$0xff]
    %v2463 = vld [vmem:[#allocation2 + $0x50] sm:$0xff]
    %v2464 = vld [vmem:[#allocation2 + $0x58] sm:$0xff]
    %v2465 = vld [vmem:[#allocation2 + $0x60] sm:$0x3]
    %s2466 = scalar_lea.vmem %s4, 64
    %v2467 = vld [vmem:[%s2466] sm:$0x3f]
    %v2469 = vsel %vm1011, %v2455, 0
    %v2472 = vsel %vm1011, %v2456, 0
    %v2475 = vsel %vm1011, %v2457, 0
    %v2478 = vsel %vm1011, %v2458, 0
    %v2481 = vsel %vm1011, %v2459, 0
    %v2484 = vsel %vm1011, %v2460, 0
    %v2487 = vsel %vm1011, %v2461, 0
    %v2490 = vsel %vm1011, %v2462, 0
    %v2493 = vsel %vm1011, %v2463, 0
    %v2496 = vsel %vm1011, %v2464, 0
    %v2499 = vsel %vm1011, %v2465, 0
    %v2502 = vsel %vm1095, %v2467, 0
    %2504 = vmatprep.subr.mxu0 0.0
    %2505 = vmatpush1.msra.mxu0 0.0
    %2506 = vmatprep.subr.mxu0 0.0
    %2507 = vmatpush1.msra.mxu0 0.0
    %2508 = vmatprep.subr.mxu0 0.0
    %2509 = vmatpush1.msra.mxu0 0.0
    %2510 = vmatprep.subr.mxu0 0.0
    %2511 = vmatpush1.msra.mxu0 0.0
    %2512 = vmatprep.subr.mxu0 0.0
    %2513 = vmatpush1.msra.mxu0 0.0
    %2514 = vmatprep.subr.mxu0 0.0
    %2515 = vmatpush1.msra.mxu0 0.0
    %2516 = vmatprep.subr.mxu0 0.0
    %2517 = vmatpush1.msra.mxu0 0.0
    %2518 = vmatprep.subr.mxu0 0.0
    %2519 = vmatpush1.msra.mxu0 0.0
    %2520 = vmatprep.subr.mxu0 0.0
    %2521 = vmatpush1.msra.mxu0 0.0
    %2522 = vmatprep.subr.mxu0 0.0
    %2523 = vmatpush1.msra.mxu0 0.0
    %2524 = vmatprep.subr.mxu0 0.0
    %2525 = vmatpush1.msra.mxu0 0.0
    %2526 = vmatprep.subr.mxu0 0.0
    %2527 = vmatpush1.msra.mxu0 0.0
    %2528 = vmatprep.subr.mxu0 0.0
    %2529 = vmatpush1.msra.mxu0 0.0
    %2530 = vmatprep.subr.mxu0 0.0
    %2531 = vmatpush1.msra.mxu0 0.0
    %2532 = vmatprep.subr.mxu0 0.0
    %2533 = vmatpush1.msra.mxu0 0.0
    %2534 = vmatprep.subr.mxu0 0.0
    %2535 = vmatpush1.msra.mxu0 %v2502
    %2536 = vmatprep.subr.mxu0 0.0
    %2537 = vmatpush2.msra.mxu0 0.0
    %2538 = vmatprep.subr.mxu0 0.0
    %2539 = vmatpush2.msra.mxu0 0.0
    %2540 = vmatprep.subr.mxu0 0.0
    %2541 = vmatpush2.msra.mxu0 0.0
    %2542 = vmatprep.subr.mxu0 0.0
    %2543 = vmatpush2.msra.mxu0 0.0
    %2544 = vmatprep.subr.mxu0 0.0
    %2545 = vmatpush2.msra.mxu0 0.0
    %2546 = vmatprep.subr.mxu0 0.0
    %2547 = vmatpush2.msra.mxu0 0.0
    %2548 = vmatprep.subr.mxu0 0.0
    %2549 = vmatpush2.msra.mxu0 0.0
    %2550 = vmatprep.subr.mxu0 0.0
    %2551 = vmatpush2.msra.mxu0 0.0
    %2552 = vmatprep.subr.mxu0 0.0
    %2553 = vmatpush2.msra.mxu0 0.0
    %2554 = vmatprep.subr.mxu0 0.0
    %2555 = vmatpush2.msra.mxu0 0.0
    %2556 = vmatprep.subr.mxu0 0.0
    %2557 = vmatpush2.msra.mxu0 0.0
    %2558 = vmatprep.subr.mxu0 0.0
    %2559 = vmatpush2.msra.mxu0 0.0
    %2560 = vmatprep.subr.mxu0 0.0
    %2561 = vmatpush2.msra.mxu0 0.0
    %2562 = vmatprep.subr.mxu0 0.0
    %2563 = vmatpush2.msra.mxu0 0.0
    %2564 = vmatprep.subr.mxu0 0.0
    %2565 = vmatpush2.msra.mxu0 0.0
    %2566 = vmatprep.subr.mxu0 0.0
    %2567 = vmatpush2.msra.mxu0 0.0
    %2568 = vmatprep.mubr.f32.mxu0 0.0
    %2569 = vmatmul.mubr.f32.gmra.mxu0 %v2469
    %v2570 = vpop.f32.mrf.mxu0
    %v2571 = vadd.f32 0.0, %v2570
    %v2572 = vpop.f32.mrf.mxu0
    %2573 = vmatprep.mubr.f32.mxu0 0.0
    %2574 = vmatmul.mubr.f32.gmra.mxu0 %v2472
    %v2575 = vpop.f32.mrf.mxu0
    %v2576 = vadd.f32 0.0, %v2575
    %v2577 = vpop.f32.mrf.mxu0
    %2578 = vmatprep.mubr.f32.mxu0 0.0
    %2579 = vmatmul.mubr.f32.gmra.mxu0 %v2475
    %v2580 = vpop.f32.mrf.mxu0
    %v2581 = vadd.f32 0.0, %v2580
    %v2582 = vpop.f32.mrf.mxu0
    %2583 = vmatprep.mubr.f32.mxu0 0.0
    %2584 = vmatmul.mubr.f32.gmra.mxu0 %v2478
    %v2585 = vpop.f32.mrf.mxu0
    %v2586 = vadd.f32 0.0, %v2585
    %v2587 = vpop.f32.mrf.mxu0
    %2588 = vmatprep.mubr.f32.mxu0 0.0
    %2589 = vmatmul.mubr.f32.gmra.mxu0 %v2481
    %v2590 = vpop.f32.mrf.mxu0
    %v2591 = vadd.f32 0.0, %v2590
    %v2592 = vpop.f32.mrf.mxu0
    %2593 = vmatprep.mubr.f32.mxu0 0.0
    %2594 = vmatmul.mubr.f32.gmra.mxu0 %v2484
    %v2595 = vpop.f32.mrf.mxu0
    %v2596 = vadd.f32 0.0, %v2595
    %v2597 = vpop.f32.mrf.mxu0
    %2598 = vmatprep.mubr.f32.mxu0 0.0
    %2599 = vmatmul.mubr.f32.gmra.mxu0 %v2487
    %v2600 = vpop.f32.mrf.mxu0
    %v2601 = vadd.f32 0.0, %v2600
    %v2602 = vpop.f32.mrf.mxu0
    %2603 = vmatprep.mubr.f32.mxu0 0.0
    %2604 = vmatmul.mubr.f32.gmra.mxu0 %v2490
    %v2605 = vpop.f32.mrf.mxu0
    %v2606 = vadd.f32 0.0, %v2605
    %v2607 = vpop.f32.mrf.mxu0
    %2608 = vmatprep.mubr.f32.mxu0 0.0
    %2609 = vmatmul.mubr.f32.gmra.mxu0 %v2493
    %v2610 = vpop.f32.mrf.mxu0
    %v2611 = vadd.f32 0.0, %v2610
    %v2612 = vpop.f32.mrf.mxu0
    %2613 = vmatprep.mubr.f32.mxu0 0.0
    %2614 = vmatmul.mubr.f32.gmra.mxu0 %v2496
    %v2615 = vpop.f32.mrf.mxu0
    %v2616 = vadd.f32 0.0, %v2615
    %v2617 = vpop.f32.mrf.mxu0
    %2618 = vmatprep.mubr.f32.mxu0 0.0
    %2619 = vmatmul.mubr.f32.gmra.mxu0 %v2499
    %v2620 = vpop.f32.mrf.mxu0
    %v2621 = vadd.f32 0.0, %v2620
    %v2622 = vpop.f32.mrf.mxu0
    %2623 = vdwg.mxu0
    %v2624 = vadd.f32 %v2444, %v2571
    %v2625 = vadd.f32 %v2445, %v2576
    %v2626 = vadd.f32 %v2446, %v2581
    %v2627 = vadd.f32 %v2447, %v2586
    %v2628 = vadd.f32 %v2448, %v2591
    %v2629 = vadd.f32 %v2449, %v2596
    %v2630 = vadd.f32 %v2450, %v2601
    %v2631 = vadd.f32 %v2451, %v2606
    %v2632 = vadd.f32 %v2452, %v2611
    %v2633 = vadd.f32 %v2453, %v2616
    %v2634 = vadd.f32 %v2454, %v2621
    %v2635 = vld [vmem:[%s5] sm:$0x1]
    %v2637 = vlaneseq
    %v2638 = vshrl.u32 %v2637, 7
    %v2639 = vsub.s32 0, %v2638
    %v2640 = vrot.slane %v2635, %v2639
    %v2642 = vadd.f32 %v2624, %v2640
    %v2643 = vadd.f32 %v2625, %v2640
    %v2644 = vadd.f32 %v2626, %v2640
    %v2645 = vadd.f32 %v2627, %v2640
    %v2646 = vadd.f32 %v2628, %v2640
    %v2647 = vadd.f32 %v2629, %v2640
    %v2648 = vadd.f32 %v2630, %v2640
    %v2649 = vadd.f32 %v2631, %v2640
    %v2650 = vadd.f32 %v2632, %v2640
    %v2651 = vadd.f32 %v2633, %v2640
    %v2652 = vadd.f32 %v2634, %v2640
    %v2653 = vmax.f32 %v2642, 0.0
    %v2654 = vmax.f32 %v2643, 0.0
    %v2655 = vmax.f32 %v2644, 0.0
    %v2656 = vmax.f32 %v2645, 0.0
    %v2657 = vmax.f32 %v2646, 0.0
    %v2658 = vmax.f32 %v2647, 0.0
    %v2659 = vmax.f32 %v2648, 0.0
    %v2660 = vmax.f32 %v2649, 0.0
    %v2661 = vmax.f32 %v2650, 0.0
    %v2662 = vmax.f32 %v2651, 0.0
    %v2663 = vmax.f32 %v2652, 0.0
    %v2664 = vmul.f32 %v2653, %v948
    %v2665 = vmul.f32 %v2654, %v953
    %v2666 = vmul.f32 %v2655, %v958
    %v2667 = vmul.f32 %v2656, %v963
    %v2668 = vmul.f32 %v2657, %v968
    %v2669 = vmul.f32 %v2658, %v973
    %v2670 = vmul.f32 %v2659, %v978
    %v2671 = vmul.f32 %v2660, %v983
    %v2672 = vmul.f32 %v2661, %v988
    %v2673 = vmul.f32 %v2662, %v993
    %v2674 = vmul.f32 %v2663, %v998
    %2675 = vst.msk [vmem:[#allocation2 + $0x8] sm:$0xff] %vm1011, %v2664
    %2676 = vst.msk [vmem:[#allocation2 + $0x10] sm:$0xff] %vm1011, %v2665
    %2677 = vst.msk [vmem:[#allocation2 + $0x18] sm:$0xff] %vm1011, %v2666
    %2678 = vst.msk [vmem:[#allocation2 + $0x20] sm:$0xff] %vm1011, %v2667
    %2679 = vst.msk [vmem:[#allocation2 + $0x28] sm:$0xff] %vm1011, %v2668
    %2680 = vst.msk [vmem:[#allocation2 + $0x30] sm:$0xff] %vm1011, %v2669
    %2681 = vst.msk [vmem:[#allocation2 + $0x38] sm:$0xff] %vm1011, %v2670
    %2682 = vst.msk [vmem:[#allocation2 + $0x40] sm:$0xff] %vm1011, %v2671
    %2683 = vst.msk [vmem:[#allocation2 + $0x48] sm:$0xff] %vm1011, %v2672
    %2684 = vst.msk [vmem:[#allocation2 + $0x50] sm:$0xff] %vm1011, %v2673
    %2685 = vst.msk [vmem:[#allocation2 + $0x58] sm:$0x3] %vm1024, %v2674
    %v2686 = vld [vmem:[#allocation2] sm:$0xff]
    %v2687 = vld [vmem:[#allocation2 + $0x8] sm:$0xff]
    %v2688 = vld [vmem:[#allocation2 + $0x10] sm:$0xff]
    %v2689 = vld [vmem:[#allocation2 + $0x18] sm:$0xff]
    %v2690 = vld [vmem:[#allocation2 + $0x20] sm:$0xff]
    %v2691 = vld [vmem:[#allocation2 + $0x28] sm:$0xff]
    %v2692 = vld [vmem:[#allocation2 + $0x30] sm:$0xff]
    %v2693 = vld [vmem:[#allocation2 + $0x38] sm:$0xff]
    %v2694 = vld [vmem:[#allocation2 + $0x40] sm:$0xff]
    %v2695 = vld [vmem:[#allocation2 + $0x48] sm:$0xff]
    %v2696 = vld [vmem:[#allocation2 + $0x50] sm:$0x3]
    %v2697 = vld [vmem:[%s6] sm:$0x3f]
    %v2698 = vld [vmem:[#allocation2 + $0x1] sm:$0xff]
    %v2699 = vld [vmem:[#allocation2 + $0x9] sm:$0xff]
    %v2700 = vld [vmem:[#allocation2 + $0x11] sm:$0xff]
    %v2701 = vld [vmem:[#allocation2 + $0x19] sm:$0xff]
    %v2702 = vld [vmem:[#allocation2 + $0x21] sm:$0xff]
    %v2703 = vld [vmem:[#allocation2 + $0x29] sm:$0xff]
    %v2704 = vld [vmem:[#allocation2 + $0x31] sm:$0xff]
    %v2705 = vld [vmem:[#allocation2 + $0x39] sm:$0xff]
    %v2706 = vld [vmem:[#allocation2 + $0x41] sm:$0xff]
    %v2707 = vld [vmem:[#allocation2 + $0x49] sm:$0xff]
    %v2708 = vld [vmem:[#allocation2 + $0x51] sm:$0x3]
    %s2709 = scalar_lea.vmem %s6, 8
    %v2710 = vld [vmem:[%s2709] sm:$0x3f]
    %v2712 = vsel %vm1011, %v2698, 0
    %v2715 = vsel %vm1011, %v2699, 0
    %v2718 = vsel %vm1011, %v2700, 0
    %v2721 = vsel %vm1011, %v2701, 0
    %v2724 = vsel %vm1011, %v2702, 0
    %v2727 = vsel %vm1011, %v2703, 0
    %v2730 = vsel %vm1011, %v2704, 0
    %v2733 = vsel %vm1011, %v2705, 0
    %v2736 = vsel %vm1011, %v2706, 0
    %v2739 = vsel %vm1011, %v2707, 0
    %v2742 = vsel %vm1011, %v2708, 0
    %v2745 = vsel %vm1095, %v2710, 0
    %2747 = vmatprep.subr.mxu0 0.0
    %2748 = vmatpush1.msra.mxu0 0.0
    %2749 = vmatprep.subr.mxu0 0.0
    %2750 = vmatpush1.msra.mxu0 0.0
    %2751 = vmatprep.subr.mxu0 0.0
    %2752 = vmatpush1.msra.mxu0 0.0
    %2753 = vmatprep.subr.mxu0 0.0
    %2754 = vmatpush1.msra.mxu0 0.0
    %2755 = vmatprep.subr.mxu0 0.0
    %2756 = vmatpush1.msra.mxu0 0.0
    %2757 = vmatprep.subr.mxu0 0.0
    %2758 = vmatpush1.msra.mxu0 0.0
    %2759 = vmatprep.subr.mxu0 0.0
    %2760 = vmatpush1.msra.mxu0 0.0
    %2761 = vmatprep.subr.mxu0 0.0
    %2762 = vmatpush1.msra.mxu0 0.0
    %2763 = vmatprep.subr.mxu0 0.0
    %2764 = vmatpush1.msra.mxu0 0.0
    %2765 = vmatprep.subr.mxu0 0.0
    %2766 = vmatpush1.msra.mxu0 0.0
    %2767 = vmatprep.subr.mxu0 0.0
    %2768 = vmatpush1.msra.mxu0 0.0
    %2769 = vmatprep.subr.mxu0 0.0
    %2770 = vmatpush1.msra.mxu0 0.0
    %2771 = vmatprep.subr.mxu0 0.0
    %2772 = vmatpush1.msra.mxu0 0.0
    %2773 = vmatprep.subr.mxu0 0.0
    %2774 = vmatpush1.msra.mxu0 0.0
    %2775 = vmatprep.subr.mxu0 0.0
    %2776 = vmatpush1.msra.mxu0 0.0
    %2777 = vmatprep.subr.mxu0 0.0
    %2778 = vmatpush1.msra.mxu0 %v2745
    %2779 = vmatprep.subr.mxu0 0.0
    %2780 = vmatpush2.msra.mxu0 0.0
    %2781 = vmatprep.subr.mxu0 0.0
    %2782 = vmatpush2.msra.mxu0 0.0
    %2783 = vmatprep.subr.mxu0 0.0
    %2784 = vmatpush2.msra.mxu0 0.0
    %2785 = vmatprep.subr.mxu0 0.0
    %2786 = vmatpush2.msra.mxu0 0.0
    %2787 = vmatprep.subr.mxu0 0.0
    %2788 = vmatpush2.msra.mxu0 0.0
    %2789 = vmatprep.subr.mxu0 0.0
    %2790 = vmatpush2.msra.mxu0 0.0
    %2791 = vmatprep.subr.mxu0 0.0
    %2792 = vmatpush2.msra.mxu0 0.0
    %2793 = vmatprep.subr.mxu0 0.0
    %2794 = vmatpush2.msra.mxu0 0.0
    %2795 = vmatprep.subr.mxu0 0.0
    %2796 = vmatpush2.msra.mxu0 0.0
    %2797 = vmatprep.subr.mxu0 0.0
    %2798 = vmatpush2.msra.mxu0 0.0
    %2799 = vmatprep.subr.mxu0 0.0
    %2800 = vmatpush2.msra.mxu0 0.0
    %2801 = vmatprep.subr.mxu0 0.0
    %2802 = vmatpush2.msra.mxu0 0.0
    %2803 = vmatprep.subr.mxu0 0.0
    %2804 = vmatpush2.msra.mxu0 0.0
    %2805 = vmatprep.subr.mxu0 0.0
    %2806 = vmatpush2.msra.mxu0 0.0
    %2807 = vmatprep.subr.mxu0 0.0
    %2808 = vmatpush2.msra.mxu0 0.0
    %2809 = vmatprep.subr.mxu0 0.0
    %2810 = vmatpush2.msra.mxu0 0.0
    %2811 = vmatprep.mubr.f32.mxu0 0.0
    %2812 = vmatmul.mubr.f32.gmra.mxu0 %v2712
    %v2813 = vpop.f32.mrf.mxu0
    %v2814 = vadd.f32 0.0, %v2813
    %v2815 = vpop.f32.mrf.mxu0
    %2816 = vmatprep.mubr.f32.mxu0 0.0
    %2817 = vmatmul.mubr.f32.gmra.mxu0 %v2715
    %v2818 = vpop.f32.mrf.mxu0
    %v2819 = vadd.f32 0.0, %v2818
    %v2820 = vpop.f32.mrf.mxu0
    %2821 = vmatprep.mubr.f32.mxu0 0.0
    %2822 = vmatmul.mubr.f32.gmra.mxu0 %v2718
    %v2823 = vpop.f32.mrf.mxu0
    %v2824 = vadd.f32 0.0, %v2823
    %v2825 = vpop.f32.mrf.mxu0
    %2826 = vmatprep.mubr.f32.mxu0 0.0
    %2827 = vmatmul.mubr.f32.gmra.mxu0 %v2721
    %v2828 = vpop.f32.mrf.mxu0
    %v2829 = vadd.f32 0.0, %v2828
    %v2830 = vpop.f32.mrf.mxu0
    %2831 = vmatprep.mubr.f32.mxu0 0.0
    %2832 = vmatmul.mubr.f32.gmra.mxu0 %v2724
    %v2833 = vpop.f32.mrf.mxu0
    %v2834 = vadd.f32 0.0, %v2833
    %v2835 = vpop.f32.mrf.mxu0
    %2836 = vmatprep.mubr.f32.mxu0 0.0
    %2837 = vmatmul.mubr.f32.gmra.mxu0 %v2727
    %v2838 = vpop.f32.mrf.mxu0
    %v2839 = vadd.f32 0.0, %v2838
    %v2840 = vpop.f32.mrf.mxu0
    %2841 = vmatprep.mubr.f32.mxu0 0.0
    %2842 = vmatmul.mubr.f32.gmra.mxu0 %v2730
    %v2843 = vpop.f32.mrf.mxu0
    %v2844 = vadd.f32 0.0, %v2843
    %v2845 = vpop.f32.mrf.mxu0
    %2846 = vmatprep.mubr.f32.mxu0 0.0
    %2847 = vmatmul.mubr.f32.gmra.mxu0 %v2733
    %v2848 = vpop.f32.mrf.mxu0
    %v2849 = vadd.f32 0.0, %v2848
    %v2850 = vpop.f32.mrf.mxu0
    %2851 = vmatprep.mubr.f32.mxu0 0.0
    %2852 = vmatmul.mubr.f32.gmra.mxu0 %v2736
    %v2853 = vpop.f32.mrf.mxu0
    %v2854 = vadd.f32 0.0, %v2853
    %v2855 = vpop.f32.mrf.mxu0
    %2856 = vmatprep.mubr.f32.mxu0 0.0
    %2857 = vmatmul.mubr.f32.gmra.mxu0 %v2739
    %v2858 = vpop.f32.mrf.mxu0
    %v2859 = vadd.f32 0.0, %v2858
    %v2860 = vpop.f32.mrf.mxu0
    %2861 = vmatprep.mubr.f32.mxu0 0.0
    %2862 = vmatmul.mubr.f32.gmra.mxu0 %v2742
    %v2863 = vpop.f32.mrf.mxu0
    %v2864 = vadd.f32 0.0, %v2863
    %v2865 = vpop.f32.mrf.mxu0
    %2866 = vdwg.mxu0
    %v2868 = vsel %vm1011, %v2686, 0
    %v2871 = vsel %vm1011, %v2687, 0
    %v2874 = vsel %vm1011, %v2688, 0
    %v2877 = vsel %vm1011, %v2689, 0
    %v2880 = vsel %vm1011, %v2690, 0
    %v2883 = vsel %vm1011, %v2691, 0
    %v2886 = vsel %vm1011, %v2692, 0
    %v2889 = vsel %vm1011, %v2693, 0
    %v2892 = vsel %vm1011, %v2694, 0
    %v2895 = vsel %vm1011, %v2695, 0
    %v2898 = vsel %vm1011, %v2696, 0
    %v2901 = vsel %vm1095, %v2697, 0
    %2903 = vmatprep.subr.mxu0 0.0
    %2904 = vmatpush1.msra.mxu0 0.0
    %2905 = vmatprep.subr.mxu0 0.0
    %2906 = vmatpush1.msra.mxu0 0.0
    %2907 = vmatprep.subr.mxu0 0.0
    %2908 = vmatpush1.msra.mxu0 0.0
    %2909 = vmatprep.subr.mxu0 0.0
    %2910 = vmatpush1.msra.mxu0 0.0
    %2911 = vmatprep.subr.mxu0 0.0
    %2912 = vmatpush1.msra.mxu0 0.0
    %2913 = vmatprep.subr.mxu0 0.0
    %2914 = vmatpush1.msra.mxu0 0.0
    %2915 = vmatprep.subr.mxu0 0.0
    %2916 = vmatpush1.msra.mxu0 0.0
    %2917 = vmatprep.subr.mxu0 0.0
    %2918 = vmatpush1.msra.mxu0 0.0
    %2919 = vmatprep.subr.mxu0 0.0
    %2920 = vmatpush1.msra.mxu0 0.0
    %2921 = vmatprep.subr.mxu0 0.0
    %2922 = vmatpush1.msra.mxu0 0.0
    %2923 = vmatprep.subr.mxu0 0.0
    %2924 = vmatpush1.msra.mxu0 0.0
    %2925 = vmatprep.subr.mxu0 0.0
    %2926 = vmatpush1.msra.mxu0 0.0
    %2927 = vmatprep.subr.mxu0 0.0
    %2928 = vmatpush1.msra.mxu0 0.0
    %2929 = vmatprep.subr.mxu0 0.0
    %2930 = vmatpush1.msra.mxu0 0.0
    %2931 = vmatprep.subr.mxu0 0.0
    %2932 = vmatpush1.msra.mxu0 0.0
    %2933 = vmatprep.subr.mxu0 0.0
    %2934 = vmatpush1.msra.mxu0 %v2901
    %2935 = vmatprep.subr.mxu0 0.0
    %2936 = vmatpush2.msra.mxu0 0.0
    %2937 = vmatprep.subr.mxu0 0.0
    %2938 = vmatpush2.msra.mxu0 0.0
    %2939 = vmatprep.subr.mxu0 0.0
    %2940 = vmatpush2.msra.mxu0 0.0
    %2941 = vmatprep.subr.mxu0 0.0
    %2942 = vmatpush2.msra.mxu0 0.0
    %2943 = vmatprep.subr.mxu0 0.0
    %2944 = vmatpush2.msra.mxu0 0.0
    %2945 = vmatprep.subr.mxu0 0.0
    %2946 = vmatpush2.msra.mxu0 0.0
    %2947 = vmatprep.subr.mxu0 0.0
    %2948 = vmatpush2.msra.mxu0 0.0
    %2949 = vmatprep.subr.mxu0 0.0
    %2950 = vmatpush2.msra.mxu0 0.0
    %2951 = vmatprep.subr.mxu0 0.0
    %2952 = vmatpush2.msra.mxu0 0.0
    %2953 = vmatprep.subr.mxu0 0.0
    %2954 = vmatpush2.msra.mxu0 0.0
    %2955 = vmatprep.subr.mxu0 0.0
    %2956 = vmatpush2.msra.mxu0 0.0
    %2957 = vmatprep.subr.mxu0 0.0
    %2958 = vmatpush2.msra.mxu0 0.0
    %2959 = vmatprep.subr.mxu0 0.0
    %2960 = vmatpush2.msra.mxu0 0.0
    %2961 = vmatprep.subr.mxu0 0.0
    %2962 = vmatpush2.msra.mxu0 0.0
    %2963 = vmatprep.subr.mxu0 0.0
    %2964 = vmatpush2.msra.mxu0 0.0
    %2965 = vmatprep.subr.mxu0 0.0
    %2966 = vmatpush2.msra.mxu0 0.0
    %2967 = vmatprep.mubr.f32.mxu0 0.0
    %2968 = vmatmul.mubr.f32.gmra.mxu0 %v2868
    %v2969 = vpop.f32.mrf.mxu0
    %v2970 = vadd.f32 %v2814, %v2969
    %v2971 = vpop.f32.mrf.mxu0
    %2972 = vmatprep.mubr.f32.mxu0 0.0
    %2973 = vmatmul.mubr.f32.gmra.mxu0 %v2871
    %v2974 = vpop.f32.mrf.mxu0
    %v2975 = vadd.f32 %v2819, %v2974
    %v2976 = vpop.f32.mrf.mxu0
    %2977 = vmatprep.mubr.f32.mxu0 0.0
    %2978 = vmatmul.mubr.f32.gmra.mxu0 %v2874
    %v2979 = vpop.f32.mrf.mxu0
    %v2980 = vadd.f32 %v2824, %v2979
    %v2981 = vpop.f32.mrf.mxu0
    %2982 = vmatprep.mubr.f32.mxu0 0.0
    %2983 = vmatmul.mubr.f32.gmra.mxu0 %v2877
    %v2984 = vpop.f32.mrf.mxu0
    %v2985 = vadd.f32 %v2829, %v2984
    %v2986 = vpop.f32.mrf.mxu0
    %2987 = vmatprep.mubr.f32.mxu0 0.0
    %2988 = vmatmul.mubr.f32.gmra.mxu0 %v2880
    %v2989 = vpop.f32.mrf.mxu0
    %v2990 = vadd.f32 %v2834, %v2989
    %v2991 = vpop.f32.mrf.mxu0
    %2992 = vmatprep.mubr.f32.mxu0 0.0
    %2993 = vmatmul.mubr.f32.gmra.mxu0 %v2883
    %v2994 = vpop.f32.mrf.mxu0
    %v2995 = vadd.f32 %v2839, %v2994
    %v2996 = vpop.f32.mrf.mxu0
    %2997 = vmatprep.mubr.f32.mxu0 0.0
    %2998 = vmatmul.mubr.f32.gmra.mxu0 %v2886
    %v2999 = vpop.f32.mrf.mxu0
    %v3000 = vadd.f32 %v2844, %v2999
    %v3001 = vpop.f32.mrf.mxu0
    %3002 = vmatprep.mubr.f32.mxu0 0.0
    %3003 = vmatmul.mubr.f32.gmra.mxu0 %v2889
    %v3004 = vpop.f32.mrf.mxu0
    %v3005 = vadd.f32 %v2849, %v3004
    %v3006 = vpop.f32.mrf.mxu0
    %3007 = vmatprep.mubr.f32.mxu0 0.0
    %3008 = vmatmul.mubr.f32.gmra.mxu0 %v2892
    %v3009 = vpop.f32.mrf.mxu0
    %v3010 = vadd.f32 %v2854, %v3009
    %v3011 = vpop.f32.mrf.mxu0
    %3012 = vmatprep.mubr.f32.mxu0 0.0
    %3013 = vmatmul.mubr.f32.gmra.mxu0 %v2895
    %v3014 = vpop.f32.mrf.mxu0
    %v3015 = vadd.f32 %v2859, %v3014
    %v3016 = vpop.f32.mrf.mxu0
    %3017 = vmatprep.mubr.f32.mxu0 0.0
    %3018 = vmatmul.mubr.f32.gmra.mxu0 %v2898
    %v3019 = vpop.f32.mrf.mxu0
    %v3020 = vadd.f32 %v2864, %v3019
    %v3021 = vpop.f32.mrf.mxu0
    %3022 = vdwg.mxu0
    %v3023 = vld [vmem:[#allocation2 + $0x2] sm:$0xff]
    %v3024 = vld [vmem:[#allocation2 + $0xa] sm:$0xff]
    %v3025 = vld [vmem:[#allocation2 + $0x12] sm:$0xff]
    %v3026 = vld [vmem:[#allocation2 + $0x1a] sm:$0xff]
    %v3027 = vld [vmem:[#allocation2 + $0x22] sm:$0xff]
    %v3028 = vld [vmem:[#allocation2 + $0x2a] sm:$0xff]
    %v3029 = vld [vmem:[#allocation2 + $0x32] sm:$0xff]
    %v3030 = vld [vmem:[#allocation2 + $0x3a] sm:$0xff]
    %v3031 = vld [vmem:[#allocation2 + $0x42] sm:$0xff]
    %v3032 = vld [vmem:[#allocation2 + $0x4a] sm:$0xff]
    %v3033 = vld [vmem:[#allocation2 + $0x52] sm:$0x3]
    %s3034 = scalar_lea.vmem %s6, 16
    %v3035 = vld [vmem:[%s3034] sm:$0x3f]
    %v3037 = vsel %vm1011, %v3023, 0
    %v3040 = vsel %vm1011, %v3024, 0
    %v3043 = vsel %vm1011, %v3025, 0
    %v3046 = vsel %vm1011, %v3026, 0
    %v3049 = vsel %vm1011, %v3027, 0
    %v3052 = vsel %vm1011, %v3028, 0
    %v3055 = vsel %vm1011, %v3029, 0
    %v3058 = vsel %vm1011, %v3030, 0
    %v3061 = vsel %vm1011, %v3031, 0
    %v3064 = vsel %vm1011, %v3032, 0
    %v3067 = vsel %vm1011, %v3033, 0
    %v3070 = vsel %vm1095, %v3035, 0
    %3072 = vmatprep.subr.mxu0 0.0
    %3073 = vmatpush1.msra.mxu0 0.0
    %3074 = vmatprep.subr.mxu0 0.0
    %3075 = vmatpush1.msra.mxu0 0.0
    %3076 = vmatprep.subr.mxu0 0.0
    %3077 = vmatpush1.msra.mxu0 0.0
    %3078 = vmatprep.subr.mxu0 0.0
    %3079 = vmatpush1.msra.mxu0 0.0
    %3080 = vmatprep.subr.mxu0 0.0
    %3081 = vmatpush1.msra.mxu0 0.0
    %3082 = vmatprep.subr.mxu0 0.0
    %3083 = vmatpush1.msra.mxu0 0.0
    %3084 = vmatprep.subr.mxu0 0.0
    %3085 = vmatpush1.msra.mxu0 0.0
    %3086 = vmatprep.subr.mxu0 0.0
    %3087 = vmatpush1.msra.mxu0 0.0
    %3088 = vmatprep.subr.mxu0 0.0
    %3089 = vmatpush1.msra.mxu0 0.0
    %3090 = vmatprep.subr.mxu0 0.0
    %3091 = vmatpush1.msra.mxu0 0.0
    %3092 = vmatprep.subr.mxu0 0.0
    %3093 = vmatpush1.msra.mxu0 0.0
    %3094 = vmatprep.subr.mxu0 0.0
    %3095 = vmatpush1.msra.mxu0 0.0
    %3096 = vmatprep.subr.mxu0 0.0
    %3097 = vmatpush1.msra.mxu0 0.0
    %3098 = vmatprep.subr.mxu0 0.0
    %3099 = vmatpush1.msra.mxu0 0.0
    %3100 = vmatprep.subr.mxu0 0.0
    %3101 = vmatpush1.msra.mxu0 0.0
    %3102 = vmatprep.subr.mxu0 0.0
    %3103 = vmatpush1.msra.mxu0 %v3070
    %3104 = vmatprep.subr.mxu0 0.0
    %3105 = vmatpush2.msra.mxu0 0.0
    %3106 = vmatprep.subr.mxu0 0.0
    %3107 = vmatpush2.msra.mxu0 0.0
    %3108 = vmatprep.subr.mxu0 0.0
    %3109 = vmatpush2.msra.mxu0 0.0
    %3110 = vmatprep.subr.mxu0 0.0
    %3111 = vmatpush2.msra.mxu0 0.0
    %3112 = vmatprep.subr.mxu0 0.0
    %3113 = vmatpush2.msra.mxu0 0.0
    %3114 = vmatprep.subr.mxu0 0.0
    %3115 = vmatpush2.msra.mxu0 0.0
    %3116 = vmatprep.subr.mxu0 0.0
    %3117 = vmatpush2.msra.mxu0 0.0
    %3118 = vmatprep.subr.mxu0 0.0
    %3119 = vmatpush2.msra.mxu0 0.0
    %3120 = vmatprep.subr.mxu0 0.0
    %3121 = vmatpush2.msra.mxu0 0.0
    %3122 = vmatprep.subr.mxu0 0.0
    %3123 = vmatpush2.msra.mxu0 0.0
    %3124 = vmatprep.subr.mxu0 0.0
    %3125 = vmatpush2.msra.mxu0 0.0
    %3126 = vmatprep.subr.mxu0 0.0
    %3127 = vmatpush2.msra.mxu0 0.0
    %3128 = vmatprep.subr.mxu0 0.0
    %3129 = vmatpush2.msra.mxu0 0.0
    %3130 = vmatprep.subr.mxu0 0.0
    %3131 = vmatpush2.msra.mxu0 0.0
    %3132 = vmatprep.subr.mxu0 0.0
    %3133 = vmatpush2.msra.mxu0 0.0
    %3134 = vmatprep.subr.mxu0 0.0
    %3135 = vmatpush2.msra.mxu0 0.0
    %3136 = vmatprep.mubr.f32.mxu0 0.0
    %3137 = vmatmul.mubr.f32.gmra.mxu0 %v3037
    %v3138 = vpop.f32.mrf.mxu0
    %v3139 = vadd.f32 0.0, %v3138
    %v3140 = vpop.f32.mrf.mxu0
    %3141 = vmatprep.mubr.f32.mxu0 0.0
    %3142 = vmatmul.mubr.f32.gmra.mxu0 %v3040
    %v3143 = vpop.f32.mrf.mxu0
    %v3144 = vadd.f32 0.0, %v3143
    %v3145 = vpop.f32.mrf.mxu0
    %3146 = vmatprep.mubr.f32.mxu0 0.0
    %3147 = vmatmul.mubr.f32.gmra.mxu0 %v3043
    %v3148 = vpop.f32.mrf.mxu0
    %v3149 = vadd.f32 0.0, %v3148
    %v3150 = vpop.f32.mrf.mxu0
    %3151 = vmatprep.mubr.f32.mxu0 0.0
    %3152 = vmatmul.mubr.f32.gmra.mxu0 %v3046
    %v3153 = vpop.f32.mrf.mxu0
    %v3154 = vadd.f32 0.0, %v3153
    %v3155 = vpop.f32.mrf.mxu0
    %3156 = vmatprep.mubr.f32.mxu0 0.0
    %3157 = vmatmul.mubr.f32.gmra.mxu0 %v3049
    %v3158 = vpop.f32.mrf.mxu0
    %v3159 = vadd.f32 0.0, %v3158
    %v3160 = vpop.f32.mrf.mxu0
    %3161 = vmatprep.mubr.f32.mxu0 0.0
    %3162 = vmatmul.mubr.f32.gmra.mxu0 %v3052
    %v3163 = vpop.f32.mrf.mxu0
    %v3164 = vadd.f32 0.0, %v3163
    %v3165 = vpop.f32.mrf.mxu0
    %3166 = vmatprep.mubr.f32.mxu0 0.0
    %3167 = vmatmul.mubr.f32.gmra.mxu0 %v3055
    %v3168 = vpop.f32.mrf.mxu0
    %v3169 = vadd.f32 0.0, %v3168
    %v3170 = vpop.f32.mrf.mxu0
    %3171 = vmatprep.mubr.f32.mxu0 0.0
    %3172 = vmatmul.mubr.f32.gmra.mxu0 %v3058
    %v3173 = vpop.f32.mrf.mxu0
    %v3174 = vadd.f32 0.0, %v3173
    %v3175 = vpop.f32.mrf.mxu0
    %3176 = vmatprep.mubr.f32.mxu0 0.0
    %3177 = vmatmul.mubr.f32.gmra.mxu0 %v3061
    %v3178 = vpop.f32.mrf.mxu0
    %v3179 = vadd.f32 0.0, %v3178
    %v3180 = vpop.f32.mrf.mxu0
    %3181 = vmatprep.mubr.f32.mxu0 0.0
    %3182 = vmatmul.mubr.f32.gmra.mxu0 %v3064
    %v3183 = vpop.f32.mrf.mxu0
    %v3184 = vadd.f32 0.0, %v3183
    %v3185 = vpop.f32.mrf.mxu0
    %3186 = vmatprep.mubr.f32.mxu0 0.0
    %3187 = vmatmul.mubr.f32.gmra.mxu0 %v3067
    %v3188 = vpop.f32.mrf.mxu0
    %v3189 = vadd.f32 0.0, %v3188
    %v3190 = vpop.f32.mrf.mxu0
    %3191 = vdwg.mxu0
    %v3192 = vadd.f32 %v2970, %v3139
    %v3193 = vadd.f32 %v2975, %v3144
    %v3194 = vadd.f32 %v2980, %v3149
    %v3195 = vadd.f32 %v2985, %v3154
    %v3196 = vadd.f32 %v2990, %v3159
    %v3197 = vadd.f32 %v2995, %v3164
    %v3198 = vadd.f32 %v3000, %v3169
    %v3199 = vadd.f32 %v3005, %v3174
    %v3200 = vadd.f32 %v3010, %v3179
    %v3201 = vadd.f32 %v3015, %v3184
    %v3202 = vadd.f32 %v3020, %v3189
    %v3203 = vld [vmem:[#allocation2 + $0x7] sm:$0xff]
    %v3204 = vld [vmem:[#allocation2 + $0xf] sm:$0xff]
    %v3205 = vld [vmem:[#allocation2 + $0x17] sm:$0xff]
    %v3206 = vld [vmem:[#allocation2 + $0x1f] sm:$0xff]
    %v3207 = vld [vmem:[#allocation2 + $0x27] sm:$0xff]
    %v3208 = vld [vmem:[#allocation2 + $0x2f] sm:$0xff]
    %v3209 = vld [vmem:[#allocation2 + $0x37] sm:$0xff]
    %v3210 = vld [vmem:[#allocation2 + $0x3f] sm:$0xff]
    %v3211 = vld [vmem:[#allocation2 + $0x47] sm:$0xff]
    %v3212 = vld [vmem:[#allocation2 + $0x4f] sm:$0xff]
    %v3213 = vld [vmem:[#allocation2 + $0x57] sm:$0x3]
    %s3214 = scalar_lea.vmem %s6, 24
    %v3215 = vld [vmem:[%s3214] sm:$0x3f]
    %v3217 = vsel %vm1011, %v3203, 0
    %v3220 = vsel %vm1011, %v3204, 0
    %v3223 = vsel %vm1011, %v3205, 0
    %v3226 = vsel %vm1011, %v3206, 0
    %v3229 = vsel %vm1011, %v3207, 0
    %v3232 = vsel %vm1011, %v3208, 0
    %v3235 = vsel %vm1011, %v3209, 0
    %v3238 = vsel %vm1011, %v3210, 0
    %v3241 = vsel %vm1011, %v3211, 0
    %v3244 = vsel %vm1011, %v3212, 0
    %v3247 = vsel %vm1011, %v3213, 0
    %v3250 = vsel %vm1095, %v3215, 0
    %3252 = vmatprep.subr.mxu0 0.0
    %3253 = vmatpush1.msra.mxu0 0.0
    %3254 = vmatprep.subr.mxu0 0.0
    %3255 = vmatpush1.msra.mxu0 0.0
    %3256 = vmatprep.subr.mxu0 0.0
    %3257 = vmatpush1.msra.mxu0 0.0
    %3258 = vmatprep.subr.mxu0 0.0
    %3259 = vmatpush1.msra.mxu0 0.0
    %3260 = vmatprep.subr.mxu0 0.0
    %3261 = vmatpush1.msra.mxu0 0.0
    %3262 = vmatprep.subr.mxu0 0.0
    %3263 = vmatpush1.msra.mxu0 0.0
    %3264 = vmatprep.subr.mxu0 0.0
    %3265 = vmatpush1.msra.mxu0 0.0
    %3266 = vmatprep.subr.mxu0 0.0
    %3267 = vmatpush1.msra.mxu0 0.0
    %3268 = vmatprep.subr.mxu0 0.0
    %3269 = vmatpush1.msra.mxu0 0.0
    %3270 = vmatprep.subr.mxu0 0.0
    %3271 = vmatpush1.msra.mxu0 0.0
    %3272 = vmatprep.subr.mxu0 0.0
    %3273 = vmatpush1.msra.mxu0 0.0
    %3274 = vmatprep.subr.mxu0 0.0
    %3275 = vmatpush1.msra.mxu0 0.0
    %3276 = vmatprep.subr.mxu0 0.0
    %3277 = vmatpush1.msra.mxu0 0.0
    %3278 = vmatprep.subr.mxu0 0.0
    %3279 = vmatpush1.msra.mxu0 0.0
    %3280 = vmatprep.subr.mxu0 0.0
    %3281 = vmatpush1.msra.mxu0 0.0
    %3282 = vmatprep.subr.mxu0 0.0
    %3283 = vmatpush1.msra.mxu0 %v3250
    %3284 = vmatprep.subr.mxu0 0.0
    %3285 = vmatpush2.msra.mxu0 0.0
    %3286 = vmatprep.subr.mxu0 0.0
    %3287 = vmatpush2.msra.mxu0 0.0
    %3288 = vmatprep.subr.mxu0 0.0
    %3289 = vmatpush2.msra.mxu0 0.0
    %3290 = vmatprep.subr.mxu0 0.0
    %3291 = vmatpush2.msra.mxu0 0.0
    %3292 = vmatprep.subr.mxu0 0.0
    %3293 = vmatpush2.msra.mxu0 0.0
    %3294 = vmatprep.subr.mxu0 0.0
    %3295 = vmatpush2.msra.mxu0 0.0
    %3296 = vmatprep.subr.mxu0 0.0
    %3297 = vmatpush2.msra.mxu0 0.0
    %3298 = vmatprep.subr.mxu0 0.0
    %3299 = vmatpush2.msra.mxu0 0.0
    %3300 = vmatprep.subr.mxu0 0.0
    %3301 = vmatpush2.msra.mxu0 0.0
    %3302 = vmatprep.subr.mxu0 0.0
    %3303 = vmatpush2.msra.mxu0 0.0
    %3304 = vmatprep.subr.mxu0 0.0
    %3305 = vmatpush2.msra.mxu0 0.0
    %3306 = vmatprep.subr.mxu0 0.0
    %3307 = vmatpush2.msra.mxu0 0.0
    %3308 = vmatprep.subr.mxu0 0.0
    %3309 = vmatpush2.msra.mxu0 0.0
    %3310 = vmatprep.subr.mxu0 0.0
    %3311 = vmatpush2.msra.mxu0 0.0
    %3312 = vmatprep.subr.mxu0 0.0
    %3313 = vmatpush2.msra.mxu0 0.0
    %3314 = vmatprep.subr.mxu0 0.0
    %3315 = vmatpush2.msra.mxu0 0.0
    %3316 = vmatprep.mubr.f32.mxu0 0.0
    %3317 = vmatmul.mubr.f32.gmra.mxu0 %v3217
    %v3318 = vpop.f32.mrf.mxu0
    %v3319 = vadd.f32 0.0, %v3318
    %v3320 = vpop.f32.mrf.mxu0
    %3321 = vmatprep.mubr.f32.mxu0 0.0
    %3322 = vmatmul.mubr.f32.gmra.mxu0 %v3220
    %v3323 = vpop.f32.mrf.mxu0
    %v3324 = vadd.f32 0.0, %v3323
    %v3325 = vpop.f32.mrf.mxu0
    %3326 = vmatprep.mubr.f32.mxu0 0.0
    %3327 = vmatmul.mubr.f32.gmra.mxu0 %v3223
    %v3328 = vpop.f32.mrf.mxu0
    %v3329 = vadd.f32 0.0, %v3328
    %v3330 = vpop.f32.mrf.mxu0
    %3331 = vmatprep.mubr.f32.mxu0 0.0
    %3332 = vmatmul.mubr.f32.gmra.mxu0 %v3226
    %v3333 = vpop.f32.mrf.mxu0
    %v3334 = vadd.f32 0.0, %v3333
    %v3335 = vpop.f32.mrf.mxu0
    %3336 = vmatprep.mubr.f32.mxu0 0.0
    %3337 = vmatmul.mubr.f32.gmra.mxu0 %v3229
    %v3338 = vpop.f32.mrf.mxu0
    %v3339 = vadd.f32 0.0, %v3338
    %v3340 = vpop.f32.mrf.mxu0
    %3341 = vmatprep.mubr.f32.mxu0 0.0
    %3342 = vmatmul.mubr.f32.gmra.mxu0 %v3232
    %v3343 = vpop.f32.mrf.mxu0
    %v3344 = vadd.f32 0.0, %v3343
    %v3345 = vpop.f32.mrf.mxu0
    %3346 = vmatprep.mubr.f32.mxu0 0.0
    %3347 = vmatmul.mubr.f32.gmra.mxu0 %v3235
    %v3348 = vpop.f32.mrf.mxu0
    %v3349 = vadd.f32 0.0, %v3348
    %v3350 = vpop.f32.mrf.mxu0
    %3351 = vmatprep.mubr.f32.mxu0 0.0
    %3352 = vmatmul.mubr.f32.gmra.mxu0 %v3238
    %v3353 = vpop.f32.mrf.mxu0
    %v3354 = vadd.f32 0.0, %v3353
    %v3355 = vpop.f32.mrf.mxu0
    %3356 = vmatprep.mubr.f32.mxu0 0.0
    %3357 = vmatmul.mubr.f32.gmra.mxu0 %v3241
    %v3358 = vpop.f32.mrf.mxu0
    %v3359 = vadd.f32 0.0, %v3358
    %v3360 = vpop.f32.mrf.mxu0
    %3361 = vmatprep.mubr.f32.mxu0 0.0
    %3362 = vmatmul.mubr.f32.gmra.mxu0 %v3244
    %v3363 = vpop.f32.mrf.mxu0
    %v3364 = vadd.f32 0.0, %v3363
    %v3365 = vpop.f32.mrf.mxu0
    %3366 = vmatprep.mubr.f32.mxu0 0.0
    %3367 = vmatmul.mubr.f32.gmra.mxu0 %v3247
    %v3368 = vpop.f32.mrf.mxu0
    %v3369 = vadd.f32 0.0, %v3368
    %v3370 = vpop.f32.mrf.mxu0
    %3371 = vdwg.mxu0
    %v3372 = vadd.f32 %v3192, %v3319
    %v3373 = vadd.f32 %v3193, %v3324
    %v3374 = vadd.f32 %v3194, %v3329
    %v3375 = vadd.f32 %v3195, %v3334
    %v3376 = vadd.f32 %v3196, %v3339
    %v3377 = vadd.f32 %v3197, %v3344
    %v3378 = vadd.f32 %v3198, %v3349
    %v3379 = vadd.f32 %v3199, %v3354
    %v3380 = vadd.f32 %v3200, %v3359
    %v3381 = vadd.f32 %v3201, %v3364
    %v3382 = vadd.f32 %v3202, %v3369
    %v3383 = vld [vmem:[#allocation2 + $0x8] sm:$0xff]
    %v3384 = vld [vmem:[#allocation2 + $0x10] sm:$0xff]
    %v3385 = vld [vmem:[#allocation2 + $0x18] sm:$0xff]
    %v3386 = vld [vmem:[#allocation2 + $0x20] sm:$0xff]
    %v3387 = vld [vmem:[#allocation2 + $0x28] sm:$0xff]
    %v3388 = vld [vmem:[#allocation2 + $0x30] sm:$0xff]
    %v3389 = vld [vmem:[#allocation2 + $0x38] sm:$0xff]
    %v3390 = vld [vmem:[#allocation2 + $0x40] sm:$0xff]
    %v3391 = vld [vmem:[#allocation2 + $0x48] sm:$0xff]
    %v3392 = vld [vmem:[#allocation2 + $0x50] sm:$0xff]
    %v3393 = vld [vmem:[#allocation2 + $0x58] sm:$0x3]
    %s3394 = scalar_lea.vmem %s6, 32
    %v3395 = vld [vmem:[%s3394] sm:$0x3f]
    %v3397 = vsel %vm1011, %v3383, 0
    %v3400 = vsel %vm1011, %v3384, 0
    %v3403 = vsel %vm1011, %v3385, 0
    %v3406 = vsel %vm1011, %v3386, 0
    %v3409 = vsel %vm1011, %v3387, 0
    %v3412 = vsel %vm1011, %v3388, 0
    %v3415 = vsel %vm1011, %v3389, 0
    %v3418 = vsel %vm1011, %v3390, 0
    %v3421 = vsel %vm1011, %v3391, 0
    %v3424 = vsel %vm1011, %v3392, 0
    %v3427 = vsel %vm1011, %v3393, 0
    %v3430 = vsel %vm1095, %v3395, 0
    %3432 = vmatprep.subr.mxu0 0.0
    %3433 = vmatpush1.msra.mxu0 0.0
    %3434 = vmatprep.subr.mxu0 0.0
    %3435 = vmatpush1.msra.mxu0 0.0
    %3436 = vmatprep.subr.mxu0 0.0
    %3437 = vmatpush1.msra.mxu0 0.0
    %3438 = vmatprep.subr.mxu0 0.0
    %3439 = vmatpush1.msra.mxu0 0.0
    %3440 = vmatprep.subr.mxu0 0.0
    %3441 = vmatpush1.msra.mxu0 0.0
    %3442 = vmatprep.subr.mxu0 0.0
    %3443 = vmatpush1.msra.mxu0 0.0
    %3444 = vmatprep.subr.mxu0 0.0
    %3445 = vmatpush1.msra.mxu0 0.0
    %3446 = vmatprep.subr.mxu0 0.0
    %3447 = vmatpush1.msra.mxu0 0.0
    %3448 = vmatprep.subr.mxu0 0.0
    %3449 = vmatpush1.msra.mxu0 0.0
    %3450 = vmatprep.subr.mxu0 0.0
    %3451 = vmatpush1.msra.mxu0 0.0
    %3452 = vmatprep.subr.mxu0 0.0
    %3453 = vmatpush1.msra.mxu0 0.0
    %3454 = vmatprep.subr.mxu0 0.0
    %3455 = vmatpush1.msra.mxu0 0.0
    %3456 = vmatprep.subr.mxu0 0.0
    %3457 = vmatpush1.msra.mxu0 0.0
    %3458 = vmatprep.subr.mxu0 0.0
    %3459 = vmatpush1.msra.mxu0 0.0
    %3460 = vmatprep.subr.mxu0 0.0
    %3461 = vmatpush1.msra.mxu0 0.0
    %3462 = vmatprep.subr.mxu0 0.0
    %3463 = vmatpush1.msra.mxu0 %v3430
    %3464 = vmatprep.subr.mxu0 0.0
    %3465 = vmatpush2.msra.mxu0 0.0
    %3466 = vmatprep.subr.mxu0 0.0
    %3467 = vmatpush2.msra.mxu0 0.0
    %3468 = vmatprep.subr.mxu0 0.0
    %3469 = vmatpush2.msra.mxu0 0.0
    %3470 = vmatprep.subr.mxu0 0.0
    %3471 = vmatpush2.msra.mxu0 0.0
    %3472 = vmatprep.subr.mxu0 0.0
    %3473 = vmatpush2.msra.mxu0 0.0
    %3474 = vmatprep.subr.mxu0 0.0
    %3475 = vmatpush2.msra.mxu0 0.0
    %3476 = vmatprep.subr.mxu0 0.0
    %3477 = vmatpush2.msra.mxu0 0.0
    %3478 = vmatprep.subr.mxu0 0.0
    %3479 = vmatpush2.msra.mxu0 0.0
    %3480 = vmatprep.subr.mxu0 0.0
    %3481 = vmatpush2.msra.mxu0 0.0
    %3482 = vmatprep.subr.mxu0 0.0
    %3483 = vmatpush2.msra.mxu0 0.0
    %3484 = vmatprep.subr.mxu0 0.0
    %3485 = vmatpush2.msra.mxu0 0.0
    %3486 = vmatprep.subr.mxu0 0.0
    %3487 = vmatpush2.msra.mxu0 0.0
    %3488 = vmatprep.subr.mxu0 0.0
    %3489 = vmatpush2.msra.mxu0 0.0
    %3490 = vmatprep.subr.mxu0 0.0
    %3491 = vmatpush2.msra.mxu0 0.0
    %3492 = vmatprep.subr.mxu0 0.0
    %3493 = vmatpush2.msra.mxu0 0.0
    %3494 = vmatprep.subr.mxu0 0.0
    %3495 = vmatpush2.msra.mxu0 0.0
    %3496 = vmatprep.mubr.f32.mxu0 0.0
    %3497 = vmatmul.mubr.f32.gmra.mxu0 %v3397
    %v3498 = vpop.f32.mrf.mxu0
    %v3499 = vadd.f32 0.0, %v3498
    %v3500 = vpop.f32.mrf.mxu0
    %3501 = vmatprep.mubr.f32.mxu0 0.0
    %3502 = vmatmul.mubr.f32.gmra.mxu0 %v3400
    %v3503 = vpop.f32.mrf.mxu0
    %v3504 = vadd.f32 0.0, %v3503
    %v3505 = vpop.f32.mrf.mxu0
    %3506 = vmatprep.mubr.f32.mxu0 0.0
    %3507 = vmatmul.mubr.f32.gmra.mxu0 %v3403
    %v3508 = vpop.f32.mrf.mxu0
    %v3509 = vadd.f32 0.0, %v3508
    %v3510 = vpop.f32.mrf.mxu0
    %3511 = vmatprep.mubr.f32.mxu0 0.0
    %3512 = vmatmul.mubr.f32.gmra.mxu0 %v3406
    %v3513 = vpop.f32.mrf.mxu0
    %v3514 = vadd.f32 0.0, %v3513
    %v3515 = vpop.f32.mrf.mxu0
    %3516 = vmatprep.mubr.f32.mxu0 0.0
    %3517 = vmatmul.mubr.f32.gmra.mxu0 %v3409
    %v3518 = vpop.f32.mrf.mxu0
    %v3519 = vadd.f32 0.0, %v3518
    %v3520 = vpop.f32.mrf.mxu0
    %3521 = vmatprep.mubr.f32.mxu0 0.0
    %3522 = vmatmul.mubr.f32.gmra.mxu0 %v3412
    %v3523 = vpop.f32.mrf.mxu0
    %v3524 = vadd.f32 0.0, %v3523
    %v3525 = vpop.f32.mrf.mxu0
    %3526 = vmatprep.mubr.f32.mxu0 0.0
    %3527 = vmatmul.mubr.f32.gmra.mxu0 %v3415
    %v3528 = vpop.f32.mrf.mxu0
    %v3529 = vadd.f32 0.0, %v3528
    %v3530 = vpop.f32.mrf.mxu0
    %3531 = vmatprep.mubr.f32.mxu0 0.0
    %3532 = vmatmul.mubr.f32.gmra.mxu0 %v3418
    %v3533 = vpop.f32.mrf.mxu0
    %v3534 = vadd.f32 0.0, %v3533
    %v3535 = vpop.f32.mrf.mxu0
    %3536 = vmatprep.mubr.f32.mxu0 0.0
    %3537 = vmatmul.mubr.f32.gmra.mxu0 %v3421
    %v3538 = vpop.f32.mrf.mxu0
    %v3539 = vadd.f32 0.0, %v3538
    %v3540 = vpop.f32.mrf.mxu0
    %3541 = vmatprep.mubr.f32.mxu0 0.0
    %3542 = vmatmul.mubr.f32.gmra.mxu0 %v3424
    %v3543 = vpop.f32.mrf.mxu0
    %v3544 = vadd.f32 0.0, %v3543
    %v3545 = vpop.f32.mrf.mxu0
    %3546 = vmatprep.mubr.f32.mxu0 0.0
    %3547 = vmatmul.mubr.f32.gmra.mxu0 %v3427
    %v3548 = vpop.f32.mrf.mxu0
    %v3549 = vadd.f32 0.0, %v3548
    %v3550 = vpop.f32.mrf.mxu0
    %3551 = vdwg.mxu0
    %v3552 = vadd.f32 %v3372, %v3499
    %v3553 = vadd.f32 %v3373, %v3504
    %v3554 = vadd.f32 %v3374, %v3509
    %v3555 = vadd.f32 %v3375, %v3514
    %v3556 = vadd.f32 %v3376, %v3519
    %v3557 = vadd.f32 %v3377, %v3524
    %v3558 = vadd.f32 %v3378, %v3529
    %v3559 = vadd.f32 %v3379, %v3534
    %v3560 = vadd.f32 %v3380, %v3539
    %v3561 = vadd.f32 %v3381, %v3544
    %v3562 = vadd.f32 %v3382, %v3549
    %v3563 = vld [vmem:[#allocation2 + $0x9] sm:$0xff]
    %v3564 = vld [vmem:[#allocation2 + $0x11] sm:$0xff]
    %v3565 = vld [vmem:[#allocation2 + $0x19] sm:$0xff]
    %v3566 = vld [vmem:[#allocation2 + $0x21] sm:$0xff]
    %v3567 = vld [vmem:[#allocation2 + $0x29] sm:$0xff]
    %v3568 = vld [vmem:[#allocation2 + $0x31] sm:$0xff]
    %v3569 = vld [vmem:[#allocation2 + $0x39] sm:$0xff]
    %v3570 = vld [vmem:[#allocation2 + $0x41] sm:$0xff]
    %v3571 = vld [vmem:[#allocation2 + $0x49] sm:$0xff]
    %v3572 = vld [vmem:[#allocation2 + $0x51] sm:$0xff]
    %v3573 = vld [vmem:[#allocation2 + $0x59] sm:$0x3]
    %s3574 = scalar_lea.vmem %s6, 40
    %v3575 = vld [vmem:[%s3574] sm:$0x3f]
    %v3577 = vsel %vm1011, %v3563, 0
    %v3580 = vsel %vm1011, %v3564, 0
    %v3583 = vsel %vm1011, %v3565, 0
    %v3586 = vsel %vm1011, %v3566, 0
    %v3589 = vsel %vm1011, %v3567, 0
    %v3592 = vsel %vm1011, %v3568, 0
    %v3595 = vsel %vm1011, %v3569, 0
    %v3598 = vsel %vm1011, %v3570, 0
    %v3601 = vsel %vm1011, %v3571, 0
    %v3604 = vsel %vm1011, %v3572, 0
    %v3607 = vsel %vm1011, %v3573, 0
    %v3610 = vsel %vm1095, %v3575, 0
    %3612 = vmatprep.subr.mxu0 0.0
    %3613 = vmatpush1.msra.mxu0 0.0
    %3614 = vmatprep.subr.mxu0 0.0
    %3615 = vmatpush1.msra.mxu0 0.0
    %3616 = vmatprep.subr.mxu0 0.0
    %3617 = vmatpush1.msra.mxu0 0.0
    %3618 = vmatprep.subr.mxu0 0.0
    %3619 = vmatpush1.msra.mxu0 0.0
    %3620 = vmatprep.subr.mxu0 0.0
    %3621 = vmatpush1.msra.mxu0 0.0
    %3622 = vmatprep.subr.mxu0 0.0
    %3623 = vmatpush1.msra.mxu0 0.0
    %3624 = vmatprep.subr.mxu0 0.0
    %3625 = vmatpush1.msra.mxu0 0.0
    %3626 = vmatprep.subr.mxu0 0.0
    %3627 = vmatpush1.msra.mxu0 0.0
    %3628 = vmatprep.subr.mxu0 0.0
    %3629 = vmatpush1.msra.mxu0 0.0
    %3630 = vmatprep.subr.mxu0 0.0
    %3631 = vmatpush1.msra.mxu0 0.0
    %3632 = vmatprep.subr.mxu0 0.0
    %3633 = vmatpush1.msra.mxu0 0.0
    %3634 = vmatprep.subr.mxu0 0.0
    %3635 = vmatpush1.msra.mxu0 0.0
    %3636 = vmatprep.subr.mxu0 0.0
    %3637 = vmatpush1.msra.mxu0 0.0
    %3638 = vmatprep.subr.mxu0 0.0
    %3639 = vmatpush1.msra.mxu0 0.0
    %3640 = vmatprep.subr.mxu0 0.0
    %3641 = vmatpush1.msra.mxu0 0.0
    %3642 = vmatprep.subr.mxu0 0.0
    %3643 = vmatpush1.msra.mxu0 %v3610
    %3644 = vmatprep.subr.mxu0 0.0
    %3645 = vmatpush2.msra.mxu0 0.0
    %3646 = vmatprep.subr.mxu0 0.0
    %3647 = vmatpush2.msra.mxu0 0.0
    %3648 = vmatprep.subr.mxu0 0.0
    %3649 = vmatpush2.msra.mxu0 0.0
    %3650 = vmatprep.subr.mxu0 0.0
    %3651 = vmatpush2.msra.mxu0 0.0
    %3652 = vmatprep.subr.mxu0 0.0
    %3653 = vmatpush2.msra.mxu0 0.0
    %3654 = vmatprep.subr.mxu0 0.0
    %3655 = vmatpush2.msra.mxu0 0.0
    %3656 = vmatprep.subr.mxu0 0.0
    %3657 = vmatpush2.msra.mxu0 0.0
    %3658 = vmatprep.subr.mxu0 0.0
    %3659 = vmatpush2.msra.mxu0 0.0
    %3660 = vmatprep.subr.mxu0 0.0
    %3661 = vmatpush2.msra.mxu0 0.0
    %3662 = vmatprep.subr.mxu0 0.0
    %3663 = vmatpush2.msra.mxu0 0.0
    %3664 = vmatprep.subr.mxu0 0.0
    %3665 = vmatpush2.msra.mxu0 0.0
    %3666 = vmatprep.subr.mxu0 0.0
    %3667 = vmatpush2.msra.mxu0 0.0
    %3668 = vmatprep.subr.mxu0 0.0
    %3669 = vmatpush2.msra.mxu0 0.0
    %3670 = vmatprep.subr.mxu0 0.0
    %3671 = vmatpush2.msra.mxu0 0.0
    %3672 = vmatprep.subr.mxu0 0.0
    %3673 = vmatpush2.msra.mxu0 0.0
    %3674 = vmatprep.subr.mxu0 0.0
    %3675 = vmatpush2.msra.mxu0 0.0
    %3676 = vmatprep.mubr.f32.mxu0 0.0
    %3677 = vmatmul.mubr.f32.gmra.mxu0 %v3577
    %v3678 = vpop.f32.mrf.mxu0
    %v3679 = vadd.f32 0.0, %v3678
    %v3680 = vpop.f32.mrf.mxu0
    %3681 = vmatprep.mubr.f32.mxu0 0.0
    %3682 = vmatmul.mubr.f32.gmra.mxu0 %v3580
    %v3683 = vpop.f32.mrf.mxu0
    %v3684 = vadd.f32 0.0, %v3683
    %v3685 = vpop.f32.mrf.mxu0
    %3686 = vmatprep.mubr.f32.mxu0 0.0
    %3687 = vmatmul.mubr.f32.gmra.mxu0 %v3583
    %v3688 = vpop.f32.mrf.mxu0
    %v3689 = vadd.f32 0.0, %v3688
    %v3690 = vpop.f32.mrf.mxu0
    %3691 = vmatprep.mubr.f32.mxu0 0.0
    %3692 = vmatmul.mubr.f32.gmra.mxu0 %v3586
    %v3693 = vpop.f32.mrf.mxu0
    %v3694 = vadd.f32 0.0, %v3693
    %v3695 = vpop.f32.mrf.mxu0
    %3696 = vmatprep.mubr.f32.mxu0 0.0
    %3697 = vmatmul.mubr.f32.gmra.mxu0 %v3589
    %v3698 = vpop.f32.mrf.mxu0
    %v3699 = vadd.f32 0.0, %v3698
    %v3700 = vpop.f32.mrf.mxu0
    %3701 = vmatprep.mubr.f32.mxu0 0.0
    %3702 = vmatmul.mubr.f32.gmra.mxu0 %v3592
    %v3703 = vpop.f32.mrf.mxu0
    %v3704 = vadd.f32 0.0, %v3703
    %v3705 = vpop.f32.mrf.mxu0
    %3706 = vmatprep.mubr.f32.mxu0 0.0
    %3707 = vmatmul.mubr.f32.gmra.mxu0 %v3595
    %v3708 = vpop.f32.mrf.mxu0
    %v3709 = vadd.f32 0.0, %v3708
    %v3710 = vpop.f32.mrf.mxu0
    %3711 = vmatprep.mubr.f32.mxu0 0.0
    %3712 = vmatmul.mubr.f32.gmra.mxu0 %v3598
    %v3713 = vpop.f32.mrf.mxu0
    %v3714 = vadd.f32 0.0, %v3713
    %v3715 = vpop.f32.mrf.mxu0
    %3716 = vmatprep.mubr.f32.mxu0 0.0
    %3717 = vmatmul.mubr.f32.gmra.mxu0 %v3601
    %v3718 = vpop.f32.mrf.mxu0
    %v3719 = vadd.f32 0.0, %v3718
    %v3720 = vpop.f32.mrf.mxu0
    %3721 = vmatprep.mubr.f32.mxu0 0.0
    %3722 = vmatmul.mubr.f32.gmra.mxu0 %v3604
    %v3723 = vpop.f32.mrf.mxu0
    %v3724 = vadd.f32 0.0, %v3723
    %v3725 = vpop.f32.mrf.mxu0
    %3726 = vmatprep.mubr.f32.mxu0 0.0
    %3727 = vmatmul.mubr.f32.gmra.mxu0 %v3607
    %v3728 = vpop.f32.mrf.mxu0
    %v3729 = vadd.f32 0.0, %v3728
    %v3730 = vpop.f32.mrf.mxu0
    %3731 = vdwg.mxu0
    %v3732 = vadd.f32 %v3552, %v3679
    %v3733 = vadd.f32 %v3553, %v3684
    %v3734 = vadd.f32 %v3554, %v3689
    %v3735 = vadd.f32 %v3555, %v3694
    %v3736 = vadd.f32 %v3556, %v3699
    %v3737 = vadd.f32 %v3557, %v3704
    %v3738 = vadd.f32 %v3558, %v3709
    %v3739 = vadd.f32 %v3559, %v3714
    %v3740 = vadd.f32 %v3560, %v3719
    %v3741 = vadd.f32 %v3561, %v3724
    %v3742 = vadd.f32 %v3562, %v3729
    %v3743 = vld [vmem:[#allocation2 + $0xe] sm:$0xff]
    %v3744 = vld [vmem:[#allocation2 + $0x16] sm:$0xff]
    %v3745 = vld [vmem:[#allocation2 + $0x1e] sm:$0xff]
    %v3746 = vld [vmem:[#allocation2 + $0x26] sm:$0xff]
    %v3747 = vld [vmem:[#allocation2 + $0x2e] sm:$0xff]
    %v3748 = vld [vmem:[#allocation2 + $0x36] sm:$0xff]
    %v3749 = vld [vmem:[#allocation2 + $0x3e] sm:$0xff]
    %v3750 = vld [vmem:[#allocation2 + $0x46] sm:$0xff]
    %v3751 = vld [vmem:[#allocation2 + $0x4e] sm:$0xff]
    %v3752 = vld [vmem:[#allocation2 + $0x56] sm:$0xff]
    %v3753 = vld [vmem:[#allocation2 + $0x5e] sm:$0x3]
    %s3754 = scalar_lea.vmem %s6, 48
    %v3755 = vld [vmem:[%s3754] sm:$0x3f]
    %v3757 = vsel %vm1011, %v3743, 0
    %v3760 = vsel %vm1011, %v3744, 0
    %v3763 = vsel %vm1011, %v3745, 0
    %v3766 = vsel %vm1011, %v3746, 0
    %v3769 = vsel %vm1011, %v3747, 0
    %v3772 = vsel %vm1011, %v3748, 0
    %v3775 = vsel %vm1011, %v3749, 0
    %v3778 = vsel %vm1011, %v3750, 0
    %v3781 = vsel %vm1011, %v3751, 0
    %v3784 = vsel %vm1011, %v3752, 0
    %v3787 = vsel %vm1011, %v3753, 0
    %v3790 = vsel %vm1095, %v3755, 0
    %3792 = vmatprep.subr.mxu0 0.0
    %3793 = vmatpush1.msra.mxu0 0.0
    %3794 = vmatprep.subr.mxu0 0.0
    %3795 = vmatpush1.msra.mxu0 0.0
    %3796 = vmatprep.subr.mxu0 0.0
    %3797 = vmatpush1.msra.mxu0 0.0
    %3798 = vmatprep.subr.mxu0 0.0
    %3799 = vmatpush1.msra.mxu0 0.0
    %3800 = vmatprep.subr.mxu0 0.0
    %3801 = vmatpush1.msra.mxu0 0.0
    %3802 = vmatprep.subr.mxu0 0.0
    %3803 = vmatpush1.msra.mxu0 0.0
    %3804 = vmatprep.subr.mxu0 0.0
    %3805 = vmatpush1.msra.mxu0 0.0
    %3806 = vmatprep.subr.mxu0 0.0
    %3807 = vmatpush1.msra.mxu0 0.0
    %3808 = vmatprep.subr.mxu0 0.0
    %3809 = vmatpush1.msra.mxu0 0.0
    %3810 = vmatprep.subr.mxu0 0.0
    %3811 = vmatpush1.msra.mxu0 0.0
    %3812 = vmatprep.subr.mxu0 0.0
    %3813 = vmatpush1.msra.mxu0 0.0
    %3814 = vmatprep.subr.mxu0 0.0
    %3815 = vmatpush1.msra.mxu0 0.0
    %3816 = vmatprep.subr.mxu0 0.0
    %3817 = vmatpush1.msra.mxu0 0.0
    %3818 = vmatprep.subr.mxu0 0.0
    %3819 = vmatpush1.msra.mxu0 0.0
    %3820 = vmatprep.subr.mxu0 0.0
    %3821 = vmatpush1.msra.mxu0 0.0
    %3822 = vmatprep.subr.mxu0 0.0
    %3823 = vmatpush1.msra.mxu0 %v3790
    %3824 = vmatprep.subr.mxu0 0.0
    %3825 = vmatpush2.msra.mxu0 0.0
    %3826 = vmatprep.subr.mxu0 0.0
    %3827 = vmatpush2.msra.mxu0 0.0
    %3828 = vmatprep.subr.mxu0 0.0
    %3829 = vmatpush2.msra.mxu0 0.0
    %3830 = vmatprep.subr.mxu0 0.0
    %3831 = vmatpush2.msra.mxu0 0.0
    %3832 = vmatprep.subr.mxu0 0.0
    %3833 = vmatpush2.msra.mxu0 0.0
    %3834 = vmatprep.subr.mxu0 0.0
    %3835 = vmatpush2.msra.mxu0 0.0
    %3836 = vmatprep.subr.mxu0 0.0
    %3837 = vmatpush2.msra.mxu0 0.0
    %3838 = vmatprep.subr.mxu0 0.0
    %3839 = vmatpush2.msra.mxu0 0.0
    %3840 = vmatprep.subr.mxu0 0.0
    %3841 = vmatpush2.msra.mxu0 0.0
    %3842 = vmatprep.subr.mxu0 0.0
    %3843 = vmatpush2.msra.mxu0 0.0
    %3844 = vmatprep.subr.mxu0 0.0
    %3845 = vmatpush2.msra.mxu0 0.0
    %3846 = vmatprep.subr.mxu0 0.0
    %3847 = vmatpush2.msra.mxu0 0.0
    %3848 = vmatprep.subr.mxu0 0.0
    %3849 = vmatpush2.msra.mxu0 0.0
    %3850 = vmatprep.subr.mxu0 0.0
    %3851 = vmatpush2.msra.mxu0 0.0
    %3852 = vmatprep.subr.mxu0 0.0
    %3853 = vmatpush2.msra.mxu0 0.0
    %3854 = vmatprep.subr.mxu0 0.0
    %3855 = vmatpush2.msra.mxu0 0.0
    %3856 = vmatprep.mubr.f32.mxu0 0.0
    %3857 = vmatmul.mubr.f32.gmra.mxu0 %v3757
    %v3858 = vpop.f32.mrf.mxu0
    %v3859 = vadd.f32 0.0, %v3858
    %v3860 = vpop.f32.mrf.mxu0
    %3861 = vmatprep.mubr.f32.mxu0 0.0
    %3862 = vmatmul.mubr.f32.gmra.mxu0 %v3760
    %v3863 = vpop.f32.mrf.mxu0
    %v3864 = vadd.f32 0.0, %v3863
    %v3865 = vpop.f32.mrf.mxu0
    %3866 = vmatprep.mubr.f32.mxu0 0.0
    %3867 = vmatmul.mubr.f32.gmra.mxu0 %v3763
    %v3868 = vpop.f32.mrf.mxu0
    %v3869 = vadd.f32 0.0, %v3868
    %v3870 = vpop.f32.mrf.mxu0
    %3871 = vmatprep.mubr.f32.mxu0 0.0
    %3872 = vmatmul.mubr.f32.gmra.mxu0 %v3766
    %v3873 = vpop.f32.mrf.mxu0
    %v3874 = vadd.f32 0.0, %v3873
    %v3875 = vpop.f32.mrf.mxu0
    %3876 = vmatprep.mubr.f32.mxu0 0.0
    %3877 = vmatmul.mubr.f32.gmra.mxu0 %v3769
    %v3878 = vpop.f32.mrf.mxu0
    %v3879 = vadd.f32 0.0, %v3878
    %v3880 = vpop.f32.mrf.mxu0
    %3881 = vmatprep.mubr.f32.mxu0 0.0
    %3882 = vmatmul.mubr.f32.gmra.mxu0 %v3772
    %v3883 = vpop.f32.mrf.mxu0
    %v3884 = vadd.f32 0.0, %v3883
    %v3885 = vpop.f32.mrf.mxu0
    %3886 = vmatprep.mubr.f32.mxu0 0.0
    %3887 = vmatmul.mubr.f32.gmra.mxu0 %v3775
    %v3888 = vpop.f32.mrf.mxu0
    %v3889 = vadd.f32 0.0, %v3888
    %v3890 = vpop.f32.mrf.mxu0
    %3891 = vmatprep.mubr.f32.mxu0 0.0
    %3892 = vmatmul.mubr.f32.gmra.mxu0 %v3778
    %v3893 = vpop.f32.mrf.mxu0
    %v3894 = vadd.f32 0.0, %v3893
    %v3895 = vpop.f32.mrf.mxu0
    %3896 = vmatprep.mubr.f32.mxu0 0.0
    %3897 = vmatmul.mubr.f32.gmra.mxu0 %v3781
    %v3898 = vpop.f32.mrf.mxu0
    %v3899 = vadd.f32 0.0, %v3898
    %v3900 = vpop.f32.mrf.mxu0
    %3901 = vmatprep.mubr.f32.mxu0 0.0
    %3902 = vmatmul.mubr.f32.gmra.mxu0 %v3784
    %v3903 = vpop.f32.mrf.mxu0
    %v3904 = vadd.f32 0.0, %v3903
    %v3905 = vpop.f32.mrf.mxu0
    %3906 = vmatprep.mubr.f32.mxu0 0.0
    %3907 = vmatmul.mubr.f32.gmra.mxu0 %v3787
    %v3908 = vpop.f32.mrf.mxu0
    %v3909 = vadd.f32 0.0, %v3908
    %v3910 = vpop.f32.mrf.mxu0
    %3911 = vdwg.mxu0
    %v3912 = vadd.f32 %v3732, %v3859
    %v3913 = vadd.f32 %v3733, %v3864
    %v3914 = vadd.f32 %v3734, %v3869
    %v3915 = vadd.f32 %v3735, %v3874
    %v3916 = vadd.f32 %v3736, %v3879
    %v3917 = vadd.f32 %v3737, %v3884
    %v3918 = vadd.f32 %v3738, %v3889
    %v3919 = vadd.f32 %v3739, %v3894
    %v3920 = vadd.f32 %v3740, %v3899
    %v3921 = vadd.f32 %v3741, %v3904
    %v3922 = vadd.f32 %v3742, %v3909
    %v3923 = vld [vmem:[#allocation2 + $0xf] sm:$0xff]
    %v3924 = vld [vmem:[#allocation2 + $0x17] sm:$0xff]
    %v3925 = vld [vmem:[#allocation2 + $0x1f] sm:$0xff]
    %v3926 = vld [vmem:[#allocation2 + $0x27] sm:$0xff]
    %v3927 = vld [vmem:[#allocation2 + $0x2f] sm:$0xff]
    %v3928 = vld [vmem:[#allocation2 + $0x37] sm:$0xff]
    %v3929 = vld [vmem:[#allocation2 + $0x3f] sm:$0xff]
    %v3930 = vld [vmem:[#allocation2 + $0x47] sm:$0xff]
    %v3931 = vld [vmem:[#allocation2 + $0x4f] sm:$0xff]
    %v3932 = vld [vmem:[#allocation2 + $0x57] sm:$0xff]
    %v3933 = vld [vmem:[#allocation2 + $0x5f] sm:$0x3]
    %s3934 = scalar_lea.vmem %s6, 56
    %v3935 = vld [vmem:[%s3934] sm:$0x3f]
    %v3937 = vsel %vm1011, %v3923, 0
    %v3940 = vsel %vm1011, %v3924, 0
    %v3943 = vsel %vm1011, %v3925, 0
    %v3946 = vsel %vm1011, %v3926, 0
    %v3949 = vsel %vm1011, %v3927, 0
    %v3952 = vsel %vm1011, %v3928, 0
    %v3955 = vsel %vm1011, %v3929, 0
    %v3958 = vsel %vm1011, %v3930, 0
    %v3961 = vsel %vm1011, %v3931, 0
    %v3964 = vsel %vm1011, %v3932, 0
    %v3967 = vsel %vm1011, %v3933, 0
    %v3970 = vsel %vm1095, %v3935, 0
    %3972 = vmatprep.subr.mxu0 0.0
    %3973 = vmatpush1.msra.mxu0 0.0
    %3974 = vmatprep.subr.mxu0 0.0
    %3975 = vmatpush1.msra.mxu0 0.0
    %3976 = vmatprep.subr.mxu0 0.0
    %3977 = vmatpush1.msra.mxu0 0.0
    %3978 = vmatprep.subr.mxu0 0.0
    %3979 = vmatpush1.msra.mxu0 0.0
    %3980 = vmatprep.subr.mxu0 0.0
    %3981 = vmatpush1.msra.mxu0 0.0
    %3982 = vmatprep.subr.mxu0 0.0
    %3983 = vmatpush1.msra.mxu0 0.0
    %3984 = vmatprep.subr.mxu0 0.0
    %3985 = vmatpush1.msra.mxu0 0.0
    %3986 = vmatprep.subr.mxu0 0.0
    %3987 = vmatpush1.msra.mxu0 0.0
    %3988 = vmatprep.subr.mxu0 0.0
    %3989 = vmatpush1.msra.mxu0 0.0
    %3990 = vmatprep.subr.mxu0 0.0
    %3991 = vmatpush1.msra.mxu0 0.0
    %3992 = vmatprep.subr.mxu0 0.0
    %3993 = vmatpush1.msra.mxu0 0.0
    %3994 = vmatprep.subr.mxu0 0.0
    %3995 = vmatpush1.msra.mxu0 0.0
    %3996 = vmatprep.subr.mxu0 0.0
    %3997 = vmatpush1.msra.mxu0 0.0
    %3998 = vmatprep.subr.mxu0 0.0
    %3999 = vmatpush1.msra.mxu0 0.0
    %4000 = vmatprep.subr.mxu0 0.0
    %4001 = vmatpush1.msra.mxu0 0.0
    %4002 = vmatprep.subr.mxu0 0.0
    %4003 = vmatpush1.msra.mxu0 %v3970
    %4004 = vmatprep.subr.mxu0 0.0
    %4005 = vmatpush2.msra.mxu0 0.0
    %4006 = vmatprep.subr.mxu0 0.0
    %4007 = vmatpush2.msra.mxu0 0.0
    %4008 = vmatprep.subr.mxu0 0.0
    %4009 = vmatpush2.msra.mxu0 0.0
    %4010 = vmatprep.subr.mxu0 0.0
    %4011 = vmatpush2.msra.mxu0 0.0
    %4012 = vmatprep.subr.mxu0 0.0
    %4013 = vmatpush2.msra.mxu0 0.0
    %4014 = vmatprep.subr.mxu0 0.0
    %4015 = vmatpush2.msra.mxu0 0.0
    %4016 = vmatprep.subr.mxu0 0.0
    %4017 = vmatpush2.msra.mxu0 0.0
    %4018 = vmatprep.subr.mxu0 0.0
    %4019 = vmatpush2.msra.mxu0 0.0
    %4020 = vmatprep.subr.mxu0 0.0
    %4021 = vmatpush2.msra.mxu0 0.0
    %4022 = vmatprep.subr.mxu0 0.0
    %4023 = vmatpush2.msra.mxu0 0.0
    %4024 = vmatprep.subr.mxu0 0.0
    %4025 = vmatpush2.msra.mxu0 0.0
    %4026 = vmatprep.subr.mxu0 0.0
    %4027 = vmatpush2.msra.mxu0 0.0
    %4028 = vmatprep.subr.mxu0 0.0
    %4029 = vmatpush2.msra.mxu0 0.0
    %4030 = vmatprep.subr.mxu0 0.0
    %4031 = vmatpush2.msra.mxu0 0.0
    %4032 = vmatprep.subr.mxu0 0.0
    %4033 = vmatpush2.msra.mxu0 0.0
    %4034 = vmatprep.subr.mxu0 0.0
    %4035 = vmatpush2.msra.mxu0 0.0
    %4036 = vmatprep.mubr.f32.mxu0 0.0
    %4037 = vmatmul.mubr.f32.gmra.mxu0 %v3937
    %v4038 = vpop.f32.mrf.mxu0
    %v4039 = vadd.f32 0.0, %v4038
    %v4040 = vpop.f32.mrf.mxu0
    %4041 = vmatprep.mubr.f32.mxu0 0.0
    %4042 = vmatmul.mubr.f32.gmra.mxu0 %v3940
    %v4043 = vpop.f32.mrf.mxu0
    %v4044 = vadd.f32 0.0, %v4043
    %v4045 = vpop.f32.mrf.mxu0
    %4046 = vmatprep.mubr.f32.mxu0 0.0
    %4047 = vmatmul.mubr.f32.gmra.mxu0 %v3943
    %v4048 = vpop.f32.mrf.mxu0
    %v4049 = vadd.f32 0.0, %v4048
    %v4050 = vpop.f32.mrf.mxu0
    %4051 = vmatprep.mubr.f32.mxu0 0.0
    %4052 = vmatmul.mubr.f32.gmra.mxu0 %v3946
    %v4053 = vpop.f32.mrf.mxu0
    %v4054 = vadd.f32 0.0, %v4053
    %v4055 = vpop.f32.mrf.mxu0
    %4056 = vmatprep.mubr.f32.mxu0 0.0
    %4057 = vmatmul.mubr.f32.gmra.mxu0 %v3949
    %v4058 = vpop.f32.mrf.mxu0
    %v4059 = vadd.f32 0.0, %v4058
    %v4060 = vpop.f32.mrf.mxu0
    %4061 = vmatprep.mubr.f32.mxu0 0.0
    %4062 = vmatmul.mubr.f32.gmra.mxu0 %v3952
    %v4063 = vpop.f32.mrf.mxu0
    %v4064 = vadd.f32 0.0, %v4063
    %v4065 = vpop.f32.mrf.mxu0
    %4066 = vmatprep.mubr.f32.mxu0 0.0
    %4067 = vmatmul.mubr.f32.gmra.mxu0 %v3955
    %v4068 = vpop.f32.mrf.mxu0
    %v4069 = vadd.f32 0.0, %v4068
    %v4070 = vpop.f32.mrf.mxu0
    %4071 = vmatprep.mubr.f32.mxu0 0.0
    %4072 = vmatmul.mubr.f32.gmra.mxu0 %v3958
    %v4073 = vpop.f32.mrf.mxu0
    %v4074 = vadd.f32 0.0, %v4073
    %v4075 = vpop.f32.mrf.mxu0
    %4076 = vmatprep.mubr.f32.mxu0 0.0
    %4077 = vmatmul.mubr.f32.gmra.mxu0 %v3961
    %v4078 = vpop.f32.mrf.mxu0
    %v4079 = vadd.f32 0.0, %v4078
    %v4080 = vpop.f32.mrf.mxu0
    %4081 = vmatprep.mubr.f32.mxu0 0.0
    %4082 = vmatmul.mubr.f32.gmra.mxu0 %v3964
    %v4083 = vpop.f32.mrf.mxu0
    %v4084 = vadd.f32 0.0, %v4083
    %v4085 = vpop.f32.mrf.mxu0
    %4086 = vmatprep.mubr.f32.mxu0 0.0
    %4087 = vmatmul.mubr.f32.gmra.mxu0 %v3967
    %v4088 = vpop.f32.mrf.mxu0
    %v4089 = vadd.f32 0.0, %v4088
    %v4090 = vpop.f32.mrf.mxu0
    %4091 = vdwg.mxu0
    %v4092 = vadd.f32 %v3912, %v4039
    %v4093 = vadd.f32 %v3913, %v4044
    %v4094 = vadd.f32 %v3914, %v4049
    %v4095 = vadd.f32 %v3915, %v4054
    %v4096 = vadd.f32 %v3916, %v4059
    %v4097 = vadd.f32 %v3917, %v4064
    %v4098 = vadd.f32 %v3918, %v4069
    %v4099 = vadd.f32 %v3919, %v4074
    %v4100 = vadd.f32 %v3920, %v4079
    %v4101 = vadd.f32 %v3921, %v4084
    %v4102 = vadd.f32 %v3922, %v4089
    %v4103 = vld [vmem:[#allocation2 + $0x10] sm:$0xff]
    %v4104 = vld [vmem:[#allocation2 + $0x18] sm:$0xff]
    %v4105 = vld [vmem:[#allocation2 + $0x20] sm:$0xff]
    %v4106 = vld [vmem:[#allocation2 + $0x28] sm:$0xff]
    %v4107 = vld [vmem:[#allocation2 + $0x30] sm:$0xff]
    %v4108 = vld [vmem:[#allocation2 + $0x38] sm:$0xff]
    %v4109 = vld [vmem:[#allocation2 + $0x40] sm:$0xff]
    %v4110 = vld [vmem:[#allocation2 + $0x48] sm:$0xff]
    %v4111 = vld [vmem:[#allocation2 + $0x50] sm:$0xff]
    %v4112 = vld [vmem:[#allocation2 + $0x58] sm:$0xff]
    %v4113 = vld [vmem:[#allocation2 + $0x60] sm:$0x3]
    %s4114 = scalar_lea.vmem %s6, 64
    %v4115 = vld [vmem:[%s4114] sm:$0x3f]
    %v4117 = vsel %vm1011, %v4103, 0
    %v4120 = vsel %vm1011, %v4104, 0
    %v4123 = vsel %vm1011, %v4105, 0
    %v4126 = vsel %vm1011, %v4106, 0
    %v4129 = vsel %vm1011, %v4107, 0
    %v4132 = vsel %vm1011, %v4108, 0
    %v4135 = vsel %vm1011, %v4109, 0
    %v4138 = vsel %vm1011, %v4110, 0
    %v4141 = vsel %vm1011, %v4111, 0
    %v4144 = vsel %vm1011, %v4112, 0
    %v4147 = vsel %vm1011, %v4113, 0
    %v4150 = vsel %vm1095, %v4115, 0
    %4152 = vmatprep.subr.mxu0 0.0
    %4153 = vmatpush1.msra.mxu0 0.0
    %4154 = vmatprep.subr.mxu0 0.0
    %4155 = vmatpush1.msra.mxu0 0.0
    %4156 = vmatprep.subr.mxu0 0.0
    %4157 = vmatpush1.msra.mxu0 0.0
    %4158 = vmatprep.subr.mxu0 0.0
    %4159 = vmatpush1.msra.mxu0 0.0
    %4160 = vmatprep.subr.mxu0 0.0
    %4161 = vmatpush1.msra.mxu0 0.0
    %4162 = vmatprep.subr.mxu0 0.0
    %4163 = vmatpush1.msra.mxu0 0.0
    %4164 = vmatprep.subr.mxu0 0.0
    %4165 = vmatpush1.msra.mxu0 0.0
    %4166 = vmatprep.subr.mxu0 0.0
    %4167 = vmatpush1.msra.mxu0 0.0
    %4168 = vmatprep.subr.mxu0 0.0
    %4169 = vmatpush1.msra.mxu0 0.0
    %4170 = vmatprep.subr.mxu0 0.0
    %4171 = vmatpush1.msra.mxu0 0.0
    %4172 = vmatprep.subr.mxu0 0.0
    %4173 = vmatpush1.msra.mxu0 0.0
    %4174 = vmatprep.subr.mxu0 0.0
    %4175 = vmatpush1.msra.mxu0 0.0
    %4176 = vmatprep.subr.mxu0 0.0
    %4177 = vmatpush1.msra.mxu0 0.0
    %4178 = vmatprep.subr.mxu0 0.0
    %4179 = vmatpush1.msra.mxu0 0.0
    %4180 = vmatprep.subr.mxu0 0.0
    %4181 = vmatpush1.msra.mxu0 0.0
    %4182 = vmatprep.subr.mxu0 0.0
    %4183 = vmatpush1.msra.mxu0 %v4150
    %4184 = vmatprep.subr.mxu0 0.0
    %4185 = vmatpush2.msra.mxu0 0.0
    %4186 = vmatprep.subr.mxu0 0.0
    %4187 = vmatpush2.msra.mxu0 0.0
    %4188 = vmatprep.subr.mxu0 0.0
    %4189 = vmatpush2.msra.mxu0 0.0
    %4190 = vmatprep.subr.mxu0 0.0
    %4191 = vmatpush2.msra.mxu0 0.0
    %4192 = vmatprep.subr.mxu0 0.0
    %4193 = vmatpush2.msra.mxu0 0.0
    %4194 = vmatprep.subr.mxu0 0.0
    %4195 = vmatpush2.msra.mxu0 0.0
    %4196 = vmatprep.subr.mxu0 0.0
    %4197 = vmatpush2.msra.mxu0 0.0
    %4198 = vmatprep.subr.mxu0 0.0
    %4199 = vmatpush2.msra.mxu0 0.0
    %4200 = vmatprep.subr.mxu0 0.0
    %4201 = vmatpush2.msra.mxu0 0.0
    %4202 = vmatprep.subr.mxu0 0.0
    %4203 = vmatpush2.msra.mxu0 0.0
    %4204 = vmatprep.subr.mxu0 0.0
    %4205 = vmatpush2.msra.mxu0 0.0
    %4206 = vmatprep.subr.mxu0 0.0
    %4207 = vmatpush2.msra.mxu0 0.0
    %4208 = vmatprep.subr.mxu0 0.0
    %4209 = vmatpush2.msra.mxu0 0.0
    %4210 = vmatprep.subr.mxu0 0.0
    %4211 = vmatpush2.msra.mxu0 0.0
    %4212 = vmatprep.subr.mxu0 0.0
    %4213 = vmatpush2.msra.mxu0 0.0
    %4214 = vmatprep.subr.mxu0 0.0
    %4215 = vmatpush2.msra.mxu0 0.0
    %4216 = vmatprep.mubr.f32.mxu0 0.0
    %4217 = vmatmul.mubr.f32.gmra.mxu0 %v4117
    %v4218 = vpop.f32.mrf.mxu0
    %v4219 = vadd.f32 0.0, %v4218
    %v4220 = vpop.f32.mrf.mxu0
    %4221 = vmatprep.mubr.f32.mxu0 0.0
    %4222 = vmatmul.mubr.f32.gmra.mxu0 %v4120
    %v4223 = vpop.f32.mrf.mxu0
    %v4224 = vadd.f32 0.0, %v4223
    %v4225 = vpop.f32.mrf.mxu0
    %4226 = vmatprep.mubr.f32.mxu0 0.0
    %4227 = vmatmul.mubr.f32.gmra.mxu0 %v4123
    %v4228 = vpop.f32.mrf.mxu0
    %v4229 = vadd.f32 0.0, %v4228
    %v4230 = vpop.f32.mrf.mxu0
    %4231 = vmatprep.mubr.f32.mxu0 0.0
    %4232 = vmatmul.mubr.f32.gmra.mxu0 %v4126
    %v4233 = vpop.f32.mrf.mxu0
    %v4234 = vadd.f32 0.0, %v4233
    %v4235 = vpop.f32.mrf.mxu0
    %4236 = vmatprep.mubr.f32.mxu0 0.0
    %4237 = vmatmul.mubr.f32.gmra.mxu0 %v4129
    %v4238 = vpop.f32.mrf.mxu0
    %v4239 = vadd.f32 0.0, %v4238
    %v4240 = vpop.f32.mrf.mxu0
    %4241 = vmatprep.mubr.f32.mxu0 0.0
    %4242 = vmatmul.mubr.f32.gmra.mxu0 %v4132
    %v4243 = vpop.f32.mrf.mxu0
    %v4244 = vadd.f32 0.0, %v4243
    %v4245 = vpop.f32.mrf.mxu0
    %4246 = vmatprep.mubr.f32.mxu0 0.0
    %4247 = vmatmul.mubr.f32.gmra.mxu0 %v4135
    %v4248 = vpop.f32.mrf.mxu0
    %v4249 = vadd.f32 0.0, %v4248
    %v4250 = vpop.f32.mrf.mxu0
    %4251 = vmatprep.mubr.f32.mxu0 0.0
    %4252 = vmatmul.mubr.f32.gmra.mxu0 %v4138
    %v4253 = vpop.f32.mrf.mxu0
    %v4254 = vadd.f32 0.0, %v4253
    %v4255 = vpop.f32.mrf.mxu0
    %4256 = vmatprep.mubr.f32.mxu0 0.0
    %4257 = vmatmul.mubr.f32.gmra.mxu0 %v4141
    %v4258 = vpop.f32.mrf.mxu0
    %v4259 = vadd.f32 0.0, %v4258
    %v4260 = vpop.f32.mrf.mxu0
    %4261 = vmatprep.mubr.f32.mxu0 0.0
    %4262 = vmatmul.mubr.f32.gmra.mxu0 %v4144
    %v4263 = vpop.f32.mrf.mxu0
    %v4264 = vadd.f32 0.0, %v4263
    %v4265 = vpop.f32.mrf.mxu0
    %4266 = vmatprep.mubr.f32.mxu0 0.0
    %4267 = vmatmul.mubr.f32.gmra.mxu0 %v4147
    %v4268 = vpop.f32.mrf.mxu0
    %v4269 = vadd.f32 0.0, %v4268
    %v4270 = vpop.f32.mrf.mxu0
    %4271 = vdwg.mxu0
    %v4272 = vadd.f32 %v4092, %v4219
    %v4273 = vadd.f32 %v4093, %v4224
    %v4274 = vadd.f32 %v4094, %v4229
    %v4275 = vadd.f32 %v4095, %v4234
    %v4276 = vadd.f32 %v4096, %v4239
    %v4277 = vadd.f32 %v4097, %v4244
    %v4278 = vadd.f32 %v4098, %v4249
    %v4279 = vadd.f32 %v4099, %v4254
    %v4280 = vadd.f32 %v4100, %v4259
    %v4281 = vadd.f32 %v4101, %v4264
    %v4282 = vadd.f32 %v4102, %v4269
    %v4283 = vld [vmem:[%s7] sm:$0x1]
    %v4285 = vlaneseq
    %v4286 = vshrl.u32 %v4285, 7
    %v4287 = vsub.s32 0, %v4286
    %v4288 = vrot.slane %v4283, %v4287
    %v4290 = vadd.f32 %v4272, %v4288
    %v4291 = vadd.f32 %v4273, %v4288
    %v4292 = vadd.f32 %v4274, %v4288
    %v4293 = vadd.f32 %v4275, %v4288
    %v4294 = vadd.f32 %v4276, %v4288
    %v4295 = vadd.f32 %v4277, %v4288
    %v4296 = vadd.f32 %v4278, %v4288
    %v4297 = vadd.f32 %v4279, %v4288
    %v4298 = vadd.f32 %v4280, %v4288
    %v4299 = vadd.f32 %v4281, %v4288
    %v4300 = vadd.f32 %v4282, %v4288
    %v4301 = vmax.f32 %v4290, 0.0
    %v4302 = vmax.f32 %v4291, 0.0
    %v4303 = vmax.f32 %v4292, 0.0
    %v4304 = vmax.f32 %v4293, 0.0
    %v4305 = vmax.f32 %v4294, 0.0
    %v4306 = vmax.f32 %v4295, 0.0
    %v4307 = vmax.f32 %v4296, 0.0
    %v4308 = vmax.f32 %v4297, 0.0
    %v4309 = vmax.f32 %v4298, 0.0
    %v4310 = vmax.f32 %v4299, 0.0
    %v4311 = vmax.f32 %v4300, 0.0
    %4312 = vst.msk [vmem:[#allocation2 + $0x8] sm:$0xff] %vm1011, %v4301
    %4313 = vst.msk [vmem:[#allocation2 + $0x10] sm:$0xff] %vm1011, %v4302
    %4314 = vst.msk [vmem:[#allocation2 + $0x18] sm:$0xff] %vm1011, %v4303
    %4315 = vst.msk [vmem:[#allocation2 + $0x20] sm:$0xff] %vm1011, %v4304
    %4316 = vst.msk [vmem:[#allocation2 + $0x28] sm:$0xff] %vm1011, %v4305
    %4317 = vst.msk [vmem:[#allocation2 + $0x30] sm:$0xff] %vm1011, %v4306
    %4318 = vst.msk [vmem:[#allocation2 + $0x38] sm:$0xff] %vm1011, %v4307
    %4319 = vst.msk [vmem:[#allocation2 + $0x40] sm:$0xff] %vm1011, %v4308
    %4320 = vst.msk [vmem:[#allocation2 + $0x48] sm:$0xff] %vm1011, %v4309
    %4321 = vst.msk [vmem:[#allocation2 + $0x50] sm:$0xff] %vm1011, %v4310
    %4322 = vst.msk [vmem:[#allocation2 + $0x58] sm:$0x3] %vm1024, %v4311
    %v4323 = vld [vmem:[%s9] sm:$0x1]
    %v4325 = vlaneseq
    %v4326 = vshrl.u32 %v4325, 7
    %v4327 = vsub.s32 0, %v4326
    %v4328 = vrot.slane %v4323, %v4327
    %v4330 = vld [vmem:[#allocation2 + $0x8] sm:$0x1]
    %v4331 = vld [vmem:[#allocation2 + $0x39] sm:$0x1]
    %v4333 = vrot.slane %v4331, 7
    %vm4335 = vcmask 1040384
    %v4336 = vsel %vm4335, %v4330, %v4333
    %v4337 = vld [vmem:[%s8] sm:$0x3f]
    %v4339 = vsel %vm1011, %v4336, 0
    %v4342 = vsel %vm1095, %v4337, 0
    %4344 = vmatprep.subr.mxu0 0.0
    %4345 = vmatpush1.msra.mxu0 0.0
    %4346 = vmatprep.subr.mxu0 0.0
    %4347 = vmatpush1.msra.mxu0 0.0
    %4348 = vmatprep.subr.mxu0 0.0
    %4349 = vmatpush1.msra.mxu0 0.0
    %4350 = vmatprep.subr.mxu0 0.0
    %4351 = vmatpush1.msra.mxu0 0.0
    %4352 = vmatprep.subr.mxu0 0.0
    %4353 = vmatpush1.msra.mxu0 0.0
    %4354 = vmatprep.subr.mxu0 0.0
    %4355 = vmatpush1.msra.mxu0 0.0
    %4356 = vmatprep.subr.mxu0 0.0
    %4357 = vmatpush1.msra.mxu0 0.0
    %4358 = vmatprep.subr.mxu0 0.0
    %4359 = vmatpush1.msra.mxu0 0.0
    %4360 = vmatprep.subr.mxu0 0.0
    %4361 = vmatpush1.msra.mxu0 0.0
    %4362 = vmatprep.subr.mxu0 0.0
    %4363 = vmatpush1.msra.mxu0 0.0
    %4364 = vmatprep.subr.mxu0 0.0
    %4365 = vmatpush1.msra.mxu0 0.0
    %4366 = vmatprep.subr.mxu0 0.0
    %4367 = vmatpush1.msra.mxu0 0.0
    %4368 = vmatprep.subr.mxu0 0.0
    %4369 = vmatpush1.msra.mxu0 0.0
    %4370 = vmatprep.subr.mxu0 0.0
    %4371 = vmatpush1.msra.mxu0 0.0
    %4372 = vmatprep.subr.mxu0 0.0
    %4373 = vmatpush1.msra.mxu0 0.0
    %4374 = vmatprep.subr.mxu0 0.0
    %4375 = vmatpush1.msra.mxu0 %v4342
    %4376 = vmatprep.subr.mxu0 0.0
    %4377 = vmatpush2.msra.mxu0 0.0
    %4378 = vmatprep.subr.mxu0 0.0
    %4379 = vmatpush2.msra.mxu0 0.0
    %4380 = vmatprep.subr.mxu0 0.0
    %4381 = vmatpush2.msra.mxu0 0.0
    %4382 = vmatprep.subr.mxu0 0.0
    %4383 = vmatpush2.msra.mxu0 0.0
    %4384 = vmatprep.subr.mxu0 0.0
    %4385 = vmatpush2.msra.mxu0 0.0
    %4386 = vmatprep.subr.mxu0 0.0
    %4387 = vmatpush2.msra.mxu0 0.0
    %4388 = vmatprep.subr.mxu0 0.0
    %4389 = vmatpush2.msra.mxu0 0.0
    %4390 = vmatprep.subr.mxu0 0.0
    %4391 = vmatpush2.msra.mxu0 0.0
    %4392 = vmatprep.subr.mxu0 0.0
    %4393 = vmatpush2.msra.mxu0 0.0
    %4394 = vmatprep.subr.mxu0 0.0
    %4395 = vmatpush2.msra.mxu0 0.0
    %4396 = vmatprep.subr.mxu0 0.0
    %4397 = vmatpush2.msra.mxu0 0.0
    %4398 = vmatprep.subr.mxu0 0.0
    %4399 = vmatpush2.msra.mxu0 0.0
    %4400 = vmatprep.subr.mxu0 0.0
    %4401 = vmatpush2.msra.mxu0 0.0
    %4402 = vmatprep.subr.mxu0 0.0
    %4403 = vmatpush2.msra.mxu0 0.0
    %4404 = vmatprep.subr.mxu0 0.0
    %4405 = vmatpush2.msra.mxu0 0.0
    %4406 = vmatprep.subr.mxu0 0.0
    %4407 = vmatpush2.msra.mxu0 0.0
    %4408 = vmatprep.mubr.f32.mxu0 0.0
    %4409 = vmatmul.mubr.f32.gmra.mxu0 %v4339
    %v4410 = vpop.f32.mrf.mxu0
    %v4411 = vadd.f32 0.0, %v4410
    %v4412 = vpop.f32.mrf.mxu0
    %4413 = vdwg.mxu0
    %v4414 = vadd.f32 %v4328, %v4411
    %v4415 = vld [vmem:[#allocation2 + $0x9] sm:$0x1]
    %v4416 = vld [vmem:[#allocation2 + $0x3a] sm:$0x1]
    %v4418 = vrot.slane %v4416, 7
    %v4420 = vsel %vm4335, %v4415, %v4418
    %s4421 = scalar_lea.vmem %s8, 8
    %v4422 = vld [vmem:[%s4421] sm:$0x3f]
    %v4424 = vsel %vm1011, %v4420, 0
    %v4427 = vsel %vm1095, %v4422, 0
    %4429 = vmatprep.subr.mxu0 0.0
    %4430 = vmatpush1.msra.mxu0 0.0
    %4431 = vmatprep.subr.mxu0 0.0
    %4432 = vmatpush1.msra.mxu0 0.0
    %4433 = vmatprep.subr.mxu0 0.0
    %4434 = vmatpush1.msra.mxu0 0.0
    %4435 = vmatprep.subr.mxu0 0.0
    %4436 = vmatpush1.msra.mxu0 0.0
    %4437 = vmatprep.subr.mxu0 0.0
    %4438 = vmatpush1.msra.mxu0 0.0
    %4439 = vmatprep.subr.mxu0 0.0
    %4440 = vmatpush1.msra.mxu0 0.0
    %4441 = vmatprep.subr.mxu0 0.0
    %4442 = vmatpush1.msra.mxu0 0.0
    %4443 = vmatprep.subr.mxu0 0.0
    %4444 = vmatpush1.msra.mxu0 0.0
    %4445 = vmatprep.subr.mxu0 0.0
    %4446 = vmatpush1.msra.mxu0 0.0
    %4447 = vmatprep.subr.mxu0 0.0
    %4448 = vmatpush1.msra.mxu0 0.0
    %4449 = vmatprep.subr.mxu0 0.0
    %4450 = vmatpush1.msra.mxu0 0.0
    %4451 = vmatprep.subr.mxu0 0.0
    %4452 = vmatpush1.msra.mxu0 0.0
    %4453 = vmatprep.subr.mxu0 0.0
    %4454 = vmatpush1.msra.mxu0 0.0
    %4455 = vmatprep.subr.mxu0 0.0
    %4456 = vmatpush1.msra.mxu0 0.0
    %4457 = vmatprep.subr.mxu0 0.0
    %4458 = vmatpush1.msra.mxu0 0.0
    %4459 = vmatprep.subr.mxu0 0.0
    %4460 = vmatpush1.msra.mxu0 %v4427
    %4461 = vmatprep.subr.mxu0 0.0
    %4462 = vmatpush2.msra.mxu0 0.0
    %4463 = vmatprep.subr.mxu0 0.0
    %4464 = vmatpush2.msra.mxu0 0.0
    %4465 = vmatprep.subr.mxu0 0.0
    %4466 = vmatpush2.msra.mxu0 0.0
    %4467 = vmatprep.subr.mxu0 0.0
    %4468 = vmatpush2.msra.mxu0 0.0
    %4469 = vmatprep.subr.mxu0 0.0
    %4470 = vmatpush2.msra.mxu0 0.0
    %4471 = vmatprep.subr.mxu0 0.0
    %4472 = vmatpush2.msra.mxu0 0.0
    %4473 = vmatprep.subr.mxu0 0.0
    %4474 = vmatpush2.msra.mxu0 0.0
    %4475 = vmatprep.subr.mxu0 0.0
    %4476 = vmatpush2.msra.mxu0 0.0
    %4477 = vmatprep.subr.mxu0 0.0
    %4478 = vmatpush2.msra.mxu0 0.0
    %4479 = vmatprep.subr.mxu0 0.0
    %4480 = vmatpush2.msra.mxu0 0.0
    %4481 = vmatprep.subr.mxu0 0.0
    %4482 = vmatpush2.msra.mxu0 0.0
    %4483 = vmatprep.subr.mxu0 0.0
    %4484 = vmatpush2.msra.mxu0 0.0
    %4485 = vmatprep.subr.mxu0 0.0
    %4486 = vmatpush2.msra.mxu0 0.0
    %4487 = vmatprep.subr.mxu0 0.0
    %4488 = vmatpush2.msra.mxu0 0.0
    %4489 = vmatprep.subr.mxu0 0.0
    %4490 = vmatpush2.msra.mxu0 0.0
    %4491 = vmatprep.subr.mxu0 0.0
    %4492 = vmatpush2.msra.mxu0 0.0
    %4493 = vmatprep.mubr.f32.mxu0 0.0
    %4494 = vmatmul.mubr.f32.gmra.mxu0 %v4424
    %v4495 = vpop.f32.mrf.mxu0
    %v4496 = vadd.f32 0.0, %v4495
    %v4497 = vpop.f32.mrf.mxu0
    %4498 = vdwg.mxu0
    %v4499 = vadd.f32 %v4414, %v4496
    %v4500 = vld [vmem:[#allocation2 + $0xa] sm:$0x1]
    %v4501 = vld [vmem:[#allocation2 + $0x3b] sm:$0x1]
    %v4503 = vrot.slane %v4501, 7
    %v4505 = vsel %vm4335, %v4500, %v4503
    %s4506 = scalar_lea.vmem %s8, 16
    %v4507 = vld [vmem:[%s4506] sm:$0x3f]
    %v4509 = vsel %vm1011, %v4505, 0
    %v4512 = vsel %vm1095, %v4507, 0
    %4514 = vmatprep.subr.mxu0 0.0
    %4515 = vmatpush1.msra.mxu0 0.0
    %4516 = vmatprep.subr.mxu0 0.0
    %4517 = vmatpush1.msra.mxu0 0.0
    %4518 = vmatprep.subr.mxu0 0.0
    %4519 = vmatpush1.msra.mxu0 0.0
    %4520 = vmatprep.subr.mxu0 0.0
    %4521 = vmatpush1.msra.mxu0 0.0
    %4522 = vmatprep.subr.mxu0 0.0
    %4523 = vmatpush1.msra.mxu0 0.0
    %4524 = vmatprep.subr.mxu0 0.0
    %4525 = vmatpush1.msra.mxu0 0.0
    %4526 = vmatprep.subr.mxu0 0.0
    %4527 = vmatpush1.msra.mxu0 0.0
    %4528 = vmatprep.subr.mxu0 0.0
    %4529 = vmatpush1.msra.mxu0 0.0
    %4530 = vmatprep.subr.mxu0 0.0
    %4531 = vmatpush1.msra.mxu0 0.0
    %4532 = vmatprep.subr.mxu0 0.0
    %4533 = vmatpush1.msra.mxu0 0.0
    %4534 = vmatprep.subr.mxu0 0.0
    %4535 = vmatpush1.msra.mxu0 0.0
    %4536 = vmatprep.subr.mxu0 0.0
    %4537 = vmatpush1.msra.mxu0 0.0
    %4538 = vmatprep.subr.mxu0 0.0
    %4539 = vmatpush1.msra.mxu0 0.0
    %4540 = vmatprep.subr.mxu0 0.0
    %4541 = vmatpush1.msra.mxu0 0.0
    %4542 = vmatprep.subr.mxu0 0.0
    %4543 = vmatpush1.msra.mxu0 0.0
    %4544 = vmatprep.subr.mxu0 0.0
    %4545 = vmatpush1.msra.mxu0 %v4512
    %4546 = vmatprep.subr.mxu0 0.0
    %4547 = vmatpush2.msra.mxu0 0.0
    %4548 = vmatprep.subr.mxu0 0.0
    %4549 = vmatpush2.msra.mxu0 0.0
    %4550 = vmatprep.subr.mxu0 0.0
    %4551 = vmatpush2.msra.mxu0 0.0
    %4552 = vmatprep.subr.mxu0 0.0
    %4553 = vmatpush2.msra.mxu0 0.0
    %4554 = vmatprep.subr.mxu0 0.0
    %4555 = vmatpush2.msra.mxu0 0.0
    %4556 = vmatprep.subr.mxu0 0.0
    %4557 = vmatpush2.msra.mxu0 0.0
    %4558 = vmatprep.subr.mxu0 0.0
    %4559 = vmatpush2.msra.mxu0 0.0
    %4560 = vmatprep.subr.mxu0 0.0
    %4561 = vmatpush2.msra.mxu0 0.0
    %4562 = vmatprep.subr.mxu0 0.0
    %4563 = vmatpush2.msra.mxu0 0.0
    %4564 = vmatprep.subr.mxu0 0.0
    %4565 = vmatpush2.msra.mxu0 0.0
    %4566 = vmatprep.subr.mxu0 0.0
    %4567 = vmatpush2.msra.mxu0 0.0
    %4568 = vmatprep.subr.mxu0 0.0
    %4569 = vmatpush2.msra.mxu0 0.0
    %4570 = vmatprep.subr.mxu0 0.0
    %4571 = vmatpush2.msra.mxu0 0.0
    %4572 = vmatprep.subr.mxu0 0.0
    %4573 = vmatpush2.msra.mxu0 0.0
    %4574 = vmatprep.subr.mxu0 0.0
    %4575 = vmatpush2.msra.mxu0 0.0
    %4576 = vmatprep.subr.mxu0 0.0
    %4577 = vmatpush2.msra.mxu0 0.0
    %4578 = vmatprep.mubr.f32.mxu0 0.0
    %4579 = vmatmul.mubr.f32.gmra.mxu0 %v4509
    %v4580 = vpop.f32.mrf.mxu0
    %v4581 = vadd.f32 0.0, %v4580
    %v4582 = vpop.f32.mrf.mxu0
    %4583 = vdwg.mxu0
    %v4584 = vadd.f32 %v4499, %v4581
    %v4585 = vld [vmem:[#allocation2 + $0xb] sm:$0x1]
    %v4586 = vld [vmem:[#allocation2 + $0x3c] sm:$0x1]
    %v4588 = vrot.slane %v4586, 7
    %v4590 = vsel %vm4335, %v4585, %v4588
    %s4591 = scalar_lea.vmem %s8, 24
    %v4592 = vld [vmem:[%s4591] sm:$0x3f]
    %v4594 = vsel %vm1011, %v4590, 0
    %v4597 = vsel %vm1095, %v4592, 0
    %4599 = vmatprep.subr.mxu0 0.0
    %4600 = vmatpush1.msra.mxu0 0.0
    %4601 = vmatprep.subr.mxu0 0.0
    %4602 = vmatpush1.msra.mxu0 0.0
    %4603 = vmatprep.subr.mxu0 0.0
    %4604 = vmatpush1.msra.mxu0 0.0
    %4605 = vmatprep.subr.mxu0 0.0
    %4606 = vmatpush1.msra.mxu0 0.0
    %4607 = vmatprep.subr.mxu0 0.0
    %4608 = vmatpush1.msra.mxu0 0.0
    %4609 = vmatprep.subr.mxu0 0.0
    %4610 = vmatpush1.msra.mxu0 0.0
    %4611 = vmatprep.subr.mxu0 0.0
    %4612 = vmatpush1.msra.mxu0 0.0
    %4613 = vmatprep.subr.mxu0 0.0
    %4614 = vmatpush1.msra.mxu0 0.0
    %4615 = vmatprep.subr.mxu0 0.0
    %4616 = vmatpush1.msra.mxu0 0.0
    %4617 = vmatprep.subr.mxu0 0.0
    %4618 = vmatpush1.msra.mxu0 0.0
    %4619 = vmatprep.subr.mxu0 0.0
    %4620 = vmatpush1.msra.mxu0 0.0
    %4621 = vmatprep.subr.mxu0 0.0
    %4622 = vmatpush1.msra.mxu0 0.0
    %4623 = vmatprep.subr.mxu0 0.0
    %4624 = vmatpush1.msra.mxu0 0.0
    %4625 = vmatprep.subr.mxu0 0.0
    %4626 = vmatpush1.msra.mxu0 0.0
    %4627 = vmatprep.subr.mxu0 0.0
    %4628 = vmatpush1.msra.mxu0 0.0
    %4629 = vmatprep.subr.mxu0 0.0
    %4630 = vmatpush1.msra.mxu0 %v4597
    %4631 = vmatprep.subr.mxu0 0.0
    %4632 = vmatpush2.msra.mxu0 0.0
    %4633 = vmatprep.subr.mxu0 0.0
    %4634 = vmatpush2.msra.mxu0 0.0
    %4635 = vmatprep.subr.mxu0 0.0
    %4636 = vmatpush2.msra.mxu0 0.0
    %4637 = vmatprep.subr.mxu0 0.0
    %4638 = vmatpush2.msra.mxu0 0.0
    %4639 = vmatprep.subr.mxu0 0.0
    %4640 = vmatpush2.msra.mxu0 0.0
    %4641 = vmatprep.subr.mxu0 0.0
    %4642 = vmatpush2.msra.mxu0 0.0
    %4643 = vmatprep.subr.mxu0 0.0
    %4644 = vmatpush2.msra.mxu0 0.0
    %4645 = vmatprep.subr.mxu0 0.0
    %4646 = vmatpush2.msra.mxu0 0.0
    %4647 = vmatprep.subr.mxu0 0.0
    %4648 = vmatpush2.msra.mxu0 0.0
    %4649 = vmatprep.subr.mxu0 0.0
    %4650 = vmatpush2.msra.mxu0 0.0
    %4651 = vmatprep.subr.mxu0 0.0
    %4652 = vmatpush2.msra.mxu0 0.0
    %4653 = vmatprep.subr.mxu0 0.0
    %4654 = vmatpush2.msra.mxu0 0.0
    %4655 = vmatprep.subr.mxu0 0.0
    %4656 = vmatpush2.msra.mxu0 0.0
    %4657 = vmatprep.subr.mxu0 0.0
    %4658 = vmatpush2.msra.mxu0 0.0
    %4659 = vmatprep.subr.mxu0 0.0
    %4660 = vmatpush2.msra.mxu0 0.0
    %4661 = vmatprep.subr.mxu0 0.0
    %4662 = vmatpush2.msra.mxu0 0.0
    %4663 = vmatprep.mubr.f32.mxu0 0.0
    %4664 = vmatmul.mubr.f32.gmra.mxu0 %v4594
    %v4665 = vpop.f32.mrf.mxu0
    %v4666 = vadd.f32 0.0, %v4665
    %v4667 = vpop.f32.mrf.mxu0
    %4668 = vdwg.mxu0
    %v4669 = vadd.f32 %v4584, %v4666
    %v4670 = vld [vmem:[#allocation2 + $0xc] sm:$0x1]
    %v4671 = vld [vmem:[#allocation2 + $0x3d] sm:$0x1]
    %v4673 = vrot.slane %v4671, 7
    %v4675 = vsel %vm4335, %v4670, %v4673
    %s4676 = scalar_lea.vmem %s8, 32
    %v4677 = vld [vmem:[%s4676] sm:$0x3f]
    %v4679 = vsel %vm1011, %v4675, 0
    %v4682 = vsel %vm1095, %v4677, 0
    %4684 = vmatprep.subr.mxu0 0.0
    %4685 = vmatpush1.msra.mxu0 0.0
    %4686 = vmatprep.subr.mxu0 0.0
    %4687 = vmatpush1.msra.mxu0 0.0
    %4688 = vmatprep.subr.mxu0 0.0
    %4689 = vmatpush1.msra.mxu0 0.0
    %4690 = vmatprep.subr.mxu0 0.0
    %4691 = vmatpush1.msra.mxu0 0.0
    %4692 = vmatprep.subr.mxu0 0.0
    %4693 = vmatpush1.msra.mxu0 0.0
    %4694 = vmatprep.subr.mxu0 0.0
    %4695 = vmatpush1.msra.mxu0 0.0
    %4696 = vmatprep.subr.mxu0 0.0
    %4697 = vmatpush1.msra.mxu0 0.0
    %4698 = vmatprep.subr.mxu0 0.0
    %4699 = vmatpush1.msra.mxu0 0.0
    %4700 = vmatprep.subr.mxu0 0.0
    %4701 = vmatpush1.msra.mxu0 0.0
    %4702 = vmatprep.subr.mxu0 0.0
    %4703 = vmatpush1.msra.mxu0 0.0
    %4704 = vmatprep.subr.mxu0 0.0
    %4705 = vmatpush1.msra.mxu0 0.0
    %4706 = vmatprep.subr.mxu0 0.0
    %4707 = vmatpush1.msra.mxu0 0.0
    %4708 = vmatprep.subr.mxu0 0.0
    %4709 = vmatpush1.msra.mxu0 0.0
    %4710 = vmatprep.subr.mxu0 0.0
    %4711 = vmatpush1.msra.mxu0 0.0
    %4712 = vmatprep.subr.mxu0 0.0
    %4713 = vmatpush1.msra.mxu0 0.0
    %4714 = vmatprep.subr.mxu0 0.0
    %4715 = vmatpush1.msra.mxu0 %v4682
    %4716 = vmatprep.subr.mxu0 0.0
    %4717 = vmatpush2.msra.mxu0 0.0
    %4718 = vmatprep.subr.mxu0 0.0
    %4719 = vmatpush2.msra.mxu0 0.0
    %4720 = vmatprep.subr.mxu0 0.0
    %4721 = vmatpush2.msra.mxu0 0.0
    %4722 = vmatprep.subr.mxu0 0.0
    %4723 = vmatpush2.msra.mxu0 0.0
    %4724 = vmatprep.subr.mxu0 0.0
    %4725 = vmatpush2.msra.mxu0 0.0
    %4726 = vmatprep.subr.mxu0 0.0
    %4727 = vmatpush2.msra.mxu0 0.0
    %4728 = vmatprep.subr.mxu0 0.0
    %4729 = vmatpush2.msra.mxu0 0.0
    %4730 = vmatprep.subr.mxu0 0.0
    %4731 = vmatpush2.msra.mxu0 0.0
    %4732 = vmatprep.subr.mxu0 0.0
    %4733 = vmatpush2.msra.mxu0 0.0
    %4734 = vmatprep.subr.mxu0 0.0
    %4735 = vmatpush2.msra.mxu0 0.0
    %4736 = vmatprep.subr.mxu0 0.0
    %4737 = vmatpush2.msra.mxu0 0.0
    %4738 = vmatprep.subr.mxu0 0.0
    %4739 = vmatpush2.msra.mxu0 0.0
    %4740 = vmatprep.subr.mxu0 0.0
    %4741 = vmatpush2.msra.mxu0 0.0
    %4742 = vmatprep.subr.mxu0 0.0
    %4743 = vmatpush2.msra.mxu0 0.0
    %4744 = vmatprep.subr.mxu0 0.0
    %4745 = vmatpush2.msra.mxu0 0.0
    %4746 = vmatprep.subr.mxu0 0.0
    %4747 = vmatpush2.msra.mxu0 0.0
    %4748 = vmatprep.mubr.f32.mxu0 0.0
    %4749 = vmatmul.mubr.f32.gmra.mxu0 %v4679
    %v4750 = vpop.f32.mrf.mxu0
    %v4751 = vadd.f32 0.0, %v4750
    %v4752 = vpop.f32.mrf.mxu0
    %4753 = vdwg.mxu0
    %v4754 = vadd.f32 %v4669, %v4751
    %v4755 = vld [vmem:[#allocation2 + $0xf] sm:$0x1]
    %v4756 = vld [vmem:[#allocation2 + $0x40] sm:$0x1]
    %v4758 = vrot.slane %v4756, 7
    %v4760 = vsel %vm4335, %v4755, %v4758
    %s4761 = scalar_lea.vmem %s8, 40
    %v4762 = vld [vmem:[%s4761] sm:$0x3f]
    %v4764 = vsel %vm1011, %v4760, 0
    %v4767 = vsel %vm1095, %v4762, 0
    %4769 = vmatprep.subr.mxu0 0.0
    %4770 = vmatpush1.msra.mxu0 0.0
    %4771 = vmatprep.subr.mxu0 0.0
    %4772 = vmatpush1.msra.mxu0 0.0
    %4773 = vmatprep.subr.mxu0 0.0
    %4774 = vmatpush1.msra.mxu0 0.0
    %4775 = vmatprep.subr.mxu0 0.0
    %4776 = vmatpush1.msra.mxu0 0.0
    %4777 = vmatprep.subr.mxu0 0.0
    %4778 = vmatpush1.msra.mxu0 0.0
    %4779 = vmatprep.subr.mxu0 0.0
    %4780 = vmatpush1.msra.mxu0 0.0
    %4781 = vmatprep.subr.mxu0 0.0
    %4782 = vmatpush1.msra.mxu0 0.0
    %4783 = vmatprep.subr.mxu0 0.0
    %4784 = vmatpush1.msra.mxu0 0.0
    %4785 = vmatprep.subr.mxu0 0.0
    %4786 = vmatpush1.msra.mxu0 0.0
    %4787 = vmatprep.subr.mxu0 0.0
    %4788 = vmatpush1.msra.mxu0 0.0
    %4789 = vmatprep.subr.mxu0 0.0
    %4790 = vmatpush1.msra.mxu0 0.0
    %4791 = vmatprep.subr.mxu0 0.0
    %4792 = vmatpush1.msra.mxu0 0.0
    %4793 = vmatprep.subr.mxu0 0.0
    %4794 = vmatpush1.msra.mxu0 0.0
    %4795 = vmatprep.subr.mxu0 0.0
    %4796 = vmatpush1.msra.mxu0 0.0
    %4797 = vmatprep.subr.mxu0 0.0
    %4798 = vmatpush1.msra.mxu0 0.0
    %4799 = vmatprep.subr.mxu0 0.0
    %4800 = vmatpush1.msra.mxu0 %v4767
    %4801 = vmatprep.subr.mxu0 0.0
    %4802 = vmatpush2.msra.mxu0 0.0
    %4803 = vmatprep.subr.mxu0 0.0
    %4804 = vmatpush2.msra.mxu0 0.0
    %4805 = vmatprep.subr.mxu0 0.0
    %4806 = vmatpush2.msra.mxu0 0.0
    %4807 = vmatprep.subr.mxu0 0.0
    %4808 = vmatpush2.msra.mxu0 0.0
    %4809 = vmatprep.subr.mxu0 0.0
    %4810 = vmatpush2.msra.mxu0 0.0
    %4811 = vmatprep.subr.mxu0 0.0
    %4812 = vmatpush2.msra.mxu0 0.0
    %4813 = vmatprep.subr.mxu0 0.0
    %4814 = vmatpush2.msra.mxu0 0.0
    %4815 = vmatprep.subr.mxu0 0.0
    %4816 = vmatpush2.msra.mxu0 0.0
    %4817 = vmatprep.subr.mxu0 0.0
    %4818 = vmatpush2.msra.mxu0 0.0
    %4819 = vmatprep.subr.mxu0 0.0
    %4820 = vmatpush2.msra.mxu0 0.0
    %4821 = vmatprep.subr.mxu0 0.0
    %4822 = vmatpush2.msra.mxu0 0.0
    %4823 = vmatprep.subr.mxu0 0.0
    %4824 = vmatpush2.msra.mxu0 0.0
    %4825 = vmatprep.subr.mxu0 0.0
    %4826 = vmatpush2.msra.mxu0 0.0
    %4827 = vmatprep.subr.mxu0 0.0
    %4828 = vmatpush2.msra.mxu0 0.0
    %4829 = vmatprep.subr.mxu0 0.0
    %4830 = vmatpush2.msra.mxu0 0.0
    %4831 = vmatprep.subr.mxu0 0.0
    %4832 = vmatpush2.msra.mxu0 0.0
    %4833 = vmatprep.mubr.f32.mxu0 0.0
    %4834 = vmatmul.mubr.f32.gmra.mxu0 %v4764
    %v4835 = vpop.f32.mrf.mxu0
    %v4836 = vadd.f32 0.0, %v4835
    %v4837 = vpop.f32.mrf.mxu0
    %4838 = vdwg.mxu0
    %v4839 = vadd.f32 %v4754, %v4836
    %v4840 = vld [vmem:[#allocation2 + $0x10] sm:$0x1]
    %v4841 = vld [vmem:[#allocation2 + $0x41] sm:$0x1]
    %v4843 = vrot.slane %v4841, 7
    %v4845 = vsel %vm4335, %v4840, %v4843
    %s4846 = scalar_lea.vmem %s8, 48
    %v4847 = vld [vmem:[%s4846] sm:$0x3f]
    %v4849 = vsel %vm1011, %v4845, 0
    %v4852 = vsel %vm1095, %v4847, 0
    %4854 = vmatprep.subr.mxu0 0.0
    %4855 = vmatpush1.msra.mxu0 0.0
    %4856 = vmatprep.subr.mxu0 0.0
    %4857 = vmatpush1.msra.mxu0 0.0
    %4858 = vmatprep.subr.mxu0 0.0
    %4859 = vmatpush1.msra.mxu0 0.0
    %4860 = vmatprep.subr.mxu0 0.0
    %4861 = vmatpush1.msra.mxu0 0.0
    %4862 = vmatprep.subr.mxu0 0.0
    %4863 = vmatpush1.msra.mxu0 0.0
    %4864 = vmatprep.subr.mxu0 0.0
    %4865 = vmatpush1.msra.mxu0 0.0
    %4866 = vmatprep.subr.mxu0 0.0
    %4867 = vmatpush1.msra.mxu0 0.0
    %4868 = vmatprep.subr.mxu0 0.0
    %4869 = vmatpush1.msra.mxu0 0.0
    %4870 = vmatprep.subr.mxu0 0.0
    %4871 = vmatpush1.msra.mxu0 0.0
    %4872 = vmatprep.subr.mxu0 0.0
    %4873 = vmatpush1.msra.mxu0 0.0
    %4874 = vmatprep.subr.mxu0 0.0
    %4875 = vmatpush1.msra.mxu0 0.0
    %4876 = vmatprep.subr.mxu0 0.0
    %4877 = vmatpush1.msra.mxu0 0.0
    %4878 = vmatprep.subr.mxu0 0.0
    %4879 = vmatpush1.msra.mxu0 0.0
    %4880 = vmatprep.subr.mxu0 0.0
    %4881 = vmatpush1.msra.mxu0 0.0
    %4882 = vmatprep.subr.mxu0 0.0
    %4883 = vmatpush1.msra.mxu0 0.0
    %4884 = vmatprep.subr.mxu0 0.0
    %4885 = vmatpush1.msra.mxu0 %v4852
    %4886 = vmatprep.subr.mxu0 0.0
    %4887 = vmatpush2.msra.mxu0 0.0
    %4888 = vmatprep.subr.mxu0 0.0
    %4889 = vmatpush2.msra.mxu0 0.0
    %4890 = vmatprep.subr.mxu0 0.0
    %4891 = vmatpush2.msra.mxu0 0.0
    %4892 = vmatprep.subr.mxu0 0.0
    %4893 = vmatpush2.msra.mxu0 0.0
    %4894 = vmatprep.subr.mxu0 0.0
    %4895 = vmatpush2.msra.mxu0 0.0
    %4896 = vmatprep.subr.mxu0 0.0
    %4897 = vmatpush2.msra.mxu0 0.0
    %4898 = vmatprep.subr.mxu0 0.0
    %4899 = vmatpush2.msra.mxu0 0.0
    %4900 = vmatprep.subr.mxu0 0.0
    %4901 = vmatpush2.msra.mxu0 0.0
    %4902 = vmatprep.subr.mxu0 0.0
    %4903 = vmatpush2.msra.mxu0 0.0
    %4904 = vmatprep.subr.mxu0 0.0
    %4905 = vmatpush2.msra.mxu0 0.0
    %4906 = vmatprep.subr.mxu0 0.0
    %4907 = vmatpush2.msra.mxu0 0.0
    %4908 = vmatprep.subr.mxu0 0.0
    %4909 = vmatpush2.msra.mxu0 0.0
    %4910 = vmatprep.subr.mxu0 0.0
    %4911 = vmatpush2.msra.mxu0 0.0
    %4912 = vmatprep.subr.mxu0 0.0
    %4913 = vmatpush2.msra.mxu0 0.0
    %4914 = vmatprep.subr.mxu0 0.0
    %4915 = vmatpush2.msra.mxu0 0.0
    %4916 = vmatprep.subr.mxu0 0.0
    %4917 = vmatpush2.msra.mxu0 0.0
    %4918 = vmatprep.mubr.f32.mxu0 0.0
    %4919 = vmatmul.mubr.f32.gmra.mxu0 %v4849
    %v4920 = vpop.f32.mrf.mxu0
    %v4921 = vadd.f32 0.0, %v4920
    %v4922 = vpop.f32.mrf.mxu0
    %4923 = vdwg.mxu0
    %v4924 = vadd.f32 %v4839, %v4921
    %v4925 = vld [vmem:[#allocation2 + $0x11] sm:$0x1]
    %v4926 = vld [vmem:[#allocation2 + $0x42] sm:$0x1]
    %v4928 = vrot.slane %v4926, 7
    %v4930 = vsel %vm4335, %v4925, %v4928
    %s4931 = scalar_lea.vmem %s8, 56
    %v4932 = vld [vmem:[%s4931] sm:$0x3f]
    %v4934 = vsel %vm1011, %v4930, 0
    %v4937 = vsel %vm1095, %v4932, 0
    %4939 = vmatprep.subr.mxu0 0.0
    %4940 = vmatpush1.msra.mxu0 0.0
    %4941 = vmatprep.subr.mxu0 0.0
    %4942 = vmatpush1.msra.mxu0 0.0
    %4943 = vmatprep.subr.mxu0 0.0
    %4944 = vmatpush1.msra.mxu0 0.0
    %4945 = vmatprep.subr.mxu0 0.0
    %4946 = vmatpush1.msra.mxu0 0.0
    %4947 = vmatprep.subr.mxu0 0.0
    %4948 = vmatpush1.msra.mxu0 0.0
    %4949 = vmatprep.subr.mxu0 0.0
    %4950 = vmatpush1.msra.mxu0 0.0
    %4951 = vmatprep.subr.mxu0 0.0
    %4952 = vmatpush1.msra.mxu0 0.0
    %4953 = vmatprep.subr.mxu0 0.0
    %4954 = vmatpush1.msra.mxu0 0.0
    %4955 = vmatprep.subr.mxu0 0.0
    %4956 = vmatpush1.msra.mxu0 0.0
    %4957 = vmatprep.subr.mxu0 0.0
    %4958 = vmatpush1.msra.mxu0 0.0
    %4959 = vmatprep.subr.mxu0 0.0
    %4960 = vmatpush1.msra.mxu0 0.0
    %4961 = vmatprep.subr.mxu0 0.0
    %4962 = vmatpush1.msra.mxu0 0.0
    %4963 = vmatprep.subr.mxu0 0.0
    %4964 = vmatpush1.msra.mxu0 0.0
    %4965 = vmatprep.subr.mxu0 0.0
    %4966 = vmatpush1.msra.mxu0 0.0
    %4967 = vmatprep.subr.mxu0 0.0
    %4968 = vmatpush1.msra.mxu0 0.0
    %4969 = vmatprep.subr.mxu0 0.0
    %4970 = vmatpush1.msra.mxu0 %v4937
    %4971 = vmatprep.subr.mxu0 0.0
    %4972 = vmatpush2.msra.mxu0 0.0
    %4973 = vmatprep.subr.mxu0 0.0
    %4974 = vmatpush2.msra.mxu0 0.0
    %4975 = vmatprep.subr.mxu0 0.0
    %4976 = vmatpush2.msra.mxu0 0.0
    %4977 = vmatprep.subr.mxu0 0.0
    %4978 = vmatpush2.msra.mxu0 0.0
    %4979 = vmatprep.subr.mxu0 0.0
    %4980 = vmatpush2.msra.mxu0 0.0
    %4981 = vmatprep.subr.mxu0 0.0
    %4982 = vmatpush2.msra.mxu0 0.0
    %4983 = vmatprep.subr.mxu0 0.0
    %4984 = vmatpush2.msra.mxu0 0.0
    %4985 = vmatprep.subr.mxu0 0.0
    %4986 = vmatpush2.msra.mxu0 0.0
    %4987 = vmatprep.subr.mxu0 0.0
    %4988 = vmatpush2.msra.mxu0 0.0
    %4989 = vmatprep.subr.mxu0 0.0
    %4990 = vmatpush2.msra.mxu0 0.0
    %4991 = vmatprep.subr.mxu0 0.0
    %4992 = vmatpush2.msra.mxu0 0.0
    %4993 = vmatprep.subr.mxu0 0.0
    %4994 = vmatpush2.msra.mxu0 0.0
    %4995 = vmatprep.subr.mxu0 0.0
    %4996 = vmatpush2.msra.mxu0 0.0
    %4997 = vmatprep.subr.mxu0 0.0
    %4998 = vmatpush2.msra.mxu0 0.0
    %4999 = vmatprep.subr.mxu0 0.0
    %5000 = vmatpush2.msra.mxu0 0.0
    %5001 = vmatprep.subr.mxu0 0.0
    %5002 = vmatpush2.msra.mxu0 0.0
    %5003 = vmatprep.mubr.f32.mxu0 0.0
    %5004 = vmatmul.mubr.f32.gmra.mxu0 %v4934
    %v5005 = vpop.f32.mrf.mxu0
    %v5006 = vadd.f32 0.0, %v5005
    %v5007 = vpop.f32.mrf.mxu0
    %5008 = vdwg.mxu0
    %v5009 = vadd.f32 %v4924, %v5006
    %v5010 = vld [vmem:[#allocation2 + $0x12] sm:$0x1]
    %v5011 = vld [vmem:[#allocation2 + $0x43] sm:$0x1]
    %v5013 = vrot.slane %v5011, 7
    %v5015 = vsel %vm4335, %v5010, %v5013
    %s5016 = scalar_lea.vmem %s8, 64
    %v5017 = vld [vmem:[%s5016] sm:$0x3f]
    %v5019 = vsel %vm1011, %v5015, 0
    %v5022 = vsel %vm1095, %v5017, 0
    %5024 = vmatprep.subr.mxu0 0.0
    %5025 = vmatpush1.msra.mxu0 0.0
    %5026 = vmatprep.subr.mxu0 0.0
    %5027 = vmatpush1.msra.mxu0 0.0
    %5028 = vmatprep.subr.mxu0 0.0
    %5029 = vmatpush1.msra.mxu0 0.0
    %5030 = vmatprep.subr.mxu0 0.0
    %5031 = vmatpush1.msra.mxu0 0.0
    %5032 = vmatprep.subr.mxu0 0.0
    %5033 = vmatpush1.msra.mxu0 0.0
    %5034 = vmatprep.subr.mxu0 0.0
    %5035 = vmatpush1.msra.mxu0 0.0
    %5036 = vmatprep.subr.mxu0 0.0
    %5037 = vmatpush1.msra.mxu0 0.0
    %5038 = vmatprep.subr.mxu0 0.0
    %5039 = vmatpush1.msra.mxu0 0.0
    %5040 = vmatprep.subr.mxu0 0.0
    %5041 = vmatpush1.msra.mxu0 0.0
    %5042 = vmatprep.subr.mxu0 0.0
    %5043 = vmatpush1.msra.mxu0 0.0
    %5044 = vmatprep.subr.mxu0 0.0
    %5045 = vmatpush1.msra.mxu0 0.0
    %5046 = vmatprep.subr.mxu0 0.0
    %5047 = vmatpush1.msra.mxu0 0.0
    %5048 = vmatprep.subr.mxu0 0.0
    %5049 = vmatpush1.msra.mxu0 0.0
    %5050 = vmatprep.subr.mxu0 0.0
    %5051 = vmatpush1.msra.mxu0 0.0
    %5052 = vmatprep.subr.mxu0 0.0
    %5053 = vmatpush1.msra.mxu0 0.0
    %5054 = vmatprep.subr.mxu0 0.0
    %5055 = vmatpush1.msra.mxu0 %v5022
    %5056 = vmatprep.subr.mxu0 0.0
    %5057 = vmatpush2.msra.mxu0 0.0
    %5058 = vmatprep.subr.mxu0 0.0
    %5059 = vmatpush2.msra.mxu0 0.0
    %5060 = vmatprep.subr.mxu0 0.0
    %5061 = vmatpush2.msra.mxu0 0.0
    %5062 = vmatprep.subr.mxu0 0.0
    %5063 = vmatpush2.msra.mxu0 0.0
    %5064 = vmatprep.subr.mxu0 0.0
    %5065 = vmatpush2.msra.mxu0 0.0
    %5066 = vmatprep.subr.mxu0 0.0
    %5067 = vmatpush2.msra.mxu0 0.0
    %5068 = vmatprep.subr.mxu0 0.0
    %5069 = vmatpush2.msra.mxu0 0.0
    %5070 = vmatprep.subr.mxu0 0.0
    %5071 = vmatpush2.msra.mxu0 0.0
    %5072 = vmatprep.subr.mxu0 0.0
    %5073 = vmatpush2.msra.mxu0 0.0
    %5074 = vmatprep.subr.mxu0 0.0
    %5075 = vmatpush2.msra.mxu0 0.0
    %5076 = vmatprep.subr.mxu0 0.0
    %5077 = vmatpush2.msra.mxu0 0.0
    %5078 = vmatprep.subr.mxu0 0.0
    %5079 = vmatpush2.msra.mxu0 0.0
    %5080 = vmatprep.subr.mxu0 0.0
    %5081 = vmatpush2.msra.mxu0 0.0
    %5082 = vmatprep.subr.mxu0 0.0
    %5083 = vmatpush2.msra.mxu0 0.0
    %5084 = vmatprep.subr.mxu0 0.0
    %5085 = vmatpush2.msra.mxu0 0.0
    %5086 = vmatprep.subr.mxu0 0.0
    %5087 = vmatpush2.msra.mxu0 0.0
    %5088 = vmatprep.mubr.f32.mxu0 0.0
    %5089 = vmatmul.mubr.f32.gmra.mxu0 %v5019
    %v5090 = vpop.f32.mrf.mxu0
    %v5091 = vadd.f32 0.0, %v5090
    %v5092 = vpop.f32.mrf.mxu0
    %5093 = vdwg.mxu0
    %v5094 = vadd.f32 %v5009, %v5091
    %v5095 = vld [vmem:[#allocation2 + $0x13] sm:$0x1]
    %v5096 = vld [vmem:[#allocation2 + $0x44] sm:$0x1]
    %v5098 = vrot.slane %v5096, 7
    %v5100 = vsel %vm4335, %v5095, %v5098
    %s5101 = scalar_lea.vmem %s8, 72
    %v5102 = vld [vmem:[%s5101] sm:$0x3f]
    %v5104 = vsel %vm1011, %v5100, 0
    %v5107 = vsel %vm1095, %v5102, 0
    %5109 = vmatprep.subr.mxu0 0.0
    %5110 = vmatpush1.msra.mxu0 0.0
    %5111 = vmatprep.subr.mxu0 0.0
    %5112 = vmatpush1.msra.mxu0 0.0
    %5113 = vmatprep.subr.mxu0 0.0
    %5114 = vmatpush1.msra.mxu0 0.0
    %5115 = vmatprep.subr.mxu0 0.0
    %5116 = vmatpush1.msra.mxu0 0.0
    %5117 = vmatprep.subr.mxu0 0.0
    %5118 = vmatpush1.msra.mxu0 0.0
    %5119 = vmatprep.subr.mxu0 0.0
    %5120 = vmatpush1.msra.mxu0 0.0
    %5121 = vmatprep.subr.mxu0 0.0
    %5122 = vmatpush1.msra.mxu0 0.0
    %5123 = vmatprep.subr.mxu0 0.0
    %5124 = vmatpush1.msra.mxu0 0.0
    %5125 = vmatprep.subr.mxu0 0.0
    %5126 = vmatpush1.msra.mxu0 0.0
    %5127 = vmatprep.subr.mxu0 0.0
    %5128 = vmatpush1.msra.mxu0 0.0
    %5129 = vmatprep.subr.mxu0 0.0
    %5130 = vmatpush1.msra.mxu0 0.0
    %5131 = vmatprep.subr.mxu0 0.0
    %5132 = vmatpush1.msra.mxu0 0.0
    %5133 = vmatprep.subr.mxu0 0.0
    %5134 = vmatpush1.msra.mxu0 0.0
    %5135 = vmatprep.subr.mxu0 0.0
    %5136 = vmatpush1.msra.mxu0 0.0
    %5137 = vmatprep.subr.mxu0 0.0
    %5138 = vmatpush1.msra.mxu0 0.0
    %5139 = vmatprep.subr.mxu0 0.0
    %5140 = vmatpush1.msra.mxu0 %v5107
    %5141 = vmatprep.subr.mxu0 0.0
    %5142 = vmatpush2.msra.mxu0 0.0
    %5143 = vmatprep.subr.mxu0 0.0
    %5144 = vmatpush2.msra.mxu0 0.0
    %5145 = vmatprep.subr.mxu0 0.0
    %5146 = vmatpush2.msra.mxu0 0.0
    %5147 = vmatprep.subr.mxu0 0.0
    %5148 = vmatpush2.msra.mxu0 0.0
    %5149 = vmatprep.subr.mxu0 0.0
    %5150 = vmatpush2.msra.mxu0 0.0
    %5151 = vmatprep.subr.mxu0 0.0
    %5152 = vmatpush2.msra.mxu0 0.0
    %5153 = vmatprep.subr.mxu0 0.0
    %5154 = vmatpush2.msra.mxu0 0.0
    %5155 = vmatprep.subr.mxu0 0.0
    %5156 = vmatpush2.msra.mxu0 0.0
    %5157 = vmatprep.subr.mxu0 0.0
    %5158 = vmatpush2.msra.mxu0 0.0
    %5159 = vmatprep.subr.mxu0 0.0
    %5160 = vmatpush2.msra.mxu0 0.0
    %5161 = vmatprep.subr.mxu0 0.0
    %5162 = vmatpush2.msra.mxu0 0.0
    %5163 = vmatprep.subr.mxu0 0.0
    %5164 = vmatpush2.msra.mxu0 0.0
    %5165 = vmatprep.subr.mxu0 0.0
    %5166 = vmatpush2.msra.mxu0 0.0
    %5167 = vmatprep.subr.mxu0 0.0
    %5168 = vmatpush2.msra.mxu0 0.0
    %5169 = vmatprep.subr.mxu0 0.0
    %5170 = vmatpush2.msra.mxu0 0.0
    %5171 = vmatprep.subr.mxu0 0.0
    %5172 = vmatpush2.msra.mxu0 0.0
    %5173 = vmatprep.mubr.f32.mxu0 0.0
    %5174 = vmatmul.mubr.f32.gmra.mxu0 %v5104
    %v5175 = vpop.f32.mrf.mxu0
    %v5176 = vadd.f32 0.0, %v5175
    %v5177 = vpop.f32.mrf.mxu0
    %5178 = vdwg.mxu0
    %v5179 = vadd.f32 %v5094, %v5176
    %v5180 = vld [vmem:[#allocation2 + $0x16] sm:$0x1]
    %v5181 = vld [vmem:[#allocation2 + $0x47] sm:$0x1]
    %v5183 = vrot.slane %v5181, 7
    %v5185 = vsel %vm4335, %v5180, %v5183
    %s5186 = scalar_lea.vmem %s8, 80
    %v5187 = vld [vmem:[%s5186] sm:$0x3f]
    %v5189 = vsel %vm1011, %v5185, 0
    %v5192 = vsel %vm1095, %v5187, 0
    %5194 = vmatprep.subr.mxu0 0.0
    %5195 = vmatpush1.msra.mxu0 0.0
    %5196 = vmatprep.subr.mxu0 0.0
    %5197 = vmatpush1.msra.mxu0 0.0
    %5198 = vmatprep.subr.mxu0 0.0
    %5199 = vmatpush1.msra.mxu0 0.0
    %5200 = vmatprep.subr.mxu0 0.0
    %5201 = vmatpush1.msra.mxu0 0.0
    %5202 = vmatprep.subr.mxu0 0.0
    %5203 = vmatpush1.msra.mxu0 0.0
    %5204 = vmatprep.subr.mxu0 0.0
    %5205 = vmatpush1.msra.mxu0 0.0
    %5206 = vmatprep.subr.mxu0 0.0
    %5207 = vmatpush1.msra.mxu0 0.0
    %5208 = vmatprep.subr.mxu0 0.0
    %5209 = vmatpush1.msra.mxu0 0.0
    %5210 = vmatprep.subr.mxu0 0.0
    %5211 = vmatpush1.msra.mxu0 0.0
    %5212 = vmatprep.subr.mxu0 0.0
    %5213 = vmatpush1.msra.mxu0 0.0
    %5214 = vmatprep.subr.mxu0 0.0
    %5215 = vmatpush1.msra.mxu0 0.0
    %5216 = vmatprep.subr.mxu0 0.0
    %5217 = vmatpush1.msra.mxu0 0.0
    %5218 = vmatprep.subr.mxu0 0.0
    %5219 = vmatpush1.msra.mxu0 0.0
    %5220 = vmatprep.subr.mxu0 0.0
    %5221 = vmatpush1.msra.mxu0 0.0
    %5222 = vmatprep.subr.mxu0 0.0
    %5223 = vmatpush1.msra.mxu0 0.0
    %5224 = vmatprep.subr.mxu0 0.0
    %5225 = vmatpush1.msra.mxu0 %v5192
    %5226 = vmatprep.subr.mxu0 0.0
    %5227 = vmatpush2.msra.mxu0 0.0
    %5228 = vmatprep.subr.mxu0 0.0
    %5229 = vmatpush2.msra.mxu0 0.0
    %5230 = vmatprep.subr.mxu0 0.0
    %5231 = vmatpush2.msra.mxu0 0.0
    %5232 = vmatprep.subr.mxu0 0.0
    %5233 = vmatpush2.msra.mxu0 0.0
    %5234 = vmatprep.subr.mxu0 0.0
    %5235 = vmatpush2.msra.mxu0 0.0
    %5236 = vmatprep.subr.mxu0 0.0
    %5237 = vmatpush2.msra.mxu0 0.0
    %5238 = vmatprep.subr.mxu0 0.0
    %5239 = vmatpush2.msra.mxu0 0.0
    %5240 = vmatprep.subr.mxu0 0.0
    %5241 = vmatpush2.msra.mxu0 0.0
    %5242 = vmatprep.subr.mxu0 0.0
    %5243 = vmatpush2.msra.mxu0 0.0
    %5244 = vmatprep.subr.mxu0 0.0
    %5245 = vmatpush2.msra.mxu0 0.0
    %5246 = vmatprep.subr.mxu0 0.0
    %5247 = vmatpush2.msra.mxu0 0.0
    %5248 = vmatprep.subr.mxu0 0.0
    %5249 = vmatpush2.msra.mxu0 0.0
    %5250 = vmatprep.subr.mxu0 0.0
    %5251 = vmatpush2.msra.mxu0 0.0
    %5252 = vmatprep.subr.mxu0 0.0
    %5253 = vmatpush2.msra.mxu0 0.0
    %5254 = vmatprep.subr.mxu0 0.0
    %5255 = vmatpush2.msra.mxu0 0.0
    %5256 = vmatprep.subr.mxu0 0.0
    %5257 = vmatpush2.msra.mxu0 0.0
    %5258 = vmatprep.mubr.f32.mxu0 0.0
    %5259 = vmatmul.mubr.f32.gmra.mxu0 %v5189
    %v5260 = vpop.f32.mrf.mxu0
    %v5261 = vadd.f32 0.0, %v5260
    %v5262 = vpop.f32.mrf.mxu0
    %5263 = vdwg.mxu0
    %v5264 = vadd.f32 %v5179, %v5261
    %v5265 = vld [vmem:[#allocation2 + $0x17] sm:$0x1]
    %v5266 = vld [vmem:[#allocation2 + $0x48] sm:$0x1]
    %v5268 = vrot.slane %v5266, 7
    %v5270 = vsel %vm4335, %v5265, %v5268
    %s5271 = scalar_lea.vmem %s8, 88
    %v5272 = vld [vmem:[%s5271] sm:$0x3f]
    %v5274 = vsel %vm1011, %v5270, 0
    %v5277 = vsel %vm1095, %v5272, 0
    %5279 = vmatprep.subr.mxu0 0.0
    %5280 = vmatpush1.msra.mxu0 0.0
    %5281 = vmatprep.subr.mxu0 0.0
    %5282 = vmatpush1.msra.mxu0 0.0
    %5283 = vmatprep.subr.mxu0 0.0
    %5284 = vmatpush1.msra.mxu0 0.0
    %5285 = vmatprep.subr.mxu0 0.0
    %5286 = vmatpush1.msra.mxu0 0.0
    %5287 = vmatprep.subr.mxu0 0.0
    %5288 = vmatpush1.msra.mxu0 0.0
    %5289 = vmatprep.subr.mxu0 0.0
    %5290 = vmatpush1.msra.mxu0 0.0
    %5291 = vmatprep.subr.mxu0 0.0
    %5292 = vmatpush1.msra.mxu0 0.0
    %5293 = vmatprep.subr.mxu0 0.0
    %5294 = vmatpush1.msra.mxu0 0.0
    %5295 = vmatprep.subr.mxu0 0.0
    %5296 = vmatpush1.msra.mxu0 0.0
    %5297 = vmatprep.subr.mxu0 0.0
    %5298 = vmatpush1.msra.mxu0 0.0
    %5299 = vmatprep.subr.mxu0 0.0
    %5300 = vmatpush1.msra.mxu0 0.0
    %5301 = vmatprep.subr.mxu0 0.0
    %5302 = vmatpush1.msra.mxu0 0.0
    %5303 = vmatprep.subr.mxu0 0.0
    %5304 = vmatpush1.msra.mxu0 0.0
    %5305 = vmatprep.subr.mxu0 0.0
    %5306 = vmatpush1.msra.mxu0 0.0
    %5307 = vmatprep.subr.mxu0 0.0
    %5308 = vmatpush1.msra.mxu0 0.0
    %5309 = vmatprep.subr.mxu0 0.0
    %5310 = vmatpush1.msra.mxu0 %v5277
    %5311 = vmatprep.subr.mxu0 0.0
    %5312 = vmatpush2.msra.mxu0 0.0
    %5313 = vmatprep.subr.mxu0 0.0
    %5314 = vmatpush2.msra.mxu0 0.0
    %5315 = vmatprep.subr.mxu0 0.0
    %5316 = vmatpush2.msra.mxu0 0.0
    %5317 = vmatprep.subr.mxu0 0.0
    %5318 = vmatpush2.msra.mxu0 0.0
    %5319 = vmatprep.subr.mxu0 0.0
    %5320 = vmatpush2.msra.mxu0 0.0
    %5321 = vmatprep.subr.mxu0 0.0
    %5322 = vmatpush2.msra.mxu0 0.0
    %5323 = vmatprep.subr.mxu0 0.0
    %5324 = vmatpush2.msra.mxu0 0.0
    %5325 = vmatprep.subr.mxu0 0.0
    %5326 = vmatpush2.msra.mxu0 0.0
    %5327 = vmatprep.subr.mxu0 0.0
    %5328 = vmatpush2.msra.mxu0 0.0
    %5329 = vmatprep.subr.mxu0 0.0
    %5330 = vmatpush2.msra.mxu0 0.0
    %5331 = vmatprep.subr.mxu0 0.0
    %5332 = vmatpush2.msra.mxu0 0.0
    %5333 = vmatprep.subr.mxu0 0.0
    %5334 = vmatpush2.msra.mxu0 0.0
    %5335 = vmatprep.subr.mxu0 0.0
    %5336 = vmatpush2.msra.mxu0 0.0
    %5337 = vmatprep.subr.mxu0 0.0
    %5338 = vmatpush2.msra.mxu0 0.0
    %5339 = vmatprep.subr.mxu0 0.0
    %5340 = vmatpush2.msra.mxu0 0.0
    %5341 = vmatprep.subr.mxu0 0.0
    %5342 = vmatpush2.msra.mxu0 0.0
    %5343 = vmatprep.mubr.f32.mxu0 0.0
    %5344 = vmatmul.mubr.f32.gmra.mxu0 %v5274
    %v5345 = vpop.f32.mrf.mxu0
    %v5346 = vadd.f32 0.0, %v5345
    %v5347 = vpop.f32.mrf.mxu0
    %5348 = vdwg.mxu0
    %v5349 = vadd.f32 %v5264, %v5346
    %v5350 = vld [vmem:[#allocation2 + $0x18] sm:$0x1]
    %v5351 = vld [vmem:[#allocation2 + $0x49] sm:$0x1]
    %v5353 = vrot.slane %v5351, 7
    %v5355 = vsel %vm4335, %v5350, %v5353
    %s5356 = scalar_lea.vmem %s8, 96
    %v5357 = vld [vmem:[%s5356] sm:$0x3f]
    %v5359 = vsel %vm1011, %v5355, 0
    %v5362 = vsel %vm1095, %v5357, 0
    %5364 = vmatprep.subr.mxu0 0.0
    %5365 = vmatpush1.msra.mxu0 0.0
    %5366 = vmatprep.subr.mxu0 0.0
    %5367 = vmatpush1.msra.mxu0 0.0
    %5368 = vmatprep.subr.mxu0 0.0
    %5369 = vmatpush1.msra.mxu0 0.0
    %5370 = vmatprep.subr.mxu0 0.0
    %5371 = vmatpush1.msra.mxu0 0.0
    %5372 = vmatprep.subr.mxu0 0.0
    %5373 = vmatpush1.msra.mxu0 0.0
    %5374 = vmatprep.subr.mxu0 0.0
    %5375 = vmatpush1.msra.mxu0 0.0
    %5376 = vmatprep.subr.mxu0 0.0
    %5377 = vmatpush1.msra.mxu0 0.0
    %5378 = vmatprep.subr.mxu0 0.0
    %5379 = vmatpush1.msra.mxu0 0.0
    %5380 = vmatprep.subr.mxu0 0.0
    %5381 = vmatpush1.msra.mxu0 0.0
    %5382 = vmatprep.subr.mxu0 0.0
    %5383 = vmatpush1.msra.mxu0 0.0
    %5384 = vmatprep.subr.mxu0 0.0
    %5385 = vmatpush1.msra.mxu0 0.0
    %5386 = vmatprep.subr.mxu0 0.0
    %5387 = vmatpush1.msra.mxu0 0.0
    %5388 = vmatprep.subr.mxu0 0.0
    %5389 = vmatpush1.msra.mxu0 0.0
    %5390 = vmatprep.subr.mxu0 0.0
    %5391 = vmatpush1.msra.mxu0 0.0
    %5392 = vmatprep.subr.mxu0 0.0
    %5393 = vmatpush1.msra.mxu0 0.0
    %5394 = vmatprep.subr.mxu0 0.0
    %5395 = vmatpush1.msra.mxu0 %v5362
    %5396 = vmatprep.subr.mxu0 0.0
    %5397 = vmatpush2.msra.mxu0 0.0
    %5398 = vmatprep.subr.mxu0 0.0
    %5399 = vmatpush2.msra.mxu0 0.0
    %5400 = vmatprep.subr.mxu0 0.0
    %5401 = vmatpush2.msra.mxu0 0.0
    %5402 = vmatprep.subr.mxu0 0.0
    %5403 = vmatpush2.msra.mxu0 0.0
    %5404 = vmatprep.subr.mxu0 0.0
    %5405 = vmatpush2.msra.mxu0 0.0
    %5406 = vmatprep.subr.mxu0 0.0
    %5407 = vmatpush2.msra.mxu0 0.0
    %5408 = vmatprep.subr.mxu0 0.0
    %5409 = vmatpush2.msra.mxu0 0.0
    %5410 = vmatprep.subr.mxu0 0.0
    %5411 = vmatpush2.msra.mxu0 0.0
    %5412 = vmatprep.subr.mxu0 0.0
    %5413 = vmatpush2.msra.mxu0 0.0
    %5414 = vmatprep.subr.mxu0 0.0
    %5415 = vmatpush2.msra.mxu0 0.0
    %5416 = vmatprep.subr.mxu0 0.0
    %5417 = vmatpush2.msra.mxu0 0.0
    %5418 = vmatprep.subr.mxu0 0.0
    %5419 = vmatpush2.msra.mxu0 0.0
    %5420 = vmatprep.subr.mxu0 0.0
    %5421 = vmatpush2.msra.mxu0 0.0
    %5422 = vmatprep.subr.mxu0 0.0
    %5423 = vmatpush2.msra.mxu0 0.0
    %5424 = vmatprep.subr.mxu0 0.0
    %5425 = vmatpush2.msra.mxu0 0.0
    %5426 = vmatprep.subr.mxu0 0.0
    %5427 = vmatpush2.msra.mxu0 0.0
    %5428 = vmatprep.mubr.f32.mxu0 0.0
    %5429 = vmatmul.mubr.f32.gmra.mxu0 %v5359
    %v5430 = vpop.f32.mrf.mxu0
    %v5431 = vadd.f32 0.0, %v5430
    %v5432 = vpop.f32.mrf.mxu0
    %5433 = vdwg.mxu0
    %v5434 = vadd.f32 %v5349, %v5431
    %v5435 = vld [vmem:[#allocation2 + $0x19] sm:$0x1]
    %v5436 = vld [vmem:[#allocation2 + $0x4a] sm:$0x1]
    %v5438 = vrot.slane %v5436, 7
    %v5440 = vsel %vm4335, %v5435, %v5438
    %s5441 = scalar_lea.vmem %s8, 104
    %v5442 = vld [vmem:[%s5441] sm:$0x3f]
    %v5444 = vsel %vm1011, %v5440, 0
    %v5447 = vsel %vm1095, %v5442, 0
    %5449 = vmatprep.subr.mxu0 0.0
    %5450 = vmatpush1.msra.mxu0 0.0
    %5451 = vmatprep.subr.mxu0 0.0
    %5452 = vmatpush1.msra.mxu0 0.0
    %5453 = vmatprep.subr.mxu0 0.0
    %5454 = vmatpush1.msra.mxu0 0.0
    %5455 = vmatprep.subr.mxu0 0.0
    %5456 = vmatpush1.msra.mxu0 0.0
    %5457 = vmatprep.subr.mxu0 0.0
    %5458 = vmatpush1.msra.mxu0 0.0
    %5459 = vmatprep.subr.mxu0 0.0
    %5460 = vmatpush1.msra.mxu0 0.0
    %5461 = vmatprep.subr.mxu0 0.0
    %5462 = vmatpush1.msra.mxu0 0.0
    %5463 = vmatprep.subr.mxu0 0.0
    %5464 = vmatpush1.msra.mxu0 0.0
    %5465 = vmatprep.subr.mxu0 0.0
    %5466 = vmatpush1.msra.mxu0 0.0
    %5467 = vmatprep.subr.mxu0 0.0
    %5468 = vmatpush1.msra.mxu0 0.0
    %5469 = vmatprep.subr.mxu0 0.0
    %5470 = vmatpush1.msra.mxu0 0.0
    %5471 = vmatprep.subr.mxu0 0.0
    %5472 = vmatpush1.msra.mxu0 0.0
    %5473 = vmatprep.subr.mxu0 0.0
    %5474 = vmatpush1.msra.mxu0 0.0
    %5475 = vmatprep.subr.mxu0 0.0
    %5476 = vmatpush1.msra.mxu0 0.0
    %5477 = vmatprep.subr.mxu0 0.0
    %5478 = vmatpush1.msra.mxu0 0.0
    %5479 = vmatprep.subr.mxu0 0.0
    %5480 = vmatpush1.msra.mxu0 %v5447
    %5481 = vmatprep.subr.mxu0 0.0
    %5482 = vmatpush2.msra.mxu0 0.0
    %5483 = vmatprep.subr.mxu0 0.0
    %5484 = vmatpush2.msra.mxu0 0.0
    %5485 = vmatprep.subr.mxu0 0.0
    %5486 = vmatpush2.msra.mxu0 0.0
    %5487 = vmatprep.subr.mxu0 0.0
    %5488 = vmatpush2.msra.mxu0 0.0
    %5489 = vmatprep.subr.mxu0 0.0
    %5490 = vmatpush2.msra.mxu0 0.0
    %5491 = vmatprep.subr.mxu0 0.0
    %5492 = vmatpush2.msra.mxu0 0.0
    %5493 = vmatprep.subr.mxu0 0.0
    %5494 = vmatpush2.msra.mxu0 0.0
    %5495 = vmatprep.subr.mxu0 0.0
    %5496 = vmatpush2.msra.mxu0 0.0
    %5497 = vmatprep.subr.mxu0 0.0
    %5498 = vmatpush2.msra.mxu0 0.0
    %5499 = vmatprep.subr.mxu0 0.0
    %5500 = vmatpush2.msra.mxu0 0.0
    %5501 = vmatprep.subr.mxu0 0.0
    %5502 = vmatpush2.msra.mxu0 0.0
    %5503 = vmatprep.subr.mxu0 0.0
    %5504 = vmatpush2.msra.mxu0 0.0
    %5505 = vmatprep.subr.mxu0 0.0
    %5506 = vmatpush2.msra.mxu0 0.0
    %5507 = vmatprep.subr.mxu0 0.0
    %5508 = vmatpush2.msra.mxu0 0.0
    %5509 = vmatprep.subr.mxu0 0.0
    %5510 = vmatpush2.msra.mxu0 0.0
    %5511 = vmatprep.subr.mxu0 0.0
    %5512 = vmatpush2.msra.mxu0 0.0
    %5513 = vmatprep.mubr.f32.mxu0 0.0
    %5514 = vmatmul.mubr.f32.gmra.mxu0 %v5444
    %v5515 = vpop.f32.mrf.mxu0
    %v5516 = vadd.f32 0.0, %v5515
    %v5517 = vpop.f32.mrf.mxu0
    %5518 = vdwg.mxu0
    %v5519 = vadd.f32 %v5434, %v5516
    %v5520 = vld [vmem:[#allocation2 + $0x1a] sm:$0x1]
    %v5521 = vld [vmem:[#allocation2 + $0x4b] sm:$0x1]
    %v5523 = vrot.slane %v5521, 7
    %v5525 = vsel %vm4335, %v5520, %v5523
    %s5526 = scalar_lea.vmem %s8, 112
    %v5527 = vld [vmem:[%s5526] sm:$0x3f]
    %v5529 = vsel %vm1011, %v5525, 0
    %v5532 = vsel %vm1095, %v5527, 0
    %5534 = vmatprep.subr.mxu0 0.0
    %5535 = vmatpush1.msra.mxu0 0.0
    %5536 = vmatprep.subr.mxu0 0.0
    %5537 = vmatpush1.msra.mxu0 0.0
    %5538 = vmatprep.subr.mxu0 0.0
    %5539 = vmatpush1.msra.mxu0 0.0
    %5540 = vmatprep.subr.mxu0 0.0
    %5541 = vmatpush1.msra.mxu0 0.0
    %5542 = vmatprep.subr.mxu0 0.0
    %5543 = vmatpush1.msra.mxu0 0.0
    %5544 = vmatprep.subr.mxu0 0.0
    %5545 = vmatpush1.msra.mxu0 0.0
    %5546 = vmatprep.subr.mxu0 0.0
    %5547 = vmatpush1.msra.mxu0 0.0
    %5548 = vmatprep.subr.mxu0 0.0
    %5549 = vmatpush1.msra.mxu0 0.0
    %5550 = vmatprep.subr.mxu0 0.0
    %5551 = vmatpush1.msra.mxu0 0.0
    %5552 = vmatprep.subr.mxu0 0.0
    %5553 = vmatpush1.msra.mxu0 0.0
    %5554 = vmatprep.subr.mxu0 0.0
    %5555 = vmatpush1.msra.mxu0 0.0
    %5556 = vmatprep.subr.mxu0 0.0
    %5557 = vmatpush1.msra.mxu0 0.0
    %5558 = vmatprep.subr.mxu0 0.0
    %5559 = vmatpush1.msra.mxu0 0.0
    %5560 = vmatprep.subr.mxu0 0.0
    %5561 = vmatpush1.msra.mxu0 0.0
    %5562 = vmatprep.subr.mxu0 0.0
    %5563 = vmatpush1.msra.mxu0 0.0
    %5564 = vmatprep.subr.mxu0 0.0
    %5565 = vmatpush1.msra.mxu0 %v5532
    %5566 = vmatprep.subr.mxu0 0.0
    %5567 = vmatpush2.msra.mxu0 0.0
    %5568 = vmatprep.subr.mxu0 0.0
    %5569 = vmatpush2.msra.mxu0 0.0
    %5570 = vmatprep.subr.mxu0 0.0
    %5571 = vmatpush2.msra.mxu0 0.0
    %5572 = vmatprep.subr.mxu0 0.0
    %5573 = vmatpush2.msra.mxu0 0.0
    %5574 = vmatprep.subr.mxu0 0.0
    %5575 = vmatpush2.msra.mxu0 0.0
    %5576 = vmatprep.subr.mxu0 0.0
    %5577 = vmatpush2.msra.mxu0 0.0
    %5578 = vmatprep.subr.mxu0 0.0
    %5579 = vmatpush2.msra.mxu0 0.0
    %5580 = vmatprep.subr.mxu0 0.0
    %5581 = vmatpush2.msra.mxu0 0.0
    %5582 = vmatprep.subr.mxu0 0.0
    %5583 = vmatpush2.msra.mxu0 0.0
    %5584 = vmatprep.subr.mxu0 0.0
    %5585 = vmatpush2.msra.mxu0 0.0
    %5586 = vmatprep.subr.mxu0 0.0
    %5587 = vmatpush2.msra.mxu0 0.0
    %5588 = vmatprep.subr.mxu0 0.0
    %5589 = vmatpush2.msra.mxu0 0.0
    %5590 = vmatprep.subr.mxu0 0.0
    %5591 = vmatpush2.msra.mxu0 0.0
    %5592 = vmatprep.subr.mxu0 0.0
    %5593 = vmatpush2.msra.mxu0 0.0
    %5594 = vmatprep.subr.mxu0 0.0
    %5595 = vmatpush2.msra.mxu0 0.0
    %5596 = vmatprep.subr.mxu0 0.0
    %5597 = vmatpush2.msra.mxu0 0.0
    %5598 = vmatprep.mubr.f32.mxu0 0.0
    %5599 = vmatmul.mubr.f32.gmra.mxu0 %v5529
    %v5600 = vpop.f32.mrf.mxu0
    %v5601 = vadd.f32 0.0, %v5600
    %v5602 = vpop.f32.mrf.mxu0
    %5603 = vdwg.mxu0
    %v5604 = vadd.f32 %v5519, %v5601
    %v5605 = vld [vmem:[#allocation2 + $0x1d] sm:$0x1]
    %v5606 = vld [vmem:[#allocation2 + $0x4e] sm:$0x1]
    %v5608 = vrot.slane %v5606, 7
    %v5610 = vsel %vm4335, %v5605, %v5608
    %s5611 = scalar_lea.vmem %s8, 120
    %v5612 = vld [vmem:[%s5611] sm:$0x3f]
    %v5614 = vsel %vm1011, %v5610, 0
    %v5617 = vsel %vm1095, %v5612, 0
    %5619 = vmatprep.subr.mxu0 0.0
    %5620 = vmatpush1.msra.mxu0 0.0
    %5621 = vmatprep.subr.mxu0 0.0
    %5622 = vmatpush1.msra.mxu0 0.0
    %5623 = vmatprep.subr.mxu0 0.0
    %5624 = vmatpush1.msra.mxu0 0.0
    %5625 = vmatprep.subr.mxu0 0.0
    %5626 = vmatpush1.msra.mxu0 0.0
    %5627 = vmatprep.subr.mxu0 0.0
    %5628 = vmatpush1.msra.mxu0 0.0
    %5629 = vmatprep.subr.mxu0 0.0
    %5630 = vmatpush1.msra.mxu0 0.0
    %5631 = vmatprep.subr.mxu0 0.0
    %5632 = vmatpush1.msra.mxu0 0.0
    %5633 = vmatprep.subr.mxu0 0.0
    %5634 = vmatpush1.msra.mxu0 0.0
    %5635 = vmatprep.subr.mxu0 0.0
    %5636 = vmatpush1.msra.mxu0 0.0
    %5637 = vmatprep.subr.mxu0 0.0
    %5638 = vmatpush1.msra.mxu0 0.0
    %5639 = vmatprep.subr.mxu0 0.0
    %5640 = vmatpush1.msra.mxu0 0.0
    %5641 = vmatprep.subr.mxu0 0.0
    %5642 = vmatpush1.msra.mxu0 0.0
    %5643 = vmatprep.subr.mxu0 0.0
    %5644 = vmatpush1.msra.mxu0 0.0
    %5645 = vmatprep.subr.mxu0 0.0
    %5646 = vmatpush1.msra.mxu0 0.0
    %5647 = vmatprep.subr.mxu0 0.0
    %5648 = vmatpush1.msra.mxu0 0.0
    %5649 = vmatprep.subr.mxu0 0.0
    %5650 = vmatpush1.msra.mxu0 %v5617
    %5651 = vmatprep.subr.mxu0 0.0
    %5652 = vmatpush2.msra.mxu0 0.0
    %5653 = vmatprep.subr.mxu0 0.0
    %5654 = vmatpush2.msra.mxu0 0.0
    %5655 = vmatprep.subr.mxu0 0.0
    %5656 = vmatpush2.msra.mxu0 0.0
    %5657 = vmatprep.subr.mxu0 0.0
    %5658 = vmatpush2.msra.mxu0 0.0
    %5659 = vmatprep.subr.mxu0 0.0
    %5660 = vmatpush2.msra.mxu0 0.0
    %5661 = vmatprep.subr.mxu0 0.0
    %5662 = vmatpush2.msra.mxu0 0.0
    %5663 = vmatprep.subr.mxu0 0.0
    %5664 = vmatpush2.msra.mxu0 0.0
    %5665 = vmatprep.subr.mxu0 0.0
    %5666 = vmatpush2.msra.mxu0 0.0
    %5667 = vmatprep.subr.mxu0 0.0
    %5668 = vmatpush2.msra.mxu0 0.0
    %5669 = vmatprep.subr.mxu0 0.0
    %5670 = vmatpush2.msra.mxu0 0.0
    %5671 = vmatprep.subr.mxu0 0.0
    %5672 = vmatpush2.msra.mxu0 0.0
    %5673 = vmatprep.subr.mxu0 0.0
    %5674 = vmatpush2.msra.mxu0 0.0
    %5675 = vmatprep.subr.mxu0 0.0
    %5676 = vmatpush2.msra.mxu0 0.0
    %5677 = vmatprep.subr.mxu0 0.0
    %5678 = vmatpush2.msra.mxu0 0.0
    %5679 = vmatprep.subr.mxu0 0.0
    %5680 = vmatpush2.msra.mxu0 0.0
    %5681 = vmatprep.subr.mxu0 0.0
    %5682 = vmatpush2.msra.mxu0 0.0
    %5683 = vmatprep.mubr.f32.mxu0 0.0
    %5684 = vmatmul.mubr.f32.gmra.mxu0 %v5614
    %v5685 = vpop.f32.mrf.mxu0
    %v5686 = vadd.f32 0.0, %v5685
    %v5687 = vpop.f32.mrf.mxu0
    %5688 = vdwg.mxu0
    %v5689 = vadd.f32 %v5604, %v5686
    %v5690 = vld [vmem:[#allocation2 + $0x1e] sm:$0x1]
    %v5691 = vld [vmem:[#allocation2 + $0x4f] sm:$0x1]
    %v5693 = vrot.slane %v5691, 7
    %v5695 = vsel %vm4335, %v5690, %v5693
    %s5696 = scalar_lea.vmem %s8, 128
    %v5697 = vld [vmem:[%s5696] sm:$0x3f]
    %v5699 = vsel %vm1011, %v5695, 0
    %v5702 = vsel %vm1095, %v5697, 0
    %5704 = vmatprep.subr.mxu0 0.0
    %5705 = vmatpush1.msra.mxu0 0.0
    %5706 = vmatprep.subr.mxu0 0.0
    %5707 = vmatpush1.msra.mxu0 0.0
    %5708 = vmatprep.subr.mxu0 0.0
    %5709 = vmatpush1.msra.mxu0 0.0
    %5710 = vmatprep.subr.mxu0 0.0
    %5711 = vmatpush1.msra.mxu0 0.0
    %5712 = vmatprep.subr.mxu0 0.0
    %5713 = vmatpush1.msra.mxu0 0.0
    %5714 = vmatprep.subr.mxu0 0.0
    %5715 = vmatpush1.msra.mxu0 0.0
    %5716 = vmatprep.subr.mxu0 0.0
    %5717 = vmatpush1.msra.mxu0 0.0
    %5718 = vmatprep.subr.mxu0 0.0
    %5719 = vmatpush1.msra.mxu0 0.0
    %5720 = vmatprep.subr.mxu0 0.0
    %5721 = vmatpush1.msra.mxu0 0.0
    %5722 = vmatprep.subr.mxu0 0.0
    %5723 = vmatpush1.msra.mxu0 0.0
    %5724 = vmatprep.subr.mxu0 0.0
    %5725 = vmatpush1.msra.mxu0 0.0
    %5726 = vmatprep.subr.mxu0 0.0
    %5727 = vmatpush1.msra.mxu0 0.0
    %5728 = vmatprep.subr.mxu0 0.0
    %5729 = vmatpush1.msra.mxu0 0.0
    %5730 = vmatprep.subr.mxu0 0.0
    %5731 = vmatpush1.msra.mxu0 0.0
    %5732 = vmatprep.subr.mxu0 0.0
    %5733 = vmatpush1.msra.mxu0 0.0
    %5734 = vmatprep.subr.mxu0 0.0
    %5735 = vmatpush1.msra.mxu0 %v5702
    %5736 = vmatprep.subr.mxu0 0.0
    %5737 = vmatpush2.msra.mxu0 0.0
    %5738 = vmatprep.subr.mxu0 0.0
    %5739 = vmatpush2.msra.mxu0 0.0
    %5740 = vmatprep.subr.mxu0 0.0
    %5741 = vmatpush2.msra.mxu0 0.0
    %5742 = vmatprep.subr.mxu0 0.0
    %5743 = vmatpush2.msra.mxu0 0.0
    %5744 = vmatprep.subr.mxu0 0.0
    %5745 = vmatpush2.msra.mxu0 0.0
    %5746 = vmatprep.subr.mxu0 0.0
    %5747 = vmatpush2.msra.mxu0 0.0
    %5748 = vmatprep.subr.mxu0 0.0
    %5749 = vmatpush2.msra.mxu0 0.0
    %5750 = vmatprep.subr.mxu0 0.0
    %5751 = vmatpush2.msra.mxu0 0.0
    %5752 = vmatprep.subr.mxu0 0.0
    %5753 = vmatpush2.msra.mxu0 0.0
    %5754 = vmatprep.subr.mxu0 0.0
    %5755 = vmatpush2.msra.mxu0 0.0
    %5756 = vmatprep.subr.mxu0 0.0
    %5757 = vmatpush2.msra.mxu0 0.0
    %5758 = vmatprep.subr.mxu0 0.0
    %5759 = vmatpush2.msra.mxu0 0.0
    %5760 = vmatprep.subr.mxu0 0.0
    %5761 = vmatpush2.msra.mxu0 0.0
    %5762 = vmatprep.subr.mxu0 0.0
    %5763 = vmatpush2.msra.mxu0 0.0
    %5764 = vmatprep.subr.mxu0 0.0
    %5765 = vmatpush2.msra.mxu0 0.0
    %5766 = vmatprep.subr.mxu0 0.0
    %5767 = vmatpush2.msra.mxu0 0.0
    %5768 = vmatprep.mubr.f32.mxu0 0.0
    %5769 = vmatmul.mubr.f32.gmra.mxu0 %v5699
    %v5770 = vpop.f32.mrf.mxu0
    %v5771 = vadd.f32 0.0, %v5770
    %v5772 = vpop.f32.mrf.mxu0
    %5773 = vdwg.mxu0
    %v5774 = vadd.f32 %v5689, %v5771
    %v5775 = vld [vmem:[#allocation2 + $0x1f] sm:$0x1]
    %v5776 = vld [vmem:[#allocation2 + $0x50] sm:$0x1]
    %v5778 = vrot.slane %v5776, 7
    %v5780 = vsel %vm4335, %v5775, %v5778
    %s5781 = scalar_lea.vmem %s8, 136
    %v5782 = vld [vmem:[%s5781] sm:$0x3f]
    %v5784 = vsel %vm1011, %v5780, 0
    %v5787 = vsel %vm1095, %v5782, 0
    %5789 = vmatprep.subr.mxu0 0.0
    %5790 = vmatpush1.msra.mxu0 0.0
    %5791 = vmatprep.subr.mxu0 0.0
    %5792 = vmatpush1.msra.mxu0 0.0
    %5793 = vmatprep.subr.mxu0 0.0
    %5794 = vmatpush1.msra.mxu0 0.0
    %5795 = vmatprep.subr.mxu0 0.0
    %5796 = vmatpush1.msra.mxu0 0.0
    %5797 = vmatprep.subr.mxu0 0.0
    %5798 = vmatpush1.msra.mxu0 0.0
    %5799 = vmatprep.subr.mxu0 0.0
    %5800 = vmatpush1.msra.mxu0 0.0
    %5801 = vmatprep.subr.mxu0 0.0
    %5802 = vmatpush1.msra.mxu0 0.0
    %5803 = vmatprep.subr.mxu0 0.0
    %5804 = vmatpush1.msra.mxu0 0.0
    %5805 = vmatprep.subr.mxu0 0.0
    %5806 = vmatpush1.msra.mxu0 0.0
    %5807 = vmatprep.subr.mxu0 0.0
    %5808 = vmatpush1.msra.mxu0 0.0
    %5809 = vmatprep.subr.mxu0 0.0
    %5810 = vmatpush1.msra.mxu0 0.0
    %5811 = vmatprep.subr.mxu0 0.0
    %5812 = vmatpush1.msra.mxu0 0.0
    %5813 = vmatprep.subr.mxu0 0.0
    %5814 = vmatpush1.msra.mxu0 0.0
    %5815 = vmatprep.subr.mxu0 0.0
    %5816 = vmatpush1.msra.mxu0 0.0
    %5817 = vmatprep.subr.mxu0 0.0
    %5818 = vmatpush1.msra.mxu0 0.0
    %5819 = vmatprep.subr.mxu0 0.0
    %5820 = vmatpush1.msra.mxu0 %v5787
    %5821 = vmatprep.subr.mxu0 0.0
    %5822 = vmatpush2.msra.mxu0 0.0
    %5823 = vmatprep.subr.mxu0 0.0
    %5824 = vmatpush2.msra.mxu0 0.0
    %5825 = vmatprep.subr.mxu0 0.0
    %5826 = vmatpush2.msra.mxu0 0.0
    %5827 = vmatprep.subr.mxu0 0.0
    %5828 = vmatpush2.msra.mxu0 0.0
    %5829 = vmatprep.subr.mxu0 0.0
    %5830 = vmatpush2.msra.mxu0 0.0
    %5831 = vmatprep.subr.mxu0 0.0
    %5832 = vmatpush2.msra.mxu0 0.0
    %5833 = vmatprep.subr.mxu0 0.0
    %5834 = vmatpush2.msra.mxu0 0.0
    %5835 = vmatprep.subr.mxu0 0.0
    %5836 = vmatpush2.msra.mxu0 0.0
    %5837 = vmatprep.subr.mxu0 0.0
    %5838 = vmatpush2.msra.mxu0 0.0
    %5839 = vmatprep.subr.mxu0 0.0
    %5840 = vmatpush2.msra.mxu0 0.0
    %5841 = vmatprep.subr.mxu0 0.0
    %5842 = vmatpush2.msra.mxu0 0.0
    %5843 = vmatprep.subr.mxu0 0.0
    %5844 = vmatpush2.msra.mxu0 0.0
    %5845 = vmatprep.subr.mxu0 0.0
    %5846 = vmatpush2.msra.mxu0 0.0
    %5847 = vmatprep.subr.mxu0 0.0
    %5848 = vmatpush2.msra.mxu0 0.0
    %5849 = vmatprep.subr.mxu0 0.0
    %5850 = vmatpush2.msra.mxu0 0.0
    %5851 = vmatprep.subr.mxu0 0.0
    %5852 = vmatpush2.msra.mxu0 0.0
    %5853 = vmatprep.mubr.f32.mxu0 0.0
    %5854 = vmatmul.mubr.f32.gmra.mxu0 %v5784
    %v5855 = vpop.f32.mrf.mxu0
    %v5856 = vadd.f32 0.0, %v5855
    %v5857 = vpop.f32.mrf.mxu0
    %5858 = vdwg.mxu0
    %v5859 = vadd.f32 %v5774, %v5856
    %v5860 = vld [vmem:[#allocation2 + $0x20] sm:$0x1]
    %v5861 = vld [vmem:[#allocation2 + $0x51] sm:$0x1]
    %v5863 = vrot.slane %v5861, 7
    %v5865 = vsel %vm4335, %v5860, %v5863
    %s5866 = scalar_lea.vmem %s8, 144
    %v5867 = vld [vmem:[%s5866] sm:$0x3f]
    %v5869 = vsel %vm1011, %v5865, 0
    %v5872 = vsel %vm1095, %v5867, 0
    %5874 = vmatprep.subr.mxu0 0.0
    %5875 = vmatpush1.msra.mxu0 0.0
    %5876 = vmatprep.subr.mxu0 0.0
    %5877 = vmatpush1.msra.mxu0 0.0
    %5878 = vmatprep.subr.mxu0 0.0
    %5879 = vmatpush1.msra.mxu0 0.0
    %5880 = vmatprep.subr.mxu0 0.0
    %5881 = vmatpush1.msra.mxu0 0.0
    %5882 = vmatprep.subr.mxu0 0.0
    %5883 = vmatpush1.msra.mxu0 0.0
    %5884 = vmatprep.subr.mxu0 0.0
    %5885 = vmatpush1.msra.mxu0 0.0
    %5886 = vmatprep.subr.mxu0 0.0
    %5887 = vmatpush1.msra.mxu0 0.0
    %5888 = vmatprep.subr.mxu0 0.0
    %5889 = vmatpush1.msra.mxu0 0.0
    %5890 = vmatprep.subr.mxu0 0.0
    %5891 = vmatpush1.msra.mxu0 0.0
    %5892 = vmatprep.subr.mxu0 0.0
    %5893 = vmatpush1.msra.mxu0 0.0
    %5894 = vmatprep.subr.mxu0 0.0
    %5895 = vmatpush1.msra.mxu0 0.0
    %5896 = vmatprep.subr.mxu0 0.0
    %5897 = vmatpush1.msra.mxu0 0.0
    %5898 = vmatprep.subr.mxu0 0.0
    %5899 = vmatpush1.msra.mxu0 0.0
    %5900 = vmatprep.subr.mxu0 0.0
    %5901 = vmatpush1.msra.mxu0 0.0
    %5902 = vmatprep.subr.mxu0 0.0
    %5903 = vmatpush1.msra.mxu0 0.0
    %5904 = vmatprep.subr.mxu0 0.0
    %5905 = vmatpush1.msra.mxu0 %v5872
    %5906 = vmatprep.subr.mxu0 0.0
    %5907 = vmatpush2.msra.mxu0 0.0
    %5908 = vmatprep.subr.mxu0 0.0
    %5909 = vmatpush2.msra.mxu0 0.0
    %5910 = vmatprep.subr.mxu0 0.0
    %5911 = vmatpush2.msra.mxu0 0.0
    %5912 = vmatprep.subr.mxu0 0.0
    %5913 = vmatpush2.msra.mxu0 0.0
    %5914 = vmatprep.subr.mxu0 0.0
    %5915 = vmatpush2.msra.mxu0 0.0
    %5916 = vmatprep.subr.mxu0 0.0
    %5917 = vmatpush2.msra.mxu0 0.0
    %5918 = vmatprep.subr.mxu0 0.0
    %5919 = vmatpush2.msra.mxu0 0.0
    %5920 = vmatprep.subr.mxu0 0.0
    %5921 = vmatpush2.msra.mxu0 0.0
    %5922 = vmatprep.subr.mxu0 0.0
    %5923 = vmatpush2.msra.mxu0 0.0
    %5924 = vmatprep.subr.mxu0 0.0
    %5925 = vmatpush2.msra.mxu0 0.0
    %5926 = vmatprep.subr.mxu0 0.0
    %5927 = vmatpush2.msra.mxu0 0.0
    %5928 = vmatprep.subr.mxu0 0.0
    %5929 = vmatpush2.msra.mxu0 0.0
    %5930 = vmatprep.subr.mxu0 0.0
    %5931 = vmatpush2.msra.mxu0 0.0
    %5932 = vmatprep.subr.mxu0 0.0
    %5933 = vmatpush2.msra.mxu0 0.0
    %5934 = vmatprep.subr.mxu0 0.0
    %5935 = vmatpush2.msra.mxu0 0.0
    %5936 = vmatprep.subr.mxu0 0.0
    %5937 = vmatpush2.msra.mxu0 0.0
    %5938 = vmatprep.mubr.f32.mxu0 0.0
    %5939 = vmatmul.mubr.f32.gmra.mxu0 %v5869
    %v5940 = vpop.f32.mrf.mxu0
    %v5941 = vadd.f32 0.0, %v5940
    %v5942 = vpop.f32.mrf.mxu0
    %5943 = vdwg.mxu0
    %v5944 = vadd.f32 %v5859, %v5941
    %v5945 = vld [vmem:[#allocation2 + $0x21] sm:$0x1]
    %v5946 = vld [vmem:[#allocation2 + $0x52] sm:$0x1]
    %v5948 = vrot.slane %v5946, 7
    %v5950 = vsel %vm4335, %v5945, %v5948
    %s5951 = scalar_lea.vmem %s8, 152
    %v5952 = vld [vmem:[%s5951] sm:$0x3f]
    %v5954 = vsel %vm1011, %v5950, 0
    %v5957 = vsel %vm1095, %v5952, 0
    %5959 = vmatprep.subr.mxu0 0.0
    %5960 = vmatpush1.msra.mxu0 0.0
    %5961 = vmatprep.subr.mxu0 0.0
    %5962 = vmatpush1.msra.mxu0 0.0
    %5963 = vmatprep.subr.mxu0 0.0
    %5964 = vmatpush1.msra.mxu0 0.0
    %5965 = vmatprep.subr.mxu0 0.0
    %5966 = vmatpush1.msra.mxu0 0.0
    %5967 = vmatprep.subr.mxu0 0.0
    %5968 = vmatpush1.msra.mxu0 0.0
    %5969 = vmatprep.subr.mxu0 0.0
    %5970 = vmatpush1.msra.mxu0 0.0
    %5971 = vmatprep.subr.mxu0 0.0
    %5972 = vmatpush1.msra.mxu0 0.0
    %5973 = vmatprep.subr.mxu0 0.0
    %5974 = vmatpush1.msra.mxu0 0.0
    %5975 = vmatprep.subr.mxu0 0.0
    %5976 = vmatpush1.msra.mxu0 0.0
    %5977 = vmatprep.subr.mxu0 0.0
    %5978 = vmatpush1.msra.mxu0 0.0
    %5979 = vmatprep.subr.mxu0 0.0
    %5980 = vmatpush1.msra.mxu0 0.0
    %5981 = vmatprep.subr.mxu0 0.0
    %5982 = vmatpush1.msra.mxu0 0.0
    %5983 = vmatprep.subr.mxu0 0.0
    %5984 = vmatpush1.msra.mxu0 0.0
    %5985 = vmatprep.subr.mxu0 0.0
    %5986 = vmatpush1.msra.mxu0 0.0
    %5987 = vmatprep.subr.mxu0 0.0
    %5988 = vmatpush1.msra.mxu0 0.0
    %5989 = vmatprep.subr.mxu0 0.0
    %5990 = vmatpush1.msra.mxu0 %v5957
    %5991 = vmatprep.subr.mxu0 0.0
    %5992 = vmatpush2.msra.mxu0 0.0
    %5993 = vmatprep.subr.mxu0 0.0
    %5994 = vmatpush2.msra.mxu0 0.0
    %5995 = vmatprep.subr.mxu0 0.0
    %5996 = vmatpush2.msra.mxu0 0.0
    %5997 = vmatprep.subr.mxu0 0.0
    %5998 = vmatpush2.msra.mxu0 0.0
    %5999 = vmatprep.subr.mxu0 0.0
    %6000 = vmatpush2.msra.mxu0 0.0
    %6001 = vmatprep.subr.mxu0 0.0
    %6002 = vmatpush2.msra.mxu0 0.0
    %6003 = vmatprep.subr.mxu0 0.0
    %6004 = vmatpush2.msra.mxu0 0.0
    %6005 = vmatprep.subr.mxu0 0.0
    %6006 = vmatpush2.msra.mxu0 0.0
    %6007 = vmatprep.subr.mxu0 0.0
    %6008 = vmatpush2.msra.mxu0 0.0
    %6009 = vmatprep.subr.mxu0 0.0
    %6010 = vmatpush2.msra.mxu0 0.0
    %6011 = vmatprep.subr.mxu0 0.0
    %6012 = vmatpush2.msra.mxu0 0.0
    %6013 = vmatprep.subr.mxu0 0.0
    %6014 = vmatpush2.msra.mxu0 0.0
    %6015 = vmatprep.subr.mxu0 0.0
    %6016 = vmatpush2.msra.mxu0 0.0
    %6017 = vmatprep.subr.mxu0 0.0
    %6018 = vmatpush2.msra.mxu0 0.0
    %6019 = vmatprep.subr.mxu0 0.0
    %6020 = vmatpush2.msra.mxu0 0.0
    %6021 = vmatprep.subr.mxu0 0.0
    %6022 = vmatpush2.msra.mxu0 0.0
    %6023 = vmatprep.mubr.f32.mxu0 0.0
    %6024 = vmatmul.mubr.f32.gmra.mxu0 %v5954
    %v6025 = vpop.f32.mrf.mxu0
    %v6026 = vadd.f32 0.0, %v6025
    %v6027 = vpop.f32.mrf.mxu0
    %6028 = vdwg.mxu0
    %v6029 = vadd.f32 %v5944, %v6026
    %v6030 = vld [vmem:[#allocation2 + $0x24] sm:$0x1]
    %v6031 = vld [vmem:[#allocation2 + $0x55] sm:$0x1]
    %v6033 = vrot.slane %v6031, 7
    %v6035 = vsel %vm4335, %v6030, %v6033
    %s6036 = scalar_lea.vmem %s8, 160
    %v6037 = vld [vmem:[%s6036] sm:$0x3f]
    %v6039 = vsel %vm1011, %v6035, 0
    %v6042 = vsel %vm1095, %v6037, 0
    %6044 = vmatprep.subr.mxu0 0.0
    %6045 = vmatpush1.msra.mxu0 0.0
    %6046 = vmatprep.subr.mxu0 0.0
    %6047 = vmatpush1.msra.mxu0 0.0
    %6048 = vmatprep.subr.mxu0 0.0
    %6049 = vmatpush1.msra.mxu0 0.0
    %6050 = vmatprep.subr.mxu0 0.0
    %6051 = vmatpush1.msra.mxu0 0.0
    %6052 = vmatprep.subr.mxu0 0.0
    %6053 = vmatpush1.msra.mxu0 0.0
    %6054 = vmatprep.subr.mxu0 0.0
    %6055 = vmatpush1.msra.mxu0 0.0
    %6056 = vmatprep.subr.mxu0 0.0
    %6057 = vmatpush1.msra.mxu0 0.0
    %6058 = vmatprep.subr.mxu0 0.0
    %6059 = vmatpush1.msra.mxu0 0.0
    %6060 = vmatprep.subr.mxu0 0.0
    %6061 = vmatpush1.msra.mxu0 0.0
    %6062 = vmatprep.subr.mxu0 0.0
    %6063 = vmatpush1.msra.mxu0 0.0
    %6064 = vmatprep.subr.mxu0 0.0
    %6065 = vmatpush1.msra.mxu0 0.0
    %6066 = vmatprep.subr.mxu0 0.0
    %6067 = vmatpush1.msra.mxu0 0.0
    %6068 = vmatprep.subr.mxu0 0.0
    %6069 = vmatpush1.msra.mxu0 0.0
    %6070 = vmatprep.subr.mxu0 0.0
    %6071 = vmatpush1.msra.mxu0 0.0
    %6072 = vmatprep.subr.mxu0 0.0
    %6073 = vmatpush1.msra.mxu0 0.0
    %6074 = vmatprep.subr.mxu0 0.0
    %6075 = vmatpush1.msra.mxu0 %v6042
    %6076 = vmatprep.subr.mxu0 0.0
    %6077 = vmatpush2.msra.mxu0 0.0
    %6078 = vmatprep.subr.mxu0 0.0
    %6079 = vmatpush2.msra.mxu0 0.0
    %6080 = vmatprep.subr.mxu0 0.0
    %6081 = vmatpush2.msra.mxu0 0.0
    %6082 = vmatprep.subr.mxu0 0.0
    %6083 = vmatpush2.msra.mxu0 0.0
    %6084 = vmatprep.subr.mxu0 0.0
    %6085 = vmatpush2.msra.mxu0 0.0
    %6086 = vmatprep.subr.mxu0 0.0
    %6087 = vmatpush2.msra.mxu0 0.0
    %6088 = vmatprep.subr.mxu0 0.0
    %6089 = vmatpush2.msra.mxu0 0.0
    %6090 = vmatprep.subr.mxu0 0.0
    %6091 = vmatpush2.msra.mxu0 0.0
    %6092 = vmatprep.subr.mxu0 0.0
    %6093 = vmatpush2.msra.mxu0 0.0
    %6094 = vmatprep.subr.mxu0 0.0
    %6095 = vmatpush2.msra.mxu0 0.0
    %6096 = vmatprep.subr.mxu0 0.0
    %6097 = vmatpush2.msra.mxu0 0.0
    %6098 = vmatprep.subr.mxu0 0.0
    %6099 = vmatpush2.msra.mxu0 0.0
    %6100 = vmatprep.subr.mxu0 0.0
    %6101 = vmatpush2.msra.mxu0 0.0
    %6102 = vmatprep.subr.mxu0 0.0
    %6103 = vmatpush2.msra.mxu0 0.0
    %6104 = vmatprep.subr.mxu0 0.0
    %6105 = vmatpush2.msra.mxu0 0.0
    %6106 = vmatprep.subr.mxu0 0.0
    %6107 = vmatpush2.msra.mxu0 0.0
    %6108 = vmatprep.mubr.f32.mxu0 0.0
    %6109 = vmatmul.mubr.f32.gmra.mxu0 %v6039
    %v6110 = vpop.f32.mrf.mxu0
    %v6111 = vadd.f32 0.0, %v6110
    %v6112 = vpop.f32.mrf.mxu0
    %6113 = vdwg.mxu0
    %v6114 = vadd.f32 %v6029, %v6111
    %v6115 = vld [vmem:[#allocation2 + $0x25] sm:$0x1]
    %v6116 = vld [vmem:[#allocation2 + $0x56] sm:$0x1]
    %v6118 = vrot.slane %v6116, 7
    %v6120 = vsel %vm4335, %v6115, %v6118
    %s6121 = scalar_lea.vmem %s8, 168
    %v6122 = vld [vmem:[%s6121] sm:$0x3f]
    %v6124 = vsel %vm1011, %v6120, 0
    %v6127 = vsel %vm1095, %v6122, 0
    %6129 = vmatprep.subr.mxu0 0.0
    %6130 = vmatpush1.msra.mxu0 0.0
    %6131 = vmatprep.subr.mxu0 0.0
    %6132 = vmatpush1.msra.mxu0 0.0
    %6133 = vmatprep.subr.mxu0 0.0
    %6134 = vmatpush1.msra.mxu0 0.0
    %6135 = vmatprep.subr.mxu0 0.0
    %6136 = vmatpush1.msra.mxu0 0.0
    %6137 = vmatprep.subr.mxu0 0.0
    %6138 = vmatpush1.msra.mxu0 0.0
    %6139 = vmatprep.subr.mxu0 0.0
    %6140 = vmatpush1.msra.mxu0 0.0
    %6141 = vmatprep.subr.mxu0 0.0
    %6142 = vmatpush1.msra.mxu0 0.0
    %6143 = vmatprep.subr.mxu0 0.0
    %6144 = vmatpush1.msra.mxu0 0.0
    %6145 = vmatprep.subr.mxu0 0.0
    %6146 = vmatpush1.msra.mxu0 0.0
    %6147 = vmatprep.subr.mxu0 0.0
    %6148 = vmatpush1.msra.mxu0 0.0
    %6149 = vmatprep.subr.mxu0 0.0
    %6150 = vmatpush1.msra.mxu0 0.0
    %6151 = vmatprep.subr.mxu0 0.0
    %6152 = vmatpush1.msra.mxu0 0.0
    %6153 = vmatprep.subr.mxu0 0.0
    %6154 = vmatpush1.msra.mxu0 0.0
    %6155 = vmatprep.subr.mxu0 0.0
    %6156 = vmatpush1.msra.mxu0 0.0
    %6157 = vmatprep.subr.mxu0 0.0
    %6158 = vmatpush1.msra.mxu0 0.0
    %6159 = vmatprep.subr.mxu0 0.0
    %6160 = vmatpush1.msra.mxu0 %v6127
    %6161 = vmatprep.subr.mxu0 0.0
    %6162 = vmatpush2.msra.mxu0 0.0
    %6163 = vmatprep.subr.mxu0 0.0
    %6164 = vmatpush2.msra.mxu0 0.0
    %6165 = vmatprep.subr.mxu0 0.0
    %6166 = vmatpush2.msra.mxu0 0.0
    %6167 = vmatprep.subr.mxu0 0.0
    %6168 = vmatpush2.msra.mxu0 0.0
    %6169 = vmatprep.subr.mxu0 0.0
    %6170 = vmatpush2.msra.mxu0 0.0
    %6171 = vmatprep.subr.mxu0 0.0
    %6172 = vmatpush2.msra.mxu0 0.0
    %6173 = vmatprep.subr.mxu0 0.0
    %6174 = vmatpush2.msra.mxu0 0.0
    %6175 = vmatprep.subr.mxu0 0.0
    %6176 = vmatpush2.msra.mxu0 0.0
    %6177 = vmatprep.subr.mxu0 0.0
    %6178 = vmatpush2.msra.mxu0 0.0
    %6179 = vmatprep.subr.mxu0 0.0
    %6180 = vmatpush2.msra.mxu0 0.0
    %6181 = vmatprep.subr.mxu0 0.0
    %6182 = vmatpush2.msra.mxu0 0.0
    %6183 = vmatprep.subr.mxu0 0.0
    %6184 = vmatpush2.msra.mxu0 0.0
    %6185 = vmatprep.subr.mxu0 0.0
    %6186 = vmatpush2.msra.mxu0 0.0
    %6187 = vmatprep.subr.mxu0 0.0
    %6188 = vmatpush2.msra.mxu0 0.0
    %6189 = vmatprep.subr.mxu0 0.0
    %6190 = vmatpush2.msra.mxu0 0.0
    %6191 = vmatprep.subr.mxu0 0.0
    %6192 = vmatpush2.msra.mxu0 0.0
    %6193 = vmatprep.mubr.f32.mxu0 0.0
    %6194 = vmatmul.mubr.f32.gmra.mxu0 %v6124
    %v6195 = vpop.f32.mrf.mxu0
    %v6196 = vadd.f32 0.0, %v6195
    %v6197 = vpop.f32.mrf.mxu0
    %6198 = vdwg.mxu0
    %v6199 = vadd.f32 %v6114, %v6196
    %v6200 = vld [vmem:[#allocation2 + $0x26] sm:$0x1]
    %v6201 = vld [vmem:[#allocation2 + $0x57] sm:$0x1]
    %v6203 = vrot.slane %v6201, 7
    %v6205 = vsel %vm4335, %v6200, %v6203
    %s6206 = scalar_lea.vmem %s8, 176
    %v6207 = vld [vmem:[%s6206] sm:$0x3f]
    %v6209 = vsel %vm1011, %v6205, 0
    %v6212 = vsel %vm1095, %v6207, 0
    %6214 = vmatprep.subr.mxu0 0.0
    %6215 = vmatpush1.msra.mxu0 0.0
    %6216 = vmatprep.subr.mxu0 0.0
    %6217 = vmatpush1.msra.mxu0 0.0
    %6218 = vmatprep.subr.mxu0 0.0
    %6219 = vmatpush1.msra.mxu0 0.0
    %6220 = vmatprep.subr.mxu0 0.0
    %6221 = vmatpush1.msra.mxu0 0.0
    %6222 = vmatprep.subr.mxu0 0.0
    %6223 = vmatpush1.msra.mxu0 0.0
    %6224 = vmatprep.subr.mxu0 0.0
    %6225 = vmatpush1.msra.mxu0 0.0
    %6226 = vmatprep.subr.mxu0 0.0
    %6227 = vmatpush1.msra.mxu0 0.0
    %6228 = vmatprep.subr.mxu0 0.0
    %6229 = vmatpush1.msra.mxu0 0.0
    %6230 = vmatprep.subr.mxu0 0.0
    %6231 = vmatpush1.msra.mxu0 0.0
    %6232 = vmatprep.subr.mxu0 0.0
    %6233 = vmatpush1.msra.mxu0 0.0
    %6234 = vmatprep.subr.mxu0 0.0
    %6235 = vmatpush1.msra.mxu0 0.0
    %6236 = vmatprep.subr.mxu0 0.0
    %6237 = vmatpush1.msra.mxu0 0.0
    %6238 = vmatprep.subr.mxu0 0.0
    %6239 = vmatpush1.msra.mxu0 0.0
    %6240 = vmatprep.subr.mxu0 0.0
    %6241 = vmatpush1.msra.mxu0 0.0
    %6242 = vmatprep.subr.mxu0 0.0
    %6243 = vmatpush1.msra.mxu0 0.0
    %6244 = vmatprep.subr.mxu0 0.0
    %6245 = vmatpush1.msra.mxu0 %v6212
    %6246 = vmatprep.subr.mxu0 0.0
    %6247 = vmatpush2.msra.mxu0 0.0
    %6248 = vmatprep.subr.mxu0 0.0
    %6249 = vmatpush2.msra.mxu0 0.0
    %6250 = vmatprep.subr.mxu0 0.0
    %6251 = vmatpush2.msra.mxu0 0.0
    %6252 = vmatprep.subr.mxu0 0.0
    %6253 = vmatpush2.msra.mxu0 0.0
    %6254 = vmatprep.subr.mxu0 0.0
    %6255 = vmatpush2.msra.mxu0 0.0
    %6256 = vmatprep.subr.mxu0 0.0
    %6257 = vmatpush2.msra.mxu0 0.0
    %6258 = vmatprep.subr.mxu0 0.0
    %6259 = vmatpush2.msra.mxu0 0.0
    %6260 = vmatprep.subr.mxu0 0.0
    %6261 = vmatpush2.msra.mxu0 0.0
    %6262 = vmatprep.subr.mxu0 0.0
    %6263 = vmatpush2.msra.mxu0 0.0
    %6264 = vmatprep.subr.mxu0 0.0
    %6265 = vmatpush2.msra.mxu0 0.0
    %6266 = vmatprep.subr.mxu0 0.0
    %6267 = vmatpush2.msra.mxu0 0.0
    %6268 = vmatprep.subr.mxu0 0.0
    %6269 = vmatpush2.msra.mxu0 0.0
    %6270 = vmatprep.subr.mxu0 0.0
    %6271 = vmatpush2.msra.mxu0 0.0
    %6272 = vmatprep.subr.mxu0 0.0
    %6273 = vmatpush2.msra.mxu0 0.0
    %6274 = vmatprep.subr.mxu0 0.0
    %6275 = vmatpush2.msra.mxu0 0.0
    %6276 = vmatprep.subr.mxu0 0.0
    %6277 = vmatpush2.msra.mxu0 0.0
    %6278 = vmatprep.mubr.f32.mxu0 0.0
    %6279 = vmatmul.mubr.f32.gmra.mxu0 %v6209
    %v6280 = vpop.f32.mrf.mxu0
    %v6281 = vadd.f32 0.0, %v6280
    %v6282 = vpop.f32.mrf.mxu0
    %6283 = vdwg.mxu0
    %v6284 = vadd.f32 %v6199, %v6281
    %v6285 = vld [vmem:[#allocation2 + $0x27] sm:$0x1]
    %v6286 = vld [vmem:[#allocation2 + $0x58] sm:$0x1]
    %v6288 = vrot.slane %v6286, 7
    %v6290 = vsel %vm4335, %v6285, %v6288
    %s6291 = scalar_lea.vmem %s8, 184
    %v6292 = vld [vmem:[%s6291] sm:$0x3f]
    %v6294 = vsel %vm1011, %v6290, 0
    %v6297 = vsel %vm1095, %v6292, 0
    %6299 = vmatprep.subr.mxu0 0.0
    %6300 = vmatpush1.msra.mxu0 0.0
    %6301 = vmatprep.subr.mxu0 0.0
    %6302 = vmatpush1.msra.mxu0 0.0
    %6303 = vmatprep.subr.mxu0 0.0
    %6304 = vmatpush1.msra.mxu0 0.0
    %6305 = vmatprep.subr.mxu0 0.0
    %6306 = vmatpush1.msra.mxu0 0.0
    %6307 = vmatprep.subr.mxu0 0.0
    %6308 = vmatpush1.msra.mxu0 0.0
    %6309 = vmatprep.subr.mxu0 0.0
    %6310 = vmatpush1.msra.mxu0 0.0
    %6311 = vmatprep.subr.mxu0 0.0
    %6312 = vmatpush1.msra.mxu0 0.0
    %6313 = vmatprep.subr.mxu0 0.0
    %6314 = vmatpush1.msra.mxu0 0.0
    %6315 = vmatprep.subr.mxu0 0.0
    %6316 = vmatpush1.msra.mxu0 0.0
    %6317 = vmatprep.subr.mxu0 0.0
    %6318 = vmatpush1.msra.mxu0 0.0
    %6319 = vmatprep.subr.mxu0 0.0
    %6320 = vmatpush1.msra.mxu0 0.0
    %6321 = vmatprep.subr.mxu0 0.0
    %6322 = vmatpush1.msra.mxu0 0.0
    %6323 = vmatprep.subr.mxu0 0.0
    %6324 = vmatpush1.msra.mxu0 0.0
    %6325 = vmatprep.subr.mxu0 0.0
    %6326 = vmatpush1.msra.mxu0 0.0
    %6327 = vmatprep.subr.mxu0 0.0
    %6328 = vmatpush1.msra.mxu0 0.0
    %6329 = vmatprep.subr.mxu0 0.0
    %6330 = vmatpush1.msra.mxu0 %v6297
    %6331 = vmatprep.subr.mxu0 0.0
    %6332 = vmatpush2.msra.mxu0 0.0
    %6333 = vmatprep.subr.mxu0 0.0
    %6334 = vmatpush2.msra.mxu0 0.0
    %6335 = vmatprep.subr.mxu0 0.0
    %6336 = vmatpush2.msra.mxu0 0.0
    %6337 = vmatprep.subr.mxu0 0.0
    %6338 = vmatpush2.msra.mxu0 0.0
    %6339 = vmatprep.subr.mxu0 0.0
    %6340 = vmatpush2.msra.mxu0 0.0
    %6341 = vmatprep.subr.mxu0 0.0
    %6342 = vmatpush2.msra.mxu0 0.0
    %6343 = vmatprep.subr.mxu0 0.0
    %6344 = vmatpush2.msra.mxu0 0.0
    %6345 = vmatprep.subr.mxu0 0.0
    %6346 = vmatpush2.msra.mxu0 0.0
    %6347 = vmatprep.subr.mxu0 0.0
    %6348 = vmatpush2.msra.mxu0 0.0
    %6349 = vmatprep.subr.mxu0 0.0
    %6350 = vmatpush2.msra.mxu0 0.0
    %6351 = vmatprep.subr.mxu0 0.0
    %6352 = vmatpush2.msra.mxu0 0.0
    %6353 = vmatprep.subr.mxu0 0.0
    %6354 = vmatpush2.msra.mxu0 0.0
    %6355 = vmatprep.subr.mxu0 0.0
    %6356 = vmatpush2.msra.mxu0 0.0
    %6357 = vmatprep.subr.mxu0 0.0
    %6358 = vmatpush2.msra.mxu0 0.0
    %6359 = vmatprep.subr.mxu0 0.0
    %6360 = vmatpush2.msra.mxu0 0.0
    %6361 = vmatprep.subr.mxu0 0.0
    %6362 = vmatpush2.msra.mxu0 0.0
    %6363 = vmatprep.mubr.f32.mxu0 0.0
    %6364 = vmatmul.mubr.f32.gmra.mxu0 %v6294
    %v6365 = vpop.f32.mrf.mxu0
    %v6366 = vadd.f32 0.0, %v6365
    %v6367 = vpop.f32.mrf.mxu0
    %6368 = vdwg.mxu0
    %v6369 = vadd.f32 %v6284, %v6366
    %v6370 = vld [vmem:[#allocation2 + $0x28] sm:$0x1]
    %v6371 = vld [vmem:[#allocation2 + $0x59] sm:$0x1]
    %v6373 = vrot.slane %v6371, 7
    %v6375 = vsel %vm4335, %v6370, %v6373
    %s6376 = scalar_lea.vmem %s8, 192
    %v6377 = vld [vmem:[%s6376] sm:$0x3f]
    %v6379 = vsel %vm1011, %v6375, 0
    %v6382 = vsel %vm1095, %v6377, 0
    %6384 = vmatprep.subr.mxu0 0.0
    %6385 = vmatpush1.msra.mxu0 0.0
    %6386 = vmatprep.subr.mxu0 0.0
    %6387 = vmatpush1.msra.mxu0 0.0
    %6388 = vmatprep.subr.mxu0 0.0
    %6389 = vmatpush1.msra.mxu0 0.0
    %6390 = vmatprep.subr.mxu0 0.0
    %6391 = vmatpush1.msra.mxu0 0.0
    %6392 = vmatprep.subr.mxu0 0.0
    %6393 = vmatpush1.msra.mxu0 0.0
    %6394 = vmatprep.subr.mxu0 0.0
    %6395 = vmatpush1.msra.mxu0 0.0
    %6396 = vmatprep.subr.mxu0 0.0
    %6397 = vmatpush1.msra.mxu0 0.0
    %6398 = vmatprep.subr.mxu0 0.0
    %6399 = vmatpush1.msra.mxu0 0.0
    %6400 = vmatprep.subr.mxu0 0.0
    %6401 = vmatpush1.msra.mxu0 0.0
    %6402 = vmatprep.subr.mxu0 0.0
    %6403 = vmatpush1.msra.mxu0 0.0
    %6404 = vmatprep.subr.mxu0 0.0
    %6405 = vmatpush1.msra.mxu0 0.0
    %6406 = vmatprep.subr.mxu0 0.0
    %6407 = vmatpush1.msra.mxu0 0.0
    %6408 = vmatprep.subr.mxu0 0.0
    %6409 = vmatpush1.msra.mxu0 0.0
    %6410 = vmatprep.subr.mxu0 0.0
    %6411 = vmatpush1.msra.mxu0 0.0
    %6412 = vmatprep.subr.mxu0 0.0
    %6413 = vmatpush1.msra.mxu0 0.0
    %6414 = vmatprep.subr.mxu0 0.0
    %6415 = vmatpush1.msra.mxu0 %v6382
    %6416 = vmatprep.subr.mxu0 0.0
    %6417 = vmatpush2.msra.mxu0 0.0
    %6418 = vmatprep.subr.mxu0 0.0
    %6419 = vmatpush2.msra.mxu0 0.0
    %6420 = vmatprep.subr.mxu0 0.0
    %6421 = vmatpush2.msra.mxu0 0.0
    %6422 = vmatprep.subr.mxu0 0.0
    %6423 = vmatpush2.msra.mxu0 0.0
    %6424 = vmatprep.subr.mxu0 0.0
    %6425 = vmatpush2.msra.mxu0 0.0
    %6426 = vmatprep.subr.mxu0 0.0
    %6427 = vmatpush2.msra.mxu0 0.0
    %6428 = vmatprep.subr.mxu0 0.0
    %6429 = vmatpush2.msra.mxu0 0.0
    %6430 = vmatprep.subr.mxu0 0.0
    %6431 = vmatpush2.msra.mxu0 0.0
    %6432 = vmatprep.subr.mxu0 0.0
    %6433 = vmatpush2.msra.mxu0 0.0
    %6434 = vmatprep.subr.mxu0 0.0
    %6435 = vmatpush2.msra.mxu0 0.0
    %6436 = vmatprep.subr.mxu0 0.0
    %6437 = vmatpush2.msra.mxu0 0.0
    %6438 = vmatprep.subr.mxu0 0.0
    %6439 = vmatpush2.msra.mxu0 0.0
    %6440 = vmatprep.subr.mxu0 0.0
    %6441 = vmatpush2.msra.mxu0 0.0
    %6442 = vmatprep.subr.mxu0 0.0
    %6443 = vmatpush2.msra.mxu0 0.0
    %6444 = vmatprep.subr.mxu0 0.0
    %6445 = vmatpush2.msra.mxu0 0.0
    %6446 = vmatprep.subr.mxu0 0.0
    %6447 = vmatpush2.msra.mxu0 0.0
    %6448 = vmatprep.mubr.f32.mxu0 0.0
    %6449 = vmatmul.mubr.f32.gmra.mxu0 %v6379
    %v6450 = vpop.f32.mrf.mxu0
    %v6451 = vadd.f32 0.0, %v6450
    %v6452 = vpop.f32.mrf.mxu0
    %6453 = vdwg.mxu0
    %v6454 = vadd.f32 %v6369, %v6451
    %v6455 = vmax.f32 %v6454, 0.0
    %v6456 = vld [vmem:[%s10] sm:$0xff]
    %v6457 = vld [vmem:[%s10 + $0x8] sm:$0xff]
    %v6458 = vld [vmem:[%s10 + $0x10] sm:$0xff]
    %v6459 = vld [vmem:[%s10 + $0x18] sm:$0xff]
    %v6460 = vld [vmem:[%s10 + $0x20] sm:$0xff]
    %v6461 = vld [vmem:[%s10 + $0x28] sm:$0xff]
    %v6462 = vld [vmem:[%s10 + $0x30] sm:$0xff]
    %v6463 = vld [vmem:[%s10 + $0x38] sm:$0xff]
    %v6464 = vld [vmem:[%s10 + $0x40] sm:$0xff]
    %v6465 = vld [vmem:[%s10 + $0x48] sm:$0xff]
    %v6466 = vld [vmem:[%s10 + $0x50] sm:$0xff]
    %v6467 = vld [vmem:[%s10 + $0x58] sm:$0xff]
    %v6468 = vld [vmem:[%s10 + $0x60] sm:$0xff]
    %v6469 = vld [vmem:[%s10 + $0x68] sm:$0xff]
    %v6470 = vld [vmem:[%s10 + $0x70] sm:$0xff]
    %v6471 = vld [vmem:[%s10 + $0x78] sm:$0xff]
    %v6472 = vld [vmem:[%s11] sm:$0x1]
    %v6474 = vlaneseq
    %v6475 = vshrl.u32 %v6474, 7
    %v6476 = vsub.s32 0, %v6475
    %v6477 = vrot.slane %v6472, %v6476
    %6479 = vmatprep.subr.mxu0 0.0
    %6480 = vmatpush1.msra.mxu0 %v6471
    %6481 = vmatprep.subr.mxu0 0.0
    %6482 = vmatpush1.msra.mxu0 %v6470
    %6483 = vmatprep.subr.mxu0 0.0
    %6484 = vmatpush1.msra.mxu0 %v6469
    %6485 = vmatprep.subr.mxu0 0.0
    %6486 = vmatpush1.msra.mxu0 %v6468
    %6487 = vmatprep.subr.mxu0 0.0
    %6488 = vmatpush1.msra.mxu0 %v6467
    %6489 = vmatprep.subr.mxu0 0.0
    %6490 = vmatpush1.msra.mxu0 %v6466
    %6491 = vmatprep.subr.mxu0 0.0
    %6492 = vmatpush1.msra.mxu0 %v6465
    %6493 = vmatprep.subr.mxu0 0.0
    %6494 = vmatpush1.msra.mxu0 %v6464
    %6495 = vmatprep.subr.mxu0 0.0
    %6496 = vmatpush1.msra.mxu0 %v6463
    %6497 = vmatprep.subr.mxu0 0.0
    %6498 = vmatpush1.msra.mxu0 %v6462
    %6499 = vmatprep.subr.mxu0 0.0
    %6500 = vmatpush1.msra.mxu0 %v6461
    %6501 = vmatprep.subr.mxu0 0.0
    %6502 = vmatpush1.msra.mxu0 %v6460
    %6503 = vmatprep.subr.mxu0 0.0
    %6504 = vmatpush1.msra.mxu0 %v6459
    %6505 = vmatprep.subr.mxu0 0.0
    %6506 = vmatpush1.msra.mxu0 %v6458
    %6507 = vmatprep.subr.mxu0 0.0
    %6508 = vmatpush1.msra.mxu0 %v6457
    %6509 = vmatprep.subr.mxu0 0.0
    %6510 = vmatpush1.msra.mxu0 %v6456
    %6511 = vmatprep.subr.mxu0 0.0
    %6512 = vmatpush2.msra.mxu0 0.0
    %6513 = vmatprep.subr.mxu0 0.0
    %6514 = vmatpush2.msra.mxu0 0.0
    %6515 = vmatprep.subr.mxu0 0.0
    %6516 = vmatpush2.msra.mxu0 0.0
    %6517 = vmatprep.subr.mxu0 0.0
    %6518 = vmatpush2.msra.mxu0 0.0
    %6519 = vmatprep.subr.mxu0 0.0
    %6520 = vmatpush2.msra.mxu0 0.0
    %6521 = vmatprep.subr.mxu0 0.0
    %6522 = vmatpush2.msra.mxu0 0.0
    %6523 = vmatprep.subr.mxu0 0.0
    %6524 = vmatpush2.msra.mxu0 0.0
    %6525 = vmatprep.subr.mxu0 0.0
    %6526 = vmatpush2.msra.mxu0 0.0
    %6527 = vmatprep.subr.mxu0 0.0
    %6528 = vmatpush2.msra.mxu0 0.0
    %6529 = vmatprep.subr.mxu0 0.0
    %6530 = vmatpush2.msra.mxu0 0.0
    %6531 = vmatprep.subr.mxu0 0.0
    %6532 = vmatpush2.msra.mxu0 0.0
    %6533 = vmatprep.subr.mxu0 0.0
    %6534 = vmatpush2.msra.mxu0 0.0
    %6535 = vmatprep.subr.mxu0 0.0
    %6536 = vmatpush2.msra.mxu0 0.0
    %6537 = vmatprep.subr.mxu0 0.0
    %6538 = vmatpush2.msra.mxu0 0.0
    %6539 = vmatprep.subr.mxu0 0.0
    %6540 = vmatpush2.msra.mxu0 0.0
    %6541 = vmatprep.subr.mxu0 0.0
    %6542 = vmatpush2.msra.mxu0 0.0
    %6543 = vmatprep.mubr.f32.mxu0 0.0
    %6544 = vmatmul.mubr.f32.gmra.mxu0 %v6455
    %v6545 = vpop.f32.mrf.mxu0
    %v6546 = vadd.f32 %v6477, %v6545
    %v6547 = vpop.f32.mrf.mxu0
    %6548 = vdwg.mxu0
    %v6549 = vmax.f32 %v6546, 0.0
    %vm6550 = vcmask 287744
    %6551 = vst.msk [vmem:[#allocation3] sm:$0x3] %vm6550, %v6549
    // Predicated region
    $region50: #{dqn_forward.1} parent=1 // pred_check
      _
    $region51: #{dqn_forward.1} parent=1 // pred_check_branch
      %6553 = sbr.rel (0) target = $region53
    $region52: #{dqn_forward.1} parent=1 // pred_region
      %s6555 = ssub.s32 32, 32
      %6556 = vsyncadd [#allocation4], %s6555
      %s6558 = sshll.u32 [#allocation3], 4
      %s6559 = int_to_ptr.vmem [resolvable:$true] %s6558
      %6561 = dma.vmem_to_hbm [thread:$0]  %s6559, 32, %s12, [#allocation4]
    $region53: #{dqn_forward.1} parent=1 // pred_fallthru
      _
    // Predicated region
    $region54: #{dqn_forward.1} parent=1 // pred_check
      _
    $region55: #{dqn_forward.1} parent=1 // pred_check_branch
      %6563 = sbr.rel (0) target = $region57
    $region56: #{dqn_forward.1} parent=1 // pred_region
      %6564 = dma.done [#allocation4], 32
    $region57: #{dqn_forward.1} parent=1 // pred_fallthru
      _
    %6565 = vsyncpa [#allocation4], 1

</llo_original>
